<compile_context>
chip_gen: v5e
topology: v5e:2x2
jax: 0.10.0
libtpu: 0.0.40
codegen_flags: <defaults>
</compile_context>

<pallas_src>
import jax
import jax.numpy as jnp
from jax.experimental import pallas as pl
from jax.experimental.pallas import tpu as pltpu


def _round_up(x, m):
    return -(-x // m) * m


def _vmem_limit_bytes(*buffer_bytes):
    need = int(sum(buffer_bytes))
    return int(min(32 * 1024 * 1024, max(8 * 1024 * 1024, need + need // 2)))


# ----------------------------------------------------------------------------
# Fused 3x3 "same" conv + bias + ReLU + 2x2/2 maxpool as ONE MXU matmul.
# ----------------------------------------------------------------------------
def _conv_pool_kernel(p_ref, w_ref, b_ref, o_ref):
    """
    p_ref: (Mblk, 16*Cin) bf16 super-patch.  Row m=(b,i,j), column
           (s*4+t)*Cin + c holds x_pad[b, 2i+s, 2j+t, c] for s,t in 0..3.
    w_ref: (16*Cin, 512) bf16 phase-blocked conv weight: columns
           [p*128, p*128+Cout) of pooling phase p=(dh,dw) carry w[s-dh, t-dw].
    b_ref: (1, 128) f32 bias, zero-padded past Cout.
    o_ref: (Mblk, 128) bf16 = relu(max_p conv_p + bias); columns >= Cout are 0.
    """
    y = jnp.dot(p_ref[...], w_ref[...], preferred_element_type=jnp.float32)
    # 4 pooling phases live in 4 aligned 128-lane groups -> pure VALU maxes.
    pooled = jnp.maximum(jnp.maximum(y[:, 0:128], y[:, 128:256]),
                         jnp.maximum(y[:, 256:384], y[:, 384:512]))
    # Bias is phase-invariant and ReLU monotone, so pooling first is exact.
    o_ref[...] = jnp.maximum(pooled + b_ref[...], 0.0).astype(o_ref.dtype)


def _im2col_superpatch(x_nhwc):
    """(B, H, W, Cin) -> (B*Hp*Wp, 16*Cin) bf16 patch matrix.

    Zero-FLOP layout plumbing kept in the XLA wrapper (per review): row
    (b, i, j) holds the 4x4 window x_pad[b, 2i:2i+4, 2j:2j+4, :] that covers
    all four 2x2-pool phases of the 3x3 "same" convolution.
    """
    B, H, W, Cin = x_nhwc.shape
    Hp, Wp = H // 2, W // 2
    xp = jnp.pad(x_nhwc, ((0, 0), (1, 1), (1, 1), (0, 0)))
    taps = [xp[:, s:s + 2 * Hp:2, t:t + 2 * Wp:2, :]
            for s in range(4) for t in range(4)]
    patch = jnp.stack(taps, axis=3)                      # (B, Hp, Wp, 16, Cin)
    return patch.reshape(B * Hp * Wp, 16 * Cin).astype(jnp.bfloat16)


def conv3x3_relu_pool(x_nhwc, w_super, b_pad, cout):
    B, H, W, Cin = x_nhwc.shape
    Hp, Wp = H // 2, W // 2
    K = 16 * Cin
    patch = _im2col_superpatch(x_nhwc)                   # (Mtot, K) bf16
    Mtot = B * Hp * Wp
    # >= 2 grid steps when possible (v7x megacore); rows a multiple of 8.
    Mblk = min(2048, max(8, _round_up(pl.cdiv(Mtot, 2), 8)))
    Mpad = _round_up(Mtot, Mblk)
    if Mpad != Mtot:
        patch = jnp.pad(patch, ((0, Mpad - Mtot), (0, 0)))
    vmem = _vmem_limit_bytes(
        2 * Mblk * _round_up(K, 128) * 2,   # patch block, double-buffered
        2 * K * 512 * 2,                    # resident weight
        2 * Mblk * 128 * 2,                 # output block
        4 * 128 * 4)                        # bias
    out = pl.pallas_call(
        _conv_pool_kernel,
        out_shape=jax.ShapeDtypeStruct((Mpad, 128), jnp.bfloat16),
        grid=(Mpad // Mblk,),
        in_specs=[
            pl.BlockSpec((Mblk, K), lambda i: (i, 0)),
            pl.BlockSpec((K, 512), lambda i: (0, 0)),    # resident weight
            pl.BlockSpec((1, 128), lambda i: (0, 0)),
        ],
        out_specs=pl.BlockSpec((Mblk, 128), lambda i: (i, 0)),
        compiler_params=pltpu.CompilerParams(
            dimension_semantics=("parallel",), vmem_limit_bytes=vmem),
    )(patch, w_super, b_pad)
    # Free-ish HBM view back to feature-map layout (columns >= cout are zero).
    return out[:Mtot, :cout].reshape(B, Hp, Wp, cout)


# ----------------------------------------------------------------------------
# Fused fc1 -> relu -> fc2 kernel, tiled over batch rows; weights resident.
# ----------------------------------------------------------------------------
def _mlp_kernel(x_ref, w1_ref, b1_ref, w2_ref, b2_ref, o_ref):
    h = jnp.dot(x_ref[...], w1_ref[...], preferred_element_type=jnp.float32)
    h = jnp.maximum(h + b1_ref[...], 0.0)
    o_ref[...] = (jnp.dot(h, w2_ref[...], preferred_element_type=jnp.float32)
                  + b2_ref[...]).astype(o_ref.dtype)


def mlp(x_bf16, w1, b1, w2p, b2p):
    B, D = x_bf16.shape
    Nh = w1.shape[1]           # 512
    No = w2p.shape[1]          # 128 (full lane group; sliced to 10 outside)
    Bm = min(256, max(8, _round_up(pl.cdiv(B, 2), 8)))   # >=2 steps for B>=16
    Bpad = _round_up(B, Bm)
    if Bpad != B:
        x_bf16 = jnp.pad(x_bf16, ((0, Bpad - B), (0, 0)))
    vmem = _vmem_limit_bytes(2 * Bm * D * 2, 2 * D * Nh * 2, 2 * Nh * No * 4,
                             2 * Bm * No * 4, 2 * (Nh + No) * 4)
    out = pl.pallas_call(
        _mlp_kernel,
        out_shape=jax.ShapeDtypeStruct((Bpad, No), jnp.float32),
        grid=(Bpad // Bm,),
        in_specs=[
            pl.BlockSpec((Bm, D), lambda i: (i, 0)),     # bf16 activation tile
            pl.BlockSpec((D, Nh), lambda i: (0, 0)),     # resident weights
            pl.BlockSpec((1, Nh), lambda i: (0, 0)),
            pl.BlockSpec((Nh, No), lambda i: (0, 0)),
            pl.BlockSpec((1, No), lambda i: (0, 0)),
        ],
        out_specs=pl.BlockSpec((Bm, No), lambda i: (i, 0)),
        compiler_params=pltpu.CompilerParams(
            dimension_semantics=("parallel",), vmem_limit_bytes=vmem),
    )(x_bf16, w1, b1, w2p, b2p)
    return out[:B, :10]


# ----------------------------------------------------------------------------
# Full Net forward.  Public entry point takes NCHW float32 (PyTorch layout).
# ----------------------------------------------------------------------------
def net_forward(x_nchw, params):
    B = x_nchw.shape[0]
    x = jnp.transpose(x_nchw, (0, 2, 3, 1))                              # NHWC
    x = conv3x3_relu_pool(x, params["conv1_w"], params["conv1_b"], 32)   # (B,16,16,32) bf16
    x = conv3x3_relu_pool(x, params["conv2_w"], params["conv2_b"], 64)   # (B, 8, 8,64) bf16
    # Flatten in (h, w, c) order; the PyTorch (c, h, w) flatten permutation has
    # been folded into fc1's weight rows at prepare_params time.
    x = x.reshape(B, 8 * 8 * 64)
    return mlp(x, params["fc1_w"], params["fc1_b"],
               params["fc2_w"], params["fc2_b"])


# ----------------------------------------------------------------------------
# Parameters.  init_params mirrors the PyTorch module layouts (conv HWIO,
# fc as (in, out)); prepare_params does the one-time kernel-friendly repacks.
# ----------------------------------------------------------------------------
def init_params(key):
    ks = jax.random.split(key, 8)
    s = 0.05
    return {
        "conv1_w": s * jax.random.normal(ks[0], (3, 3, 3, 32), jnp.float32),
        "conv1_b": s * jax.random.normal(ks[1], (32,), jnp.float32),
        "conv2_w": s * jax.random.normal(ks[2], (3, 3, 32, 64), jnp.float32),
        "conv2_b": s * jax.random.normal(ks[3], (64,), jnp.float32),
        "fc1_w":  s * jax.random.normal(ks[4], (64 * 8 * 8, 512), jnp.float32),
        "fc1_b":  s * jax.random.normal(ks[5], (512,), jnp.float32),
        "fc2_w":  s * jax.random.normal(ks[6], (512, 10), jnp.float32),
        "fc2_b":  s * jax.random.normal(ks[7], (10,), jnp.float32),
    }


def _pack_conv_weight(w_hwio):
    """(3,3,Cin,Cout) HWIO -> (16*Cin, 4*128) bf16 phase-blocked matmul weight.

    Row (s*4+t)*Cin + c, column p*128 + co (phase p = dh*2+dw) carries
    w[s-dh, t-dw, c, co] when 0 <= s-dh < 3 and 0 <= t-dw < 3, else zero.
    """
    Cin, Cout = w_hwio.shape[2], w_hwio.shape[3]
    W = jnp.zeros((16 * Cin, 4 * 128), jnp.float32)
    for dh in range(2):
        for dw in range(2):
            p = dh * 2 + dw
            for kh in range(3):
                for kw in range(3):
                    s, t = dh + kh, dw + kw
                    r0 = (s * 4 + t) * Cin
                    W = W.at[r0:r0 + Cin, p * 128:p * 128 + Cout].set(
                        w_hwio[kh, kw])
    return W.astype(jnp.bfloat16)


def _pad_bias_128(b):
    return jnp.zeros((1, 128), jnp.float32).at[0, :b.shape[0]].set(b)


def prepare_params(p):
    # Reorder fc1 rows from PyTorch (c*64 + h*8 + w) to NHWC (h*512 + w*64 + c)
    # and store in bf16 (matmul accumulates in f32).
    fc1_w = (p["fc1_w"].reshape(64, 8, 8, 512)
             .transpose(1, 2, 0, 3).reshape(64 * 8 * 8, 512)
             .astype(jnp.bfloat16))
    # Pad fc2 to a full 128-lane output block (sliced back to 10 outside).
    fc2_w = jnp.zeros((512, 128), jnp.float32).at[:, :10].set(p["fc2_w"])
    fc2_b = jnp.zeros((1, 128), jnp.float32).at[0, :10].set(p["fc2_b"])
    return {
        "conv1_w": _pack_conv_weight(p["conv1_w"]),
        "conv1_b": _pad_bias_128(p["conv1_b"]),
        "conv2_w": _pack_conv_weight(p["conv2_w"]),
        "conv2_b": _pad_bias_128(p["conv2_b"]),
        "fc1_w": fc1_w, "fc1_b": p["fc1_b"].reshape(1, 512),
        "fc2_w": fc2_w, "fc2_b": fc2_b,
    }


# Pure-JAX reference (XLA), used only to sanity-check the Pallas kernels.
# It mirrors the kernels' deliberate bf16 rounding points (inputs to each conv
# matmul, conv outputs, fc1 weight) so the comparison isolates kernel
# correctness (indexing / structure) rather than dtype policy.
def net_forward_ref(x_nchw, raw_params):
    r = lambda a: a.astype(jnp.bfloat16).astype(jnp.float32)
    x = r(jnp.transpose(x_nchw, (0, 2, 3, 1)))

    def block(x, w, b):
        y = jax.lax.conv_general_dilated(
            x, r(w), (1, 1), ((1, 1), (1, 1)),
            dimension_numbers=("NHWC", "HWIO", "NHWC"))
        y = jnp.maximum(y + b, 0.0)
        B, H, W, C = y.shape
        y = jnp.max(y.reshape(B, H // 2, 2, W // 2, 2, C), axis=(2, 4))
        return r(y)

    x = block(x, raw_params["conv1_w"], raw_params["conv1_b"])
    x = block(x, raw_params["conv2_w"], raw_params["conv2_b"])
    B = x.shape[0]
    x = jnp.transpose(x, (0, 3, 1, 2)).reshape(B, -1)     # PyTorch NCHW flatten
    h = jnp.maximum(x @ r(raw_params["fc1_w"]) + raw_params["fc1_b"], 0.0)
    return h @ raw_params["fc2_w"] + raw_params["fc2_b"]


if __name__ == "__main__":
    key = jax.random.PRNGKey(0)
    pkey, xkey = jax.random.split(key)
    raw = init_params(pkey)
    params = prepare_params(raw)

    # Input implied by the module: fc1 expects 64*8*8 => 3x32x32 images.
    x = jax.random.normal(xkey, (2, 3, 32, 32), jnp.float32)

    out = jax.block_until_ready(jax.jit(net_forward)(x, params))
    assert out.shape == (2, 10) and out.dtype == jnp.float32

    ref = jax.block_until_ready(net_forward_ref(x, raw))
    err = float(jnp.max(jnp.abs(out - ref)))
    assert err < 2e-2, f"mismatch: max abs diff {err}"

    print("KERNEL_OK")
</pallas_src>

<mosaic_0001>
module attributes {stable_mosaic.version = 11 : i64} {
  func.func @_conv_pool_kernel(%arg0: i32, %arg1: memref<256x48xbf16, #tpu.memory_space<vmem>>, %arg2: memref<48x512xbf16, #tpu.memory_space<vmem>>, %arg3: memref<1x128xf32, #tpu.memory_space<vmem>>, %arg4: memref<256x128xbf16, #tpu.memory_space<vmem>>) attributes {dimension_semantics = [#tpu.dimension_semantics<parallel>], iteration_bounds = array<i64: 2>, scalar_prefetch = 0 : i64, scratch_operands = 0 : i64, tpu.core_type = #tpu.core_type<tc>, window_params = [{transform_indices = @transform_0, window_bounds = array<i64: 256, 48>}, {pipeline_mode = #tpu.pipeline_mode<synchronous>, transform_indices = @transform_1, window_bounds = array<i64: 48, 512>}, {pipeline_mode = #tpu.pipeline_mode<synchronous>, transform_indices = @transform_2, window_bounds = array<i64: 1, 128>}, {transform_indices = @transform_3, window_bounds = array<i64: 256, 128>}]} {
    %c0 = arith.constant 0 : index
    %c0_0 = arith.constant 0 : index
    %0 = vector.load %arg1[%c0, %c0_0] : memref<256x48xbf16, #tpu.memory_space<vmem>>, vector<256x48xbf16>
    %c0_1 = arith.constant 0 : index
    %c0_2 = arith.constant 0 : index
    %1 = vector.load %arg2[%c0_1, %c0_2] : memref<48x512xbf16, #tpu.memory_space<vmem>>, vector<48x512xbf16>
    %cst = arith.constant dense<0.000000e+00> : vector<256x512xf32>
    %2 = tpu.matmul %0, %1, %cst {dimension_numbers = #tpu.dot_dimension_numbers<[1], [0], [0], [1], [0, 0, 1, 1], [], []>} : vector<256x48xbf16>, vector<48x512xbf16>, vector<256x512xf32> -> vector<256x512xf32>
    %3 = vector.extract_strided_slice %2 {offsets = [0, 0], sizes = [256, 128], strides = [1, 1]} : vector<256x512xf32> to vector<256x128xf32>
    %4 = vector.extract_strided_slice %2 {offsets = [0, 128], sizes = [256, 128], strides = [1, 1]} : vector<256x512xf32> to vector<256x128xf32>
    %5 = arith.maximumf %3, %4 : vector<256x128xf32>
    %6 = vector.extract_strided_slice %2 {offsets = [0, 256], sizes = [256, 128], strides = [1, 1]} : vector<256x512xf32> to vector<256x128xf32>
    %7 = vector.extract_strided_slice %2 {offsets = [0, 384], sizes = [256, 128], strides = [1, 1]} : vector<256x512xf32> to vector<256x128xf32>
    %8 = arith.maximumf %6, %7 : vector<256x128xf32>
    %9 = arith.maximumf %5, %8 : vector<256x128xf32>
    %c0_3 = arith.constant 0 : index
    %c0_4 = arith.constant 0 : index
    %10 = vector.load %arg3[%c0_3, %c0_4] : memref<1x128xf32, #tpu.memory_space<vmem>>, vector<1x128xf32>
    %11 = vector.broadcast %10 : vector<1x128xf32> to vector<256x128xf32>
    %12 = arith.addf %9, %11 : vector<256x128xf32>
    %cst_5 = arith.constant 0.000000e+00 : f32
    %13 = vector.broadcast %cst_5 : f32 to vector<256x128xf32>
    %14 = arith.maximumf %12, %13 : vector<256x128xf32>
    %15 = arith.truncf %14 : vector<256x128xf32> to vector<256x128xbf16>
    %c0_6 = arith.constant 0 : index
    %c0_7 = arith.constant 0 : index
    %16 = vector.load %arg4[%c0_6, %c0_7] : memref<256x128xbf16, #tpu.memory_space<vmem>>, vector<256x128xbf16>
    tpu.vector_store %arg4[%c0_6, %c0_7], %15 {strides = array<i32>} : memref<256x128xbf16, #tpu.memory_space<vmem>>, vector<256x128xbf16>,
    return
  }
  func.func @transform_0(%arg0: i32) -> (i32, i32) {
    %c0_i32 = arith.constant 0 : i32
    %c0_i32_0 = arith.constant 0 : i32
    return %arg0, %c0_i32 : i32, i32
  }
  func.func @transform_1(%arg0: i32) -> (i32, i32) {
    %c0_i32 = arith.constant 0 : i32
    %c0_i32_0 = arith.constant 0 : i32
    %c0_i32_1 = arith.constant 0 : i32
    return %c0_i32, %c0_i32_0 : i32, i32
  }
  func.func @transform_2(%arg0: i32) -> (i32, i32) {
    %c0_i32 = arith.constant 0 : i32
    %c0_i32_0 = arith.constant 0 : i32
    %c0_i32_1 = arith.constant 0 : i32
    return %c0_i32, %c0_i32_0 : i32, i32
  }
  func.func @transform_3(%arg0: i32) -> (i32, i32) {
    %c0_i32 = arith.constant 0 : i32
    %c0_i32_0 = arith.constant 0 : i32
    return %arg0, %c0_i32 : i32, i32
  }
}

module attributes {stable_mosaic.version = 11 : i64} {
  func.func @_conv_pool_kernel(%arg0: i32, %arg1: memref<64x512xbf16, #tpu.memory_space<vmem>>, %arg2: memref<512x512xbf16, #tpu.memory_space<vmem>>, %arg3: memref<1x128xf32, #tpu.memory_space<vmem>>, %arg4: memref<64x128xbf16, #tpu.memory_space<vmem>>) attributes {dimension_semantics = [#tpu.dimension_semantics<parallel>], iteration_bounds = array<i64: 2>, scalar_prefetch = 0 : i64, scratch_operands = 0 : i64, tpu.core_type = #tpu.core_type<tc>, window_params = [{transform_indices = @transform_0, window_bounds = array<i64: 64, 512>}, {pipeline_mode = #tpu.pipeline_mode<synchronous>, transform_indices = @transform_1, window_bounds = array<i64: 512, 512>}, {pipeline_mode = #tpu.pipeline_mode<synchronous>, transform_indices = @transform_2, window_bounds = array<i64: 1, 128>}, {transform_indices = @transform_3, window_bounds = array<i64: 64, 128>}]} {
    %c0 = arith.constant 0 : index
    %c0_0 = arith.constant 0 : index
    %0 = vector.load %arg1[%c0, %c0_0] : memref<64x512xbf16, #tpu.memory_space<vmem>>, vector<64x512xbf16>
    %c0_1 = arith.constant 0 : index
    %c0_2 = arith.constant 0 : index
    %1 = vector.load %arg2[%c0_1, %c0_2] : memref<512x512xbf16, #tpu.memory_space<vmem>>, vector<512x512xbf16>
    %cst = arith.constant dense<0.000000e+00> : vector<64x512xf32>
    %2 = tpu.matmul %0, %1, %cst {dimension_numbers = #tpu.dot_dimension_numbers<[1], [0], [0], [1], [0, 0, 1, 1], [], []>} : vector<64x512xbf16>, vector<512x512xbf16>, vector<64x512xf32> -> vector<64x512xf32>
    %3 = vector.extract_strided_slice %2 {offsets = [0, 0], sizes = [64, 128], strides = [1, 1]} : vector<64x512xf32> to vector<64x128xf32>
    %4 = vector.extract_strided_slice %2 {offsets = [0, 128], sizes = [64, 128], strides = [1, 1]} : vector<64x512xf32> to vector<64x128xf32>
    %5 = arith.maximumf %3, %4 : vector<64x128xf32>
    %6 = vector.extract_strided_slice %2 {offsets = [0, 256], sizes = [64, 128], strides = [1, 1]} : vector<64x512xf32> to vector<64x128xf32>
    %7 = vector.extract_strided_slice %2 {offsets = [0, 384], sizes = [64, 128], strides = [1, 1]} : vector<64x512xf32> to vector<64x128xf32>
    %8 = arith.maximumf %6, %7 : vector<64x128xf32>
    %9 = arith.maximumf %5, %8 : vector<64x128xf32>
    %c0_3 = arith.constant 0 : index
    %c0_4 = arith.constant 0 : index
    %10 = vector.load %arg3[%c0_3, %c0_4] : memref<1x128xf32, #tpu.memory_space<vmem>>, vector<1x128xf32>
    %11 = vector.broadcast %10 : vector<1x128xf32> to vector<64x128xf32>
    %12 = arith.addf %9, %11 : vector<64x128xf32>
    %cst_5 = arith.constant 0.000000e+00 : f32
    %13 = vector.broadcast %cst_5 : f32 to vector<64x128xf32>
    %14 = arith.maximumf %12, %13 : vector<64x128xf32>
    %15 = arith.truncf %14 : vector<64x128xf32> to vector<64x128xbf16>
    %c0_6 = arith.constant 0 : index
    %c0_7 = arith.constant 0 : index
    %16 = vector.load %arg4[%c0_6, %c0_7] : memref<64x128xbf16, #tpu.memory_space<vmem>>, vector<64x128xbf16>
    tpu.vector_store %arg4[%c0_6, %c0_7], %15 {strides = array<i32>} : memref<64x128xbf16, #tpu.memory_space<vmem>>, vector<64x128xbf16>,
    return
  }
  func.func @transform_0(%arg0: i32) -> (i32, i32) {
    %c0_i32 = arith.constant 0 : i32
    %c0_i32_0 = arith.constant 0 : i32
    return %arg0, %c0_i32 : i32, i32
  }
  func.func @transform_1(%arg0: i32) -> (i32, i32) {
    %c0_i32 = arith.constant 0 : i32
    %c0_i32_0 = arith.constant 0 : i32
    %c0_i32_1 = arith.constant 0 : i32
    return %c0_i32, %c0_i32_0 : i32, i32
  }
  func.func @transform_2(%arg0: i32) -> (i32, i32) {
    %c0_i32 = arith.constant 0 : i32
    %c0_i32_0 = arith.constant 0 : i32
    %c0_i32_1 = arith.constant 0 : i32
    return %c0_i32, %c0_i32_0 : i32, i32
  }
  func.func @transform_3(%arg0: i32) -> (i32, i32) {
    %c0_i32 = arith.constant 0 : i32
    %c0_i32_0 = arith.constant 0 : i32
    return %arg0, %c0_i32 : i32, i32
  }
}

module attributes {stable_mosaic.version = 11 : i64} {
  func.func @_mlp_kernel(%arg0: i32, %arg1: memref<8x4096xbf16, #tpu.memory_space<vmem>>, %arg2: memref<4096x512xbf16, #tpu.memory_space<vmem>>, %arg3: memref<1x512xf32, #tpu.memory_space<vmem>>, %arg4: memref<512x128xf32, #tpu.memory_space<vmem>>, %arg5: memref<1x128xf32, #tpu.memory_space<vmem>>, %arg6: memref<8x128xf32, #tpu.memory_space<vmem>>) attributes {dimension_semantics = [#tpu.dimension_semantics<parallel>], iteration_bounds = array<i64: 1>, scalar_prefetch = 0 : i64, scratch_operands = 0 : i64, tpu.core_type = #tpu.core_type<tc>, window_params = [{transform_indices = @transform_0, window_bounds = array<i64: 8, 4096>}, {pipeline_mode = #tpu.pipeline_mode<synchronous>, transform_indices = @transform_1, window_bounds = array<i64: 4096, 512>}, {pipeline_mode = #tpu.pipeline_mode<synchronous>, transform_indices = @transform_2, window_bounds = array<i64: 1, 512>}, {pipeline_mode = #tpu.pipeline_mode<synchronous>, transform_indices = @transform_3, window_bounds = array<i64: 512, 128>}, {pipeline_mode = #tpu.pipeline_mode<synchronous>, transform_indices = @transform_4, window_bounds = array<i64: 1, 128>}, {transform_indices = @transform_5, window_bounds = array<i64: 8, 128>}]} {
    %c0 = arith.constant 0 : index
    %c0_0 = arith.constant 0 : index
    %0 = vector.load %arg1[%c0, %c0_0] : memref<8x4096xbf16, #tpu.memory_space<vmem>>, vector<8x4096xbf16>
    %c0_1 = arith.constant 0 : index
    %c0_2 = arith.constant 0 : index
    %1 = vector.load %arg2[%c0_1, %c0_2] : memref<4096x512xbf16, #tpu.memory_space<vmem>>, vector<4096x512xbf16>
    %cst = arith.constant dense<0.000000e+00> : vector<8x512xf32>
    %2 = tpu.matmul %0, %1, %cst {dimension_numbers = #tpu.dot_dimension_numbers<[1], [0], [0], [1], [0, 0, 1, 1], [], []>} : vector<8x4096xbf16>, vector<4096x512xbf16>, vector<8x512xf32> -> vector<8x512xf32>
    %c0_3 = arith.constant 0 : index
    %c0_4 = arith.constant 0 : index
    %3 = vector.load %arg3[%c0_3, %c0_4] : memref<1x512xf32, #tpu.memory_space<vmem>>, vector<1x512xf32>
    %4 = vector.broadcast %3 : vector<1x512xf32> to vector<8x512xf32>
    %5 = arith.addf %2, %4 : vector<8x512xf32>
    %cst_5 = arith.constant 0.000000e+00 : f32
    %6 = vector.broadcast %cst_5 : f32 to vector<8x512xf32>
    %7 = arith.maximumf %5, %6 : vector<8x512xf32>
    %c0_6 = arith.constant 0 : index
    %c0_7 = arith.constant 0 : index
    %8 = vector.load %arg4[%c0_6, %c0_7] : memref<512x128xf32, #tpu.memory_space<vmem>>, vector<512x128xf32>
    %cst_8 = arith.constant dense<0.000000e+00> : vector<8x128xf32>
    %9 = tpu.matmul %7, %8, %cst_8 {dimension_numbers = #tpu.dot_dimension_numbers<[1], [0], [0], [1], [0, 0, 1, 1], [], []>} : vector<8x512xf32>, vector<512x128xf32>, vector<8x128xf32> -> vector<8x128xf32>
    %c0_9 = arith.constant 0 : index
    %c0_10 = arith.constant 0 : index
    %10 = vector.load %arg5[%c0_9, %c0_10] : memref<1x128xf32, #tpu.memory_space<vmem>>, vector<1x128xf32>
    %11 = vector.broadcast %10 : vector<1x128xf32> to vector<8x128xf32>
    %12 = arith.addf %9, %11 : vector<8x128xf32>
    %c0_11 = arith.constant 0 : index
    %c0_12 = arith.constant 0 : index
    %13 = vector.load %arg6[%c0_11, %c0_12] : memref<8x128xf32, #tpu.memory_space<vmem>>, vector<8x128xf32>
    tpu.vector_store %arg6[%c0_11, %c0_12], %12 {strides = array<i32>} : memref<8x128xf32, #tpu.memory_space<vmem>>, vector<8x128xf32>,
    return
  }
  func.func @transform_0(%arg0: i32) -> (i32, i32) {
    %c0_i32 = arith.constant 0 : i32
    %c0_i32_0 = arith.constant 0 : i32
    return %arg0, %c0_i32 : i32, i32
  }
  func.func @transform_1(%arg0: i32) -> (i32, i32) {
    %c0_i32 = arith.constant 0 : i32
    %c0_i32_0 = arith.constant 0 : i32
    %c0_i32_1 = arith.constant 0 : i32
    return %c0_i32, %c0_i32_0 : i32, i32
  }
  func.func @transform_2(%arg0: i32) -> (i32, i32) {
    %c0_i32 = arith.constant 0 : i32
    %c0_i32_0 = arith.constant 0 : i32
    %c0_i32_1 = arith.constant 0 : i32
    return %c0_i32, %c0_i32_0 : i32, i32
  }
  func.func @transform_3(%arg0: i32) -> (i32, i32) {
    %c0_i32 = arith.constant 0 : i32
    %c0_i32_0 = arith.constant 0 : i32
    %c0_i32_1 = arith.constant 0 : i32
    return %c0_i32, %c0_i32_0 : i32, i32
  }
  func.func @transform_4(%arg0: i32) -> (i32, i32) {
    %c0_i32 = arith.constant 0 : i32
    %c0_i32_0 = arith.constant 0 : i32
    %c0_i32_1 = arith.constant 0 : i32
    return %c0_i32, %c0_i32_0 : i32, i32
  }
  func.func @transform_5(%arg0: i32) -> (i32, i32) {
    %c0_i32 = arith.constant 0 : i32
    %c0_i32_0 = arith.constant 0 : i32
    return %arg0, %c0_i32 : i32, i32
  }
}

</mosaic_0001>

<llo_original>
// kernel: net_forward.3
$region0: #{net_forward.3}
  #allocation0 [shape = 'u32[]', space=smem, size = 0x4, offset = 0x4, fixed_abs, tag = 'smem constant byte address 0x4 - core index']
  #allocation1 [shape = 'u32[72,128]{1,0:T(1,128)}', space=vmem, size = 0x9000, scoped, tag = 'internal scratch']
  %s0 = inlined_call_operand.vmem [shape: bf16[512,48], index: 0, kind: input, shape index: {}]
  %s1 = inlined_call_operand.hbm [shape: bf16[48,512], index: 1, kind: input, shape index: {}]
  %s2 = inlined_call_operand.hbm [shape: f32[1,128], index: 2, kind: input, shape index: {}]
  %s3 = inlined_call_operand.vmem [shape: bf16[512,128], index: 3, kind: output, shape index: {}]
  %s4 = sld [smem:[#allocation0]]
  $region53: #{net_forward.3} parent=0
    _
  %s6 = ssub.s32 1, %s4
  %s7 = scalar_select 0, %s6, %s4
  $region1: #{net_forward.3} parent=0
    #allocation2 [shape = 'u8[49152]{0}', space=vmem, size = 0xc000, scoped, tag = 'input window, operand 1, single buffered']
    #allocation3 [shape = 's32[2]{0}', space=sflag, size = 0x8, scoped, tag = 'scoped memory for net_forward.3']
    #allocation4 [shape = 'u8[512]{0}', space=vmem, size = 0x400, scoped, tag = 'input window, operand 2, single buffered']
    #allocation5 [shape = 's32[1]{0}', space=sflag, size = 0x4, scoped, tag = 'scoped memory for net_forward.3']
    %8 = vsyncpa [#allocation3], 0
    %9 = vsyncpa [#allocation5], 0
    loop: start=0, step=1, limit=4
    $region2: #{net_forward.3} parent=1 // loop_pre_header
      _
    $region3: #{net_forward.3} parent=1 // loop_header
      %s11 = sphi 0, %s15
      %p12 = scmp.ge.s32.totalorder %s11, 4
      %s21 = sphi 0, %s23
      %s24 = sphi 0, %s21
      %s25 = sphi 0, %s24
      %s41 = sphi 0, %s25
      %s45 = sphi 0, %s45
      %s47 = sphi 0, %s45
      %s48 = sphi 0, %s47
      %s62 = sphi 0, %s48
      %s66 = sphi 0, %s66
      %s68 = sphi 0, %s66
      %s69 = sphi 0, %s68
      %s83 = sphi 0, %s69
      %s89 = sphi 0, %s91
      %s92 = sphi 0, %s89
      %s93 = sphi 0, %s92
      %s109 = sphi 0, %s93
    $region4: #{net_forward.3} parent=1 // loop_header_branch
      %14 = sbr.rel (%p12) target = $region8
    $region5: #{net_forward.3} parent=1 // loop_body
      %s16 = ssub.s32 %s11, 1
      %s17 = ssub.s32 %s11, 2
      %s18 = sadd.s32 %s11, 1
      %s19 = ssub.s32 %s11, %s18
      %p20 = scmp.eq.s32.totalorder %s19, 0
      %s22 = sadd.s32 %s21, 1
      %s23 = scalar_select %p20, %s21, %s22
      %p26 = pneg %p20
      %p27 = scmp.eq.s32.totalorder %s11, 1
      %p28 = por %p26, %p27
      %p29 = scmp.ne.s32.totalorder %s21, %s24
      %p30 = scmp.eq.s32.totalorder %s11, 0
      %p31 = por %p29, %p30
      %p32 = scmp.ne.s32.totalorder %s21, %s24
      %p33 = scmp.eq.s32.totalorder %s16, 1
      %p34 = por %p32, %p33
      %p35 = scmp.ne.s32.totalorder %s24, %s25
      %p36 = scmp.eq.s32.totalorder %s16, 0
      %p37 = por %p35, %p36
      %p38 = scmp.ne.s32.totalorder %s24, %s25
      %p39 = scmp.eq.s32.totalorder %s17, 1
      %p40 = por %p38, %p39
      %p42 = scmp.ne.s32.totalorder %s25, %s41
      %p43 = scmp.eq.s32.totalorder %s17, 0
      %p44 = por %p42, %p43
      %s46 = sadd.s32 %s45, 1
      %p49 = scmp.eq.s32.totalorder %s11, 1
      %p50 = scmp.ne.s32.totalorder %s45, %s47
      %p51 = scmp.eq.s32.totalorder %s11, 0
      %p52 = por %p50, %p51
      %p53 = scmp.ne.s32.totalorder %s45, %s47
      %p54 = scmp.eq.s32.totalorder %s16, 1
      %p55 = por %p53, %p54
      %p56 = scmp.ne.s32.totalorder %s47, %s48
      %p57 = scmp.eq.s32.totalorder %s16, 0
      %p58 = por %p56, %p57
      %p59 = scmp.ne.s32.totalorder %s47, %s48
      %p60 = scmp.eq.s32.totalorder %s17, 1
      %p61 = por %p59, %p60
      %p63 = scmp.ne.s32.totalorder %s48, %s62
      %p64 = scmp.eq.s32.totalorder %s17, 0
      %p65 = por %p63, %p64
      %s67 = sadd.s32 %s66, 1
      %p70 = scmp.eq.s32.totalorder %s11, 1
      %p71 = scmp.ne.s32.totalorder %s66, %s68
      %p72 = scmp.eq.s32.totalorder %s11, 0
      %p73 = por %p71, %p72
      %p74 = scmp.ne.s32.totalorder %s66, %s68
      %p75 = scmp.eq.s32.totalorder %s16, 1
      %p76 = por %p74, %p75
      %p77 = scmp.ne.s32.totalorder %s68, %s69
      %p78 = scmp.eq.s32.totalorder %s16, 0
      %p79 = por %p77, %p78
      %p80 = scmp.ne.s32.totalorder %s68, %s69
      %p81 = scmp.eq.s32.totalorder %s17, 1
      %p82 = por %p80, %p81
      %p84 = scmp.ne.s32.totalorder %s69, %s83
      %p85 = scmp.eq.s32.totalorder %s17, 0
      %p86 = por %p84, %p85
      %s87 = ssub.s32 %s11, %s18
      %p88 = scmp.eq.s32.totalorder %s87, 0
      %s90 = sadd.s32 %s89, 1
      %s91 = scalar_select %p88, %s89, %s90
      %p94 = pneg %p88
      %p95 = scmp.eq.s32.totalorder %s11, 1
      %p96 = por %p94, %p95
      %p97 = scmp.ne.s32.totalorder %s89, %s92
      %p98 = scmp.eq.s32.totalorder %s11, 0
      %p99 = por %p97, %p98
      %p100 = scmp.ne.s32.totalorder %s89, %s92
      %p101 = scmp.eq.s32.totalorder %s16, 1
      %p102 = por %p100, %p101
      %p103 = scmp.ne.s32.totalorder %s92, %s93
      %p104 = scmp.eq.s32.totalorder %s16, 0
      %p105 = por %p103, %p104
      %p106 = scmp.ne.s32.totalorder %s92, %s93
      %p107 = scmp.eq.s32.totalorder %s17, 1
      %p108 = por %p106, %p107
      %p110 = scmp.ne.s32.totalorder %s93, %s109
      %p111 = scmp.eq.s32.totalorder %s17, 0
      %p112 = por %p110, %p111
      %p113 = scmp.le.s32.totalorder 1, %s11
      %p114 = scmp.lt.s32.totalorder %s11, 3
      %p115 = pnand %p113, %p114
      %p116 = pneg %p115
      // Predicated region
      $region9: #{net_forward.3} parent=5 // pred_check
        _
      $region10: #{net_forward.3} parent=5 // pred_check_branch
        %118 = sbr.rel (%p115) target = $region12
      $region11: #{net_forward.3} parent=5 // pred_region
        %s119 = ssub.s32 %s11, 1
        // Predicated region
        $region13: #{net_forward.3} parent=11 // pred_check
          %p120 = pneg %p58
        $region14: #{net_forward.3} parent=11 // pred_check_branch
          %122 = sbr.rel (%p120) target = $region16
        $region15: #{net_forward.3} parent=11 // pred_region
          %124 = vsyncadd [#allocation3], 0
          %s125 = sshll.u32 %s1, 4
          %s126 = int_to_ptr.hbm [resolvable:$true] %s125
          %s127 = sshll.u32 [#allocation2], 4
          %s128 = int_to_ptr.vmem [resolvable:$true] %s127
          %133 = dma.hbm_to_vmem [thread:$0]  %s126, 1536, %s128, [#allocation3], 256, 256, 16
        $region16: #{net_forward.3} parent=11 // pred_fallthru
          _
        // Predicated region
        $region17: #{net_forward.3} parent=11 // pred_check
          %p134 = pneg %p79
        $region18: #{net_forward.3} parent=11 // pred_check_branch
          %136 = sbr.rel (%p134) target = $region20
        $region19: #{net_forward.3} parent=11 // pred_region
          %138 = vsyncadd [#allocation5], 0
          %s140 = sshll.u32 %s2, 4
          %s141 = int_to_ptr.hbm [resolvable:$true] %s140
          %s142 = sshll.u32 [#allocation4], 4
          %s143 = int_to_ptr.vmem [resolvable:$true] %s142
          %145 = dma.hbm_to_vmem [thread:$0]  %s141, 16, %s143, [#allocation5]
        $region20: #{net_forward.3} parent=11 // pred_fallthru
          _
      $region12: #{net_forward.3} parent=5 // pred_fallthru
        _
      %p146 = scmp.lt.s32.totalorder %s11, 2
      // Predicated region
      $region21: #{net_forward.3} parent=5 // pred_check
        %p147 = pneg %p146
      $region22: #{net_forward.3} parent=5 // pred_check_branch
        %149 = sbr.rel (%p147) target = $region24
      $region23: #{net_forward.3} parent=5 // pred_region
        // Predicated region
        $region25: #{net_forward.3} parent=23 // pred_check
          %p150 = pneg %p31
        $region26: #{net_forward.3} parent=23 // pred_check_branch
          %152 = sbr.rel (%p150) target = $region28
        $region27: #{net_forward.3} parent=23 // pred_region
          %s153 = smul.u32 32, %s11
          %p154 = scmp.lt.s32.totalorder %s153, 63
          %s155 = scalar_select %p154, %s153, 63
          %s156 = smul.addr %s155, 4
          %s157 = scalar_lea.vmem %s0, %s156
          %s158 = smul.u32 32, %s11
        $region28: #{net_forward.3} parent=23 // pred_fallthru
          _
      $region24: #{net_forward.3} parent=5 // pred_fallthru
        _
      %p159 = scmp.le.s32.totalorder 1, %s11
      %p160 = scmp.lt.s32.totalorder %s11, 3
      %p161 = pnand %p159, %p160
      %p162 = pneg %p161
      // Predicated region
      $region29: #{net_forward.3} parent=5 // pred_check
        _
      $region30: #{net_forward.3} parent=5 // pred_check_branch
        %164 = sbr.rel (%p161) target = $region32
      $region31: #{net_forward.3} parent=5 // pred_region
        %s165 = ssub.s32 %s11, 1
        // Predicated region
        $region33: #{net_forward.3} parent=31 // pred_check
          %p166 = pneg %p58
        $region34: #{net_forward.3} parent=31 // pred_check_branch
          %168 = sbr.rel (%p166) target = $region36
        $region35: #{net_forward.3} parent=31 // pred_region
          %170 = dma.done [#allocation3], 1536
        $region36: #{net_forward.3} parent=31 // pred_fallthru
          _
        // Predicated region
        $region37: #{net_forward.3} parent=31 // pred_check
          %p171 = pneg %p79
        $region38: #{net_forward.3} parent=31 // pred_check_branch
          %173 = sbr.rel (%p171) target = $region40
        $region39: #{net_forward.3} parent=31 // pred_region
          %175 = dma.done [#allocation5], 16
        $region40: #{net_forward.3} parent=31 // pred_fallthru
          _
        %s176 = smul.u32 32, %s16
        %p177 = scmp.lt.s32.totalorder %s176, 63
        %s178 = scalar_select %p177, %s176, 63
        %s179 = smul.addr %s178, 4
        %s180 = scalar_lea.vmem %s0, %s179
        %p181 = pneg %p37
        %p182 = pneg %p34
        %p183 = pneg %p58
        %p184 = pneg %p55
        %p185 = pneg %p79
        %p186 = pneg %p76
        %p187 = pneg %p105
        %p188 = pneg %p102
        %s189 = smul.u32 32, %s16
        %p190 = scmp.lt.s32.totalorder %s189, 63
        %s191 = scalar_select %p190, %s189, 63
        %s192 = smul.addr %s191, 4
        %s193 = scalar_lea.vmem %s3, %s192
        %s194 = smul.u32 32, %s16
        %p195 = scmp.lt.s32.totalorder %s194, 63
        %s196 = scalar_select %p195, %s194, 63
        %s197 = smul.addr %s196, 4
        %s198 = scalar_lea.vmem %s0, %s197
        %s199 = smul.u32 32, %s16
        %s200 = smul.u32 32, %s16
        %p201 = scmp.lt.s32.totalorder %s200, 63
        %s202 = scalar_select %p201, %s200, 63
        %s203 = smul.addr %s202, 4
        %s204 = scalar_lea.vmem %s3, %s203
        %s205 = smul.u32 32, %s16
        %v207 = vld [vmem:[%s198] sm:$0xf]
        %v208 = vld [vmem:[%s198 + $0x4] sm:$0xf]
        %v209 = vld [vmem:[%s198 + $0x8] sm:$0xf]
        %v210 = vld [vmem:[%s198 + $0xc] sm:$0xf]
        %v211 = vld [vmem:[%s198 + $0x10] sm:$0xf]
        %v212 = vld [vmem:[%s198 + $0x14] sm:$0xf]
        %v213 = vld [vmem:[%s198 + $0x18] sm:$0xf]
        %v214 = vld [vmem:[%s198 + $0x1c] sm:$0xf]
        %v215 = vld [vmem:[%s198 + $0x20] sm:$0xf]
        %v216 = vld [vmem:[%s198 + $0x24] sm:$0xf]
        %v217 = vld [vmem:[%s198 + $0x28] sm:$0xf]
        %v218 = vld [vmem:[%s198 + $0x2c] sm:$0xf]
        %v219 = vld [vmem:[%s198 + $0x30] sm:$0xf]
        %v220 = vld [vmem:[%s198 + $0x34] sm:$0xf]
        %v221 = vld [vmem:[%s198 + $0x38] sm:$0xf]
        %v222 = vld [vmem:[%s198 + $0x3c] sm:$0xf]
        %v223 = vld [vmem:[%s198 + $0x40] sm:$0xf]
        %v224 = vld [vmem:[%s198 + $0x44] sm:$0xf]
        %v225 = vld [vmem:[%s198 + $0x48] sm:$0xf]
        %v226 = vld [vmem:[%s198 + $0x4c] sm:$0xf]
        %v227 = vld [vmem:[%s198 + $0x50] sm:$0xf]
        %v228 = vld [vmem:[%s198 + $0x54] sm:$0xf]
        %v229 = vld [vmem:[%s198 + $0x58] sm:$0xf]
        %v230 = vld [vmem:[%s198 + $0x5c] sm:$0xf]
        %v231 = vld [vmem:[%s198 + $0x60] sm:$0xf]
        %v232 = vld [vmem:[%s198 + $0x64] sm:$0xf]
        %v233 = vld [vmem:[%s198 + $0x68] sm:$0xf]
        %v234 = vld [vmem:[%s198 + $0x6c] sm:$0xf]
        %v235 = vld [vmem:[%s198 + $0x70] sm:$0xf]
        %v236 = vld [vmem:[%s198 + $0x74] sm:$0xf]
        %v237 = vld [vmem:[%s198 + $0x78] sm:$0xf]
        %v238 = vld [vmem:[%s198 + $0x7c] sm:$0xf]
        %v239 = vld [vmem:[#allocation2] sm:$0xff]
        %v240 = vld [vmem:[#allocation2 + $0x8] sm:$0xff]
        %v241 = vld [vmem:[#allocation2 + $0x10] sm:$0xff]
        %v242 = vld [vmem:[#allocation2 + $0x18] sm:$0xff]
        %v243 = vld [vmem:[#allocation2 + $0x20] sm:$0xff]
        %v244 = vld [vmem:[#allocation2 + $0x28] sm:$0xff]
        %v245 = vld [vmem:[#allocation2 + $0x30] sm:$0xff]
        %v246 = vld [vmem:[#allocation2 + $0x38] sm:$0xff]
        %v247 = vld [vmem:[#allocation2 + $0x40] sm:$0xff]
        %v248 = vld [vmem:[#allocation2 + $0x48] sm:$0xff]
        %v249 = vld [vmem:[#allocation2 + $0x50] sm:$0xff]
        %v250 = vld [vmem:[#allocation2 + $0x58] sm:$0xff]
        %v283 = vunpack.c.l.b16 %v207
        %v284 = vunpack.c.l.b16 %v208
        %v285 = vunpack.c.l.b16 %v209
        %v286 = vunpack.c.l.b16 %v210
        %v287 = vunpack.c.l.b16 %v211
        %v288 = vunpack.c.l.b16 %v212
        %v289 = vunpack.c.l.b16 %v213
        %v290 = vunpack.c.l.b16 %v214
        %v291 = vunpack.c.l.b16 %v215
        %v292 = vunpack.c.l.b16 %v216
        %v293 = vunpack.c.l.b16 %v217
        %v294 = vunpack.c.l.b16 %v218
        %v295 = vunpack.c.l.b16 %v219
        %v296 = vunpack.c.l.b16 %v220
        %v297 = vunpack.c.l.b16 %v221
        %v298 = vunpack.c.l.b16 %v222
        %v299 = vunpack.c.l.b16 %v223
        %v300 = vunpack.c.l.b16 %v224
        %v301 = vunpack.c.l.b16 %v225
        %v302 = vunpack.c.l.b16 %v226
        %v303 = vunpack.c.l.b16 %v227
        %v304 = vunpack.c.l.b16 %v228
        %v305 = vunpack.c.l.b16 %v229
        %v306 = vunpack.c.l.b16 %v230
        %v307 = vunpack.c.l.b16 %v231
        %v308 = vunpack.c.l.b16 %v232
        %v309 = vunpack.c.l.b16 %v233
        %v310 = vunpack.c.l.b16 %v234
        %v311 = vunpack.c.l.b16 %v235
        %v312 = vunpack.c.l.b16 %v236
        %v313 = vunpack.c.l.b16 %v237
        %v314 = vunpack.c.l.b16 %v238
        %v315 = vpack.c.b16 %v284, %v283
        %v316 = vpack.c.b16 %v286, %v285
        %v317 = vpack.c.b16 %v288, %v287
        %v318 = vpack.c.b16 %v290, %v289
        %v319 = vpack.c.b16 %v292, %v291
        %v320 = vpack.c.b16 %v294, %v293
        %v321 = vpack.c.b16 %v296, %v295
        %v322 = vpack.c.b16 %v298, %v297
        %v323 = vpack.c.b16 %v300, %v299
        %v324 = vpack.c.b16 %v302, %v301
        %v325 = vpack.c.b16 %v304, %v303
        %v326 = vpack.c.b16 %v306, %v305
        %v327 = vpack.c.b16 %v308, %v307
        %v328 = vpack.c.b16 %v310, %v309
        %v329 = vpack.c.b16 %v312, %v311
        %v330 = vpack.c.b16 %v314, %v313
        %v343 = vunpack.c.l.b16 %v239
        %v344 = vunpack.c.h.b16 %v239
        %v345 = vunpack.c.l.b16 %v240
        %v346 = vunpack.c.h.b16 %v240
        %v347 = vunpack.c.l.b16 %v241
        %v348 = vunpack.c.h.b16 %v241
        %v349 = vunpack.c.l.b16 %v242
        %v350 = vunpack.c.h.b16 %v242
        %v351 = vunpack.c.l.b16 %v243
        %v352 = vunpack.c.h.b16 %v243
        %v353 = vunpack.c.l.b16 %v244
        %v354 = vunpack.c.h.b16 %v244
        %v355 = vunpack.c.l.b16 %v245
        %v356 = vunpack.c.h.b16 %v245
        %v357 = vunpack.c.l.b16 %v246
        %v358 = vunpack.c.h.b16 %v246
        %v359 = vunpack.c.l.b16 %v247
        %v360 = vunpack.c.h.b16 %v247
        %v361 = vunpack.c.l.b16 %v248
        %v362 = vunpack.c.h.b16 %v248
        %v363 = vunpack.c.l.b16 %v249
        %v364 = vunpack.c.h.b16 %v249
        %v365 = vunpack.c.l.b16 %v250
        %v366 = vunpack.c.h.b16 %v250
        %v367 = vpack.c.b16 %v347, %v343
        %v368 = vpack.c.b16 %v348, %v344
        %v369 = vpack.c.b16 %v349, %v345
        %v370 = vpack.c.b16 %v350, %v346
        %v371 = vpack.c.b16 %v355, %v351
        %v372 = vpack.c.b16 %v356, %v352
        %v373 = vpack.c.b16 %v357, %v353
        %v374 = vpack.c.b16 %v358, %v354
        %v375 = vpack.c.b16 %v363, %v359
        %v376 = vpack.c.b16 %v364, %v360
        %v377 = vpack.c.b16 %v365, %v361
        %v378 = vpack.c.b16 %v366, %v362
        %vm391 = vcmask 392192
        %v393 = vsel %vm391, %v315, 0
        %v396 = vsel %vm391, %v316, 0
        %v399 = vsel %vm391, %v317, 0
        %v402 = vsel %vm391, %v318, 0
        %v405 = vsel %vm391, %v319, 0
        %v408 = vsel %vm391, %v320, 0
        %v411 = vsel %vm391, %v321, 0
        %v414 = vsel %vm391, %v322, 0
        %v417 = vsel %vm391, %v323, 0
        %v420 = vsel %vm391, %v324, 0
        %v423 = vsel %vm391, %v325, 0
        %v426 = vsel %vm391, %v326, 0
        %v429 = vsel %vm391, %v327, 0
        %v432 = vsel %vm391, %v328, 0
        %v435 = vsel %vm391, %v329, 0
        %v438 = vsel %vm391, %v330, 0
        %440 = vmatpush.bf16.msra.mxu0 0
        %441 = vmatpush.bf16.msra.mxu0 0
        %442 = vmatpush.bf16.msra.mxu0 0
        %443 = vmatpush.bf16.msra.mxu0 0
        %444 = vmatpush.bf16.msra.mxu0 0
        %445 = vmatpush.bf16.msra.mxu0 %v375
        %446 = vmatpush.bf16.msra.mxu0 %v371
        %447 = vmatpush.bf16.msra.mxu0 %v367
        %448 = vmatmul.bf16.gmra.mxu0 %v393
        %v449 = vpop.f32.mrf.mxu0
        %v450 = vadd.f32 0.0, %v449
        %v451 = vpop.f32.mrf.mxu0
        %v452 = vadd.f32 0.0, %v451
        %453 = vmatmul.bf16.gmra.mxu0 %v396
        %v454 = vpop.f32.mrf.mxu0
        %v455 = vadd.f32 0.0, %v454
        %v456 = vpop.f32.mrf.mxu0
        %v457 = vadd.f32 0.0, %v456
        %458 = vmatmul.bf16.gmra.mxu0 %v399
        %v459 = vpop.f32.mrf.mxu0
        %v460 = vadd.f32 0.0, %v459
        %v461 = vpop.f32.mrf.mxu0
        %v462 = vadd.f32 0.0, %v461
        %463 = vmatmul.bf16.gmra.mxu0 %v402
        %v464 = vpop.f32.mrf.mxu0
        %v465 = vadd.f32 0.0, %v464
        %v466 = vpop.f32.mrf.mxu0
        %v467 = vadd.f32 0.0, %v466
        %468 = vmatmul.bf16.gmra.mxu0 %v405
        %v469 = vpop.f32.mrf.mxu0
        %v470 = vadd.f32 0.0, %v469
        %v471 = vpop.f32.mrf.mxu0
        %v472 = vadd.f32 0.0, %v471
        %473 = vmatmul.bf16.gmra.mxu0 %v408
        %v474 = vpop.f32.mrf.mxu0
        %v475 = vadd.f32 0.0, %v474
        %v476 = vpop.f32.mrf.mxu0
        %v477 = vadd.f32 0.0, %v476
        %478 = vmatmul.bf16.gmra.mxu0 %v411
        %v479 = vpop.f32.mrf.mxu0
        %v480 = vadd.f32 0.0, %v479
        %v481 = vpop.f32.mrf.mxu0
        %v482 = vadd.f32 0.0, %v481
        %483 = vmatmul.bf16.gmra.mxu0 %v414
        %v484 = vpop.f32.mrf.mxu0
        %v485 = vadd.f32 0.0, %v484
        %v486 = vpop.f32.mrf.mxu0
        %v487 = vadd.f32 0.0, %v486
        %488 = vmatmul.bf16.gmra.mxu0 %v417
        %v489 = vpop.f32.mrf.mxu0
        %v490 = vadd.f32 0.0, %v489
        %v491 = vpop.f32.mrf.mxu0
        %v492 = vadd.f32 0.0, %v491
        %493 = vmatmul.bf16.gmra.mxu0 %v420
        %v494 = vpop.f32.mrf.mxu0
        %v495 = vadd.f32 0.0, %v494
        %v496 = vpop.f32.mrf.mxu0
        %v497 = vadd.f32 0.0, %v496
        %498 = vmatmul.bf16.gmra.mxu0 %v423
        %v499 = vpop.f32.mrf.mxu0
        %v500 = vadd.f32 0.0, %v499
        %v501 = vpop.f32.mrf.mxu0
        %v502 = vadd.f32 0.0, %v501
        %503 = vmatmul.bf16.gmra.mxu0 %v426
        %v504 = vpop.f32.mrf.mxu0
        %v505 = vadd.f32 0.0, %v504
        %v506 = vpop.f32.mrf.mxu0
        %v507 = vadd.f32 0.0, %v506
        %508 = vmatmul.bf16.gmra.mxu0 %v429
        %v509 = vpop.f32.mrf.mxu0
        %v510 = vadd.f32 0.0, %v509
        %v511 = vpop.f32.mrf.mxu0
        %v512 = vadd.f32 0.0, %v511
        %513 = vmatmul.bf16.gmra.mxu0 %v432
        %v514 = vpop.f32.mrf.mxu0
        %v515 = vadd.f32 0.0, %v514
        %v516 = vpop.f32.mrf.mxu0
        %v517 = vadd.f32 0.0, %v516
        %518 = vmatmul.bf16.gmra.mxu0 %v435
        %v519 = vpop.f32.mrf.mxu0
        %v520 = vadd.f32 0.0, %v519
        %v521 = vpop.f32.mrf.mxu0
        %v522 = vadd.f32 0.0, %v521
        %523 = vmatmul.bf16.gmra.mxu0 %v438
        %v524 = vpop.f32.mrf.mxu0
        %v525 = vadd.f32 0.0, %v524
        %v526 = vpop.f32.mrf.mxu0
        %v527 = vadd.f32 0.0, %v526
        %528 = vdwg.mxu0
        %529 = vmatpush.bf16.msra.mxu0 0
        %530 = vmatpush.bf16.msra.mxu0 0
        %531 = vmatpush.bf16.msra.mxu0 0
        %532 = vmatpush.bf16.msra.mxu0 0
        %533 = vmatpush.bf16.msra.mxu0 0
        %534 = vmatpush.bf16.msra.mxu0 %v376
        %535 = vmatpush.bf16.msra.mxu0 %v372
        %536 = vmatpush.bf16.msra.mxu0 %v368
        %537 = vmatmul.bf16.gmra.mxu0 %v393
        %v538 = vpop.f32.mrf.mxu0
        %v539 = vadd.f32 0.0, %v538
        %v540 = vpop.f32.mrf.mxu0
        %v541 = vadd.f32 0.0, %v540
        %542 = vmatmul.bf16.gmra.mxu0 %v396
        %v543 = vpop.f32.mrf.mxu0
        %v544 = vadd.f32 0.0, %v543
        %v545 = vpop.f32.mrf.mxu0
        %v546 = vadd.f32 0.0, %v545
        %547 = vmatmul.bf16.gmra.mxu0 %v399
        %v548 = vpop.f32.mrf.mxu0
        %v549 = vadd.f32 0.0, %v548
        %v550 = vpop.f32.mrf.mxu0
        %v551 = vadd.f32 0.0, %v550
        %552 = vmatmul.bf16.gmra.mxu0 %v402
        %v553 = vpop.f32.mrf.mxu0
        %v554 = vadd.f32 0.0, %v553
        %v555 = vpop.f32.mrf.mxu0
        %v556 = vadd.f32 0.0, %v555
        %557 = vmatmul.bf16.gmra.mxu0 %v405
        %v558 = vpop.f32.mrf.mxu0
        %v559 = vadd.f32 0.0, %v558
        %v560 = vpop.f32.mrf.mxu0
        %v561 = vadd.f32 0.0, %v560
        %562 = vmatmul.bf16.gmra.mxu0 %v408
        %v563 = vpop.f32.mrf.mxu0
        %v564 = vadd.f32 0.0, %v563
        %v565 = vpop.f32.mrf.mxu0
        %v566 = vadd.f32 0.0, %v565
        %567 = vmatmul.bf16.gmra.mxu0 %v411
        %v568 = vpop.f32.mrf.mxu0
        %v569 = vadd.f32 0.0, %v568
        %v570 = vpop.f32.mrf.mxu0
        %v571 = vadd.f32 0.0, %v570
        %572 = vmatmul.bf16.gmra.mxu0 %v414
        %v573 = vpop.f32.mrf.mxu0
        %v574 = vadd.f32 0.0, %v573
        %v575 = vpop.f32.mrf.mxu0
        %v576 = vadd.f32 0.0, %v575
        %577 = vmatmul.bf16.gmra.mxu0 %v417
        %v578 = vpop.f32.mrf.mxu0
        %v579 = vadd.f32 0.0, %v578
        %v580 = vpop.f32.mrf.mxu0
        %v581 = vadd.f32 0.0, %v580
        %582 = vmatmul.bf16.gmra.mxu0 %v420
        %v583 = vpop.f32.mrf.mxu0
        %v584 = vadd.f32 0.0, %v583
        %v585 = vpop.f32.mrf.mxu0
        %v586 = vadd.f32 0.0, %v585
        %587 = vmatmul.bf16.gmra.mxu0 %v423
        %v588 = vpop.f32.mrf.mxu0
        %v589 = vadd.f32 0.0, %v588
        %v590 = vpop.f32.mrf.mxu0
        %v591 = vadd.f32 0.0, %v590
        %592 = vmatmul.bf16.gmra.mxu0 %v426
        %v593 = vpop.f32.mrf.mxu0
        %v594 = vadd.f32 0.0, %v593
        %v595 = vpop.f32.mrf.mxu0
        %v596 = vadd.f32 0.0, %v595
        %597 = vmatmul.bf16.gmra.mxu0 %v429
        %v598 = vpop.f32.mrf.mxu0
        %v599 = vadd.f32 0.0, %v598
        %v600 = vpop.f32.mrf.mxu0
        %v601 = vadd.f32 0.0, %v600
        %602 = vmatmul.bf16.gmra.mxu0 %v432
        %v603 = vpop.f32.mrf.mxu0
        %v604 = vadd.f32 0.0, %v603
        %v605 = vpop.f32.mrf.mxu0
        %v606 = vadd.f32 0.0, %v605
        %607 = vmatmul.bf16.gmra.mxu0 %v435
        %v608 = vpop.f32.mrf.mxu0
        %v609 = vadd.f32 0.0, %v608
        %v610 = vpop.f32.mrf.mxu0
        %v611 = vadd.f32 0.0, %v610
        %612 = vmatmul.bf16.gmra.mxu0 %v438
        %v613 = vpop.f32.mrf.mxu0
        %v614 = vadd.f32 0.0, %v613
        %v615 = vpop.f32.mrf.mxu0
        %v616 = vadd.f32 0.0, %v615
        %617 = vdwg.mxu0
        %618 = vmatpush.bf16.msra.mxu0 0
        %619 = vmatpush.bf16.msra.mxu0 0
        %620 = vmatpush.bf16.msra.mxu0 0
        %621 = vmatpush.bf16.msra.mxu0 0
        %622 = vmatpush.bf16.msra.mxu0 0
        %623 = vmatpush.bf16.msra.mxu0 %v377
        %624 = vmatpush.bf16.msra.mxu0 %v373
        %625 = vmatpush.bf16.msra.mxu0 %v369
        %626 = vmatmul.bf16.gmra.mxu0 %v393
        %v627 = vpop.f32.mrf.mxu0
        %v628 = vadd.f32 0.0, %v627
        %v629 = vpop.f32.mrf.mxu0
        %v630 = vadd.f32 0.0, %v629
        %631 = vmatmul.bf16.gmra.mxu0 %v396
        %v632 = vpop.f32.mrf.mxu0
        %v633 = vadd.f32 0.0, %v632
        %v634 = vpop.f32.mrf.mxu0
        %v635 = vadd.f32 0.0, %v634
        %636 = vmatmul.bf16.gmra.mxu0 %v399
        %v637 = vpop.f32.mrf.mxu0
        %v638 = vadd.f32 0.0, %v637
        %v639 = vpop.f32.mrf.mxu0
        %v640 = vadd.f32 0.0, %v639
        %641 = vmatmul.bf16.gmra.mxu0 %v402
        %v642 = vpop.f32.mrf.mxu0
        %v643 = vadd.f32 0.0, %v642
        %v644 = vpop.f32.mrf.mxu0
        %v645 = vadd.f32 0.0, %v644
        %646 = vmatmul.bf16.gmra.mxu0 %v405
        %v647 = vpop.f32.mrf.mxu0
        %v648 = vadd.f32 0.0, %v647
        %v649 = vpop.f32.mrf.mxu0
        %v650 = vadd.f32 0.0, %v649
        %651 = vmatmul.bf16.gmra.mxu0 %v408
        %v652 = vpop.f32.mrf.mxu0
        %v653 = vadd.f32 0.0, %v652
        %v654 = vpop.f32.mrf.mxu0
        %v655 = vadd.f32 0.0, %v654
        %656 = vmatmul.bf16.gmra.mxu0 %v411
        %v657 = vpop.f32.mrf.mxu0
        %v658 = vadd.f32 0.0, %v657
        %v659 = vpop.f32.mrf.mxu0
        %v660 = vadd.f32 0.0, %v659
        %661 = vmatmul.bf16.gmra.mxu0 %v414
        %v662 = vpop.f32.mrf.mxu0
        %v663 = vadd.f32 0.0, %v662
        %v664 = vpop.f32.mrf.mxu0
        %v665 = vadd.f32 0.0, %v664
        %666 = vmatmul.bf16.gmra.mxu0 %v417
        %v667 = vpop.f32.mrf.mxu0
        %v668 = vadd.f32 0.0, %v667
        %v669 = vpop.f32.mrf.mxu0
        %v670 = vadd.f32 0.0, %v669
        %671 = vmatmul.bf16.gmra.mxu0 %v420
        %v672 = vpop.f32.mrf.mxu0
        %v673 = vadd.f32 0.0, %v672
        %v674 = vpop.f32.mrf.mxu0
        %v675 = vadd.f32 0.0, %v674
        %676 = vmatmul.bf16.gmra.mxu0 %v423
        %v677 = vpop.f32.mrf.mxu0
        %v678 = vadd.f32 0.0, %v677
        %v679 = vpop.f32.mrf.mxu0
        %v680 = vadd.f32 0.0, %v679
        %681 = vmatmul.bf16.gmra.mxu0 %v426
        %v682 = vpop.f32.mrf.mxu0
        %v683 = vadd.f32 0.0, %v682
        %v684 = vpop.f32.mrf.mxu0
        %v685 = vadd.f32 0.0, %v684
        %686 = vmatmul.bf16.gmra.mxu0 %v429
        %v687 = vpop.f32.mrf.mxu0
        %v688 = vadd.f32 0.0, %v687
        %v689 = vpop.f32.mrf.mxu0
        %v690 = vadd.f32 0.0, %v689
        %691 = vmatmul.bf16.gmra.mxu0 %v432
        %v692 = vpop.f32.mrf.mxu0
        %v693 = vadd.f32 0.0, %v692
        %v694 = vpop.f32.mrf.mxu0
        %v695 = vadd.f32 0.0, %v694
        %696 = vmatmul.bf16.gmra.mxu0 %v435
        %v697 = vpop.f32.mrf.mxu0
        %v698 = vadd.f32 0.0, %v697
        %v699 = vpop.f32.mrf.mxu0
        %v700 = vadd.f32 0.0, %v699
        %701 = vmatmul.bf16.gmra.mxu0 %v438
        %v702 = vpop.f32.mrf.mxu0
        %v703 = vadd.f32 0.0, %v702
        %v704 = vpop.f32.mrf.mxu0
        %v705 = vadd.f32 0.0, %v704
        %706 = vdwg.mxu0
        %707 = vmatpush.bf16.msra.mxu0 0
        %708 = vmatpush.bf16.msra.mxu0 0
        %709 = vmatpush.bf16.msra.mxu0 0
        %710 = vmatpush.bf16.msra.mxu0 0
        %711 = vmatpush.bf16.msra.mxu0 0
        %712 = vmatpush.bf16.msra.mxu0 %v378
        %713 = vmatpush.bf16.msra.mxu0 %v374
        %714 = vmatpush.bf16.msra.mxu0 %v370
        %715 = vmatmul.bf16.gmra.mxu0 %v393
        %v716 = vpop.f32.mrf.mxu0
        %v717 = vadd.f32 0.0, %v716
        %v718 = vpop.f32.mrf.mxu0
        %v719 = vadd.f32 0.0, %v718
        %720 = vmatmul.bf16.gmra.mxu0 %v396
        %v721 = vpop.f32.mrf.mxu0
        %v722 = vadd.f32 0.0, %v721
        %v723 = vpop.f32.mrf.mxu0
        %v724 = vadd.f32 0.0, %v723
        %725 = vmatmul.bf16.gmra.mxu0 %v399
        %v726 = vpop.f32.mrf.mxu0
        %v727 = vadd.f32 0.0, %v726
        %v728 = vpop.f32.mrf.mxu0
        %v729 = vadd.f32 0.0, %v728
        %730 = vmatmul.bf16.gmra.mxu0 %v402
        %v731 = vpop.f32.mrf.mxu0
        %v732 = vadd.f32 0.0, %v731
        %v733 = vpop.f32.mrf.mxu0
        %v734 = vadd.f32 0.0, %v733
        %735 = vmatmul.bf16.gmra.mxu0 %v405
        %v736 = vpop.f32.mrf.mxu0
        %v737 = vadd.f32 0.0, %v736
        %v738 = vpop.f32.mrf.mxu0
        %v739 = vadd.f32 0.0, %v738
        %740 = vmatmul.bf16.gmra.mxu0 %v408
        %v741 = vpop.f32.mrf.mxu0
        %v742 = vadd.f32 0.0, %v741
        %v743 = vpop.f32.mrf.mxu0
        %v744 = vadd.f32 0.0, %v743
        %745 = vmatmul.bf16.gmra.mxu0 %v411
        %v746 = vpop.f32.mrf.mxu0
        %v747 = vadd.f32 0.0, %v746
        %v748 = vpop.f32.mrf.mxu0
        %v749 = vadd.f32 0.0, %v748
        %750 = vmatmul.bf16.gmra.mxu0 %v414
        %v751 = vpop.f32.mrf.mxu0
        %v752 = vadd.f32 0.0, %v751
        %v753 = vpop.f32.mrf.mxu0
        %v754 = vadd.f32 0.0, %v753
        %755 = vmatmul.bf16.gmra.mxu0 %v417
        %v756 = vpop.f32.mrf.mxu0
        %v757 = vadd.f32 0.0, %v756
        %v758 = vpop.f32.mrf.mxu0
        %v759 = vadd.f32 0.0, %v758
        %760 = vmatmul.bf16.gmra.mxu0 %v420
        %v761 = vpop.f32.mrf.mxu0
        %v762 = vadd.f32 0.0, %v761
        %v763 = vpop.f32.mrf.mxu0
        %v764 = vadd.f32 0.0, %v763
        %765 = vmatmul.bf16.gmra.mxu0 %v423
        %v766 = vpop.f32.mrf.mxu0
        %v767 = vadd.f32 0.0, %v766
        %v768 = vpop.f32.mrf.mxu0
        %v769 = vadd.f32 0.0, %v768
        %770 = vmatmul.bf16.gmra.mxu0 %v426
        %v771 = vpop.f32.mrf.mxu0
        %v772 = vadd.f32 0.0, %v771
        %v773 = vpop.f32.mrf.mxu0
        %v774 = vadd.f32 0.0, %v773
        %775 = vmatmul.bf16.gmra.mxu0 %v429
        %v776 = vpop.f32.mrf.mxu0
        %v777 = vadd.f32 0.0, %v776
        %v778 = vpop.f32.mrf.mxu0
        %v779 = vadd.f32 0.0, %v778
        %780 = vmatmul.bf16.gmra.mxu0 %v432
        %v781 = vpop.f32.mrf.mxu0
        %v782 = vadd.f32 0.0, %v781
        %v783 = vpop.f32.mrf.mxu0
        %v784 = vadd.f32 0.0, %v783
        %785 = vmatmul.bf16.gmra.mxu0 %v435
        %v786 = vpop.f32.mrf.mxu0
        %v787 = vadd.f32 0.0, %v786
        %v788 = vpop.f32.mrf.mxu0
        %v789 = vadd.f32 0.0, %v788
        %790 = vmatmul.bf16.gmra.mxu0 %v438
        %v791 = vpop.f32.mrf.mxu0
        %v792 = vadd.f32 0.0, %v791
        %v793 = vpop.f32.mrf.mxu0
        %v794 = vadd.f32 0.0, %v793
        %795 = vdwg.mxu0
        %v796 = vmax.f32 %v450, %v539
        %v797 = vmax.f32 %v452, %v541
        %v798 = vmax.f32 %v455, %v544
        %v799 = vmax.f32 %v457, %v546
        %v800 = vmax.f32 %v460, %v549
        %v801 = vmax.f32 %v462, %v551
        %v802 = vmax.f32 %v465, %v554
        %v803 = vmax.f32 %v467, %v556
        %v804 = vmax.f32 %v470, %v559
        %v805 = vmax.f32 %v472, %v561
        %v806 = vmax.f32 %v475, %v564
        %v807 = vmax.f32 %v477, %v566
        %v808 = vmax.f32 %v480, %v569
        %v809 = vmax.f32 %v482, %v571
        %v810 = vmax.f32 %v485, %v574
        %v811 = vmax.f32 %v487, %v576
        %v812 = vmax.f32 %v490, %v579
        %v813 = vmax.f32 %v492, %v581
        %v814 = vmax.f32 %v495, %v584
        %v815 = vmax.f32 %v497, %v586
        %v816 = vmax.f32 %v500, %v589
        %v817 = vmax.f32 %v502, %v591
        %v818 = vmax.f32 %v505, %v594
        %v819 = vmax.f32 %v507, %v596
        %v820 = vmax.f32 %v510, %v599
        %v821 = vmax.f32 %v512, %v601
        %v822 = vmax.f32 %v515, %v604
        %v823 = vmax.f32 %v517, %v606
        %v824 = vmax.f32 %v520, %v609
        %v825 = vmax.f32 %v522, %v611
        %v826 = vmax.f32 %v525, %v614
        %v827 = vmax.f32 %v527, %v616
        %v828 = vmax.f32 %v628, %v717
        %v829 = vmax.f32 %v630, %v719
        %v830 = vmax.f32 %v633, %v722
        %v831 = vmax.f32 %v635, %v724
        %v832 = vmax.f32 %v638, %v727
        %v833 = vmax.f32 %v640, %v729
        %v834 = vmax.f32 %v643, %v732
        %v835 = vmax.f32 %v645, %v734
        %v836 = vmax.f32 %v648, %v737
        %v837 = vmax.f32 %v650, %v739
        %v838 = vmax.f32 %v653, %v742
        %v839 = vmax.f32 %v655, %v744
        %v840 = vmax.f32 %v658, %v747
        %v841 = vmax.f32 %v660, %v749
        %v842 = vmax.f32 %v663, %v752
        %v843 = vmax.f32 %v665, %v754
        %v844 = vmax.f32 %v668, %v757
        %v845 = vmax.f32 %v670, %v759
        %v846 = vmax.f32 %v673, %v762
        %v847 = vmax.f32 %v675, %v764
        %v848 = vmax.f32 %v678, %v767
        %v849 = vmax.f32 %v680, %v769
        %v850 = vmax.f32 %v683, %v772
        %v851 = vmax.f32 %v685, %v774
        %v852 = vmax.f32 %v688, %v777
        %v853 = vmax.f32 %v690, %v779
        %v854 = vmax.f32 %v693, %v782
        %v855 = vmax.f32 %v695, %v784
        %v856 = vmax.f32 %v698, %v787
        %v857 = vmax.f32 %v700, %v789
        %v858 = vmax.f32 %v703, %v792
        %v859 = vmax.f32 %v705, %v794
        %v860 = vmax.f32 %v796, %v828
        %v861 = vmax.f32 %v797, %v829
        %v862 = vmax.f32 %v798, %v830
        %v863 = vmax.f32 %v799, %v831
        %v864 = vmax.f32 %v800, %v832
        %v865 = vmax.f32 %v801, %v833
        %v866 = vmax.f32 %v802, %v834
        %v867 = vmax.f32 %v803, %v835
        %v868 = vmax.f32 %v804, %v836
        %v869 = vmax.f32 %v805, %v837
        %v870 = vmax.f32 %v806, %v838
        %v871 = vmax.f32 %v807, %v839
        %v872 = vmax.f32 %v808, %v840
        %v873 = vmax.f32 %v809, %v841
        %v874 = vmax.f32 %v810, %v842
        %v875 = vmax.f32 %v811, %v843
        %v876 = vmax.f32 %v812, %v844
        %v877 = vmax.f32 %v813, %v845
        %v878 = vmax.f32 %v814, %v846
        %v879 = vmax.f32 %v815, %v847
        %v880 = vmax.f32 %v816, %v848
        %v881 = vmax.f32 %v817, %v849
        %v882 = vmax.f32 %v818, %v850
        %v883 = vmax.f32 %v819, %v851
        %v884 = vmax.f32 %v820, %v852
        %v885 = vmax.f32 %v821, %v853
        %v886 = vmax.f32 %v822, %v854
        %v887 = vmax.f32 %v823, %v855
        %v888 = vmax.f32 %v824, %v856
        %v889 = vmax.f32 %v825, %v857
        %v890 = vmax.f32 %v826, %v858
        %v891 = vmax.f32 %v827, %v859
        %v892 = vld [vmem:[#allocation4] sm:$0x1]
        %v894 = vperm.slane %v892, 0
        %v896 = vadd.f32 %v860, %v894
        %v897 = vadd.f32 %v861, %v894
        %v898 = vadd.f32 %v862, %v894
        %v899 = vadd.f32 %v863, %v894
        %v900 = vadd.f32 %v864, %v894
        %v901 = vadd.f32 %v865, %v894
        %v902 = vadd.f32 %v866, %v894
        %v903 = vadd.f32 %v867, %v894
        %v904 = vadd.f32 %v868, %v894
        %v905 = vadd.f32 %v869, %v894
        %v906 = vadd.f32 %v870, %v894
        %v907 = vadd.f32 %v871, %v894
        %v908 = vadd.f32 %v872, %v894
        %v909 = vadd.f32 %v873, %v894
        %v910 = vadd.f32 %v874, %v894
        %v911 = vadd.f32 %v875, %v894
        %v912 = vadd.f32 %v876, %v894
        %v913 = vadd.f32 %v877, %v894
        %v914 = vadd.f32 %v878, %v894
        %v915 = vadd.f32 %v879, %v894
        %v916 = vadd.f32 %v880, %v894
        %v917 = vadd.f32 %v881, %v894
        %v918 = vadd.f32 %v882, %v894
        %v919 = vadd.f32 %v883, %v894
        %v920 = vadd.f32 %v884, %v894
        %v921 = vadd.f32 %v885, %v894
        %v922 = vadd.f32 %v886, %v894
        %v923 = vadd.f32 %v887, %v894
        %v924 = vadd.f32 %v888, %v894
        %v925 = vadd.f32 %v889, %v894
        %v926 = vadd.f32 %v890, %v894
        %v927 = vadd.f32 %v891, %v894
        %v928 = vmax.f32 %v896, 0.0
        %v929 = vmax.f32 %v897, 0.0
        %v930 = vmax.f32 %v898, 0.0
        %v931 = vmax.f32 %v899, 0.0
        %v932 = vmax.f32 %v900, 0.0
        %v933 = vmax.f32 %v901, 0.0
        %v934 = vmax.f32 %v902, 0.0
        %v935 = vmax.f32 %v903, 0.0
        %v936 = vmax.f32 %v904, 0.0
        %v937 = vmax.f32 %v905, 0.0
        %v938 = vmax.f32 %v906, 0.0
        %v939 = vmax.f32 %v907, 0.0
        %v940 = vmax.f32 %v908, 0.0
        %v941 = vmax.f32 %v909, 0.0
        %v942 = vmax.f32 %v910, 0.0
        %v943 = vmax.f32 %v911, 0.0
        %v944 = vmax.f32 %v912, 0.0
        %v945 = vmax.f32 %v913, 0.0
        %v946 = vmax.f32 %v914, 0.0
        %v947 = vmax.f32 %v915, 0.0
        %v948 = vmax.f32 %v916, 0.0
        %v949 = vmax.f32 %v917, 0.0
        %v950 = vmax.f32 %v918, 0.0
        %v951 = vmax.f32 %v919, 0.0
        %v952 = vmax.f32 %v920, 0.0
        %v953 = vmax.f32 %v921, 0.0
        %v954 = vmax.f32 %v922, 0.0
        %v955 = vmax.f32 %v923, 0.0
        %v956 = vmax.f32 %v924, 0.0
        %v957 = vmax.f32 %v925, 0.0
        %v958 = vmax.f32 %v926, 0.0
        %v959 = vmax.f32 %v927, 0.0
        %v960 = vpack.c.bf16 %v928, %v928
        %v961 = vpack.c.bf16 %v929, %v929
        %v962 = vpack.c.bf16 %v930, %v930
        %v963 = vpack.c.bf16 %v931, %v931
        %v964 = vpack.c.bf16 %v932, %v932
        %v965 = vpack.c.bf16 %v933, %v933
        %v966 = vpack.c.bf16 %v934, %v934
        %v967 = vpack.c.bf16 %v935, %v935
        %v968 = vpack.c.bf16 %v936, %v936
        %v969 = vpack.c.bf16 %v937, %v937
        %v970 = vpack.c.bf16 %v938, %v938
        %v971 = vpack.c.bf16 %v939, %v939
        %v972 = vpack.c.bf16 %v940, %v940
        %v973 = vpack.c.bf16 %v941, %v941
        %v974 = vpack.c.bf16 %v942, %v942
        %v975 = vpack.c.bf16 %v943, %v943
        %v976 = vpack.c.bf16 %v944, %v944
        %v977 = vpack.c.bf16 %v945, %v945
        %v978 = vpack.c.bf16 %v946, %v946
        %v979 = vpack.c.bf16 %v947, %v947
        %v980 = vpack.c.bf16 %v948, %v948
        %v981 = vpack.c.bf16 %v949, %v949
        %v982 = vpack.c.bf16 %v950, %v950
        %v983 = vpack.c.bf16 %v951, %v951
        %v984 = vpack.c.bf16 %v952, %v952
        %v985 = vpack.c.bf16 %v953, %v953
        %v986 = vpack.c.bf16 %v954, %v954
        %v987 = vpack.c.bf16 %v955, %v955
        %v988 = vpack.c.bf16 %v956, %v956
        %v989 = vpack.c.bf16 %v957, %v957
        %v990 = vpack.c.bf16 %v958, %v958
        %v991 = vpack.c.bf16 %v959, %v959
        %992 = vst [vmem:[%s204] sm:$0xf] %v960
        %993 = vst [vmem:[%s204 + $0x4] sm:$0xf] %v961
        %994 = vst [vmem:[%s204 + $0x8] sm:$0xf] %v962
        %995 = vst [vmem:[%s204 + $0xc] sm:$0xf] %v963
        %996 = vst [vmem:[%s204 + $0x10] sm:$0xf] %v964
        %997 = vst [vmem:[%s204 + $0x14] sm:$0xf] %v965
        %998 = vst [vmem:[%s204 + $0x18] sm:$0xf] %v966
        %999 = vst [vmem:[%s204 + $0x1c] sm:$0xf] %v967
        %1000 = vst [vmem:[%s204 + $0x20] sm:$0xf] %v968
        %1001 = vst [vmem:[%s204 + $0x24] sm:$0xf] %v969
        %1002 = vst [vmem:[%s204 + $0x28] sm:$0xf] %v970
        %1003 = vst [vmem:[%s204 + $0x2c] sm:$0xf] %v971
        %1004 = vst [vmem:[%s204 + $0x30] sm:$0xf] %v972
        %1005 = vst [vmem:[%s204 + $0x34] sm:$0xf] %v973
        %1006 = vst [vmem:[%s204 + $0x38] sm:$0xf] %v974
        %1007 = vst [vmem:[%s204 + $0x3c] sm:$0xf] %v975
        %1008 = vst [vmem:[%s204 + $0x40] sm:$0xf] %v976
        %1009 = vst [vmem:[%s204 + $0x44] sm:$0xf] %v977
        %1010 = vst [vmem:[%s204 + $0x48] sm:$0xf] %v978
        %1011 = vst [vmem:[%s204 + $0x4c] sm:$0xf] %v979
        %1012 = vst [vmem:[%s204 + $0x50] sm:$0xf] %v980
        %1013 = vst [vmem:[%s204 + $0x54] sm:$0xf] %v981
        %1014 = vst [vmem:[%s204 + $0x58] sm:$0xf] %v982
        %1015 = vst [vmem:[%s204 + $0x5c] sm:$0xf] %v983
        %1016 = vst [vmem:[%s204 + $0x60] sm:$0xf] %v984
        %1017 = vst [vmem:[%s204 + $0x64] sm:$0xf] %v985
        %1018 = vst [vmem:[%s204 + $0x68] sm:$0xf] %v986
        %1019 = vst [vmem:[%s204 + $0x6c] sm:$0xf] %v987
        %1020 = vst [vmem:[%s204 + $0x70] sm:$0xf] %v988
        %1021 = vst [vmem:[%s204 + $0x74] sm:$0xf] %v989
        %1022 = vst [vmem:[%s204 + $0x78] sm:$0xf] %v990
        %1023 = vst [vmem:[%s204 + $0x7c] sm:$0xf] %v991
        %s1024 = smul.u32 32, %s16
        %p1025 = scmp.lt.s32.totalorder %s1024, 63
        %s1026 = scalar_select %p1025, %s1024, 63
        %s1027 = smul.addr %s1026, 4
        %s1028 = scalar_lea.vmem %s3, %s1027
        // Predicated region
        $region41: #{net_forward.3} parent=31 // pred_check
          %p1029 = pneg %p102
        $region42: #{net_forward.3} parent=31 // pred_check_branch
          %1031 = sbr.rel (%p1029) target = $region44
        $region43: #{net_forward.3} parent=31 // pred_region
          %s1032 = smul.u32 32, %s16
        $region44: #{net_forward.3} parent=31 // pred_fallthru
          _
      $region32: #{net_forward.3} parent=5 // pred_fallthru
        _
      %p1033 = scmp.le.s32.totalorder 2, %s11
      // Predicated region
      $region45: #{net_forward.3} parent=5 // pred_check
        %p1034 = pneg %p1033
      $region46: #{net_forward.3} parent=5 // pred_check_branch
        %1036 = sbr.rel (%p1034) target = $region48
      $region47: #{net_forward.3} parent=5 // pred_region
        %s1037 = ssub.s32 %s11, 2
        // Predicated region
        $region49: #{net_forward.3} parent=47 // pred_check
          %p1038 = pneg %p108
        $region50: #{net_forward.3} parent=47 // pred_check_branch
          %1040 = sbr.rel (%p1038) target = $region52
        $region51: #{net_forward.3} parent=47 // pred_region
          %s1041 = smul.u32 32, %s17
          %p1042 = scmp.lt.s32.totalorder %s1041, 63
          %s1043 = scalar_select %p1042, %s1041, 63
          %s1044 = smul.addr %s1043, 4
          %s1045 = scalar_lea.vmem %s3, %s1044
        $region52: #{net_forward.3} parent=47 // pred_fallthru
          _
      $region48: #{net_forward.3} parent=5 // pred_fallthru
        _
    $region6: #{net_forward.3} parent=1 // loop_footer
      %s15 = sadd.s32 1, %s11
    $region7: #{net_forward.3} parent=1 // loop_footer_branch
      %10 = sbr.rel target = $region3
    $region8: #{net_forward.3} parent=1 // loop_exit
      _
    %1046 = vsyncpa [#allocation3], 1
    %s1047 = scalar_lea.sflag [#allocation3], 1
    %1048 = vsyncpa %s1047, 1
    %1049 = vsyncpa [#allocation5], 1

// kernel: net_forward.4
$region0: #{net_forward.4}
  #allocation0 [shape = 'u32[]', space=smem, size = 0x4, offset = 0x4, fixed_abs, tag = 'smem constant byte address 0x4 - core index']
  #allocation1 [shape = 'u32[72,128]{1,0:T(1,128)}', space=vmem, size = 0x9000, scoped, tag = 'internal scratch']
  %s0 = inlined_call_operand.vmem [shape: bf16[128,512], index: 0, kind: input, shape index: {}]
  %s1 = inlined_call_operand.vmem [shape: bf16[512,512], index: 1, kind: input, shape index: {}]
  %s2 = inlined_call_operand.vmem [shape: f32[1,128], index: 2, kind: input, shape index: {}]
  %s3 = inlined_call_operand.vmem [shape: bf16[128,128], index: 3, kind: output, shape index: {}]
  %s4 = sld [smem:[#allocation0]]
  $region45: #{net_forward.4} parent=0
    _
  %s6 = ssub.s32 1, %s4
  %s7 = scalar_select 0, %s6, %s4
  loop: start=0, step=1, limit=4
  $region2: #{net_forward.4} parent=0 // loop_pre_header
    _
  $region3: #{net_forward.4} parent=0 // loop_header
    %s9 = sphi 0, %s13
    %p10 = scmp.ge.s32.totalorder %s9, 4
    %s19 = sphi 0, %s21
    %s22 = sphi 0, %s19
    %s23 = sphi 0, %s22
    %s39 = sphi 0, %s23
    %s43 = sphi 0, %s43
    %s45 = sphi 0, %s43
    %s46 = sphi 0, %s45
    %s60 = sphi 0, %s46
    %s64 = sphi 0, %s64
    %s66 = sphi 0, %s64
    %s67 = sphi 0, %s66
    %s81 = sphi 0, %s67
    %s87 = sphi 0, %s89
    %s90 = sphi 0, %s87
    %s91 = sphi 0, %s90
    %s107 = sphi 0, %s91
  $region4: #{net_forward.4} parent=0 // loop_header_branch
    %12 = sbr.rel (%p10) target = $region8
  $region5: #{net_forward.4} parent=0 // loop_body
    %s14 = ssub.s32 %s9, 1
    %s15 = ssub.s32 %s9, 2
    %s16 = sadd.s32 %s9, 1
    %s17 = ssub.s32 %s9, %s16
    %p18 = scmp.eq.s32.totalorder %s17, 0
    %s20 = sadd.s32 %s19, 1
    %s21 = scalar_select %p18, %s19, %s20
    %p24 = pneg %p18
    %p25 = scmp.eq.s32.totalorder %s9, 1
    %p26 = por %p24, %p25
    %p27 = scmp.ne.s32.totalorder %s19, %s22
    %p28 = scmp.eq.s32.totalorder %s9, 0
    %p29 = por %p27, %p28
    %p30 = scmp.ne.s32.totalorder %s19, %s22
    %p31 = scmp.eq.s32.totalorder %s14, 1
    %p32 = por %p30, %p31
    %p33 = scmp.ne.s32.totalorder %s22, %s23
    %p34 = scmp.eq.s32.totalorder %s14, 0
    %p35 = por %p33, %p34
    %p36 = scmp.ne.s32.totalorder %s22, %s23
    %p37 = scmp.eq.s32.totalorder %s15, 1
    %p38 = por %p36, %p37
    %p40 = scmp.ne.s32.totalorder %s23, %s39
    %p41 = scmp.eq.s32.totalorder %s15, 0
    %p42 = por %p40, %p41
    %s44 = sadd.s32 %s43, 1
    %p47 = scmp.eq.s32.totalorder %s9, 1
    %p48 = scmp.ne.s32.totalorder %s43, %s45
    %p49 = scmp.eq.s32.totalorder %s9, 0
    %p50 = por %p48, %p49
    %p51 = scmp.ne.s32.totalorder %s43, %s45
    %p52 = scmp.eq.s32.totalorder %s14, 1
    %p53 = por %p51, %p52
    %p54 = scmp.ne.s32.totalorder %s45, %s46
    %p55 = scmp.eq.s32.totalorder %s14, 0
    %p56 = por %p54, %p55
    %p57 = scmp.ne.s32.totalorder %s45, %s46
    %p58 = scmp.eq.s32.totalorder %s15, 1
    %p59 = por %p57, %p58
    %p61 = scmp.ne.s32.totalorder %s46, %s60
    %p62 = scmp.eq.s32.totalorder %s15, 0
    %p63 = por %p61, %p62
    %s65 = sadd.s32 %s64, 1
    %p68 = scmp.eq.s32.totalorder %s9, 1
    %p69 = scmp.ne.s32.totalorder %s64, %s66
    %p70 = scmp.eq.s32.totalorder %s9, 0
    %p71 = por %p69, %p70
    %p72 = scmp.ne.s32.totalorder %s64, %s66
    %p73 = scmp.eq.s32.totalorder %s14, 1
    %p74 = por %p72, %p73
    %p75 = scmp.ne.s32.totalorder %s66, %s67
    %p76 = scmp.eq.s32.totalorder %s14, 0
    %p77 = por %p75, %p76
    %p78 = scmp.ne.s32.totalorder %s66, %s67
    %p79 = scmp.eq.s32.totalorder %s15, 1
    %p80 = por %p78, %p79
    %p82 = scmp.ne.s32.totalorder %s67, %s81
    %p83 = scmp.eq.s32.totalorder %s15, 0
    %p84 = por %p82, %p83
    %s85 = ssub.s32 %s9, %s16
    %p86 = scmp.eq.s32.totalorder %s85, 0
    %s88 = sadd.s32 %s87, 1
    %s89 = scalar_select %p86, %s87, %s88
    %p92 = pneg %p86
    %p93 = scmp.eq.s32.totalorder %s9, 1
    %p94 = por %p92, %p93
    %p95 = scmp.ne.s32.totalorder %s87, %s90
    %p96 = scmp.eq.s32.totalorder %s9, 0
    %p97 = por %p95, %p96
    %p98 = scmp.ne.s32.totalorder %s87, %s90
    %p99 = scmp.eq.s32.totalorder %s14, 1
    %p100 = por %p98, %p99
    %p101 = scmp.ne.s32.totalorder %s90, %s91
    %p102 = scmp.eq.s32.totalorder %s14, 0
    %p103 = por %p101, %p102
    %p104 = scmp.ne.s32.totalorder %s90, %s91
    %p105 = scmp.eq.s32.totalorder %s15, 1
    %p106 = por %p104, %p105
    %p108 = scmp.ne.s32.totalorder %s91, %s107
    %p109 = scmp.eq.s32.totalorder %s15, 0
    %p110 = por %p108, %p109
    %p111 = scmp.le.s32.totalorder 1, %s9
    %p112 = scmp.lt.s32.totalorder %s9, 3
    %p113 = pnand %p111, %p112
    %p114 = pneg %p113
    // Predicated region
    $region9: #{net_forward.4} parent=5 // pred_check
      _
    $region10: #{net_forward.4} parent=5 // pred_check_branch
      %116 = sbr.rel (%p113) target = $region12
    $region11: #{net_forward.4} parent=5 // pred_region
      %s117 = ssub.s32 %s9, 1
      // Predicated region
      $region13: #{net_forward.4} parent=11 // pred_check
        %p118 = pneg %p56
      $region14: #{net_forward.4} parent=11 // pred_check_branch
        %120 = sbr.rel (%p118) target = $region16
      $region15: #{net_forward.4} parent=11 // pred_region
        _
      $region16: #{net_forward.4} parent=11 // pred_fallthru
        _
      // Predicated region
      $region17: #{net_forward.4} parent=11 // pred_check
        %p121 = pneg %p77
      $region18: #{net_forward.4} parent=11 // pred_check_branch
        %123 = sbr.rel (%p121) target = $region20
      $region19: #{net_forward.4} parent=11 // pred_region
        _
      $region20: #{net_forward.4} parent=11 // pred_fallthru
        _
    $region12: #{net_forward.4} parent=5 // pred_fallthru
      _
    %p124 = scmp.lt.s32.totalorder %s9, 2
    // Predicated region
    $region21: #{net_forward.4} parent=5 // pred_check
      %p125 = pneg %p124
    $region22: #{net_forward.4} parent=5 // pred_check_branch
      %127 = sbr.rel (%p125) target = $region24
    $region23: #{net_forward.4} parent=5 // pred_region
      // Predicated region
      $region25: #{net_forward.4} parent=23 // pred_check
        %p128 = pneg %p29
      $region26: #{net_forward.4} parent=23 // pred_check_branch
        %130 = sbr.rel (%p128) target = $region28
      $region27: #{net_forward.4} parent=23 // pred_region
        %s131 = smul.u32 8, %s9
        %p132 = scmp.lt.s32.totalorder %s131, 15
        %s133 = scalar_select %p132, %s131, 15
        %s134 = smul.addr %s133, 4
        %s135 = smul.addr %s134, 4
        %s136 = scalar_lea.vmem %s0, %s135
        %s137 = smul.u32 8, %s9
      $region28: #{net_forward.4} parent=23 // pred_fallthru
        _
    $region24: #{net_forward.4} parent=5 // pred_fallthru
      _
    %p138 = scmp.le.s32.totalorder 1, %s9
    %p139 = scmp.lt.s32.totalorder %s9, 3
    %p140 = pnand %p138, %p139
    %p141 = pneg %p140
    // Predicated region
    $region29: #{net_forward.4} parent=5 // pred_check
      _
    $region30: #{net_forward.4} parent=5 // pred_check_branch
      %143 = sbr.rel (%p140) target = $region32
    $region31: #{net_forward.4} parent=5 // pred_region
      %s144 = ssub.s32 %s9, 1
      %s145 = smul.u32 8, %s14
      %p146 = scmp.lt.s32.totalorder %s145, 15
      %s147 = scalar_select %p146, %s145, 15
      %s148 = smul.addr %s147, 4
      %s149 = smul.addr %s148, 4
      %s150 = scalar_lea.vmem %s0, %s149
      %p151 = pneg %p35
      %p152 = pneg %p32
      %p153 = pneg %p56
      %p154 = pneg %p53
      %p155 = pneg %p77
      %p156 = pneg %p74
      %p157 = pneg %p103
      %p158 = pneg %p100
      %s159 = smul.u32 8, %s14
      %p160 = scmp.lt.s32.totalorder %s159, 15
      %s161 = scalar_select %p160, %s159, 15
      %s162 = smul.addr %s161, 4
      %s163 = scalar_lea.vmem %s3, %s162
      %s164 = smul.u32 8, %s14
      %p165 = scmp.lt.s32.totalorder %s164, 15
      %s166 = scalar_select %p165, %s164, 15
      %s167 = smul.addr %s166, 4
      %s168 = smul.addr %s167, 4
      %s169 = scalar_lea.vmem %s0, %s168
      %s170 = smul.u32 8, %s14
      %s171 = smul.u32 8, %s14
      %p172 = scmp.lt.s32.totalorder %s171, 15
      %s173 = scalar_select %p172, %s171, 15
      %s174 = smul.addr %s173, 4
      %s175 = scalar_lea.vmem %s3, %s174
      %s176 = smul.u32 8, %s14
      %v177 = vld [vmem:[%s169] sm:$0xff]
      %v178 = vld [vmem:[%s169 + $0x8] sm:$0xff]
      %v179 = vld [vmem:[%s169 + $0x10] sm:$0xff]
      %v180 = vld [vmem:[%s169 + $0x18] sm:$0xff]
      %v181 = vld [vmem:[%s169 + $0x20] sm:$0xff]
      %v182 = vld [vmem:[%s169 + $0x28] sm:$0xff]
      %v183 = vld [vmem:[%s169 + $0x30] sm:$0xff]
      %v184 = vld [vmem:[%s169 + $0x38] sm:$0xff]
      %v185 = vld [vmem:[%s169 + $0x40] sm:$0xff]
      %v186 = vld [vmem:[%s169 + $0x48] sm:$0xff]
      %v187 = vld [vmem:[%s169 + $0x50] sm:$0xff]
      %v188 = vld [vmem:[%s169 + $0x58] sm:$0xff]
      %v189 = vld [vmem:[%s169 + $0x60] sm:$0xff]
      %v190 = vld [vmem:[%s169 + $0x68] sm:$0xff]
      %v191 = vld [vmem:[%s169 + $0x70] sm:$0xff]
      %v192 = vld [vmem:[%s169 + $0x78] sm:$0xff]
      %v193 = vld [vmem:[%s1] sm:$0xff]
      %v194 = vld [vmem:[%s1 + $0x8] sm:$0xff]
      %v195 = vld [vmem:[%s1 + $0x10] sm:$0xff]
      %v196 = vld [vmem:[%s1 + $0x18] sm:$0xff]
      %v197 = vld [vmem:[%s1 + $0x20] sm:$0xff]
      %v198 = vld [vmem:[%s1 + $0x28] sm:$0xff]
      %v199 = vld [vmem:[%s1 + $0x30] sm:$0xff]
      %v200 = vld [vmem:[%s1 + $0x38] sm:$0xff]
      %v201 = vld [vmem:[%s1 + $0x40] sm:$0xff]
      %v202 = vld [vmem:[%s1 + $0x48] sm:$0xff]
      %v203 = vld [vmem:[%s1 + $0x50] sm:$0xff]
      %v204 = vld [vmem:[%s1 + $0x58] sm:$0xff]
      %v205 = vld [vmem:[%s1 + $0x60] sm:$0xff]
      %v206 = vld [vmem:[%s1 + $0x68] sm:$0xff]
      %v207 = vld [vmem:[%s1 + $0x70] sm:$0xff]
      %v208 = vld [vmem:[%s1 + $0x78] sm:$0xff]
      %v209 = vld [vmem:[%s1 + $0x80] sm:$0xff]
      %v210 = vld [vmem:[%s1 + $0x88] sm:$0xff]
      %v211 = vld [vmem:[%s1 + $0x90] sm:$0xff]
      %v212 = vld [vmem:[%s1 + $0x98] sm:$0xff]
      %v213 = vld [vmem:[%s1 + $0xa0] sm:$0xff]
      %v214 = vld [vmem:[%s1 + $0xa8] sm:$0xff]
      %v215 = vld [vmem:[%s1 + $0xb0] sm:$0xff]
      %v216 = vld [vmem:[%s1 + $0xb8] sm:$0xff]
      %v217 = vld [vmem:[%s1 + $0xc0] sm:$0xff]
      %v218 = vld [vmem:[%s1 + $0xc8] sm:$0xff]
      %v219 = vld [vmem:[%s1 + $0xd0] sm:$0xff]
      %v220 = vld [vmem:[%s1 + $0xd8] sm:$0xff]
      %v221 = vld [vmem:[%s1 + $0xe0] sm:$0xff]
      %v222 = vld [vmem:[%s1 + $0xe8] sm:$0xff]
      %v223 = vld [vmem:[%s1 + $0xf0] sm:$0xff]
      %v224 = vld [vmem:[%s1 + $0xf8] sm:$0xff]
      %v225 = vld [vmem:[%s1 + $0x100] sm:$0xff]
      %v226 = vld [vmem:[%s1 + $0x108] sm:$0xff]
      %v227 = vld [vmem:[%s1 + $0x110] sm:$0xff]
      %v228 = vld [vmem:[%s1 + $0x118] sm:$0xff]
      %v229 = vld [vmem:[%s1 + $0x120] sm:$0xff]
      %v230 = vld [vmem:[%s1 + $0x128] sm:$0xff]
      %v231 = vld [vmem:[%s1 + $0x130] sm:$0xff]
      %v232 = vld [vmem:[%s1 + $0x138] sm:$0xff]
      %v233 = vld [vmem:[%s1 + $0x140] sm:$0xff]
      %v234 = vld [vmem:[%s1 + $0x148] sm:$0xff]
      %v235 = vld [vmem:[%s1 + $0x150] sm:$0xff]
      %v236 = vld [vmem:[%s1 + $0x158] sm:$0xff]
      %v237 = vld [vmem:[%s1 + $0x160] sm:$0xff]
      %v238 = vld [vmem:[%s1 + $0x168] sm:$0xff]
      %v239 = vld [vmem:[%s1 + $0x170] sm:$0xff]
      %v240 = vld [vmem:[%s1 + $0x178] sm:$0xff]
      %v241 = vld [vmem:[%s1 + $0x180] sm:$0xff]
      %v242 = vld [vmem:[%s1 + $0x188] sm:$0xff]
      %v243 = vld [vmem:[%s1 + $0x190] sm:$0xff]
      %v244 = vld [vmem:[%s1 + $0x198] sm:$0xff]
      %v245 = vld [vmem:[%s1 + $0x1a0] sm:$0xff]
      %v246 = vld [vmem:[%s1 + $0x1a8] sm:$0xff]
      %v247 = vld [vmem:[%s1 + $0x1b0] sm:$0xff]
      %v248 = vld [vmem:[%s1 + $0x1b8] sm:$0xff]
      %v249 = vld [vmem:[%s1 + $0x1c0] sm:$0xff]
      %v250 = vld [vmem:[%s1 + $0x1c8] sm:$0xff]
      %v251 = vld [vmem:[%s1 + $0x1d0] sm:$0xff]
      %v252 = vld [vmem:[%s1 + $0x1d8] sm:$0xff]
      %v253 = vld [vmem:[%s1 + $0x1e0] sm:$0xff]
      %v254 = vld [vmem:[%s1 + $0x1e8] sm:$0xff]
      %v255 = vld [vmem:[%s1 + $0x1f0] sm:$0xff]
      %v256 = vld [vmem:[%s1 + $0x1f8] sm:$0xff]
      %v257 = vld [vmem:[%s1 + $0x200] sm:$0xff]
      %v258 = vld [vmem:[%s1 + $0x208] sm:$0xff]
      %v259 = vld [vmem:[%s1 + $0x210] sm:$0xff]
      %v260 = vld [vmem:[%s1 + $0x218] sm:$0xff]
      %v261 = vld [vmem:[%s1 + $0x220] sm:$0xff]
      %v262 = vld [vmem:[%s1 + $0x228] sm:$0xff]
      %v263 = vld [vmem:[%s1 + $0x230] sm:$0xff]
      %v264 = vld [vmem:[%s1 + $0x238] sm:$0xff]
      %v265 = vld [vmem:[%s1 + $0x240] sm:$0xff]
      %v266 = vld [vmem:[%s1 + $0x248] sm:$0xff]
      %v267 = vld [vmem:[%s1 + $0x250] sm:$0xff]
      %v268 = vld [vmem:[%s1 + $0x258] sm:$0xff]
      %v269 = vld [vmem:[%s1 + $0x260] sm:$0xff]
      %v270 = vld [vmem:[%s1 + $0x268] sm:$0xff]
      %v271 = vld [vmem:[%s1 + $0x270] sm:$0xff]
      %v272 = vld [vmem:[%s1 + $0x278] sm:$0xff]
      %v273 = vld [vmem:[%s1 + $0x280] sm:$0xff]
      %v274 = vld [vmem:[%s1 + $0x288] sm:$0xff]
      %v275 = vld [vmem:[%s1 + $0x290] sm:$0xff]
      %v276 = vld [vmem:[%s1 + $0x298] sm:$0xff]
      %v277 = vld [vmem:[%s1 + $0x2a0] sm:$0xff]
      %v278 = vld [vmem:[%s1 + $0x2a8] sm:$0xff]
      %v279 = vld [vmem:[%s1 + $0x2b0] sm:$0xff]
      %v280 = vld [vmem:[%s1 + $0x2b8] sm:$0xff]
      %v281 = vld [vmem:[%s1 + $0x2c0] sm:$0xff]
      %v282 = vld [vmem:[%s1 + $0x2c8] sm:$0xff]
      %v283 = vld [vmem:[%s1 + $0x2d0] sm:$0xff]
      %v284 = vld [vmem:[%s1 + $0x2d8] sm:$0xff]
      %v285 = vld [vmem:[%s1 + $0x2e0] sm:$0xff]
      %v286 = vld [vmem:[%s1 + $0x2e8] sm:$0xff]
      %v287 = vld [vmem:[%s1 + $0x2f0] sm:$0xff]
      %v288 = vld [vmem:[%s1 + $0x2f8] sm:$0xff]
      %v289 = vld [vmem:[%s1 + $0x300] sm:$0xff]
      %v290 = vld [vmem:[%s1 + $0x308] sm:$0xff]
      %v291 = vld [vmem:[%s1 + $0x310] sm:$0xff]
      %v292 = vld [vmem:[%s1 + $0x318] sm:$0xff]
      %v293 = vld [vmem:[%s1 + $0x320] sm:$0xff]
      %v294 = vld [vmem:[%s1 + $0x328] sm:$0xff]
      %v295 = vld [vmem:[%s1 + $0x330] sm:$0xff]
      %v296 = vld [vmem:[%s1 + $0x338] sm:$0xff]
      %v297 = vld [vmem:[%s1 + $0x340] sm:$0xff]
      %v298 = vld [vmem:[%s1 + $0x348] sm:$0xff]
      %v299 = vld [vmem:[%s1 + $0x350] sm:$0xff]
      %v300 = vld [vmem:[%s1 + $0x358] sm:$0xff]
      %v301 = vld [vmem:[%s1 + $0x360] sm:$0xff]
      %v302 = vld [vmem:[%s1 + $0x368] sm:$0xff]
      %v303 = vld [vmem:[%s1 + $0x370] sm:$0xff]
      %v304 = vld [vmem:[%s1 + $0x378] sm:$0xff]
      %v305 = vld [vmem:[%s1 + $0x380] sm:$0xff]
      %v306 = vld [vmem:[%s1 + $0x388] sm:$0xff]
      %v307 = vld [vmem:[%s1 + $0x390] sm:$0xff]
      %v308 = vld [vmem:[%s1 + $0x398] sm:$0xff]
      %v309 = vld [vmem:[%s1 + $0x3a0] sm:$0xff]
      %v310 = vld [vmem:[%s1 + $0x3a8] sm:$0xff]
      %v311 = vld [vmem:[%s1 + $0x3b0] sm:$0xff]
      %v312 = vld [vmem:[%s1 + $0x3b8] sm:$0xff]
      %v313 = vld [vmem:[%s1 + $0x3c0] sm:$0xff]
      %v314 = vld [vmem:[%s1 + $0x3c8] sm:$0xff]
      %v315 = vld [vmem:[%s1 + $0x3d0] sm:$0xff]
      %v316 = vld [vmem:[%s1 + $0x3d8] sm:$0xff]
      %v317 = vld [vmem:[%s1 + $0x3e0] sm:$0xff]
      %v318 = vld [vmem:[%s1 + $0x3e8] sm:$0xff]
      %v319 = vld [vmem:[%s1 + $0x3f0] sm:$0xff]
      %v320 = vld [vmem:[%s1 + $0x3f8] sm:$0xff]
      %v337 = vunpack.c.l.b16 %v177
      %v338 = vunpack.c.h.b16 %v177
      %v339 = vunpack.c.l.b16 %v178
      %v340 = vunpack.c.h.b16 %v178
      %v341 = vunpack.c.l.b16 %v179
      %v342 = vunpack.c.h.b16 %v179
      %v343 = vunpack.c.l.b16 %v180
      %v344 = vunpack.c.h.b16 %v180
      %v345 = vunpack.c.l.b16 %v181
      %v346 = vunpack.c.h.b16 %v181
      %v347 = vunpack.c.l.b16 %v182
      %v348 = vunpack.c.h.b16 %v182
      %v349 = vunpack.c.l.b16 %v183
      %v350 = vunpack.c.h.b16 %v183
      %v351 = vunpack.c.l.b16 %v184
      %v352 = vunpack.c.h.b16 %v184
      %v353 = vunpack.c.l.b16 %v185
      %v354 = vunpack.c.h.b16 %v185
      %v355 = vunpack.c.l.b16 %v186
      %v356 = vunpack.c.h.b16 %v186
      %v357 = vunpack.c.l.b16 %v187
      %v358 = vunpack.c.h.b16 %v187
      %v359 = vunpack.c.l.b16 %v188
      %v360 = vunpack.c.h.b16 %v188
      %v361 = vunpack.c.l.b16 %v189
      %v362 = vunpack.c.h.b16 %v189
      %v363 = vunpack.c.l.b16 %v190
      %v364 = vunpack.c.h.b16 %v190
      %v365 = vunpack.c.l.b16 %v191
      %v366 = vunpack.c.h.b16 %v191
      %v367 = vunpack.c.l.b16 %v192
      %v368 = vunpack.c.h.b16 %v192
      %v369 = vpack.c.b16 %v341, %v337
      %v370 = vpack.c.b16 %v342, %v338
      %v371 = vpack.c.b16 %v343, %v339
      %v372 = vpack.c.b16 %v344, %v340
      %v373 = vpack.c.b16 %v349, %v345
      %v374 = vpack.c.b16 %v350, %v346
      %v375 = vpack.c.b16 %v351, %v347
      %v376 = vpack.c.b16 %v352, %v348
      %v377 = vpack.c.b16 %v357, %v353
      %v378 = vpack.c.b16 %v358, %v354
      %v379 = vpack.c.b16 %v359, %v355
      %v380 = vpack.c.b16 %v360, %v356
      %v381 = vpack.c.b16 %v365, %v361
      %v382 = vpack.c.b16 %v366, %v362
      %v383 = vpack.c.b16 %v367, %v363
      %v384 = vpack.c.b16 %v368, %v364
      %v529 = vunpack.c.l.b16 %v193
      %v530 = vunpack.c.h.b16 %v193
      %v531 = vunpack.c.l.b16 %v194
      %v532 = vunpack.c.h.b16 %v194
      %v533 = vunpack.c.l.b16 %v195
      %v534 = vunpack.c.h.b16 %v195
      %v535 = vunpack.c.l.b16 %v196
      %v536 = vunpack.c.h.b16 %v196
      %v537 = vunpack.c.l.b16 %v197
      %v538 = vunpack.c.h.b16 %v197
      %v539 = vunpack.c.l.b16 %v198
      %v540 = vunpack.c.h.b16 %v198
      %v541 = vunpack.c.l.b16 %v199
      %v542 = vunpack.c.h.b16 %v199
      %v543 = vunpack.c.l.b16 %v200
      %v544 = vunpack.c.h.b16 %v200
      %v545 = vunpack.c.l.b16 %v201
      %v546 = vunpack.c.h.b16 %v201
      %v547 = vunpack.c.l.b16 %v202
      %v548 = vunpack.c.h.b16 %v202
      %v549 = vunpack.c.l.b16 %v203
      %v550 = vunpack.c.h.b16 %v203
      %v551 = vunpack.c.l.b16 %v204
      %v552 = vunpack.c.h.b16 %v204
      %v553 = vunpack.c.l.b16 %v205
      %v554 = vunpack.c.h.b16 %v205
      %v555 = vunpack.c.l.b16 %v206
      %v556 = vunpack.c.h.b16 %v206
      %v557 = vunpack.c.l.b16 %v207
      %v558 = vunpack.c.h.b16 %v207
      %v559 = vunpack.c.l.b16 %v208
      %v560 = vunpack.c.h.b16 %v208
      %v561 = vunpack.c.l.b16 %v209
      %v562 = vunpack.c.h.b16 %v209
      %v563 = vunpack.c.l.b16 %v210
      %v564 = vunpack.c.h.b16 %v210
      %v565 = vunpack.c.l.b16 %v211
      %v566 = vunpack.c.h.b16 %v211
      %v567 = vunpack.c.l.b16 %v212
      %v568 = vunpack.c.h.b16 %v212
      %v569 = vunpack.c.l.b16 %v213
      %v570 = vunpack.c.h.b16 %v213
      %v571 = vunpack.c.l.b16 %v214
      %v572 = vunpack.c.h.b16 %v214
      %v573 = vunpack.c.l.b16 %v215
      %v574 = vunpack.c.h.b16 %v215
      %v575 = vunpack.c.l.b16 %v216
      %v576 = vunpack.c.h.b16 %v216
      %v577 = vunpack.c.l.b16 %v217
      %v578 = vunpack.c.h.b16 %v217
      %v579 = vunpack.c.l.b16 %v218
      %v580 = vunpack.c.h.b16 %v218
      %v581 = vunpack.c.l.b16 %v219
      %v582 = vunpack.c.h.b16 %v219
      %v583 = vunpack.c.l.b16 %v220
      %v584 = vunpack.c.h.b16 %v220
      %v585 = vunpack.c.l.b16 %v221
      %v586 = vunpack.c.h.b16 %v221
      %v587 = vunpack.c.l.b16 %v222
      %v588 = vunpack.c.h.b16 %v222
      %v589 = vunpack.c.l.b16 %v223
      %v590 = vunpack.c.h.b16 %v223
      %v591 = vunpack.c.l.b16 %v224
      %v592 = vunpack.c.h.b16 %v224
      %v593 = vunpack.c.l.b16 %v225
      %v594 = vunpack.c.h.b16 %v225
      %v595 = vunpack.c.l.b16 %v226
      %v596 = vunpack.c.h.b16 %v226
      %v597 = vunpack.c.l.b16 %v227
      %v598 = vunpack.c.h.b16 %v227
      %v599 = vunpack.c.l.b16 %v228
      %v600 = vunpack.c.h.b16 %v228
      %v601 = vunpack.c.l.b16 %v229
      %v602 = vunpack.c.h.b16 %v229
      %v603 = vunpack.c.l.b16 %v230
      %v604 = vunpack.c.h.b16 %v230
      %v605 = vunpack.c.l.b16 %v231
      %v606 = vunpack.c.h.b16 %v231
      %v607 = vunpack.c.l.b16 %v232
      %v608 = vunpack.c.h.b16 %v232
      %v609 = vunpack.c.l.b16 %v233
      %v610 = vunpack.c.h.b16 %v233
      %v611 = vunpack.c.l.b16 %v234
      %v612 = vunpack.c.h.b16 %v234
      %v613 = vunpack.c.l.b16 %v235
      %v614 = vunpack.c.h.b16 %v235
      %v615 = vunpack.c.l.b16 %v236
      %v616 = vunpack.c.h.b16 %v236
      %v617 = vunpack.c.l.b16 %v237
      %v618 = vunpack.c.h.b16 %v237
      %v619 = vunpack.c.l.b16 %v238
      %v620 = vunpack.c.h.b16 %v238
      %v621 = vunpack.c.l.b16 %v239
      %v622 = vunpack.c.h.b16 %v239
      %v623 = vunpack.c.l.b16 %v240
      %v624 = vunpack.c.h.b16 %v240
      %v625 = vunpack.c.l.b16 %v241
      %v626 = vunpack.c.h.b16 %v241
      %v627 = vunpack.c.l.b16 %v242
      %v628 = vunpack.c.h.b16 %v242
      %v629 = vunpack.c.l.b16 %v243
      %v630 = vunpack.c.h.b16 %v243
      %v631 = vunpack.c.l.b16 %v244
      %v632 = vunpack.c.h.b16 %v244
      %v633 = vunpack.c.l.b16 %v245
      %v634 = vunpack.c.h.b16 %v245
      %v635 = vunpack.c.l.b16 %v246
      %v636 = vunpack.c.h.b16 %v246
      %v637 = vunpack.c.l.b16 %v247
      %v638 = vunpack.c.h.b16 %v247
      %v639 = vunpack.c.l.b16 %v248
      %v640 = vunpack.c.h.b16 %v248
      %v641 = vunpack.c.l.b16 %v249
      %v642 = vunpack.c.h.b16 %v249
      %v643 = vunpack.c.l.b16 %v250
      %v644 = vunpack.c.h.b16 %v250
      %v645 = vunpack.c.l.b16 %v251
      %v646 = vunpack.c.h.b16 %v251
      %v647 = vunpack.c.l.b16 %v252
      %v648 = vunpack.c.h.b16 %v252
      %v649 = vunpack.c.l.b16 %v253
      %v650 = vunpack.c.h.b16 %v253
      %v651 = vunpack.c.l.b16 %v254
      %v652 = vunpack.c.h.b16 %v254
      %v653 = vunpack.c.l.b16 %v255
      %v654 = vunpack.c.h.b16 %v255
      %v655 = vunpack.c.l.b16 %v256
      %v656 = vunpack.c.h.b16 %v256
      %v657 = vunpack.c.l.b16 %v257
      %v658 = vunpack.c.h.b16 %v257
      %v659 = vunpack.c.l.b16 %v258
      %v660 = vunpack.c.h.b16 %v258
      %v661 = vunpack.c.l.b16 %v259
      %v662 = vunpack.c.h.b16 %v259
      %v663 = vunpack.c.l.b16 %v260
      %v664 = vunpack.c.h.b16 %v260
      %v665 = vunpack.c.l.b16 %v261
      %v666 = vunpack.c.h.b16 %v261
      %v667 = vunpack.c.l.b16 %v262
      %v668 = vunpack.c.h.b16 %v262
      %v669 = vunpack.c.l.b16 %v263
      %v670 = vunpack.c.h.b16 %v263
      %v671 = vunpack.c.l.b16 %v264
      %v672 = vunpack.c.h.b16 %v264
      %v673 = vunpack.c.l.b16 %v265
      %v674 = vunpack.c.h.b16 %v265
      %v675 = vunpack.c.l.b16 %v266
      %v676 = vunpack.c.h.b16 %v266
      %v677 = vunpack.c.l.b16 %v267
      %v678 = vunpack.c.h.b16 %v267
      %v679 = vunpack.c.l.b16 %v268
      %v680 = vunpack.c.h.b16 %v268
      %v681 = vunpack.c.l.b16 %v269
      %v682 = vunpack.c.h.b16 %v269
      %v683 = vunpack.c.l.b16 %v270
      %v684 = vunpack.c.h.b16 %v270
      %v685 = vunpack.c.l.b16 %v271
      %v686 = vunpack.c.h.b16 %v271
      %v687 = vunpack.c.l.b16 %v272
      %v688 = vunpack.c.h.b16 %v272
      %v689 = vunpack.c.l.b16 %v273
      %v690 = vunpack.c.h.b16 %v273
      %v691 = vunpack.c.l.b16 %v274
      %v692 = vunpack.c.h.b16 %v274
      %v693 = vunpack.c.l.b16 %v275
      %v694 = vunpack.c.h.b16 %v275
      %v695 = vunpack.c.l.b16 %v276
      %v696 = vunpack.c.h.b16 %v276
      %v697 = vunpack.c.l.b16 %v277
      %v698 = vunpack.c.h.b16 %v277
      %v699 = vunpack.c.l.b16 %v278
      %v700 = vunpack.c.h.b16 %v278
      %v701 = vunpack.c.l.b16 %v279
      %v702 = vunpack.c.h.b16 %v279
      %v703 = vunpack.c.l.b16 %v280
      %v704 = vunpack.c.h.b16 %v280
      %v705 = vunpack.c.l.b16 %v281
      %v706 = vunpack.c.h.b16 %v281
      %v707 = vunpack.c.l.b16 %v282
      %v708 = vunpack.c.h.b16 %v282
      %v709 = vunpack.c.l.b16 %v283
      %v710 = vunpack.c.h.b16 %v283
      %v711 = vunpack.c.l.b16 %v284
      %v712 = vunpack.c.h.b16 %v284
      %v713 = vunpack.c.l.b16 %v285
      %v714 = vunpack.c.h.b16 %v285
      %v715 = vunpack.c.l.b16 %v286
      %v716 = vunpack.c.h.b16 %v286
      %v717 = vunpack.c.l.b16 %v287
      %v718 = vunpack.c.h.b16 %v287
      %v719 = vunpack.c.l.b16 %v288
      %v720 = vunpack.c.h.b16 %v288
      %v721 = vunpack.c.l.b16 %v289
      %v722 = vunpack.c.h.b16 %v289
      %v723 = vunpack.c.l.b16 %v290
      %v724 = vunpack.c.h.b16 %v290
      %v725 = vunpack.c.l.b16 %v291
      %v726 = vunpack.c.h.b16 %v291
      %v727 = vunpack.c.l.b16 %v292
      %v728 = vunpack.c.h.b16 %v292
      %v729 = vunpack.c.l.b16 %v293
      %v730 = vunpack.c.h.b16 %v293
      %v731 = vunpack.c.l.b16 %v294
      %v732 = vunpack.c.h.b16 %v294
      %v733 = vunpack.c.l.b16 %v295
      %v734 = vunpack.c.h.b16 %v295
      %v735 = vunpack.c.l.b16 %v296
      %v736 = vunpack.c.h.b16 %v296
      %v737 = vunpack.c.l.b16 %v297
      %v738 = vunpack.c.h.b16 %v297
      %v739 = vunpack.c.l.b16 %v298
      %v740 = vunpack.c.h.b16 %v298
      %v741 = vunpack.c.l.b16 %v299
      %v742 = vunpack.c.h.b16 %v299
      %v743 = vunpack.c.l.b16 %v300
      %v744 = vunpack.c.h.b16 %v300
      %v745 = vunpack.c.l.b16 %v301
      %v746 = vunpack.c.h.b16 %v301
      %v747 = vunpack.c.l.b16 %v302
      %v748 = vunpack.c.h.b16 %v302
      %v749 = vunpack.c.l.b16 %v303
      %v750 = vunpack.c.h.b16 %v303
      %v751 = vunpack.c.l.b16 %v304
      %v752 = vunpack.c.h.b16 %v304
      %v753 = vunpack.c.l.b16 %v305
      %v754 = vunpack.c.h.b16 %v305
      %v755 = vunpack.c.l.b16 %v306
      %v756 = vunpack.c.h.b16 %v306
      %v757 = vunpack.c.l.b16 %v307
      %v758 = vunpack.c.h.b16 %v307
      %v759 = vunpack.c.l.b16 %v308
      %v760 = vunpack.c.h.b16 %v308
      %v761 = vunpack.c.l.b16 %v309
      %v762 = vunpack.c.h.b16 %v309
      %v763 = vunpack.c.l.b16 %v310
      %v764 = vunpack.c.h.b16 %v310
      %v765 = vunpack.c.l.b16 %v311
      %v766 = vunpack.c.h.b16 %v311
      %v767 = vunpack.c.l.b16 %v312
      %v768 = vunpack.c.h.b16 %v312
      %v769 = vunpack.c.l.b16 %v313
      %v770 = vunpack.c.h.b16 %v313
      %v771 = vunpack.c.l.b16 %v314
      %v772 = vunpack.c.h.b16 %v314
      %v773 = vunpack.c.l.b16 %v315
      %v774 = vunpack.c.h.b16 %v315
      %v775 = vunpack.c.l.b16 %v316
      %v776 = vunpack.c.h.b16 %v316
      %v777 = vunpack.c.l.b16 %v317
      %v778 = vunpack.c.h.b16 %v317
      %v779 = vunpack.c.l.b16 %v318
      %v780 = vunpack.c.h.b16 %v318
      %v781 = vunpack.c.l.b16 %v319
      %v782 = vunpack.c.h.b16 %v319
      %v783 = vunpack.c.l.b16 %v320
      %v784 = vunpack.c.h.b16 %v320
      %v785 = vpack.c.b16 %v533, %v529
      %v786 = vpack.c.b16 %v534, %v530
      %v787 = vpack.c.b16 %v535, %v531
      %v788 = vpack.c.b16 %v536, %v532
      %v789 = vpack.c.b16 %v541, %v537
      %v790 = vpack.c.b16 %v542, %v538
      %v791 = vpack.c.b16 %v543, %v539
      %v792 = vpack.c.b16 %v544, %v540
      %v793 = vpack.c.b16 %v549, %v545
      %v794 = vpack.c.b16 %v550, %v546
      %v795 = vpack.c.b16 %v551, %v547
      %v796 = vpack.c.b16 %v552, %v548
      %v797 = vpack.c.b16 %v557, %v553
      %v798 = vpack.c.b16 %v558, %v554
      %v799 = vpack.c.b16 %v559, %v555
      %v800 = vpack.c.b16 %v560, %v556
      %v801 = vpack.c.b16 %v565, %v561
      %v802 = vpack.c.b16 %v566, %v562
      %v803 = vpack.c.b16 %v567, %v563
      %v804 = vpack.c.b16 %v568, %v564
      %v805 = vpack.c.b16 %v573, %v569
      %v806 = vpack.c.b16 %v574, %v570
      %v807 = vpack.c.b16 %v575, %v571
      %v808 = vpack.c.b16 %v576, %v572
      %v809 = vpack.c.b16 %v581, %v577
      %v810 = vpack.c.b16 %v582, %v578
      %v811 = vpack.c.b16 %v583, %v579
      %v812 = vpack.c.b16 %v584, %v580
      %v813 = vpack.c.b16 %v589, %v585
      %v814 = vpack.c.b16 %v590, %v586
      %v815 = vpack.c.b16 %v591, %v587
      %v816 = vpack.c.b16 %v592, %v588
      %v817 = vpack.c.b16 %v597, %v593
      %v818 = vpack.c.b16 %v598, %v594
      %v819 = vpack.c.b16 %v599, %v595
      %v820 = vpack.c.b16 %v600, %v596
      %v821 = vpack.c.b16 %v605, %v601
      %v822 = vpack.c.b16 %v606, %v602
      %v823 = vpack.c.b16 %v607, %v603
      %v824 = vpack.c.b16 %v608, %v604
      %v825 = vpack.c.b16 %v613, %v609
      %v826 = vpack.c.b16 %v614, %v610
      %v827 = vpack.c.b16 %v615, %v611
      %v828 = vpack.c.b16 %v616, %v612
      %v829 = vpack.c.b16 %v621, %v617
      %v830 = vpack.c.b16 %v622, %v618
      %v831 = vpack.c.b16 %v623, %v619
      %v832 = vpack.c.b16 %v624, %v620
      %v833 = vpack.c.b16 %v629, %v625
      %v834 = vpack.c.b16 %v630, %v626
      %v835 = vpack.c.b16 %v631, %v627
      %v836 = vpack.c.b16 %v632, %v628
      %v837 = vpack.c.b16 %v637, %v633
      %v838 = vpack.c.b16 %v638, %v634
      %v839 = vpack.c.b16 %v639, %v635
      %v840 = vpack.c.b16 %v640, %v636
      %v841 = vpack.c.b16 %v645, %v641
      %v842 = vpack.c.b16 %v646, %v642
      %v843 = vpack.c.b16 %v647, %v643
      %v844 = vpack.c.b16 %v648, %v644
      %v845 = vpack.c.b16 %v653, %v649
      %v846 = vpack.c.b16 %v654, %v650
      %v847 = vpack.c.b16 %v655, %v651
      %v848 = vpack.c.b16 %v656, %v652
      %v849 = vpack.c.b16 %v661, %v657
      %v850 = vpack.c.b16 %v662, %v658
      %v851 = vpack.c.b16 %v663, %v659
      %v852 = vpack.c.b16 %v664, %v660
      %v853 = vpack.c.b16 %v669, %v665
      %v854 = vpack.c.b16 %v670, %v666
      %v855 = vpack.c.b16 %v671, %v667
      %v856 = vpack.c.b16 %v672, %v668
      %v857 = vpack.c.b16 %v677, %v673
      %v858 = vpack.c.b16 %v678, %v674
      %v859 = vpack.c.b16 %v679, %v675
      %v860 = vpack.c.b16 %v680, %v676
      %v861 = vpack.c.b16 %v685, %v681
      %v862 = vpack.c.b16 %v686, %v682
      %v863 = vpack.c.b16 %v687, %v683
      %v864 = vpack.c.b16 %v688, %v684
      %v865 = vpack.c.b16 %v693, %v689
      %v866 = vpack.c.b16 %v694, %v690
      %v867 = vpack.c.b16 %v695, %v691
      %v868 = vpack.c.b16 %v696, %v692
      %v869 = vpack.c.b16 %v701, %v697
      %v870 = vpack.c.b16 %v702, %v698
      %v871 = vpack.c.b16 %v703, %v699
      %v872 = vpack.c.b16 %v704, %v700
      %v873 = vpack.c.b16 %v709, %v705
      %v874 = vpack.c.b16 %v710, %v706
      %v875 = vpack.c.b16 %v711, %v707
      %v876 = vpack.c.b16 %v712, %v708
      %v877 = vpack.c.b16 %v717, %v713
      %v878 = vpack.c.b16 %v718, %v714
      %v879 = vpack.c.b16 %v719, %v715
      %v880 = vpack.c.b16 %v720, %v716
      %v881 = vpack.c.b16 %v725, %v721
      %v882 = vpack.c.b16 %v726, %v722
      %v883 = vpack.c.b16 %v727, %v723
      %v884 = vpack.c.b16 %v728, %v724
      %v885 = vpack.c.b16 %v733, %v729
      %v886 = vpack.c.b16 %v734, %v730
      %v887 = vpack.c.b16 %v735, %v731
      %v888 = vpack.c.b16 %v736, %v732
      %v889 = vpack.c.b16 %v741, %v737
      %v890 = vpack.c.b16 %v742, %v738
      %v891 = vpack.c.b16 %v743, %v739
      %v892 = vpack.c.b16 %v744, %v740
      %v893 = vpack.c.b16 %v749, %v745
      %v894 = vpack.c.b16 %v750, %v746
      %v895 = vpack.c.b16 %v751, %v747
      %v896 = vpack.c.b16 %v752, %v748
      %v897 = vpack.c.b16 %v757, %v753
      %v898 = vpack.c.b16 %v758, %v754
      %v899 = vpack.c.b16 %v759, %v755
      %v900 = vpack.c.b16 %v760, %v756
      %v901 = vpack.c.b16 %v765, %v761
      %v902 = vpack.c.b16 %v766, %v762
      %v903 = vpack.c.b16 %v767, %v763
      %v904 = vpack.c.b16 %v768, %v764
      %v905 = vpack.c.b16 %v773, %v769
      %v906 = vpack.c.b16 %v774, %v770
      %v907 = vpack.c.b16 %v775, %v771
      %v908 = vpack.c.b16 %v776, %v772
      %v909 = vpack.c.b16 %v781, %v777
      %v910 = vpack.c.b16 %v782, %v778
      %v911 = vpack.c.b16 %v783, %v779
      %v912 = vpack.c.b16 %v784, %v780
      %1041 = vmatpush.bf16.msra.mxu0 %v813
      %1042 = vmatpush.bf16.msra.mxu0 %v809
      %1043 = vmatpush.bf16.msra.mxu0 %v805
      %1044 = vmatpush.bf16.msra.mxu0 %v801
      %1045 = vmatpush.bf16.msra.mxu0 %v797
      %1046 = vmatpush.bf16.msra.mxu0 %v793
      %1047 = vmatpush.bf16.msra.mxu0 %v789
      %1048 = vmatpush.bf16.msra.mxu0 %v785
      %1049 = vmatmul.bf16.gmra.mxu0 %v369
      %v1050 = vpop.f32.mrf.mxu0
      %v1051 = vadd.f32 0.0, %v1050
      %v1052 = vpop.f32.mrf.mxu0
      %v1053 = vadd.f32 0.0, %v1052
      %1054 = vmatmul.bf16.gmra.mxu0 %v373
      %v1055 = vpop.f32.mrf.mxu0
      %v1056 = vadd.f32 0.0, %v1055
      %v1057 = vpop.f32.mrf.mxu0
      %v1058 = vadd.f32 0.0, %v1057
      %1059 = vmatmul.bf16.gmra.mxu0 %v377
      %v1060 = vpop.f32.mrf.mxu0
      %v1061 = vadd.f32 0.0, %v1060
      %v1062 = vpop.f32.mrf.mxu0
      %v1063 = vadd.f32 0.0, %v1062
      %1064 = vmatmul.bf16.gmra.mxu0 %v381
      %v1065 = vpop.f32.mrf.mxu0
      %v1066 = vadd.f32 0.0, %v1065
      %v1067 = vpop.f32.mrf.mxu0
      %v1068 = vadd.f32 0.0, %v1067
      %1069 = vdwg.mxu0
      %1070 = vmatpush.bf16.msra.mxu0 %v845
      %1071 = vmatpush.bf16.msra.mxu0 %v841
      %1072 = vmatpush.bf16.msra.mxu0 %v837
      %1073 = vmatpush.bf16.msra.mxu0 %v833
      %1074 = vmatpush.bf16.msra.mxu0 %v829
      %1075 = vmatpush.bf16.msra.mxu0 %v825
      %1076 = vmatpush.bf16.msra.mxu0 %v821
      %1077 = vmatpush.bf16.msra.mxu0 %v817
      %1078 = vmatmul.bf16.gmra.mxu0 %v370
      %v1079 = vpop.f32.mrf.mxu0
      %v1080 = vadd.f32 %v1051, %v1079
      %v1081 = vpop.f32.mrf.mxu0
      %v1082 = vadd.f32 %v1053, %v1081
      %1083 = vmatmul.bf16.gmra.mxu0 %v374
      %v1084 = vpop.f32.mrf.mxu0
      %v1085 = vadd.f32 %v1056, %v1084
      %v1086 = vpop.f32.mrf.mxu0
      %v1087 = vadd.f32 %v1058, %v1086
      %1088 = vmatmul.bf16.gmra.mxu0 %v378
      %v1089 = vpop.f32.mrf.mxu0
      %v1090 = vadd.f32 %v1061, %v1089
      %v1091 = vpop.f32.mrf.mxu0
      %v1092 = vadd.f32 %v1063, %v1091
      %1093 = vmatmul.bf16.gmra.mxu0 %v382
      %v1094 = vpop.f32.mrf.mxu0
      %v1095 = vadd.f32 %v1066, %v1094
      %v1096 = vpop.f32.mrf.mxu0
      %v1097 = vadd.f32 %v1068, %v1096
      %1098 = vdwg.mxu0
      %1099 = vmatpush.bf16.msra.mxu0 %v877
      %1100 = vmatpush.bf16.msra.mxu0 %v873
      %1101 = vmatpush.bf16.msra.mxu0 %v869
      %1102 = vmatpush.bf16.msra.mxu0 %v865
      %1103 = vmatpush.bf16.msra.mxu0 %v861
      %1104 = vmatpush.bf16.msra.mxu0 %v857
      %1105 = vmatpush.bf16.msra.mxu0 %v853
      %1106 = vmatpush.bf16.msra.mxu0 %v849
      %1107 = vmatmul.bf16.gmra.mxu0 %v371
      %v1108 = vpop.f32.mrf.mxu0
      %v1109 = vadd.f32 %v1080, %v1108
      %v1110 = vpop.f32.mrf.mxu0
      %v1111 = vadd.f32 %v1082, %v1110
      %1112 = vmatmul.bf16.gmra.mxu0 %v375
      %v1113 = vpop.f32.mrf.mxu0
      %v1114 = vadd.f32 %v1085, %v1113
      %v1115 = vpop.f32.mrf.mxu0
      %v1116 = vadd.f32 %v1087, %v1115
      %1117 = vmatmul.bf16.gmra.mxu0 %v379
      %v1118 = vpop.f32.mrf.mxu0
      %v1119 = vadd.f32 %v1090, %v1118
      %v1120 = vpop.f32.mrf.mxu0
      %v1121 = vadd.f32 %v1092, %v1120
      %1122 = vmatmul.bf16.gmra.mxu0 %v383
      %v1123 = vpop.f32.mrf.mxu0
      %v1124 = vadd.f32 %v1095, %v1123
      %v1125 = vpop.f32.mrf.mxu0
      %v1126 = vadd.f32 %v1097, %v1125
      %1127 = vdwg.mxu0
      %1128 = vmatpush.bf16.msra.mxu0 %v909
      %1129 = vmatpush.bf16.msra.mxu0 %v905
      %1130 = vmatpush.bf16.msra.mxu0 %v901
      %1131 = vmatpush.bf16.msra.mxu0 %v897
      %1132 = vmatpush.bf16.msra.mxu0 %v893
      %1133 = vmatpush.bf16.msra.mxu0 %v889
      %1134 = vmatpush.bf16.msra.mxu0 %v885
      %1135 = vmatpush.bf16.msra.mxu0 %v881
      %1136 = vmatmul.bf16.gmra.mxu0 %v372
      %v1137 = vpop.f32.mrf.mxu0
      %v1138 = vadd.f32 %v1109, %v1137
      %v1139 = vpop.f32.mrf.mxu0
      %v1140 = vadd.f32 %v1111, %v1139
      %1141 = vmatmul.bf16.gmra.mxu0 %v376
      %v1142 = vpop.f32.mrf.mxu0
      %v1143 = vadd.f32 %v1114, %v1142
      %v1144 = vpop.f32.mrf.mxu0
      %v1145 = vadd.f32 %v1116, %v1144
      %1146 = vmatmul.bf16.gmra.mxu0 %v380
      %v1147 = vpop.f32.mrf.mxu0
      %v1148 = vadd.f32 %v1119, %v1147
      %v1149 = vpop.f32.mrf.mxu0
      %v1150 = vadd.f32 %v1121, %v1149
      %1151 = vmatmul.bf16.gmra.mxu0 %v384
      %v1152 = vpop.f32.mrf.mxu0
      %v1153 = vadd.f32 %v1124, %v1152
      %v1154 = vpop.f32.mrf.mxu0
      %v1155 = vadd.f32 %v1126, %v1154
      %1156 = vdwg.mxu0
      %1157 = vmatpush.bf16.msra.mxu0 %v814
      %1158 = vmatpush.bf16.msra.mxu0 %v810
      %1159 = vmatpush.bf16.msra.mxu0 %v806
      %1160 = vmatpush.bf16.msra.mxu0 %v802
      %1161 = vmatpush.bf16.msra.mxu0 %v798
      %1162 = vmatpush.bf16.msra.mxu0 %v794
      %1163 = vmatpush.bf16.msra.mxu0 %v790
      %1164 = vmatpush.bf16.msra.mxu0 %v786
      %1165 = vmatmul.bf16.gmra.mxu0 %v369
      %v1166 = vpop.f32.mrf.mxu0
      %v1167 = vadd.f32 0.0, %v1166
      %v1168 = vpop.f32.mrf.mxu0
      %v1169 = vadd.f32 0.0, %v1168
      %1170 = vmatmul.bf16.gmra.mxu0 %v373
      %v1171 = vpop.f32.mrf.mxu0
      %v1172 = vadd.f32 0.0, %v1171
      %v1173 = vpop.f32.mrf.mxu0
      %v1174 = vadd.f32 0.0, %v1173
      %1175 = vmatmul.bf16.gmra.mxu0 %v377
      %v1176 = vpop.f32.mrf.mxu0
      %v1177 = vadd.f32 0.0, %v1176
      %v1178 = vpop.f32.mrf.mxu0
      %v1179 = vadd.f32 0.0, %v1178
      %1180 = vmatmul.bf16.gmra.mxu0 %v381
      %v1181 = vpop.f32.mrf.mxu0
      %v1182 = vadd.f32 0.0, %v1181
      %v1183 = vpop.f32.mrf.mxu0
      %v1184 = vadd.f32 0.0, %v1183
      %1185 = vdwg.mxu0
      %1186 = vmatpush.bf16.msra.mxu0 %v846
      %1187 = vmatpush.bf16.msra.mxu0 %v842
      %1188 = vmatpush.bf16.msra.mxu0 %v838
      %1189 = vmatpush.bf16.msra.mxu0 %v834
      %1190 = vmatpush.bf16.msra.mxu0 %v830
      %1191 = vmatpush.bf16.msra.mxu0 %v826
      %1192 = vmatpush.bf16.msra.mxu0 %v822
      %1193 = vmatpush.bf16.msra.mxu0 %v818
      %1194 = vmatmul.bf16.gmra.mxu0 %v370
      %v1195 = vpop.f32.mrf.mxu0
      %v1196 = vadd.f32 %v1167, %v1195
      %v1197 = vpop.f32.mrf.mxu0
      %v1198 = vadd.f32 %v1169, %v1197
      %1199 = vmatmul.bf16.gmra.mxu0 %v374
      %v1200 = vpop.f32.mrf.mxu0
      %v1201 = vadd.f32 %v1172, %v1200
      %v1202 = vpop.f32.mrf.mxu0
      %v1203 = vadd.f32 %v1174, %v1202
      %1204 = vmatmul.bf16.gmra.mxu0 %v378
      %v1205 = vpop.f32.mrf.mxu0
      %v1206 = vadd.f32 %v1177, %v1205
      %v1207 = vpop.f32.mrf.mxu0
      %v1208 = vadd.f32 %v1179, %v1207
      %1209 = vmatmul.bf16.gmra.mxu0 %v382
      %v1210 = vpop.f32.mrf.mxu0
      %v1211 = vadd.f32 %v1182, %v1210
      %v1212 = vpop.f32.mrf.mxu0
      %v1213 = vadd.f32 %v1184, %v1212
      %1214 = vdwg.mxu0
      %1215 = vmatpush.bf16.msra.mxu0 %v878
      %1216 = vmatpush.bf16.msra.mxu0 %v874
      %1217 = vmatpush.bf16.msra.mxu0 %v870
      %1218 = vmatpush.bf16.msra.mxu0 %v866
      %1219 = vmatpush.bf16.msra.mxu0 %v862
      %1220 = vmatpush.bf16.msra.mxu0 %v858
      %1221 = vmatpush.bf16.msra.mxu0 %v854
      %1222 = vmatpush.bf16.msra.mxu0 %v850
      %1223 = vmatmul.bf16.gmra.mxu0 %v371
      %v1224 = vpop.f32.mrf.mxu0
      %v1225 = vadd.f32 %v1196, %v1224
      %v1226 = vpop.f32.mrf.mxu0
      %v1227 = vadd.f32 %v1198, %v1226
      %1228 = vmatmul.bf16.gmra.mxu0 %v375
      %v1229 = vpop.f32.mrf.mxu0
      %v1230 = vadd.f32 %v1201, %v1229
      %v1231 = vpop.f32.mrf.mxu0
      %v1232 = vadd.f32 %v1203, %v1231
      %1233 = vmatmul.bf16.gmra.mxu0 %v379
      %v1234 = vpop.f32.mrf.mxu0
      %v1235 = vadd.f32 %v1206, %v1234
      %v1236 = vpop.f32.mrf.mxu0
      %v1237 = vadd.f32 %v1208, %v1236
      %1238 = vmatmul.bf16.gmra.mxu0 %v383
      %v1239 = vpop.f32.mrf.mxu0
      %v1240 = vadd.f32 %v1211, %v1239
      %v1241 = vpop.f32.mrf.mxu0
      %v1242 = vadd.f32 %v1213, %v1241
      %1243 = vdwg.mxu0
      %1244 = vmatpush.bf16.msra.mxu0 %v910
      %1245 = vmatpush.bf16.msra.mxu0 %v906
      %1246 = vmatpush.bf16.msra.mxu0 %v902
      %1247 = vmatpush.bf16.msra.mxu0 %v898
      %1248 = vmatpush.bf16.msra.mxu0 %v894
      %1249 = vmatpush.bf16.msra.mxu0 %v890
      %1250 = vmatpush.bf16.msra.mxu0 %v886
      %1251 = vmatpush.bf16.msra.mxu0 %v882
      %1252 = vmatmul.bf16.gmra.mxu0 %v372
      %v1253 = vpop.f32.mrf.mxu0
      %v1254 = vadd.f32 %v1225, %v1253
      %v1255 = vpop.f32.mrf.mxu0
      %v1256 = vadd.f32 %v1227, %v1255
      %1257 = vmatmul.bf16.gmra.mxu0 %v376
      %v1258 = vpop.f32.mrf.mxu0
      %v1259 = vadd.f32 %v1230, %v1258
      %v1260 = vpop.f32.mrf.mxu0
      %v1261 = vadd.f32 %v1232, %v1260
      %1262 = vmatmul.bf16.gmra.mxu0 %v380
      %v1263 = vpop.f32.mrf.mxu0
      %v1264 = vadd.f32 %v1235, %v1263
      %v1265 = vpop.f32.mrf.mxu0
      %v1266 = vadd.f32 %v1237, %v1265
      %1267 = vmatmul.bf16.gmra.mxu0 %v384
      %v1268 = vpop.f32.mrf.mxu0
      %v1269 = vadd.f32 %v1240, %v1268
      %v1270 = vpop.f32.mrf.mxu0
      %v1271 = vadd.f32 %v1242, %v1270
      %1272 = vdwg.mxu0
      %1273 = vmatpush.bf16.msra.mxu0 %v815
      %1274 = vmatpush.bf16.msra.mxu0 %v811
      %1275 = vmatpush.bf16.msra.mxu0 %v807
      %1276 = vmatpush.bf16.msra.mxu0 %v803
      %1277 = vmatpush.bf16.msra.mxu0 %v799
      %1278 = vmatpush.bf16.msra.mxu0 %v795
      %1279 = vmatpush.bf16.msra.mxu0 %v791
      %1280 = vmatpush.bf16.msra.mxu0 %v787
      %1281 = vmatmul.bf16.gmra.mxu0 %v369
      %v1282 = vpop.f32.mrf.mxu0
      %v1283 = vadd.f32 0.0, %v1282
      %v1284 = vpop.f32.mrf.mxu0
      %v1285 = vadd.f32 0.0, %v1284
      %1286 = vmatmul.bf16.gmra.mxu0 %v373
      %v1287 = vpop.f32.mrf.mxu0
      %v1288 = vadd.f32 0.0, %v1287
      %v1289 = vpop.f32.mrf.mxu0
      %v1290 = vadd.f32 0.0, %v1289
      %1291 = vmatmul.bf16.gmra.mxu0 %v377
      %v1292 = vpop.f32.mrf.mxu0
      %v1293 = vadd.f32 0.0, %v1292
      %v1294 = vpop.f32.mrf.mxu0
      %v1295 = vadd.f32 0.0, %v1294
      %1296 = vmatmul.bf16.gmra.mxu0 %v381
      %v1297 = vpop.f32.mrf.mxu0
      %v1298 = vadd.f32 0.0, %v1297
      %v1299 = vpop.f32.mrf.mxu0
      %v1300 = vadd.f32 0.0, %v1299
      %1301 = vdwg.mxu0
      %1302 = vmatpush.bf16.msra.mxu0 %v847
      %1303 = vmatpush.bf16.msra.mxu0 %v843
      %1304 = vmatpush.bf16.msra.mxu0 %v839
      %1305 = vmatpush.bf16.msra.mxu0 %v835
      %1306 = vmatpush.bf16.msra.mxu0 %v831
      %1307 = vmatpush.bf16.msra.mxu0 %v827
      %1308 = vmatpush.bf16.msra.mxu0 %v823
      %1309 = vmatpush.bf16.msra.mxu0 %v819
      %1310 = vmatmul.bf16.gmra.mxu0 %v370
      %v1311 = vpop.f32.mrf.mxu0
      %v1312 = vadd.f32 %v1283, %v1311
      %v1313 = vpop.f32.mrf.mxu0
      %v1314 = vadd.f32 %v1285, %v1313
      %1315 = vmatmul.bf16.gmra.mxu0 %v374
      %v1316 = vpop.f32.mrf.mxu0
      %v1317 = vadd.f32 %v1288, %v1316
      %v1318 = vpop.f32.mrf.mxu0
      %v1319 = vadd.f32 %v1290, %v1318
      %1320 = vmatmul.bf16.gmra.mxu0 %v378
      %v1321 = vpop.f32.mrf.mxu0
      %v1322 = vadd.f32 %v1293, %v1321
      %v1323 = vpop.f32.mrf.mxu0
      %v1324 = vadd.f32 %v1295, %v1323
      %1325 = vmatmul.bf16.gmra.mxu0 %v382
      %v1326 = vpop.f32.mrf.mxu0
      %v1327 = vadd.f32 %v1298, %v1326
      %v1328 = vpop.f32.mrf.mxu0
      %v1329 = vadd.f32 %v1300, %v1328
      %1330 = vdwg.mxu0
      %1331 = vmatpush.bf16.msra.mxu0 %v879
      %1332 = vmatpush.bf16.msra.mxu0 %v875
      %1333 = vmatpush.bf16.msra.mxu0 %v871
      %1334 = vmatpush.bf16.msra.mxu0 %v867
      %1335 = vmatpush.bf16.msra.mxu0 %v863
      %1336 = vmatpush.bf16.msra.mxu0 %v859
      %1337 = vmatpush.bf16.msra.mxu0 %v855
      %1338 = vmatpush.bf16.msra.mxu0 %v851
      %1339 = vmatmul.bf16.gmra.mxu0 %v371
      %v1340 = vpop.f32.mrf.mxu0
      %v1341 = vadd.f32 %v1312, %v1340
      %v1342 = vpop.f32.mrf.mxu0
      %v1343 = vadd.f32 %v1314, %v1342
      %1344 = vmatmul.bf16.gmra.mxu0 %v375
      %v1345 = vpop.f32.mrf.mxu0
      %v1346 = vadd.f32 %v1317, %v1345
      %v1347 = vpop.f32.mrf.mxu0
      %v1348 = vadd.f32 %v1319, %v1347
      %1349 = vmatmul.bf16.gmra.mxu0 %v379
      %v1350 = vpop.f32.mrf.mxu0
      %v1351 = vadd.f32 %v1322, %v1350
      %v1352 = vpop.f32.mrf.mxu0
      %v1353 = vadd.f32 %v1324, %v1352
      %1354 = vmatmul.bf16.gmra.mxu0 %v383
      %v1355 = vpop.f32.mrf.mxu0
      %v1356 = vadd.f32 %v1327, %v1355
      %v1357 = vpop.f32.mrf.mxu0
      %v1358 = vadd.f32 %v1329, %v1357
      %1359 = vdwg.mxu0
      %1360 = vmatpush.bf16.msra.mxu0 %v911
      %1361 = vmatpush.bf16.msra.mxu0 %v907
      %1362 = vmatpush.bf16.msra.mxu0 %v903
      %1363 = vmatpush.bf16.msra.mxu0 %v899
      %1364 = vmatpush.bf16.msra.mxu0 %v895
      %1365 = vmatpush.bf16.msra.mxu0 %v891
      %1366 = vmatpush.bf16.msra.mxu0 %v887
      %1367 = vmatpush.bf16.msra.mxu0 %v883
      %1368 = vmatmul.bf16.gmra.mxu0 %v372
      %v1369 = vpop.f32.mrf.mxu0
      %v1370 = vadd.f32 %v1341, %v1369
      %v1371 = vpop.f32.mrf.mxu0
      %v1372 = vadd.f32 %v1343, %v1371
      %1373 = vmatmul.bf16.gmra.mxu0 %v376
      %v1374 = vpop.f32.mrf.mxu0
      %v1375 = vadd.f32 %v1346, %v1374
      %v1376 = vpop.f32.mrf.mxu0
      %v1377 = vadd.f32 %v1348, %v1376
      %1378 = vmatmul.bf16.gmra.mxu0 %v380
      %v1379 = vpop.f32.mrf.mxu0
      %v1380 = vadd.f32 %v1351, %v1379
      %v1381 = vpop.f32.mrf.mxu0
      %v1382 = vadd.f32 %v1353, %v1381
      %1383 = vmatmul.bf16.gmra.mxu0 %v384
      %v1384 = vpop.f32.mrf.mxu0
      %v1385 = vadd.f32 %v1356, %v1384
      %v1386 = vpop.f32.mrf.mxu0
      %v1387 = vadd.f32 %v1358, %v1386
      %1388 = vdwg.mxu0
      %1389 = vmatpush.bf16.msra.mxu0 %v816
      %1390 = vmatpush.bf16.msra.mxu0 %v812
      %1391 = vmatpush.bf16.msra.mxu0 %v808
      %1392 = vmatpush.bf16.msra.mxu0 %v804
      %1393 = vmatpush.bf16.msra.mxu0 %v800
      %1394 = vmatpush.bf16.msra.mxu0 %v796
      %1395 = vmatpush.bf16.msra.mxu0 %v792
      %1396 = vmatpush.bf16.msra.mxu0 %v788
      %1397 = vmatmul.bf16.gmra.mxu0 %v369
      %v1398 = vpop.f32.mrf.mxu0
      %v1399 = vadd.f32 0.0, %v1398
      %v1400 = vpop.f32.mrf.mxu0
      %v1401 = vadd.f32 0.0, %v1400
      %1402 = vmatmul.bf16.gmra.mxu0 %v373
      %v1403 = vpop.f32.mrf.mxu0
      %v1404 = vadd.f32 0.0, %v1403
      %v1405 = vpop.f32.mrf.mxu0
      %v1406 = vadd.f32 0.0, %v1405
      %1407 = vmatmul.bf16.gmra.mxu0 %v377
      %v1408 = vpop.f32.mrf.mxu0
      %v1409 = vadd.f32 0.0, %v1408
      %v1410 = vpop.f32.mrf.mxu0
      %v1411 = vadd.f32 0.0, %v1410
      %1412 = vmatmul.bf16.gmra.mxu0 %v381
      %v1413 = vpop.f32.mrf.mxu0
      %v1414 = vadd.f32 0.0, %v1413
      %v1415 = vpop.f32.mrf.mxu0
      %v1416 = vadd.f32 0.0, %v1415
      %1417 = vdwg.mxu0
      %1418 = vmatpush.bf16.msra.mxu0 %v848
      %1419 = vmatpush.bf16.msra.mxu0 %v844
      %1420 = vmatpush.bf16.msra.mxu0 %v840
      %1421 = vmatpush.bf16.msra.mxu0 %v836
      %1422 = vmatpush.bf16.msra.mxu0 %v832
      %1423 = vmatpush.bf16.msra.mxu0 %v828
      %1424 = vmatpush.bf16.msra.mxu0 %v824
      %1425 = vmatpush.bf16.msra.mxu0 %v820
      %1426 = vmatmul.bf16.gmra.mxu0 %v370
      %v1427 = vpop.f32.mrf.mxu0
      %v1428 = vadd.f32 %v1399, %v1427
      %v1429 = vpop.f32.mrf.mxu0
      %v1430 = vadd.f32 %v1401, %v1429
      %1431 = vmatmul.bf16.gmra.mxu0 %v374
      %v1432 = vpop.f32.mrf.mxu0
      %v1433 = vadd.f32 %v1404, %v1432
      %v1434 = vpop.f32.mrf.mxu0
      %v1435 = vadd.f32 %v1406, %v1434
      %1436 = vmatmul.bf16.gmra.mxu0 %v378
      %v1437 = vpop.f32.mrf.mxu0
      %v1438 = vadd.f32 %v1409, %v1437
      %v1439 = vpop.f32.mrf.mxu0
      %v1440 = vadd.f32 %v1411, %v1439
      %1441 = vmatmul.bf16.gmra.mxu0 %v382
      %v1442 = vpop.f32.mrf.mxu0
      %v1443 = vadd.f32 %v1414, %v1442
      %v1444 = vpop.f32.mrf.mxu0
      %v1445 = vadd.f32 %v1416, %v1444
      %1446 = vdwg.mxu0
      %1447 = vmatpush.bf16.msra.mxu0 %v880
      %1448 = vmatpush.bf16.msra.mxu0 %v876
      %1449 = vmatpush.bf16.msra.mxu0 %v872
      %1450 = vmatpush.bf16.msra.mxu0 %v868
      %1451 = vmatpush.bf16.msra.mxu0 %v864
      %1452 = vmatpush.bf16.msra.mxu0 %v860
      %1453 = vmatpush.bf16.msra.mxu0 %v856
      %1454 = vmatpush.bf16.msra.mxu0 %v852
      %1455 = vmatmul.bf16.gmra.mxu0 %v371
      %v1456 = vpop.f32.mrf.mxu0
      %v1457 = vadd.f32 %v1428, %v1456
      %v1458 = vpop.f32.mrf.mxu0
      %v1459 = vadd.f32 %v1430, %v1458
      %1460 = vmatmul.bf16.gmra.mxu0 %v375
      %v1461 = vpop.f32.mrf.mxu0
      %v1462 = vadd.f32 %v1433, %v1461
      %v1463 = vpop.f32.mrf.mxu0
      %v1464 = vadd.f32 %v1435, %v1463
      %1465 = vmatmul.bf16.gmra.mxu0 %v379
      %v1466 = vpop.f32.mrf.mxu0
      %v1467 = vadd.f32 %v1438, %v1466
      %v1468 = vpop.f32.mrf.mxu0
      %v1469 = vadd.f32 %v1440, %v1468
      %1470 = vmatmul.bf16.gmra.mxu0 %v383
      %v1471 = vpop.f32.mrf.mxu0
      %v1472 = vadd.f32 %v1443, %v1471
      %v1473 = vpop.f32.mrf.mxu0
      %v1474 = vadd.f32 %v1445, %v1473
      %1475 = vdwg.mxu0
      %1476 = vmatpush.bf16.msra.mxu0 %v912
      %1477 = vmatpush.bf16.msra.mxu0 %v908
      %1478 = vmatpush.bf16.msra.mxu0 %v904
      %1479 = vmatpush.bf16.msra.mxu0 %v900
      %1480 = vmatpush.bf16.msra.mxu0 %v896
      %1481 = vmatpush.bf16.msra.mxu0 %v892
      %1482 = vmatpush.bf16.msra.mxu0 %v888
      %1483 = vmatpush.bf16.msra.mxu0 %v884
      %1484 = vmatmul.bf16.gmra.mxu0 %v372
      %v1485 = vpop.f32.mrf.mxu0
      %v1486 = vadd.f32 %v1457, %v1485
      %v1487 = vpop.f32.mrf.mxu0
      %v1488 = vadd.f32 %v1459, %v1487
      %1489 = vmatmul.bf16.gmra.mxu0 %v376
      %v1490 = vpop.f32.mrf.mxu0
      %v1491 = vadd.f32 %v1462, %v1490
      %v1492 = vpop.f32.mrf.mxu0
      %v1493 = vadd.f32 %v1464, %v1492
      %1494 = vmatmul.bf16.gmra.mxu0 %v380
      %v1495 = vpop.f32.mrf.mxu0
      %v1496 = vadd.f32 %v1467, %v1495
      %v1497 = vpop.f32.mrf.mxu0
      %v1498 = vadd.f32 %v1469, %v1497
      %1499 = vmatmul.bf16.gmra.mxu0 %v384
      %v1500 = vpop.f32.mrf.mxu0
      %v1501 = vadd.f32 %v1472, %v1500
      %v1502 = vpop.f32.mrf.mxu0
      %v1503 = vadd.f32 %v1474, %v1502
      %1504 = vdwg.mxu0
      %v1505 = vmax.f32 %v1138, %v1254
      %v1506 = vmax.f32 %v1140, %v1256
      %v1507 = vmax.f32 %v1143, %v1259
      %v1508 = vmax.f32 %v1145, %v1261
      %v1509 = vmax.f32 %v1148, %v1264
      %v1510 = vmax.f32 %v1150, %v1266
      %v1511 = vmax.f32 %v1153, %v1269
      %v1512 = vmax.f32 %v1155, %v1271
      %v1513 = vmax.f32 %v1370, %v1486
      %v1514 = vmax.f32 %v1372, %v1488
      %v1515 = vmax.f32 %v1375, %v1491
      %v1516 = vmax.f32 %v1377, %v1493
      %v1517 = vmax.f32 %v1380, %v1496
      %v1518 = vmax.f32 %v1382, %v1498
      %v1519 = vmax.f32 %v1385, %v1501
      %v1520 = vmax.f32 %v1387, %v1503
      %v1521 = vmax.f32 %v1505, %v1513
      %v1522 = vmax.f32 %v1506, %v1514
      %v1523 = vmax.f32 %v1507, %v1515
      %v1524 = vmax.f32 %v1508, %v1516
      %v1525 = vmax.f32 %v1509, %v1517
      %v1526 = vmax.f32 %v1510, %v1518
      %v1527 = vmax.f32 %v1511, %v1519
      %v1528 = vmax.f32 %v1512, %v1520
      %v1529 = vld [vmem:[%s2] sm:$0x1]
      %v1531 = vperm.slane %v1529, 0
      %v1533 = vadd.f32 %v1521, %v1531
      %v1534 = vadd.f32 %v1522, %v1531
      %v1535 = vadd.f32 %v1523, %v1531
      %v1536 = vadd.f32 %v1524, %v1531
      %v1537 = vadd.f32 %v1525, %v1531
      %v1538 = vadd.f32 %v1526, %v1531
      %v1539 = vadd.f32 %v1527, %v1531
      %v1540 = vadd.f32 %v1528, %v1531
      %v1541 = vmax.f32 %v1533, 0.0
      %v1542 = vmax.f32 %v1534, 0.0
      %v1543 = vmax.f32 %v1535, 0.0
      %v1544 = vmax.f32 %v1536, 0.0
      %v1545 = vmax.f32 %v1537, 0.0
      %v1546 = vmax.f32 %v1538, 0.0
      %v1547 = vmax.f32 %v1539, 0.0
      %v1548 = vmax.f32 %v1540, 0.0
      %v1549 = vpack.c.bf16 %v1541, %v1541
      %v1550 = vpack.c.bf16 %v1542, %v1542
      %v1551 = vpack.c.bf16 %v1543, %v1543
      %v1552 = vpack.c.bf16 %v1544, %v1544
      %v1553 = vpack.c.bf16 %v1545, %v1545
      %v1554 = vpack.c.bf16 %v1546, %v1546
      %v1555 = vpack.c.bf16 %v1547, %v1547
      %v1556 = vpack.c.bf16 %v1548, %v1548
      %1557 = vst [vmem:[%s175] sm:$0xf] %v1549
      %1558 = vst [vmem:[%s175 + $0x4] sm:$0xf] %v1550
      %1559 = vst [vmem:[%s175 + $0x8] sm:$0xf] %v1551
      %1560 = vst [vmem:[%s175 + $0xc] sm:$0xf] %v1552
      %1561 = vst [vmem:[%s175 + $0x10] sm:$0xf] %v1553
      %1562 = vst [vmem:[%s175 + $0x14] sm:$0xf] %v1554
      %1563 = vst [vmem:[%s175 + $0x18] sm:$0xf] %v1555
      %1564 = vst [vmem:[%s175 + $0x1c] sm:$0xf] %v1556
      %s1565 = smul.u32 8, %s14
      %p1566 = scmp.lt.s32.totalorder %s1565, 15
      %s1567 = scalar_select %p1566, %s1565, 15
      %s1568 = smul.addr %s1567, 4
      %s1569 = scalar_lea.vmem %s3, %s1568
      // Predicated region
      $region33: #{net_forward.4} parent=31 // pred_check
        %p1570 = pneg %p100
      $region34: #{net_forward.4} parent=31 // pred_check_branch
        %1572 = sbr.rel (%p1570) target = $region36
      $region35: #{net_forward.4} parent=31 // pred_region
        %s1573 = smul.u32 8, %s14
      $region36: #{net_forward.4} parent=31 // pred_fallthru
        _
    $region32: #{net_forward.4} parent=5 // pred_fallthru
      _
    %p1574 = scmp.le.s32.totalorder 2, %s9
    // Predicated region
    $region37: #{net_forward.4} parent=5 // pred_check
      %p1575 = pneg %p1574
    $region38: #{net_forward.4} parent=5 // pred_check_branch
      %1577 = sbr.rel (%p1575) target = $region40
    $region39: #{net_forward.4} parent=5 // pred_region
      %s1578 = ssub.s32 %s9, 2
      // Predicated region
      $region41: #{net_forward.4} parent=39 // pred_check
        %p1579 = pneg %p106
      $region42: #{net_forward.4} parent=39 // pred_check_branch
        %1581 = sbr.rel (%p1579) target = $region44
      $region43: #{net_forward.4} parent=39 // pred_region
        %s1582 = smul.u32 8, %s15
        %p1583 = scmp.lt.s32.totalorder %s1582, 15
        %s1584 = scalar_select %p1583, %s1582, 15
        %s1585 = smul.addr %s1584, 4
        %s1586 = scalar_lea.vmem %s3, %s1585
      $region44: #{net_forward.4} parent=39 // pred_fallthru
        _
    $region40: #{net_forward.4} parent=5 // pred_fallthru
      _
  $region6: #{net_forward.4} parent=0 // loop_footer
    %s13 = sadd.s32 1, %s9
  $region7: #{net_forward.4} parent=0 // loop_footer_branch
    %8 = sbr.rel target = $region3
  $region8: #{net_forward.4} parent=0 // loop_exit
    _

// kernel: net_forward.5
$region0: #{net_forward.5}
  #allocation0 [shape = 'u32[]', space=smem, size = 0x4, offset = 0x4, fixed_abs, tag = 'smem constant byte address 0x4 - core index']
  #allocation1 [shape = 'u32[72,128]{1,0:T(1,128)}', space=vmem, size = 0x9000, scoped, tag = 'internal scratch']
  %s0 = inlined_call_operand.vmem [shape: bf16[8,4096], index: 0, kind: input, shape index: {}]
  %s1 = inlined_call_operand.vmem [shape: bf16[4096,512], index: 1, kind: input, shape index: {}]
  %s2 = inlined_call_operand.vmem [shape: f32[1,512], index: 2, kind: input, shape index: {}]
  %s3 = inlined_call_operand.vmem [shape: f32[512,128], index: 3, kind: input, shape index: {}]
  %s4 = inlined_call_operand.vmem [shape: f32[1,128], index: 4, kind: input, shape index: {}]
  %s5 = inlined_call_operand.vmem [shape: f32[8,128], index: 5, kind: output, shape index: {}]
  %s6 = sld [smem:[#allocation0]]
  $region30: #{net_forward.5} parent=0
    _
  %s8 = ssub.s32 1, %s6
  %s9 = scalar_select 0, %s8, %s6
  // Predicated region
  $region2: #{net_forward.5} parent=0 // pred_check
    _
  $region3: #{net_forward.5} parent=0 // pred_check_branch
    %11 = sbr.rel (0) target = $region5
  $region4: #{net_forward.5} parent=0 // pred_region
    _
  $region5: #{net_forward.5} parent=0 // pred_fallthru
    _
  // Predicated region
  $region6: #{net_forward.5} parent=0 // pred_check
    _
  $region7: #{net_forward.5} parent=0 // pred_check_branch
    %13 = sbr.rel (0) target = $region9
  $region8: #{net_forward.5} parent=0 // pred_region
    _
  $region9: #{net_forward.5} parent=0 // pred_fallthru
    _
  // Predicated region
  $region10: #{net_forward.5} parent=0 // pred_check
    _
  $region11: #{net_forward.5} parent=0 // pred_check_branch
    %15 = sbr.rel (0) target = $region13
  $region12: #{net_forward.5} parent=0 // pred_region
    _
  $region13: #{net_forward.5} parent=0 // pred_fallthru
    _
  // Predicated region
  $region14: #{net_forward.5} parent=0 // pred_check
    _
  $region15: #{net_forward.5} parent=0 // pred_check_branch
    %17 = sbr.rel (0) target = $region17
  $region16: #{net_forward.5} parent=0 // pred_region
    _
  $region17: #{net_forward.5} parent=0 // pred_fallthru
    _
  // Predicated region
  $region18: #{net_forward.5} parent=0 // pred_check
    _
  $region19: #{net_forward.5} parent=0 // pred_check_branch
    %19 = sbr.rel (0) target = $region21
  $region20: #{net_forward.5} parent=0 // pred_region
    _
  $region21: #{net_forward.5} parent=0 // pred_fallthru
    _
  %v20 = vld [vmem:[%s0] sm:$0xff]
  %v21 = vld [vmem:[%s0 + $0x8] sm:$0xff]
  %v22 = vld [vmem:[%s0 + $0x10] sm:$0xff]
  %v23 = vld [vmem:[%s0 + $0x18] sm:$0xff]
  %v24 = vld [vmem:[%s0 + $0x20] sm:$0xff]
  %v25 = vld [vmem:[%s0 + $0x28] sm:$0xff]
  %v26 = vld [vmem:[%s0 + $0x30] sm:$0xff]
  %v27 = vld [vmem:[%s0 + $0x38] sm:$0xff]
  %v28 = vld [vmem:[%s0 + $0x40] sm:$0xff]
  %v29 = vld [vmem:[%s0 + $0x48] sm:$0xff]
  %v30 = vld [vmem:[%s0 + $0x50] sm:$0xff]
  %v31 = vld [vmem:[%s0 + $0x58] sm:$0xff]
  %v32 = vld [vmem:[%s0 + $0x60] sm:$0xff]
  %v33 = vld [vmem:[%s0 + $0x68] sm:$0xff]
  %v34 = vld [vmem:[%s0 + $0x70] sm:$0xff]
  %v35 = vld [vmem:[%s0 + $0x78] sm:$0xff]
  %v36 = vld [vmem:[%s1] sm:$0xff]
  %v37 = vld [vmem:[%s1 + $0x8] sm:$0xff]
  %v38 = vld [vmem:[%s1 + $0x10] sm:$0xff]
  %v39 = vld [vmem:[%s1 + $0x18] sm:$0xff]
  %v40 = vld [vmem:[%s1 + $0x20] sm:$0xff]
  %v41 = vld [vmem:[%s1 + $0x28] sm:$0xff]
  %v42 = vld [vmem:[%s1 + $0x30] sm:$0xff]
  %v43 = vld [vmem:[%s1 + $0x38] sm:$0xff]
  %v44 = vld [vmem:[%s1 + $0x40] sm:$0xff]
  %v45 = vld [vmem:[%s1 + $0x48] sm:$0xff]
  %v46 = vld [vmem:[%s1 + $0x50] sm:$0xff]
  %v47 = vld [vmem:[%s1 + $0x58] sm:$0xff]
  %v48 = vld [vmem:[%s1 + $0x60] sm:$0xff]
  %v49 = vld [vmem:[%s1 + $0x68] sm:$0xff]
  %v50 = vld [vmem:[%s1 + $0x70] sm:$0xff]
  %v51 = vld [vmem:[%s1 + $0x78] sm:$0xff]
  %v52 = vld [vmem:[%s1 + $0x80] sm:$0xff]
  %v53 = vld [vmem:[%s1 + $0x88] sm:$0xff]
  %v54 = vld [vmem:[%s1 + $0x90] sm:$0xff]
  %v55 = vld [vmem:[%s1 + $0x98] sm:$0xff]
  %v56 = vld [vmem:[%s1 + $0xa0] sm:$0xff]
  %v57 = vld [vmem:[%s1 + $0xa8] sm:$0xff]
  %v58 = vld [vmem:[%s1 + $0xb0] sm:$0xff]
  %v59 = vld [vmem:[%s1 + $0xb8] sm:$0xff]
  %v60 = vld [vmem:[%s1 + $0xc0] sm:$0xff]
  %v61 = vld [vmem:[%s1 + $0xc8] sm:$0xff]
  %v62 = vld [vmem:[%s1 + $0xd0] sm:$0xff]
  %v63 = vld [vmem:[%s1 + $0xd8] sm:$0xff]
  %v64 = vld [vmem:[%s1 + $0xe0] sm:$0xff]
  %v65 = vld [vmem:[%s1 + $0xe8] sm:$0xff]
  %v66 = vld [vmem:[%s1 + $0xf0] sm:$0xff]
  %v67 = vld [vmem:[%s1 + $0xf8] sm:$0xff]
  %v68 = vld [vmem:[%s1 + $0x100] sm:$0xff]
  %v69 = vld [vmem:[%s1 + $0x108] sm:$0xff]
  %v70 = vld [vmem:[%s1 + $0x110] sm:$0xff]
  %v71 = vld [vmem:[%s1 + $0x118] sm:$0xff]
  %v72 = vld [vmem:[%s1 + $0x120] sm:$0xff]
  %v73 = vld [vmem:[%s1 + $0x128] sm:$0xff]
  %v74 = vld [vmem:[%s1 + $0x130] sm:$0xff]
  %v75 = vld [vmem:[%s1 + $0x138] sm:$0xff]
  %v76 = vld [vmem:[%s1 + $0x140] sm:$0xff]
  %v77 = vld [vmem:[%s1 + $0x148] sm:$0xff]
  %v78 = vld [vmem:[%s1 + $0x150] sm:$0xff]
  %v79 = vld [vmem:[%s1 + $0x158] sm:$0xff]
  %v80 = vld [vmem:[%s1 + $0x160] sm:$0xff]
  %v81 = vld [vmem:[%s1 + $0x168] sm:$0xff]
  %v82 = vld [vmem:[%s1 + $0x170] sm:$0xff]
  %v83 = vld [vmem:[%s1 + $0x178] sm:$0xff]
  %v84 = vld [vmem:[%s1 + $0x180] sm:$0xff]
  %v85 = vld [vmem:[%s1 + $0x188] sm:$0xff]
  %v86 = vld [vmem:[%s1 + $0x190] sm:$0xff]
  %v87 = vld [vmem:[%s1 + $0x198] sm:$0xff]
  %v88 = vld [vmem:[%s1 + $0x1a0] sm:$0xff]
  %v89 = vld [vmem:[%s1 + $0x1a8] sm:$0xff]
  %v90 = vld [vmem:[%s1 + $0x1b0] sm:$0xff]
  %v91 = vld [vmem:[%s1 + $0x1b8] sm:$0xff]
  %v92 = vld [vmem:[%s1 + $0x1c0] sm:$0xff]
  %v93 = vld [vmem:[%s1 + $0x1c8] sm:$0xff]
  %v94 = vld [vmem:[%s1 + $0x1d0] sm:$0xff]
  %v95 = vld [vmem:[%s1 + $0x1d8] sm:$0xff]
  %v96 = vld [vmem:[%s1 + $0x1e0] sm:$0xff]
  %v97 = vld [vmem:[%s1 + $0x1e8] sm:$0xff]
  %v98 = vld [vmem:[%s1 + $0x1f0] sm:$0xff]
  %v99 = vld [vmem:[%s1 + $0x1f8] sm:$0xff]
  %v100 = vld [vmem:[%s1 + $0x200] sm:$0xff]
  %v101 = vld [vmem:[%s1 + $0x208] sm:$0xff]
  %v102 = vld [vmem:[%s1 + $0x210] sm:$0xff]
  %v103 = vld [vmem:[%s1 + $0x218] sm:$0xff]
  %v104 = vld [vmem:[%s1 + $0x220] sm:$0xff]
  %v105 = vld [vmem:[%s1 + $0x228] sm:$0xff]
  %v106 = vld [vmem:[%s1 + $0x230] sm:$0xff]
  %v107 = vld [vmem:[%s1 + $0x238] sm:$0xff]
  %v108 = vld [vmem:[%s1 + $0x240] sm:$0xff]
  %v109 = vld [vmem:[%s1 + $0x248] sm:$0xff]
  %v110 = vld [vmem:[%s1 + $0x250] sm:$0xff]
  %v111 = vld [vmem:[%s1 + $0x258] sm:$0xff]
  %v112 = vld [vmem:[%s1 + $0x260] sm:$0xff]
  %v113 = vld [vmem:[%s1 + $0x268] sm:$0xff]
  %v114 = vld [vmem:[%s1 + $0x270] sm:$0xff]
  %v115 = vld [vmem:[%s1 + $0x278] sm:$0xff]
  %v116 = vld [vmem:[%s1 + $0x280] sm:$0xff]
  %v117 = vld [vmem:[%s1 + $0x288] sm:$0xff]
  %v118 = vld [vmem:[%s1 + $0x290] sm:$0xff]
  %v119 = vld [vmem:[%s1 + $0x298] sm:$0xff]
  %v120 = vld [vmem:[%s1 + $0x2a0] sm:$0xff]
  %v121 = vld [vmem:[%s1 + $0x2a8] sm:$0xff]
  %v122 = vld [vmem:[%s1 + $0x2b0] sm:$0xff]
  %v123 = vld [vmem:[%s1 + $0x2b8] sm:$0xff]
  %v124 = vld [vmem:[%s1 + $0x2c0] sm:$0xff]
  %v125 = vld [vmem:[%s1 + $0x2c8] sm:$0xff]
  %v126 = vld [vmem:[%s1 + $0x2d0] sm:$0xff]
  %v127 = vld [vmem:[%s1 + $0x2d8] sm:$0xff]
  %v128 = vld [vmem:[%s1 + $0x2e0] sm:$0xff]
  %v129 = vld [vmem:[%s1 + $0x2e8] sm:$0xff]
  %v130 = vld [vmem:[%s1 + $0x2f0] sm:$0xff]
  %v131 = vld [vmem:[%s1 + $0x2f8] sm:$0xff]
  %v132 = vld [vmem:[%s1 + $0x300] sm:$0xff]
  %v133 = vld [vmem:[%s1 + $0x308] sm:$0xff]
  %v134 = vld [vmem:[%s1 + $0x310] sm:$0xff]
  %v135 = vld [vmem:[%s1 + $0x318] sm:$0xff]
  %v136 = vld [vmem:[%s1 + $0x320] sm:$0xff]
  %v137 = vld [vmem:[%s1 + $0x328] sm:$0xff]
  %v138 = vld [vmem:[%s1 + $0x330] sm:$0xff]
  %v139 = vld [vmem:[%s1 + $0x338] sm:$0xff]
  %v140 = vld [vmem:[%s1 + $0x340] sm:$0xff]
  %v141 = vld [vmem:[%s1 + $0x348] sm:$0xff]
  %v142 = vld [vmem:[%s1 + $0x350] sm:$0xff]
  %v143 = vld [vmem:[%s1 + $0x358] sm:$0xff]
  %v144 = vld [vmem:[%s1 + $0x360] sm:$0xff]
  %v145 = vld [vmem:[%s1 + $0x368] sm:$0xff]
  %v146 = vld [vmem:[%s1 + $0x370] sm:$0xff]
  %v147 = vld [vmem:[%s1 + $0x378] sm:$0xff]
  %v148 = vld [vmem:[%s1 + $0x380] sm:$0xff]
  %v149 = vld [vmem:[%s1 + $0x388] sm:$0xff]
  %v150 = vld [vmem:[%s1 + $0x390] sm:$0xff]
  %v151 = vld [vmem:[%s1 + $0x398] sm:$0xff]
  %v152 = vld [vmem:[%s1 + $0x3a0] sm:$0xff]
  %v153 = vld [vmem:[%s1 + $0x3a8] sm:$0xff]
  %v154 = vld [vmem:[%s1 + $0x3b0] sm:$0xff]
  %v155 = vld [vmem:[%s1 + $0x3b8] sm:$0xff]
  %v156 = vld [vmem:[%s1 + $0x3c0] sm:$0xff]
  %v157 = vld [vmem:[%s1 + $0x3c8] sm:$0xff]
  %v158 = vld [vmem:[%s1 + $0x3d0] sm:$0xff]
  %v159 = vld [vmem:[%s1 + $0x3d8] sm:$0xff]
  %v160 = vld [vmem:[%s1 + $0x3e0] sm:$0xff]
  %v161 = vld [vmem:[%s1 + $0x3e8] sm:$0xff]
  %v162 = vld [vmem:[%s1 + $0x3f0] sm:$0xff]
  %v163 = vld [vmem:[%s1 + $0x3f8] sm:$0xff]
  %v164 = vld [vmem:[%s1 + $0x400] sm:$0xff]
  %v165 = vld [vmem:[%s1 + $0x408] sm:$0xff]
  %v166 = vld [vmem:[%s1 + $0x410] sm:$0xff]
  %v167 = vld [vmem:[%s1 + $0x418] sm:$0xff]
  %v168 = vld [vmem:[%s1 + $0x420] sm:$0xff]
  %v169 = vld [vmem:[%s1 + $0x428] sm:$0xff]
  %v170 = vld [vmem:[%s1 + $0x430] sm:$0xff]
  %v171 = vld [vmem:[%s1 + $0x438] sm:$0xff]
  %v172 = vld [vmem:[%s1 + $0x440] sm:$0xff]
  %v173 = vld [vmem:[%s1 + $0x448] sm:$0xff]
  %v174 = vld [vmem:[%s1 + $0x450] sm:$0xff]
  %v175 = vld [vmem:[%s1 + $0x458] sm:$0xff]
  %v176 = vld [vmem:[%s1 + $0x460] sm:$0xff]
  %v177 = vld [vmem:[%s1 + $0x468] sm:$0xff]
  %v178 = vld [vmem:[%s1 + $0x470] sm:$0xff]
  %v179 = vld [vmem:[%s1 + $0x478] sm:$0xff]
  %v180 = vld [vmem:[%s1 + $0x480] sm:$0xff]
  %v181 = vld [vmem:[%s1 + $0x488] sm:$0xff]
  %v182 = vld [vmem:[%s1 + $0x490] sm:$0xff]
  %v183 = vld [vmem:[%s1 + $0x498] sm:$0xff]
  %v184 = vld [vmem:[%s1 + $0x4a0] sm:$0xff]
  %v185 = vld [vmem:[%s1 + $0x4a8] sm:$0xff]
  %v186 = vld [vmem:[%s1 + $0x4b0] sm:$0xff]
  %v187 = vld [vmem:[%s1 + $0x4b8] sm:$0xff]
  %v188 = vld [vmem:[%s1 + $0x4c0] sm:$0xff]
  %v189 = vld [vmem:[%s1 + $0x4c8] sm:$0xff]
  %v190 = vld [vmem:[%s1 + $0x4d0] sm:$0xff]
  %v191 = vld [vmem:[%s1 + $0x4d8] sm:$0xff]
  %v192 = vld [vmem:[%s1 + $0x4e0] sm:$0xff]
  %v193 = vld [vmem:[%s1 + $0x4e8] sm:$0xff]
  %v194 = vld [vmem:[%s1 + $0x4f0] sm:$0xff]
  %v195 = vld [vmem:[%s1 + $0x4f8] sm:$0xff]
  %v196 = vld [vmem:[%s1 + $0x500] sm:$0xff]
  %v197 = vld [vmem:[%s1 + $0x508] sm:$0xff]
  %v198 = vld [vmem:[%s1 + $0x510] sm:$0xff]
  %v199 = vld [vmem:[%s1 + $0x518] sm:$0xff]
  %v200 = vld [vmem:[%s1 + $0x520] sm:$0xff]
  %v201 = vld [vmem:[%s1 + $0x528] sm:$0xff]
  %v202 = vld [vmem:[%s1 + $0x530] sm:$0xff]
  %v203 = vld [vmem:[%s1 + $0x538] sm:$0xff]
  %v204 = vld [vmem:[%s1 + $0x540] sm:$0xff]
  %v205 = vld [vmem:[%s1 + $0x548] sm:$0xff]
  %v206 = vld [vmem:[%s1 + $0x550] sm:$0xff]
  %v207 = vld [vmem:[%s1 + $0x558] sm:$0xff]
  %v208 = vld [vmem:[%s1 + $0x560] sm:$0xff]
  %v209 = vld [vmem:[%s1 + $0x568] sm:$0xff]
  %v210 = vld [vmem:[%s1 + $0x570] sm:$0xff]
  %v211 = vld [vmem:[%s1 + $0x578] sm:$0xff]
  %v212 = vld [vmem:[%s1 + $0x580] sm:$0xff]
  %v213 = vld [vmem:[%s1 + $0x588] sm:$0xff]
  %v214 = vld [vmem:[%s1 + $0x590] sm:$0xff]
  %v215 = vld [vmem:[%s1 + $0x598] sm:$0xff]
  %v216 = vld [vmem:[%s1 + $0x5a0] sm:$0xff]
  %v217 = vld [vmem:[%s1 + $0x5a8] sm:$0xff]
  %v218 = vld [vmem:[%s1 + $0x5b0] sm:$0xff]
  %v219 = vld [vmem:[%s1 + $0x5b8] sm:$0xff]
  %v220 = vld [vmem:[%s1 + $0x5c0] sm:$0xff]
  %v221 = vld [vmem:[%s1 + $0x5c8] sm:$0xff]
  %v222 = vld [vmem:[%s1 + $0x5d0] sm:$0xff]
  %v223 = vld [vmem:[%s1 + $0x5d8] sm:$0xff]
  %v224 = vld [vmem:[%s1 + $0x5e0] sm:$0xff]
  %v225 = vld [vmem:[%s1 + $0x5e8] sm:$0xff]
  %v226 = vld [vmem:[%s1 + $0x5f0] sm:$0xff]
  %v227 = vld [vmem:[%s1 + $0x5f8] sm:$0xff]
  %v228 = vld [vmem:[%s1 + $0x600] sm:$0xff]
  %v229 = vld [vmem:[%s1 + $0x608] sm:$0xff]
  %v230 = vld [vmem:[%s1 + $0x610] sm:$0xff]
  %v231 = vld [vmem:[%s1 + $0x618] sm:$0xff]
  %v232 = vld [vmem:[%s1 + $0x620] sm:$0xff]
  %v233 = vld [vmem:[%s1 + $0x628] sm:$0xff]
  %v234 = vld [vmem:[%s1 + $0x630] sm:$0xff]
  %v235 = vld [vmem:[%s1 + $0x638] sm:$0xff]
  %v236 = vld [vmem:[%s1 + $0x640] sm:$0xff]
  %v237 = vld [vmem:[%s1 + $0x648] sm:$0xff]
  %v238 = vld [vmem:[%s1 + $0x650] sm:$0xff]
  %v239 = vld [vmem:[%s1 + $0x658] sm:$0xff]
  %v240 = vld [vmem:[%s1 + $0x660] sm:$0xff]
  %v241 = vld [vmem:[%s1 + $0x668] sm:$0xff]
  %v242 = vld [vmem:[%s1 + $0x670] sm:$0xff]
  %v243 = vld [vmem:[%s1 + $0x678] sm:$0xff]
  %v244 = vld [vmem:[%s1 + $0x680] sm:$0xff]
  %v245 = vld [vmem:[%s1 + $0x688] sm:$0xff]
  %v246 = vld [vmem:[%s1 + $0x690] sm:$0xff]
  %v247 = vld [vmem:[%s1 + $0x698] sm:$0xff]
  %v248 = vld [vmem:[%s1 + $0x6a0] sm:$0xff]
  %v249 = vld [vmem:[%s1 + $0x6a8] sm:$0xff]
  %v250 = vld [vmem:[%s1 + $0x6b0] sm:$0xff]
  %v251 = vld [vmem:[%s1 + $0x6b8] sm:$0xff]
  %v252 = vld [vmem:[%s1 + $0x6c0] sm:$0xff]
  %v253 = vld [vmem:[%s1 + $0x6c8] sm:$0xff]
  %v254 = vld [vmem:[%s1 + $0x6d0] sm:$0xff]
  %v255 = vld [vmem:[%s1 + $0x6d8] sm:$0xff]
  %v256 = vld [vmem:[%s1 + $0x6e0] sm:$0xff]
  %v257 = vld [vmem:[%s1 + $0x6e8] sm:$0xff]
  %v258 = vld [vmem:[%s1 + $0x6f0] sm:$0xff]
  %v259 = vld [vmem:[%s1 + $0x6f8] sm:$0xff]
  %v260 = vld [vmem:[%s1 + $0x700] sm:$0xff]
  %v261 = vld [vmem:[%s1 + $0x708] sm:$0xff]
  %v262 = vld [vmem:[%s1 + $0x710] sm:$0xff]
  %v263 = vld [vmem:[%s1 + $0x718] sm:$0xff]
  %v264 = vld [vmem:[%s1 + $0x720] sm:$0xff]
  %v265 = vld [vmem:[%s1 + $0x728] sm:$0xff]
  %v266 = vld [vmem:[%s1 + $0x730] sm:$0xff]
  %v267 = vld [vmem:[%s1 + $0x738] sm:$0xff]
  %v268 = vld [vmem:[%s1 + $0x740] sm:$0xff]
  %v269 = vld [vmem:[%s1 + $0x748] sm:$0xff]
  %v270 = vld [vmem:[%s1 + $0x750] sm:$0xff]
  %v271 = vld [vmem:[%s1 + $0x758] sm:$0xff]
  %v272 = vld [vmem:[%s1 + $0x760] sm:$0xff]
  %v273 = vld [vmem:[%s1 + $0x768] sm:$0xff]
  %v274 = vld [vmem:[%s1 + $0x770] sm:$0xff]
  %v275 = vld [vmem:[%s1 + $0x778] sm:$0xff]
  %v276 = vld [vmem:[%s1 + $0x780] sm:$0xff]
  %v277 = vld [vmem:[%s1 + $0x788] sm:$0xff]
  %v278 = vld [vmem:[%s1 + $0x790] sm:$0xff]
  %v279 = vld [vmem:[%s1 + $0x798] sm:$0xff]
  %v280 = vld [vmem:[%s1 + $0x7a0] sm:$0xff]
  %v281 = vld [vmem:[%s1 + $0x7a8] sm:$0xff]
  %v282 = vld [vmem:[%s1 + $0x7b0] sm:$0xff]
  %v283 = vld [vmem:[%s1 + $0x7b8] sm:$0xff]
  %v284 = vld [vmem:[%s1 + $0x7c0] sm:$0xff]
  %v285 = vld [vmem:[%s1 + $0x7c8] sm:$0xff]
  %v286 = vld [vmem:[%s1 + $0x7d0] sm:$0xff]
  %v287 = vld [vmem:[%s1 + $0x7d8] sm:$0xff]
  %v288 = vld [vmem:[%s1 + $0x7e0] sm:$0xff]
  %v289 = vld [vmem:[%s1 + $0x7e8] sm:$0xff]
  %v290 = vld [vmem:[%s1 + $0x7f0] sm:$0xff]
  %v291 = vld [vmem:[%s1 + $0x7f8] sm:$0xff]
  %v292 = vld [vmem:[%s1 + $0x800] sm:$0xff]
  %v293 = vld [vmem:[%s1 + $0x808] sm:$0xff]
  %v294 = vld [vmem:[%s1 + $0x810] sm:$0xff]
  %v295 = vld [vmem:[%s1 + $0x818] sm:$0xff]
  %v296 = vld [vmem:[%s1 + $0x820] sm:$0xff]
  %v297 = vld [vmem:[%s1 + $0x828] sm:$0xff]
  %v298 = vld [vmem:[%s1 + $0x830] sm:$0xff]
  %v299 = vld [vmem:[%s1 + $0x838] sm:$0xff]
  %v300 = vld [vmem:[%s1 + $0x840] sm:$0xff]
  %v301 = vld [vmem:[%s1 + $0x848] sm:$0xff]
  %v302 = vld [vmem:[%s1 + $0x850] sm:$0xff]
  %v303 = vld [vmem:[%s1 + $0x858] sm:$0xff]
  %v304 = vld [vmem:[%s1 + $0x860] sm:$0xff]
  %v305 = vld [vmem:[%s1 + $0x868] sm:$0xff]
  %v306 = vld [vmem:[%s1 + $0x870] sm:$0xff]
  %v307 = vld [vmem:[%s1 + $0x878] sm:$0xff]
  %v308 = vld [vmem:[%s1 + $0x880] sm:$0xff]
  %v309 = vld [vmem:[%s1 + $0x888] sm:$0xff]
  %v310 = vld [vmem:[%s1 + $0x890] sm:$0xff]
  %v311 = vld [vmem:[%s1 + $0x898] sm:$0xff]
  %v312 = vld [vmem:[%s1 + $0x8a0] sm:$0xff]
  %v313 = vld [vmem:[%s1 + $0x8a8] sm:$0xff]
  %v314 = vld [vmem:[%s1 + $0x8b0] sm:$0xff]
  %v315 = vld [vmem:[%s1 + $0x8b8] sm:$0xff]
  %v316 = vld [vmem:[%s1 + $0x8c0] sm:$0xff]
  %v317 = vld [vmem:[%s1 + $0x8c8] sm:$0xff]
  %v318 = vld [vmem:[%s1 + $0x8d0] sm:$0xff]
  %v319 = vld [vmem:[%s1 + $0x8d8] sm:$0xff]
  %v320 = vld [vmem:[%s1 + $0x8e0] sm:$0xff]
  %v321 = vld [vmem:[%s1 + $0x8e8] sm:$0xff]
  %v322 = vld [vmem:[%s1 + $0x8f0] sm:$0xff]
  %v323 = vld [vmem:[%s1 + $0x8f8] sm:$0xff]
  %v324 = vld [vmem:[%s1 + $0x900] sm:$0xff]
  %v325 = vld [vmem:[%s1 + $0x908] sm:$0xff]
  %v326 = vld [vmem:[%s1 + $0x910] sm:$0xff]
  %v327 = vld [vmem:[%s1 + $0x918] sm:$0xff]
  %v328 = vld [vmem:[%s1 + $0x920] sm:$0xff]
  %v329 = vld [vmem:[%s1 + $0x928] sm:$0xff]
  %v330 = vld [vmem:[%s1 + $0x930] sm:$0xff]
  %v331 = vld [vmem:[%s1 + $0x938] sm:$0xff]
  %v332 = vld [vmem:[%s1 + $0x940] sm:$0xff]
  %v333 = vld [vmem:[%s1 + $0x948] sm:$0xff]
  %v334 = vld [vmem:[%s1 + $0x950] sm:$0xff]
  %v335 = vld [vmem:[%s1 + $0x958] sm:$0xff]
  %v336 = vld [vmem:[%s1 + $0x960] sm:$0xff]
  %v337 = vld [vmem:[%s1 + $0x968] sm:$0xff]
  %v338 = vld [vmem:[%s1 + $0x970] sm:$0xff]
  %v339 = vld [vmem:[%s1 + $0x978] sm:$0xff]
  %v340 = vld [vmem:[%s1 + $0x980] sm:$0xff]
  %v341 = vld [vmem:[%s1 + $0x988] sm:$0xff]
  %v342 = vld [vmem:[%s1 + $0x990] sm:$0xff]
  %v343 = vld [vmem:[%s1 + $0x998] sm:$0xff]
  %v344 = vld [vmem:[%s1 + $0x9a0] sm:$0xff]
  %v345 = vld [vmem:[%s1 + $0x9a8] sm:$0xff]
  %v346 = vld [vmem:[%s1 + $0x9b0] sm:$0xff]
  %v347 = vld [vmem:[%s1 + $0x9b8] sm:$0xff]
  %v348 = vld [vmem:[%s1 + $0x9c0] sm:$0xff]
  %v349 = vld [vmem:[%s1 + $0x9c8] sm:$0xff]
  %v350 = vld [vmem:[%s1 + $0x9d0] sm:$0xff]
  %v351 = vld [vmem:[%s1 + $0x9d8] sm:$0xff]
  %v352 = vld [vmem:[%s1 + $0x9e0] sm:$0xff]
  %v353 = vld [vmem:[%s1 + $0x9e8] sm:$0xff]
  %v354 = vld [vmem:[%s1 + $0x9f0] sm:$0xff]
  %v355 = vld [vmem:[%s1 + $0x9f8] sm:$0xff]
  %v356 = vld [vmem:[%s1 + $0xa00] sm:$0xff]
  %v357 = vld [vmem:[%s1 + $0xa08] sm:$0xff]
  %v358 = vld [vmem:[%s1 + $0xa10] sm:$0xff]
  %v359 = vld [vmem:[%s1 + $0xa18] sm:$0xff]
  %v360 = vld [vmem:[%s1 + $0xa20] sm:$0xff]
  %v361 = vld [vmem:[%s1 + $0xa28] sm:$0xff]
  %v362 = vld [vmem:[%s1 + $0xa30] sm:$0xff]
  %v363 = vld [vmem:[%s1 + $0xa38] sm:$0xff]
  %v364 = vld [vmem:[%s1 + $0xa40] sm:$0xff]
  %v365 = vld [vmem:[%s1 + $0xa48] sm:$0xff]
  %v366 = vld [vmem:[%s1 + $0xa50] sm:$0xff]
  %v367 = vld [vmem:[%s1 + $0xa58] sm:$0xff]
  %v368 = vld [vmem:[%s1 + $0xa60] sm:$0xff]
  %v369 = vld [vmem:[%s1 + $0xa68] sm:$0xff]
  %v370 = vld [vmem:[%s1 + $0xa70] sm:$0xff]
  %v371 = vld [vmem:[%s1 + $0xa78] sm:$0xff]
  %v372 = vld [vmem:[%s1 + $0xa80] sm:$0xff]
  %v373 = vld [vmem:[%s1 + $0xa88] sm:$0xff]
  %v374 = vld [vmem:[%s1 + $0xa90] sm:$0xff]
  %v375 = vld [vmem:[%s1 + $0xa98] sm:$0xff]
  %v376 = vld [vmem:[%s1 + $0xaa0] sm:$0xff]
  %v377 = vld [vmem:[%s1 + $0xaa8] sm:$0xff]
  %v378 = vld [vmem:[%s1 + $0xab0] sm:$0xff]
  %v379 = vld [vmem:[%s1 + $0xab8] sm:$0xff]
  %v380 = vld [vmem:[%s1 + $0xac0] sm:$0xff]
  %v381 = vld [vmem:[%s1 + $0xac8] sm:$0xff]
  %v382 = vld [vmem:[%s1 + $0xad0] sm:$0xff]
  %v383 = vld [vmem:[%s1 + $0xad8] sm:$0xff]
  %v384 = vld [vmem:[%s1 + $0xae0] sm:$0xff]
  %v385 = vld [vmem:[%s1 + $0xae8] sm:$0xff]
  %v386 = vld [vmem:[%s1 + $0xaf0] sm:$0xff]
  %v387 = vld [vmem:[%s1 + $0xaf8] sm:$0xff]
  %v388 = vld [vmem:[%s1 + $0xb00] sm:$0xff]
  %v389 = vld [vmem:[%s1 + $0xb08] sm:$0xff]
  %v390 = vld [vmem:[%s1 + $0xb10] sm:$0xff]
  %v391 = vld [vmem:[%s1 + $0xb18] sm:$0xff]
  %v392 = vld [vmem:[%s1 + $0xb20] sm:$0xff]
  %v393 = vld [vmem:[%s1 + $0xb28] sm:$0xff]
  %v394 = vld [vmem:[%s1 + $0xb30] sm:$0xff]
  %v395 = vld [vmem:[%s1 + $0xb38] sm:$0xff]
  %v396 = vld [vmem:[%s1 + $0xb40] sm:$0xff]
  %v397 = vld [vmem:[%s1 + $0xb48] sm:$0xff]
  %v398 = vld [vmem:[%s1 + $0xb50] sm:$0xff]
  %v399 = vld [vmem:[%s1 + $0xb58] sm:$0xff]
  %v400 = vld [vmem:[%s1 + $0xb60] sm:$0xff]
  %v401 = vld [vmem:[%s1 + $0xb68] sm:$0xff]
  %v402 = vld [vmem:[%s1 + $0xb70] sm:$0xff]
  %v403 = vld [vmem:[%s1 + $0xb78] sm:$0xff]
  %v404 = vld [vmem:[%s1 + $0xb80] sm:$0xff]
  %v405 = vld [vmem:[%s1 + $0xb88] sm:$0xff]
  %v406 = vld [vmem:[%s1 + $0xb90] sm:$0xff]
  %v407 = vld [vmem:[%s1 + $0xb98] sm:$0xff]
  %v408 = vld [vmem:[%s1 + $0xba0] sm:$0xff]
  %v409 = vld [vmem:[%s1 + $0xba8] sm:$0xff]
  %v410 = vld [vmem:[%s1 + $0xbb0] sm:$0xff]
  %v411 = vld [vmem:[%s1 + $0xbb8] sm:$0xff]
  %v412 = vld [vmem:[%s1 + $0xbc0] sm:$0xff]
  %v413 = vld [vmem:[%s1 + $0xbc8] sm:$0xff]
  %v414 = vld [vmem:[%s1 + $0xbd0] sm:$0xff]
  %v415 = vld [vmem:[%s1 + $0xbd8] sm:$0xff]
  %v416 = vld [vmem:[%s1 + $0xbe0] sm:$0xff]
  %v417 = vld [vmem:[%s1 + $0xbe8] sm:$0xff]
  %v418 = vld [vmem:[%s1 + $0xbf0] sm:$0xff]
  %v419 = vld [vmem:[%s1 + $0xbf8] sm:$0xff]
  %v420 = vld [vmem:[%s1 + $0xc00] sm:$0xff]
  %v421 = vld [vmem:[%s1 + $0xc08] sm:$0xff]
  %v422 = vld [vmem:[%s1 + $0xc10] sm:$0xff]
  %v423 = vld [vmem:[%s1 + $0xc18] sm:$0xff]
  %v424 = vld [vmem:[%s1 + $0xc20] sm:$0xff]
  %v425 = vld [vmem:[%s1 + $0xc28] sm:$0xff]
  %v426 = vld [vmem:[%s1 + $0xc30] sm:$0xff]
  %v427 = vld [vmem:[%s1 + $0xc38] sm:$0xff]
  %v428 = vld [vmem:[%s1 + $0xc40] sm:$0xff]
  %v429 = vld [vmem:[%s1 + $0xc48] sm:$0xff]
  %v430 = vld [vmem:[%s1 + $0xc50] sm:$0xff]
  %v431 = vld [vmem:[%s1 + $0xc58] sm:$0xff]
  %v432 = vld [vmem:[%s1 + $0xc60] sm:$0xff]
  %v433 = vld [vmem:[%s1 + $0xc68] sm:$0xff]
  %v434 = vld [vmem:[%s1 + $0xc70] sm:$0xff]
  %v435 = vld [vmem:[%s1 + $0xc78] sm:$0xff]
  %v436 = vld [vmem:[%s1 + $0xc80] sm:$0xff]
  %v437 = vld [vmem:[%s1 + $0xc88] sm:$0xff]
  %v438 = vld [vmem:[%s1 + $0xc90] sm:$0xff]
  %v439 = vld [vmem:[%s1 + $0xc98] sm:$0xff]
  %v440 = vld [vmem:[%s1 + $0xca0] sm:$0xff]
  %v441 = vld [vmem:[%s1 + $0xca8] sm:$0xff]
  %v442 = vld [vmem:[%s1 + $0xcb0] sm:$0xff]
  %v443 = vld [vmem:[%s1 + $0xcb8] sm:$0xff]
  %v444 = vld [vmem:[%s1 + $0xcc0] sm:$0xff]
  %v445 = vld [vmem:[%s1 + $0xcc8] sm:$0xff]
  %v446 = vld [vmem:[%s1 + $0xcd0] sm:$0xff]
  %v447 = vld [vmem:[%s1 + $0xcd8] sm:$0xff]
  %v448 = vld [vmem:[%s1 + $0xce0] sm:$0xff]
  %v449 = vld [vmem:[%s1 + $0xce8] sm:$0xff]
  %v450 = vld [vmem:[%s1 + $0xcf0] sm:$0xff]
  %v451 = vld [vmem:[%s1 + $0xcf8] sm:$0xff]
  %v452 = vld [vmem:[%s1 + $0xd00] sm:$0xff]
  %v453 = vld [vmem:[%s1 + $0xd08] sm:$0xff]
  %v454 = vld [vmem:[%s1 + $0xd10] sm:$0xff]
  %v455 = vld [vmem:[%s1 + $0xd18] sm:$0xff]
  %v456 = vld [vmem:[%s1 + $0xd20] sm:$0xff]
  %v457 = vld [vmem:[%s1 + $0xd28] sm:$0xff]
  %v458 = vld [vmem:[%s1 + $0xd30] sm:$0xff]
  %v459 = vld [vmem:[%s1 + $0xd38] sm:$0xff]
  %v460 = vld [vmem:[%s1 + $0xd40] sm:$0xff]
  %v461 = vld [vmem:[%s1 + $0xd48] sm:$0xff]
  %v462 = vld [vmem:[%s1 + $0xd50] sm:$0xff]
  %v463 = vld [vmem:[%s1 + $0xd58] sm:$0xff]
  %v464 = vld [vmem:[%s1 + $0xd60] sm:$0xff]
  %v465 = vld [vmem:[%s1 + $0xd68] sm:$0xff]
  %v466 = vld [vmem:[%s1 + $0xd70] sm:$0xff]
  %v467 = vld [vmem:[%s1 + $0xd78] sm:$0xff]
  %v468 = vld [vmem:[%s1 + $0xd80] sm:$0xff]
  %v469 = vld [vmem:[%s1 + $0xd88] sm:$0xff]
  %v470 = vld [vmem:[%s1 + $0xd90] sm:$0xff]
  %v471 = vld [vmem:[%s1 + $0xd98] sm:$0xff]
  %v472 = vld [vmem:[%s1 + $0xda0] sm:$0xff]
  %v473 = vld [vmem:[%s1 + $0xda8] sm:$0xff]
  %v474 = vld [vmem:[%s1 + $0xdb0] sm:$0xff]
  %v475 = vld [vmem:[%s1 + $0xdb8] sm:$0xff]
  %v476 = vld [vmem:[%s1 + $0xdc0] sm:$0xff]
  %v477 = vld [vmem:[%s1 + $0xdc8] sm:$0xff]
  %v478 = vld [vmem:[%s1 + $0xdd0] sm:$0xff]
  %v479 = vld [vmem:[%s1 + $0xdd8] sm:$0xff]
  %v480 = vld [vmem:[%s1 + $0xde0] sm:$0xff]
  %v481 = vld [vmem:[%s1 + $0xde8] sm:$0xff]
  %v482 = vld [vmem:[%s1 + $0xdf0] sm:$0xff]
  %v483 = vld [vmem:[%s1 + $0xdf8] sm:$0xff]
  %v484 = vld [vmem:[%s1 + $0xe00] sm:$0xff]
  %v485 = vld [vmem:[%s1 + $0xe08] sm:$0xff]
  %v486 = vld [vmem:[%s1 + $0xe10] sm:$0xff]
  %v487 = vld [vmem:[%s1 + $0xe18] sm:$0xff]
  %v488 = vld [vmem:[%s1 + $0xe20] sm:$0xff]
  %v489 = vld [vmem:[%s1 + $0xe28] sm:$0xff]
  %v490 = vld [vmem:[%s1 + $0xe30] sm:$0xff]
  %v491 = vld [vmem:[%s1 + $0xe38] sm:$0xff]
  %v492 = vld [vmem:[%s1 + $0xe40] sm:$0xff]
  %v493 = vld [vmem:[%s1 + $0xe48] sm:$0xff]
  %v494 = vld [vmem:[%s1 + $0xe50] sm:$0xff]
  %v495 = vld [vmem:[%s1 + $0xe58] sm:$0xff]
  %v496 = vld [vmem:[%s1 + $0xe60] sm:$0xff]
  %v497 = vld [vmem:[%s1 + $0xe68] sm:$0xff]
  %v498 = vld [vmem:[%s1 + $0xe70] sm:$0xff]
  %v499 = vld [vmem:[%s1 + $0xe78] sm:$0xff]
  %v500 = vld [vmem:[%s1 + $0xe80] sm:$0xff]
  %v501 = vld [vmem:[%s1 + $0xe88] sm:$0xff]
  %v502 = vld [vmem:[%s1 + $0xe90] sm:$0xff]
  %v503 = vld [vmem:[%s1 + $0xe98] sm:$0xff]
  %v504 = vld [vmem:[%s1 + $0xea0] sm:$0xff]
  %v505 = vld [vmem:[%s1 + $0xea8] sm:$0xff]
  %v506 = vld [vmem:[%s1 + $0xeb0] sm:$0xff]
  %v507 = vld [vmem:[%s1 + $0xeb8] sm:$0xff]
  %v508 = vld [vmem:[%s1 + $0xec0] sm:$0xff]
  %v509 = vld [vmem:[%s1 + $0xec8] sm:$0xff]
  %v510 = vld [vmem:[%s1 + $0xed0] sm:$0xff]
  %v511 = vld [vmem:[%s1 + $0xed8] sm:$0xff]
  %v512 = vld [vmem:[%s1 + $0xee0] sm:$0xff]
  %v513 = vld [vmem:[%s1 + $0xee8] sm:$0xff]
  %v514 = vld [vmem:[%s1 + $0xef0] sm:$0xff]
  %v515 = vld [vmem:[%s1 + $0xef8] sm:$0xff]
  %v516 = vld [vmem:[%s1 + $0xf00] sm:$0xff]
  %v517 = vld [vmem:[%s1 + $0xf08] sm:$0xff]
  %v518 = vld [vmem:[%s1 + $0xf10] sm:$0xff]
  %v519 = vld [vmem:[%s1 + $0xf18] sm:$0xff]
  %v520 = vld [vmem:[%s1 + $0xf20] sm:$0xff]
  %v521 = vld [vmem:[%s1 + $0xf28] sm:$0xff]
  %v522 = vld [vmem:[%s1 + $0xf30] sm:$0xff]
  %v523 = vld [vmem:[%s1 + $0xf38] sm:$0xff]
  %v524 = vld [vmem:[%s1 + $0xf40] sm:$0xff]
  %v525 = vld [vmem:[%s1 + $0xf48] sm:$0xff]
  %v526 = vld [vmem:[%s1 + $0xf50] sm:$0xff]
  %v527 = vld [vmem:[%s1 + $0xf58] sm:$0xff]
  %v528 = vld [vmem:[%s1 + $0xf60] sm:$0xff]
  %v529 = vld [vmem:[%s1 + $0xf68] sm:$0xff]
  %v530 = vld [vmem:[%s1 + $0xf70] sm:$0xff]
  %v531 = vld [vmem:[%s1 + $0xf78] sm:$0xff]
  %v532 = vld [vmem:[%s1 + $0xf80] sm:$0xff]
  %v533 = vld [vmem:[%s1 + $0xf88] sm:$0xff]
  %v534 = vld [vmem:[%s1 + $0xf90] sm:$0xff]
  %v535 = vld [vmem:[%s1 + $0xf98] sm:$0xff]
  %v536 = vld [vmem:[%s1 + $0xfa0] sm:$0xff]
  %v537 = vld [vmem:[%s1 + $0xfa8] sm:$0xff]
  %v538 = vld [vmem:[%s1 + $0xfb0] sm:$0xff]
  %v539 = vld [vmem:[%s1 + $0xfb8] sm:$0xff]
  %v540 = vld [vmem:[%s1 + $0xfc0] sm:$0xff]
  %v541 = vld [vmem:[%s1 + $0xfc8] sm:$0xff]
  %v542 = vld [vmem:[%s1 + $0xfd0] sm:$0xff]
  %v543 = vld [vmem:[%s1 + $0xfd8] sm:$0xff]
  %v544 = vld [vmem:[%s1 + $0xfe0] sm:$0xff]
  %v545 = vld [vmem:[%s1 + $0xfe8] sm:$0xff]
  %v546 = vld [vmem:[%s1 + $0xff0] sm:$0xff]
  %v547 = vld [vmem:[%s1 + $0xff8] sm:$0xff]
  %v548 = vld [vmem:[%s1 + $0x1000] sm:$0xff]
  %v549 = vld [vmem:[%s1 + $0x1008] sm:$0xff]
  %v550 = vld [vmem:[%s1 + $0x1010] sm:$0xff]
  %v551 = vld [vmem:[%s1 + $0x1018] sm:$0xff]
  %v552 = vld [vmem:[%s1 + $0x1020] sm:$0xff]
  %v553 = vld [vmem:[%s1 + $0x1028] sm:$0xff]
  %v554 = vld [vmem:[%s1 + $0x1030] sm:$0xff]
  %v555 = vld [vmem:[%s1 + $0x1038] sm:$0xff]
  %v556 = vld [vmem:[%s1 + $0x1040] sm:$0xff]
  %v557 = vld [vmem:[%s1 + $0x1048] sm:$0xff]
  %v558 = vld [vmem:[%s1 + $0x1050] sm:$0xff]
  %v559 = vld [vmem:[%s1 + $0x1058] sm:$0xff]
  %v560 = vld [vmem:[%s1 + $0x1060] sm:$0xff]
  %v561 = vld [vmem:[%s1 + $0x1068] sm:$0xff]
  %v562 = vld [vmem:[%s1 + $0x1070] sm:$0xff]
  %v563 = vld [vmem:[%s1 + $0x1078] sm:$0xff]
  %v564 = vld [vmem:[%s1 + $0x1080] sm:$0xff]
  %v565 = vld [vmem:[%s1 + $0x1088] sm:$0xff]
  %v566 = vld [vmem:[%s1 + $0x1090] sm:$0xff]
  %v567 = vld [vmem:[%s1 + $0x1098] sm:$0xff]
  %v568 = vld [vmem:[%s1 + $0x10a0] sm:$0xff]
  %v569 = vld [vmem:[%s1 + $0x10a8] sm:$0xff]
  %v570 = vld [vmem:[%s1 + $0x10b0] sm:$0xff]
  %v571 = vld [vmem:[%s1 + $0x10b8] sm:$0xff]
  %v572 = vld [vmem:[%s1 + $0x10c0] sm:$0xff]
  %v573 = vld [vmem:[%s1 + $0x10c8] sm:$0xff]
  %v574 = vld [vmem:[%s1 + $0x10d0] sm:$0xff]
  %v575 = vld [vmem:[%s1 + $0x10d8] sm:$0xff]
  %v576 = vld [vmem:[%s1 + $0x10e0] sm:$0xff]
  %v577 = vld [vmem:[%s1 + $0x10e8] sm:$0xff]
  %v578 = vld [vmem:[%s1 + $0x10f0] sm:$0xff]
  %v579 = vld [vmem:[%s1 + $0x10f8] sm:$0xff]
  %v580 = vld [vmem:[%s1 + $0x1100] sm:$0xff]
  %v581 = vld [vmem:[%s1 + $0x1108] sm:$0xff]
  %v582 = vld [vmem:[%s1 + $0x1110] sm:$0xff]
  %v583 = vld [vmem:[%s1 + $0x1118] sm:$0xff]
  %v584 = vld [vmem:[%s1 + $0x1120] sm:$0xff]
  %v585 = vld [vmem:[%s1 + $0x1128] sm:$0xff]
  %v586 = vld [vmem:[%s1 + $0x1130] sm:$0xff]
  %v587 = vld [vmem:[%s1 + $0x1138] sm:$0xff]
  %v588 = vld [vmem:[%s1 + $0x1140] sm:$0xff]
  %v589 = vld [vmem:[%s1 + $0x1148] sm:$0xff]
  %v590 = vld [vmem:[%s1 + $0x1150] sm:$0xff]
  %v591 = vld [vmem:[%s1 + $0x1158] sm:$0xff]
  %v592 = vld [vmem:[%s1 + $0x1160] sm:$0xff]
  %v593 = vld [vmem:[%s1 + $0x1168] sm:$0xff]
  %v594 = vld [vmem:[%s1 + $0x1170] sm:$0xff]
  %v595 = vld [vmem:[%s1 + $0x1178] sm:$0xff]
  %v596 = vld [vmem:[%s1 + $0x1180] sm:$0xff]
  %v597 = vld [vmem:[%s1 + $0x1188] sm:$0xff]
  %v598 = vld [vmem:[%s1 + $0x1190] sm:$0xff]
  %v599 = vld [vmem:[%s1 + $0x1198] sm:$0xff]
  %v600 = vld [vmem:[%s1 + $0x11a0] sm:$0xff]
  %v601 = vld [vmem:[%s1 + $0x11a8] sm:$0xff]
  %v602 = vld [vmem:[%s1 + $0x11b0] sm:$0xff]
  %v603 = vld [vmem:[%s1 + $0x11b8] sm:$0xff]
  %v604 = vld [vmem:[%s1 + $0x11c0] sm:$0xff]
  %v605 = vld [vmem:[%s1 + $0x11c8] sm:$0xff]
  %v606 = vld [vmem:[%s1 + $0x11d0] sm:$0xff]
  %v607 = vld [vmem:[%s1 + $0x11d8] sm:$0xff]
  %v608 = vld [vmem:[%s1 + $0x11e0] sm:$0xff]
  %v609 = vld [vmem:[%s1 + $0x11e8] sm:$0xff]
  %v610 = vld [vmem:[%s1 + $0x11f0] sm:$0xff]
  %v611 = vld [vmem:[%s1 + $0x11f8] sm:$0xff]
  %v612 = vld [vmem:[%s1 + $0x1200] sm:$0xff]
  %v613 = vld [vmem:[%s1 + $0x1208] sm:$0xff]
  %v614 = vld [vmem:[%s1 + $0x1210] sm:$0xff]
  %v615 = vld [vmem:[%s1 + $0x1218] sm:$0xff]
  %v616 = vld [vmem:[%s1 + $0x1220] sm:$0xff]
  %v617 = vld [vmem:[%s1 + $0x1228] sm:$0xff]
  %v618 = vld [vmem:[%s1 + $0x1230] sm:$0xff]
  %v619 = vld [vmem:[%s1 + $0x1238] sm:$0xff]
  %v620 = vld [vmem:[%s1 + $0x1240] sm:$0xff]
  %v621 = vld [vmem:[%s1 + $0x1248] sm:$0xff]
  %v622 = vld [vmem:[%s1 + $0x1250] sm:$0xff]
  %v623 = vld [vmem:[%s1 + $0x1258] sm:$0xff]
  %v624 = vld [vmem:[%s1 + $0x1260] sm:$0xff]
  %v625 = vld [vmem:[%s1 + $0x1268] sm:$0xff]
  %v626 = vld [vmem:[%s1 + $0x1270] sm:$0xff]
  %v627 = vld [vmem:[%s1 + $0x1278] sm:$0xff]
  %v628 = vld [vmem:[%s1 + $0x1280] sm:$0xff]
  %v629 = vld [vmem:[%s1 + $0x1288] sm:$0xff]
  %v630 = vld [vmem:[%s1 + $0x1290] sm:$0xff]
  %v631 = vld [vmem:[%s1 + $0x1298] sm:$0xff]
  %v632 = vld [vmem:[%s1 + $0x12a0] sm:$0xff]
  %v633 = vld [vmem:[%s1 + $0x12a8] sm:$0xff]
  %v634 = vld [vmem:[%s1 + $0x12b0] sm:$0xff]
  %v635 = vld [vmem:[%s1 + $0x12b8] sm:$0xff]
  %v636 = vld [vmem:[%s1 + $0x12c0] sm:$0xff]
  %v637 = vld [vmem:[%s1 + $0x12c8] sm:$0xff]
  %v638 = vld [vmem:[%s1 + $0x12d0] sm:$0xff]
  %v639 = vld [vmem:[%s1 + $0x12d8] sm:$0xff]
  %v640 = vld [vmem:[%s1 + $0x12e0] sm:$0xff]
  %v641 = vld [vmem:[%s1 + $0x12e8] sm:$0xff]
  %v642 = vld [vmem:[%s1 + $0x12f0] sm:$0xff]
  %v643 = vld [vmem:[%s1 + $0x12f8] sm:$0xff]
  %v644 = vld [vmem:[%s1 + $0x1300] sm:$0xff]
  %v645 = vld [vmem:[%s1 + $0x1308] sm:$0xff]
  %v646 = vld [vmem:[%s1 + $0x1310] sm:$0xff]
  %v647 = vld [vmem:[%s1 + $0x1318] sm:$0xff]
  %v648 = vld [vmem:[%s1 + $0x1320] sm:$0xff]
  %v649 = vld [vmem:[%s1 + $0x1328] sm:$0xff]
  %v650 = vld [vmem:[%s1 + $0x1330] sm:$0xff]
  %v651 = vld [vmem:[%s1 + $0x1338] sm:$0xff]
  %v652 = vld [vmem:[%s1 + $0x1340] sm:$0xff]
  %v653 = vld [vmem:[%s1 + $0x1348] sm:$0xff]
  %v654 = vld [vmem:[%s1 + $0x1350] sm:$0xff]
  %v655 = vld [vmem:[%s1 + $0x1358] sm:$0xff]
  %v656 = vld [vmem:[%s1 + $0x1360] sm:$0xff]
  %v657 = vld [vmem:[%s1 + $0x1368] sm:$0xff]
  %v658 = vld [vmem:[%s1 + $0x1370] sm:$0xff]
  %v659 = vld [vmem:[%s1 + $0x1378] sm:$0xff]
  %v660 = vld [vmem:[%s1 + $0x1380] sm:$0xff]
  %v661 = vld [vmem:[%s1 + $0x1388] sm:$0xff]
  %v662 = vld [vmem:[%s1 + $0x1390] sm:$0xff]
  %v663 = vld [vmem:[%s1 + $0x1398] sm:$0xff]
  %v664 = vld [vmem:[%s1 + $0x13a0] sm:$0xff]
  %v665 = vld [vmem:[%s1 + $0x13a8] sm:$0xff]
  %v666 = vld [vmem:[%s1 + $0x13b0] sm:$0xff]
  %v667 = vld [vmem:[%s1 + $0x13b8] sm:$0xff]
  %v668 = vld [vmem:[%s1 + $0x13c0] sm:$0xff]
  %v669 = vld [vmem:[%s1 + $0x13c8] sm:$0xff]
  %v670 = vld [vmem:[%s1 + $0x13d0] sm:$0xff]
  %v671 = vld [vmem:[%s1 + $0x13d8] sm:$0xff]
  %v672 = vld [vmem:[%s1 + $0x13e0] sm:$0xff]
  %v673 = vld [vmem:[%s1 + $0x13e8] sm:$0xff]
  %v674 = vld [vmem:[%s1 + $0x13f0] sm:$0xff]
  %v675 = vld [vmem:[%s1 + $0x13f8] sm:$0xff]
  %v676 = vld [vmem:[%s1 + $0x1400] sm:$0xff]
  %v677 = vld [vmem:[%s1 + $0x1408] sm:$0xff]
  %v678 = vld [vmem:[%s1 + $0x1410] sm:$0xff]
  %v679 = vld [vmem:[%s1 + $0x1418] sm:$0xff]
  %v680 = vld [vmem:[%s1 + $0x1420] sm:$0xff]
  %v681 = vld [vmem:[%s1 + $0x1428] sm:$0xff]
  %v682 = vld [vmem:[%s1 + $0x1430] sm:$0xff]
  %v683 = vld [vmem:[%s1 + $0x1438] sm:$0xff]
  %v684 = vld [vmem:[%s1 + $0x1440] sm:$0xff]
  %v685 = vld [vmem:[%s1 + $0x1448] sm:$0xff]
  %v686 = vld [vmem:[%s1 + $0x1450] sm:$0xff]
  %v687 = vld [vmem:[%s1 + $0x1458] sm:$0xff]
  %v688 = vld [vmem:[%s1 + $0x1460] sm:$0xff]
  %v689 = vld [vmem:[%s1 + $0x1468] sm:$0xff]
  %v690 = vld [vmem:[%s1 + $0x1470] sm:$0xff]
  %v691 = vld [vmem:[%s1 + $0x1478] sm:$0xff]
  %v692 = vld [vmem:[%s1 + $0x1480] sm:$0xff]
  %v693 = vld [vmem:[%s1 + $0x1488] sm:$0xff]
  %v694 = vld [vmem:[%s1 + $0x1490] sm:$0xff]
  %v695 = vld [vmem:[%s1 + $0x1498] sm:$0xff]
  %v696 = vld [vmem:[%s1 + $0x14a0] sm:$0xff]
  %v697 = vld [vmem:[%s1 + $0x14a8] sm:$0xff]
  %v698 = vld [vmem:[%s1 + $0x14b0] sm:$0xff]
  %v699 = vld [vmem:[%s1 + $0x14b8] sm:$0xff]
  %v700 = vld [vmem:[%s1 + $0x14c0] sm:$0xff]
  %v701 = vld [vmem:[%s1 + $0x14c8] sm:$0xff]
  %v702 = vld [vmem:[%s1 + $0x14d0] sm:$0xff]
  %v703 = vld [vmem:[%s1 + $0x14d8] sm:$0xff]
  %v704 = vld [vmem:[%s1 + $0x14e0] sm:$0xff]
  %v705 = vld [vmem:[%s1 + $0x14e8] sm:$0xff]
  %v706 = vld [vmem:[%s1 + $0x14f0] sm:$0xff]
  %v707 = vld [vmem:[%s1 + $0x14f8] sm:$0xff]
  %v708 = vld [vmem:[%s1 + $0x1500] sm:$0xff]
  %v709 = vld [vmem:[%s1 + $0x1508] sm:$0xff]
  %v710 = vld [vmem:[%s1 + $0x1510] sm:$0xff]
  %v711 = vld [vmem:[%s1 + $0x1518] sm:$0xff]
  %v712 = vld [vmem:[%s1 + $0x1520] sm:$0xff]
  %v713 = vld [vmem:[%s1 + $0x1528] sm:$0xff]
  %v714 = vld [vmem:[%s1 + $0x1530] sm:$0xff]
  %v715 = vld [vmem:[%s1 + $0x1538] sm:$0xff]
  %v716 = vld [vmem:[%s1 + $0x1540] sm:$0xff]
  %v717 = vld [vmem:[%s1 + $0x1548] sm:$0xff]
  %v718 = vld [vmem:[%s1 + $0x1550] sm:$0xff]
  %v719 = vld [vmem:[%s1 + $0x1558] sm:$0xff]
  %v720 = vld [vmem:[%s1 + $0x1560] sm:$0xff]
  %v721 = vld [vmem:[%s1 + $0x1568] sm:$0xff]
  %v722 = vld [vmem:[%s1 + $0x1570] sm:$0xff]
  %v723 = vld [vmem:[%s1 + $0x1578] sm:$0xff]
  %v724 = vld [vmem:[%s1 + $0x1580] sm:$0xff]
  %v725 = vld [vmem:[%s1 + $0x1588] sm:$0xff]
  %v726 = vld [vmem:[%s1 + $0x1590] sm:$0xff]
  %v727 = vld [vmem:[%s1 + $0x1598] sm:$0xff]
  %v728 = vld [vmem:[%s1 + $0x15a0] sm:$0xff]
  %v729 = vld [vmem:[%s1 + $0x15a8] sm:$0xff]
  %v730 = vld [vmem:[%s1 + $0x15b0] sm:$0xff]
  %v731 = vld [vmem:[%s1 + $0x15b8] sm:$0xff]
  %v732 = vld [vmem:[%s1 + $0x15c0] sm:$0xff]
  %v733 = vld [vmem:[%s1 + $0x15c8] sm:$0xff]
  %v734 = vld [vmem:[%s1 + $0x15d0] sm:$0xff]
  %v735 = vld [vmem:[%s1 + $0x15d8] sm:$0xff]
  %v736 = vld [vmem:[%s1 + $0x15e0] sm:$0xff]
  %v737 = vld [vmem:[%s1 + $0x15e8] sm:$0xff]
  %v738 = vld [vmem:[%s1 + $0x15f0] sm:$0xff]
  %v739 = vld [vmem:[%s1 + $0x15f8] sm:$0xff]
  %v740 = vld [vmem:[%s1 + $0x1600] sm:$0xff]
  %v741 = vld [vmem:[%s1 + $0x1608] sm:$0xff]
  %v742 = vld [vmem:[%s1 + $0x1610] sm:$0xff]
  %v743 = vld [vmem:[%s1 + $0x1618] sm:$0xff]
  %v744 = vld [vmem:[%s1 + $0x1620] sm:$0xff]
  %v745 = vld [vmem:[%s1 + $0x1628] sm:$0xff]
  %v746 = vld [vmem:[%s1 + $0x1630] sm:$0xff]
  %v747 = vld [vmem:[%s1 + $0x1638] sm:$0xff]
  %v748 = vld [vmem:[%s1 + $0x1640] sm:$0xff]
  %v749 = vld [vmem:[%s1 + $0x1648] sm:$0xff]
  %v750 = vld [vmem:[%s1 + $0x1650] sm:$0xff]
  %v751 = vld [vmem:[%s1 + $0x1658] sm:$0xff]
  %v752 = vld [vmem:[%s1 + $0x1660] sm:$0xff]
  %v753 = vld [vmem:[%s1 + $0x1668] sm:$0xff]
  %v754 = vld [vmem:[%s1 + $0x1670] sm:$0xff]
  %v755 = vld [vmem:[%s1 + $0x1678] sm:$0xff]
  %v756 = vld [vmem:[%s1 + $0x1680] sm:$0xff]
  %v757 = vld [vmem:[%s1 + $0x1688] sm:$0xff]
  %v758 = vld [vmem:[%s1 + $0x1690] sm:$0xff]
  %v759 = vld [vmem:[%s1 + $0x1698] sm:$0xff]
  %v760 = vld [vmem:[%s1 + $0x16a0] sm:$0xff]
  %v761 = vld [vmem:[%s1 + $0x16a8] sm:$0xff]
  %v762 = vld [vmem:[%s1 + $0x16b0] sm:$0xff]
  %v763 = vld [vmem:[%s1 + $0x16b8] sm:$0xff]
  %v764 = vld [vmem:[%s1 + $0x16c0] sm:$0xff]
  %v765 = vld [vmem:[%s1 + $0x16c8] sm:$0xff]
  %v766 = vld [vmem:[%s1 + $0x16d0] sm:$0xff]
  %v767 = vld [vmem:[%s1 + $0x16d8] sm:$0xff]
  %v768 = vld [vmem:[%s1 + $0x16e0] sm:$0xff]
  %v769 = vld [vmem:[%s1 + $0x16e8] sm:$0xff]
  %v770 = vld [vmem:[%s1 + $0x16f0] sm:$0xff]
  %v771 = vld [vmem:[%s1 + $0x16f8] sm:$0xff]
  %v772 = vld [vmem:[%s1 + $0x1700] sm:$0xff]
  %v773 = vld [vmem:[%s1 + $0x1708] sm:$0xff]
  %v774 = vld [vmem:[%s1 + $0x1710] sm:$0xff]
  %v775 = vld [vmem:[%s1 + $0x1718] sm:$0xff]
  %v776 = vld [vmem:[%s1 + $0x1720] sm:$0xff]
  %v777 = vld [vmem:[%s1 + $0x1728] sm:$0xff]
  %v778 = vld [vmem:[%s1 + $0x1730] sm:$0xff]
  %v779 = vld [vmem:[%s1 + $0x1738] sm:$0xff]
  %v780 = vld [vmem:[%s1 + $0x1740] sm:$0xff]
  %v781 = vld [vmem:[%s1 + $0x1748] sm:$0xff]
  %v782 = vld [vmem:[%s1 + $0x1750] sm:$0xff]
  %v783 = vld [vmem:[%s1 + $0x1758] sm:$0xff]
  %v784 = vld [vmem:[%s1 + $0x1760] sm:$0xff]
  %v785 = vld [vmem:[%s1 + $0x1768] sm:$0xff]
  %v786 = vld [vmem:[%s1 + $0x1770] sm:$0xff]
  %v787 = vld [vmem:[%s1 + $0x1778] sm:$0xff]
  %v788 = vld [vmem:[%s1 + $0x1780] sm:$0xff]
  %v789 = vld [vmem:[%s1 + $0x1788] sm:$0xff]
  %v790 = vld [vmem:[%s1 + $0x1790] sm:$0xff]
  %v791 = vld [vmem:[%s1 + $0x1798] sm:$0xff]
  %v792 = vld [vmem:[%s1 + $0x17a0] sm:$0xff]
  %v793 = vld [vmem:[%s1 + $0x17a8] sm:$0xff]
  %v794 = vld [vmem:[%s1 + $0x17b0] sm:$0xff]
  %v795 = vld [vmem:[%s1 + $0x17b8] sm:$0xff]
  %v796 = vld [vmem:[%s1 + $0x17c0] sm:$0xff]
  %v797 = vld [vmem:[%s1 + $0x17c8] sm:$0xff]
  %v798 = vld [vmem:[%s1 + $0x17d0] sm:$0xff]
  %v799 = vld [vmem:[%s1 + $0x17d8] sm:$0xff]
  %v800 = vld [vmem:[%s1 + $0x17e0] sm:$0xff]
  %v801 = vld [vmem:[%s1 + $0x17e8] sm:$0xff]
  %v802 = vld [vmem:[%s1 + $0x17f0] sm:$0xff]
  %v803 = vld [vmem:[%s1 + $0x17f8] sm:$0xff]
  %v804 = vld [vmem:[%s1 + $0x1800] sm:$0xff]
  %v805 = vld [vmem:[%s1 + $0x1808] sm:$0xff]
  %v806 = vld [vmem:[%s1 + $0x1810] sm:$0xff]
  %v807 = vld [vmem:[%s1 + $0x1818] sm:$0xff]
  %v808 = vld [vmem:[%s1 + $0x1820] sm:$0xff]
  %v809 = vld [vmem:[%s1 + $0x1828] sm:$0xff]
  %v810 = vld [vmem:[%s1 + $0x1830] sm:$0xff]
  %v811 = vld [vmem:[%s1 + $0x1838] sm:$0xff]
  %v812 = vld [vmem:[%s1 + $0x1840] sm:$0xff]
  %v813 = vld [vmem:[%s1 + $0x1848] sm:$0xff]
  %v814 = vld [vmem:[%s1 + $0x1850] sm:$0xff]
  %v815 = vld [vmem:[%s1 + $0x1858] sm:$0xff]
  %v816 = vld [vmem:[%s1 + $0x1860] sm:$0xff]
  %v817 = vld [vmem:[%s1 + $0x1868] sm:$0xff]
  %v818 = vld [vmem:[%s1 + $0x1870] sm:$0xff]
  %v819 = vld [vmem:[%s1 + $0x1878] sm:$0xff]
  %v820 = vld [vmem:[%s1 + $0x1880] sm:$0xff]
  %v821 = vld [vmem:[%s1 + $0x1888] sm:$0xff]
  %v822 = vld [vmem:[%s1 + $0x1890] sm:$0xff]
  %v823 = vld [vmem:[%s1 + $0x1898] sm:$0xff]
  %v824 = vld [vmem:[%s1 + $0x18a0] sm:$0xff]
  %v825 = vld [vmem:[%s1 + $0x18a8] sm:$0xff]
  %v826 = vld [vmem:[%s1 + $0x18b0] sm:$0xff]
  %v827 = vld [vmem:[%s1 + $0x18b8] sm:$0xff]
  %v828 = vld [vmem:[%s1 + $0x18c0] sm:$0xff]
  %v829 = vld [vmem:[%s1 + $0x18c8] sm:$0xff]
  %v830 = vld [vmem:[%s1 + $0x18d0] sm:$0xff]
  %v831 = vld [vmem:[%s1 + $0x18d8] sm:$0xff]
  %v832 = vld [vmem:[%s1 + $0x18e0] sm:$0xff]
  %v833 = vld [vmem:[%s1 + $0x18e8] sm:$0xff]
  %v834 = vld [vmem:[%s1 + $0x18f0] sm:$0xff]
  %v835 = vld [vmem:[%s1 + $0x18f8] sm:$0xff]
  %v836 = vld [vmem:[%s1 + $0x1900] sm:$0xff]
  %v837 = vld [vmem:[%s1 + $0x1908] sm:$0xff]
  %v838 = vld [vmem:[%s1 + $0x1910] sm:$0xff]
  %v839 = vld [vmem:[%s1 + $0x1918] sm:$0xff]
  %v840 = vld [vmem:[%s1 + $0x1920] sm:$0xff]
  %v841 = vld [vmem:[%s1 + $0x1928] sm:$0xff]
  %v842 = vld [vmem:[%s1 + $0x1930] sm:$0xff]
  %v843 = vld [vmem:[%s1 + $0x1938] sm:$0xff]
  %v844 = vld [vmem:[%s1 + $0x1940] sm:$0xff]
  %v845 = vld [vmem:[%s1 + $0x1948] sm:$0xff]
  %v846 = vld [vmem:[%s1 + $0x1950] sm:$0xff]
  %v847 = vld [vmem:[%s1 + $0x1958] sm:$0xff]
  %v848 = vld [vmem:[%s1 + $0x1960] sm:$0xff]
  %v849 = vld [vmem:[%s1 + $0x1968] sm:$0xff]
  %v850 = vld [vmem:[%s1 + $0x1970] sm:$0xff]
  %v851 = vld [vmem:[%s1 + $0x1978] sm:$0xff]
  %v852 = vld [vmem:[%s1 + $0x1980] sm:$0xff]
  %v853 = vld [vmem:[%s1 + $0x1988] sm:$0xff]
  %v854 = vld [vmem:[%s1 + $0x1990] sm:$0xff]
  %v855 = vld [vmem:[%s1 + $0x1998] sm:$0xff]
  %v856 = vld [vmem:[%s1 + $0x19a0] sm:$0xff]
  %v857 = vld [vmem:[%s1 + $0x19a8] sm:$0xff]
  %v858 = vld [vmem:[%s1 + $0x19b0] sm:$0xff]
  %v859 = vld [vmem:[%s1 + $0x19b8] sm:$0xff]
  %v860 = vld [vmem:[%s1 + $0x19c0] sm:$0xff]
  %v861 = vld [vmem:[%s1 + $0x19c8] sm:$0xff]
  %v862 = vld [vmem:[%s1 + $0x19d0] sm:$0xff]
  %v863 = vld [vmem:[%s1 + $0x19d8] sm:$0xff]
  %v864 = vld [vmem:[%s1 + $0x19e0] sm:$0xff]
  %v865 = vld [vmem:[%s1 + $0x19e8] sm:$0xff]
  %v866 = vld [vmem:[%s1 + $0x19f0] sm:$0xff]
  %v867 = vld [vmem:[%s1 + $0x19f8] sm:$0xff]
  %v868 = vld [vmem:[%s1 + $0x1a00] sm:$0xff]
  %v869 = vld [vmem:[%s1 + $0x1a08] sm:$0xff]
  %v870 = vld [vmem:[%s1 + $0x1a10] sm:$0xff]
  %v871 = vld [vmem:[%s1 + $0x1a18] sm:$0xff]
  %v872 = vld [vmem:[%s1 + $0x1a20] sm:$0xff]
  %v873 = vld [vmem:[%s1 + $0x1a28] sm:$0xff]
  %v874 = vld [vmem:[%s1 + $0x1a30] sm:$0xff]
  %v875 = vld [vmem:[%s1 + $0x1a38] sm:$0xff]
  %v876 = vld [vmem:[%s1 + $0x1a40] sm:$0xff]
  %v877 = vld [vmem:[%s1 + $0x1a48] sm:$0xff]
  %v878 = vld [vmem:[%s1 + $0x1a50] sm:$0xff]
  %v879 = vld [vmem:[%s1 + $0x1a58] sm:$0xff]
  %v880 = vld [vmem:[%s1 + $0x1a60] sm:$0xff]
  %v881 = vld [vmem:[%s1 + $0x1a68] sm:$0xff]
  %v882 = vld [vmem:[%s1 + $0x1a70] sm:$0xff]
  %v883 = vld [vmem:[%s1 + $0x1a78] sm:$0xff]
  %v884 = vld [vmem:[%s1 + $0x1a80] sm:$0xff]
  %v885 = vld [vmem:[%s1 + $0x1a88] sm:$0xff]
  %v886 = vld [vmem:[%s1 + $0x1a90] sm:$0xff]
  %v887 = vld [vmem:[%s1 + $0x1a98] sm:$0xff]
  %v888 = vld [vmem:[%s1 + $0x1aa0] sm:$0xff]
  %v889 = vld [vmem:[%s1 + $0x1aa8] sm:$0xff]
  %v890 = vld [vmem:[%s1 + $0x1ab0] sm:$0xff]
  %v891 = vld [vmem:[%s1 + $0x1ab8] sm:$0xff]
  %v892 = vld [vmem:[%s1 + $0x1ac0] sm:$0xff]
  %v893 = vld [vmem:[%s1 + $0x1ac8] sm:$0xff]
  %v894 = vld [vmem:[%s1 + $0x1ad0] sm:$0xff]
  %v895 = vld [vmem:[%s1 + $0x1ad8] sm:$0xff]
  %v896 = vld [vmem:[%s1 + $0x1ae0] sm:$0xff]
  %v897 = vld [vmem:[%s1 + $0x1ae8] sm:$0xff]
  %v898 = vld [vmem:[%s1 + $0x1af0] sm:$0xff]
  %v899 = vld [vmem:[%s1 + $0x1af8] sm:$0xff]
  %v900 = vld [vmem:[%s1 + $0x1b00] sm:$0xff]
  %v901 = vld [vmem:[%s1 + $0x1b08] sm:$0xff]
  %v902 = vld [vmem:[%s1 + $0x1b10] sm:$0xff]
  %v903 = vld [vmem:[%s1 + $0x1b18] sm:$0xff]
  %v904 = vld [vmem:[%s1 + $0x1b20] sm:$0xff]
  %v905 = vld [vmem:[%s1 + $0x1b28] sm:$0xff]
  %v906 = vld [vmem:[%s1 + $0x1b30] sm:$0xff]
  %v907 = vld [vmem:[%s1 + $0x1b38] sm:$0xff]
  %v908 = vld [vmem:[%s1 + $0x1b40] sm:$0xff]
  %v909 = vld [vmem:[%s1 + $0x1b48] sm:$0xff]
  %v910 = vld [vmem:[%s1 + $0x1b50] sm:$0xff]
  %v911 = vld [vmem:[%s1 + $0x1b58] sm:$0xff]
  %v912 = vld [vmem:[%s1 + $0x1b60] sm:$0xff]
  %v913 = vld [vmem:[%s1 + $0x1b68] sm:$0xff]
  %v914 = vld [vmem:[%s1 + $0x1b70] sm:$0xff]
  %v915 = vld [vmem:[%s1 + $0x1b78] sm:$0xff]
  %v916 = vld [vmem:[%s1 + $0x1b80] sm:$0xff]
  %v917 = vld [vmem:[%s1 + $0x1b88] sm:$0xff]
  %v918 = vld [vmem:[%s1 + $0x1b90] sm:$0xff]
  %v919 = vld [vmem:[%s1 + $0x1b98] sm:$0xff]
  %v920 = vld [vmem:[%s1 + $0x1ba0] sm:$0xff]
  %v921 = vld [vmem:[%s1 + $0x1ba8] sm:$0xff]
  %v922 = vld [vmem:[%s1 + $0x1bb0] sm:$0xff]
  %v923 = vld [vmem:[%s1 + $0x1bb8] sm:$0xff]
  %v924 = vld [vmem:[%s1 + $0x1bc0] sm:$0xff]
  %v925 = vld [vmem:[%s1 + $0x1bc8] sm:$0xff]
  %v926 = vld [vmem:[%s1 + $0x1bd0] sm:$0xff]
  %v927 = vld [vmem:[%s1 + $0x1bd8] sm:$0xff]
  %v928 = vld [vmem:[%s1 + $0x1be0] sm:$0xff]
  %v929 = vld [vmem:[%s1 + $0x1be8] sm:$0xff]
  %v930 = vld [vmem:[%s1 + $0x1bf0] sm:$0xff]
  %v931 = vld [vmem:[%s1 + $0x1bf8] sm:$0xff]
  %v932 = vld [vmem:[%s1 + $0x1c00] sm:$0xff]
  %v933 = vld [vmem:[%s1 + $0x1c08] sm:$0xff]
  %v934 = vld [vmem:[%s1 + $0x1c10] sm:$0xff]
  %v935 = vld [vmem:[%s1 + $0x1c18] sm:$0xff]
  %v936 = vld [vmem:[%s1 + $0x1c20] sm:$0xff]
  %v937 = vld [vmem:[%s1 + $0x1c28] sm:$0xff]
  %v938 = vld [vmem:[%s1 + $0x1c30] sm:$0xff]
  %v939 = vld [vmem:[%s1 + $0x1c38] sm:$0xff]
  %v940 = vld [vmem:[%s1 + $0x1c40] sm:$0xff]
  %v941 = vld [vmem:[%s1 + $0x1c48] sm:$0xff]
  %v942 = vld [vmem:[%s1 + $0x1c50] sm:$0xff]
  %v943 = vld [vmem:[%s1 + $0x1c58] sm:$0xff]
  %v944 = vld [vmem:[%s1 + $0x1c60] sm:$0xff]
  %v945 = vld [vmem:[%s1 + $0x1c68] sm:$0xff]
  %v946 = vld [vmem:[%s1 + $0x1c70] sm:$0xff]
  %v947 = vld [vmem:[%s1 + $0x1c78] sm:$0xff]
  %v948 = vld [vmem:[%s1 + $0x1c80] sm:$0xff]
  %v949 = vld [vmem:[%s1 + $0x1c88] sm:$0xff]
  %v950 = vld [vmem:[%s1 + $0x1c90] sm:$0xff]
  %v951 = vld [vmem:[%s1 + $0x1c98] sm:$0xff]
  %v952 = vld [vmem:[%s1 + $0x1ca0] sm:$0xff]
  %v953 = vld [vmem:[%s1 + $0x1ca8] sm:$0xff]
  %v954 = vld [vmem:[%s1 + $0x1cb0] sm:$0xff]
  %v955 = vld [vmem:[%s1 + $0x1cb8] sm:$0xff]
  %v956 = vld [vmem:[%s1 + $0x1cc0] sm:$0xff]
  %v957 = vld [vmem:[%s1 + $0x1cc8] sm:$0xff]
  %v958 = vld [vmem:[%s1 + $0x1cd0] sm:$0xff]
  %v959 = vld [vmem:[%s1 + $0x1cd8] sm:$0xff]
  %v960 = vld [vmem:[%s1 + $0x1ce0] sm:$0xff]
  %v961 = vld [vmem:[%s1 + $0x1ce8] sm:$0xff]
  %v962 = vld [vmem:[%s1 + $0x1cf0] sm:$0xff]
  %v963 = vld [vmem:[%s1 + $0x1cf8] sm:$0xff]
  %v964 = vld [vmem:[%s1 + $0x1d00] sm:$0xff]
  %v965 = vld [vmem:[%s1 + $0x1d08] sm:$0xff]
  %v966 = vld [vmem:[%s1 + $0x1d10] sm:$0xff]
  %v967 = vld [vmem:[%s1 + $0x1d18] sm:$0xff]
  %v968 = vld [vmem:[%s1 + $0x1d20] sm:$0xff]
  %v969 = vld [vmem:[%s1 + $0x1d28] sm:$0xff]
  %v970 = vld [vmem:[%s1 + $0x1d30] sm:$0xff]
  %v971 = vld [vmem:[%s1 + $0x1d38] sm:$0xff]
  %v972 = vld [vmem:[%s1 + $0x1d40] sm:$0xff]
  %v973 = vld [vmem:[%s1 + $0x1d48] sm:$0xff]
  %v974 = vld [vmem:[%s1 + $0x1d50] sm:$0xff]
  %v975 = vld [vmem:[%s1 + $0x1d58] sm:$0xff]
  %v976 = vld [vmem:[%s1 + $0x1d60] sm:$0xff]
  %v977 = vld [vmem:[%s1 + $0x1d68] sm:$0xff]
  %v978 = vld [vmem:[%s1 + $0x1d70] sm:$0xff]
  %v979 = vld [vmem:[%s1 + $0x1d78] sm:$0xff]
  %v980 = vld [vmem:[%s1 + $0x1d80] sm:$0xff]
  %v981 = vld [vmem:[%s1 + $0x1d88] sm:$0xff]
  %v982 = vld [vmem:[%s1 + $0x1d90] sm:$0xff]
  %v983 = vld [vmem:[%s1 + $0x1d98] sm:$0xff]
  %v984 = vld [vmem:[%s1 + $0x1da0] sm:$0xff]
  %v985 = vld [vmem:[%s1 + $0x1da8] sm:$0xff]
  %v986 = vld [vmem:[%s1 + $0x1db0] sm:$0xff]
  %v987 = vld [vmem:[%s1 + $0x1db8] sm:$0xff]
  %v988 = vld [vmem:[%s1 + $0x1dc0] sm:$0xff]
  %v989 = vld [vmem:[%s1 + $0x1dc8] sm:$0xff]
  %v990 = vld [vmem:[%s1 + $0x1dd0] sm:$0xff]
  %v991 = vld [vmem:[%s1 + $0x1dd8] sm:$0xff]
  %v992 = vld [vmem:[%s1 + $0x1de0] sm:$0xff]
  %v993 = vld [vmem:[%s1 + $0x1de8] sm:$0xff]
  %v994 = vld [vmem:[%s1 + $0x1df0] sm:$0xff]
  %v995 = vld [vmem:[%s1 + $0x1df8] sm:$0xff]
  %v996 = vld [vmem:[%s1 + $0x1e00] sm:$0xff]
  %v997 = vld [vmem:[%s1 + $0x1e08] sm:$0xff]
  %v998 = vld [vmem:[%s1 + $0x1e10] sm:$0xff]
  %v999 = vld [vmem:[%s1 + $0x1e18] sm:$0xff]
  %v1000 = vld [vmem:[%s1 + $0x1e20] sm:$0xff]
  %v1001 = vld [vmem:[%s1 + $0x1e28] sm:$0xff]
  %v1002 = vld [vmem:[%s1 + $0x1e30] sm:$0xff]
  %v1003 = vld [vmem:[%s1 + $0x1e38] sm:$0xff]
  %v1004 = vld [vmem:[%s1 + $0x1e40] sm:$0xff]
  %v1005 = vld [vmem:[%s1 + $0x1e48] sm:$0xff]
  %v1006 = vld [vmem:[%s1 + $0x1e50] sm:$0xff]
  %v1007 = vld [vmem:[%s1 + $0x1e58] sm:$0xff]
  %v1008 = vld [vmem:[%s1 + $0x1e60] sm:$0xff]
  %v1009 = vld [vmem:[%s1 + $0x1e68] sm:$0xff]
  %v1010 = vld [vmem:[%s1 + $0x1e70] sm:$0xff]
  %v1011 = vld [vmem:[%s1 + $0x1e78] sm:$0xff]
  %v1012 = vld [vmem:[%s1 + $0x1e80] sm:$0xff]
  %v1013 = vld [vmem:[%s1 + $0x1e88] sm:$0xff]
  %v1014 = vld [vmem:[%s1 + $0x1e90] sm:$0xff]
  %v1015 = vld [vmem:[%s1 + $0x1e98] sm:$0xff]
  %v1016 = vld [vmem:[%s1 + $0x1ea0] sm:$0xff]
  %v1017 = vld [vmem:[%s1 + $0x1ea8] sm:$0xff]
  %v1018 = vld [vmem:[%s1 + $0x1eb0] sm:$0xff]
  %v1019 = vld [vmem:[%s1 + $0x1eb8] sm:$0xff]
  %v1020 = vld [vmem:[%s1 + $0x1ec0] sm:$0xff]
  %v1021 = vld [vmem:[%s1 + $0x1ec8] sm:$0xff]
  %v1022 = vld [vmem:[%s1 + $0x1ed0] sm:$0xff]
  %v1023 = vld [vmem:[%s1 + $0x1ed8] sm:$0xff]
  %v1024 = vld [vmem:[%s1 + $0x1ee0] sm:$0xff]
  %v1025 = vld [vmem:[%s1 + $0x1ee8] sm:$0xff]
  %v1026 = vld [vmem:[%s1 + $0x1ef0] sm:$0xff]
  %v1027 = vld [vmem:[%s1 + $0x1ef8] sm:$0xff]
  %v1028 = vld [vmem:[%s1 + $0x1f00] sm:$0xff]
  %v1029 = vld [vmem:[%s1 + $0x1f08] sm:$0xff]
  %v1030 = vld [vmem:[%s1 + $0x1f10] sm:$0xff]
  %v1031 = vld [vmem:[%s1 + $0x1f18] sm:$0xff]
  %v1032 = vld [vmem:[%s1 + $0x1f20] sm:$0xff]
  %v1033 = vld [vmem:[%s1 + $0x1f28] sm:$0xff]
  %v1034 = vld [vmem:[%s1 + $0x1f30] sm:$0xff]
  %v1035 = vld [vmem:[%s1 + $0x1f38] sm:$0xff]
  %v1036 = vld [vmem:[%s1 + $0x1f40] sm:$0xff]
  %v1037 = vld [vmem:[%s1 + $0x1f48] sm:$0xff]
  %v1038 = vld [vmem:[%s1 + $0x1f50] sm:$0xff]
  %v1039 = vld [vmem:[%s1 + $0x1f58] sm:$0xff]
  %v1040 = vld [vmem:[%s1 + $0x1f60] sm:$0xff]
  %v1041 = vld [vmem:[%s1 + $0x1f68] sm:$0xff]
  %v1042 = vld [vmem:[%s1 + $0x1f70] sm:$0xff]
  %v1043 = vld [vmem:[%s1 + $0x1f78] sm:$0xff]
  %v1044 = vld [vmem:[%s1 + $0x1f80] sm:$0xff]
  %v1045 = vld [vmem:[%s1 + $0x1f88] sm:$0xff]
  %v1046 = vld [vmem:[%s1 + $0x1f90] sm:$0xff]
  %v1047 = vld [vmem:[%s1 + $0x1f98] sm:$0xff]
  %v1048 = vld [vmem:[%s1 + $0x1fa0] sm:$0xff]
  %v1049 = vld [vmem:[%s1 + $0x1fa8] sm:$0xff]
  %v1050 = vld [vmem:[%s1 + $0x1fb0] sm:$0xff]
  %v1051 = vld [vmem:[%s1 + $0x1fb8] sm:$0xff]
  %v1052 = vld [vmem:[%s1 + $0x1fc0] sm:$0xff]
  %v1053 = vld [vmem:[%s1 + $0x1fc8] sm:$0xff]
  %v1054 = vld [vmem:[%s1 + $0x1fd0] sm:$0xff]
  %v1055 = vld [vmem:[%s1 + $0x1fd8] sm:$0xff]
  %v1056 = vld [vmem:[%s1 + $0x1fe0] sm:$0xff]
  %v1057 = vld [vmem:[%s1 + $0x1fe8] sm:$0xff]
  %v1058 = vld [vmem:[%s1 + $0x1ff0] sm:$0xff]
  %v1059 = vld [vmem:[%s1 + $0x1ff8] sm:$0xff]
  %v1060 = vld [vmem:[%s2] sm:$0xf]
  %v1062 = vperm.slane %v1060, 0
  %v1063 = vperm.slane %v1060, 1
  %v1064 = vperm.slane %v1060, 2
  %v1065 = vperm.slane %v1060, 3
  %v1086 = vunpack.c.l.b16 %v20
  %v1087 = vunpack.c.h.b16 %v20
  %v1088 = vunpack.c.l.b16 %v21
  %v1089 = vunpack.c.h.b16 %v21
  %v1090 = vunpack.c.l.b16 %v22
  %v1091 = vunpack.c.h.b16 %v22
  %v1092 = vunpack.c.l.b16 %v23
  %v1093 = vunpack.c.h.b16 %v23
  %v1094 = vunpack.c.l.b16 %v24
  %v1095 = vunpack.c.h.b16 %v24
  %v1096 = vunpack.c.l.b16 %v25
  %v1097 = vunpack.c.h.b16 %v25
  %v1098 = vunpack.c.l.b16 %v26
  %v1099 = vunpack.c.h.b16 %v26
  %v1100 = vunpack.c.l.b16 %v27
  %v1101 = vunpack.c.h.b16 %v27
  %v1102 = vunpack.c.l.b16 %v28
  %v1103 = vunpack.c.h.b16 %v28
  %v1104 = vunpack.c.l.b16 %v29
  %v1105 = vunpack.c.h.b16 %v29
  %v1106 = vunpack.c.l.b16 %v30
  %v1107 = vunpack.c.h.b16 %v30
  %v1108 = vunpack.c.l.b16 %v31
  %v1109 = vunpack.c.h.b16 %v31
  %v1110 = vunpack.c.l.b16 %v32
  %v1111 = vunpack.c.h.b16 %v32
  %v1112 = vunpack.c.l.b16 %v33
  %v1113 = vunpack.c.h.b16 %v33
  %v1114 = vunpack.c.l.b16 %v34
  %v1115 = vunpack.c.h.b16 %v34
  %v1116 = vunpack.c.l.b16 %v35
  %v1117 = vunpack.c.h.b16 %v35
  %v1118 = vpack.c.b16 %v1086, %v1086
  %v1119 = vpack.c.b16 %v1087, %v1087
  %v1120 = vpack.c.b16 %v1088, %v1088
  %v1121 = vpack.c.b16 %v1089, %v1089
  %v1122 = vpack.c.b16 %v1090, %v1090
  %v1123 = vpack.c.b16 %v1091, %v1091
  %v1124 = vpack.c.b16 %v1092, %v1092
  %v1125 = vpack.c.b16 %v1093, %v1093
  %v1126 = vpack.c.b16 %v1094, %v1094
  %v1127 = vpack.c.b16 %v1095, %v1095
  %v1128 = vpack.c.b16 %v1096, %v1096
  %v1129 = vpack.c.b16 %v1097, %v1097
  %v1130 = vpack.c.b16 %v1098, %v1098
  %v1131 = vpack.c.b16 %v1099, %v1099
  %v1132 = vpack.c.b16 %v1100, %v1100
  %v1133 = vpack.c.b16 %v1101, %v1101
  %v1134 = vpack.c.b16 %v1102, %v1102
  %v1135 = vpack.c.b16 %v1103, %v1103
  %v1136 = vpack.c.b16 %v1104, %v1104
  %v1137 = vpack.c.b16 %v1105, %v1105
  %v1138 = vpack.c.b16 %v1106, %v1106
  %v1139 = vpack.c.b16 %v1107, %v1107
  %v1140 = vpack.c.b16 %v1108, %v1108
  %v1141 = vpack.c.b16 %v1109, %v1109
  %v1142 = vpack.c.b16 %v1110, %v1110
  %v1143 = vpack.c.b16 %v1111, %v1111
  %v1144 = vpack.c.b16 %v1112, %v1112
  %v1145 = vpack.c.b16 %v1113, %v1113
  %v1146 = vpack.c.b16 %v1114, %v1114
  %v1147 = vpack.c.b16 %v1115, %v1115
  %v1148 = vpack.c.b16 %v1116, %v1116
  %v1149 = vpack.c.b16 %v1117, %v1117
  %v2206 = vunpack.c.l.b16 %v36
  %v2207 = vunpack.c.h.b16 %v36
  %v2208 = vunpack.c.l.b16 %v37
  %v2209 = vunpack.c.h.b16 %v37
  %v2210 = vunpack.c.l.b16 %v38
  %v2211 = vunpack.c.h.b16 %v38
  %v2212 = vunpack.c.l.b16 %v39
  %v2213 = vunpack.c.h.b16 %v39
  %v2214 = vunpack.c.l.b16 %v40
  %v2215 = vunpack.c.h.b16 %v40
  %v2216 = vunpack.c.l.b16 %v41
  %v2217 = vunpack.c.h.b16 %v41
  %v2218 = vunpack.c.l.b16 %v42
  %v2219 = vunpack.c.h.b16 %v42
  %v2220 = vunpack.c.l.b16 %v43
  %v2221 = vunpack.c.h.b16 %v43
  %v2222 = vunpack.c.l.b16 %v44
  %v2223 = vunpack.c.h.b16 %v44
  %v2224 = vunpack.c.l.b16 %v45
  %v2225 = vunpack.c.h.b16 %v45
  %v2226 = vunpack.c.l.b16 %v46
  %v2227 = vunpack.c.h.b16 %v46
  %v2228 = vunpack.c.l.b16 %v47
  %v2229 = vunpack.c.h.b16 %v47
  %v2230 = vunpack.c.l.b16 %v48
  %v2231 = vunpack.c.h.b16 %v48
  %v2232 = vunpack.c.l.b16 %v49
  %v2233 = vunpack.c.h.b16 %v49
  %v2234 = vunpack.c.l.b16 %v50
  %v2235 = vunpack.c.h.b16 %v50
  %v2236 = vunpack.c.l.b16 %v51
  %v2237 = vunpack.c.h.b16 %v51
  %v2238 = vunpack.c.l.b16 %v52
  %v2239 = vunpack.c.h.b16 %v52
  %v2240 = vunpack.c.l.b16 %v53
  %v2241 = vunpack.c.h.b16 %v53
  %v2242 = vunpack.c.l.b16 %v54
  %v2243 = vunpack.c.h.b16 %v54
  %v2244 = vunpack.c.l.b16 %v55
  %v2245 = vunpack.c.h.b16 %v55
  %v2246 = vunpack.c.l.b16 %v56
  %v2247 = vunpack.c.h.b16 %v56
  %v2248 = vunpack.c.l.b16 %v57
  %v2249 = vunpack.c.h.b16 %v57
  %v2250 = vunpack.c.l.b16 %v58
  %v2251 = vunpack.c.h.b16 %v58
  %v2252 = vunpack.c.l.b16 %v59
  %v2253 = vunpack.c.h.b16 %v59
  %v2254 = vunpack.c.l.b16 %v60
  %v2255 = vunpack.c.h.b16 %v60
  %v2256 = vunpack.c.l.b16 %v61
  %v2257 = vunpack.c.h.b16 %v61
  %v2258 = vunpack.c.l.b16 %v62
  %v2259 = vunpack.c.h.b16 %v62
  %v2260 = vunpack.c.l.b16 %v63
  %v2261 = vunpack.c.h.b16 %v63
  %v2262 = vunpack.c.l.b16 %v64
  %v2263 = vunpack.c.h.b16 %v64
  %v2264 = vunpack.c.l.b16 %v65
  %v2265 = vunpack.c.h.b16 %v65
  %v2266 = vunpack.c.l.b16 %v66
  %v2267 = vunpack.c.h.b16 %v66
  %v2268 = vunpack.c.l.b16 %v67
  %v2269 = vunpack.c.h.b16 %v67
  %v2270 = vunpack.c.l.b16 %v68
  %v2271 = vunpack.c.h.b16 %v68
  %v2272 = vunpack.c.l.b16 %v69
  %v2273 = vunpack.c.h.b16 %v69
  %v2274 = vunpack.c.l.b16 %v70
  %v2275 = vunpack.c.h.b16 %v70
  %v2276 = vunpack.c.l.b16 %v71
  %v2277 = vunpack.c.h.b16 %v71
  %v2278 = vunpack.c.l.b16 %v72
  %v2279 = vunpack.c.h.b16 %v72
  %v2280 = vunpack.c.l.b16 %v73
  %v2281 = vunpack.c.h.b16 %v73
  %v2282 = vunpack.c.l.b16 %v74
  %v2283 = vunpack.c.h.b16 %v74
  %v2284 = vunpack.c.l.b16 %v75
  %v2285 = vunpack.c.h.b16 %v75
  %v2286 = vunpack.c.l.b16 %v76
  %v2287 = vunpack.c.h.b16 %v76
  %v2288 = vunpack.c.l.b16 %v77
  %v2289 = vunpack.c.h.b16 %v77
  %v2290 = vunpack.c.l.b16 %v78
  %v2291 = vunpack.c.h.b16 %v78
  %v2292 = vunpack.c.l.b16 %v79
  %v2293 = vunpack.c.h.b16 %v79
  %v2294 = vunpack.c.l.b16 %v80
  %v2295 = vunpack.c.h.b16 %v80
  %v2296 = vunpack.c.l.b16 %v81
  %v2297 = vunpack.c.h.b16 %v81
  %v2298 = vunpack.c.l.b16 %v82
  %v2299 = vunpack.c.h.b16 %v82
  %v2300 = vunpack.c.l.b16 %v83
  %v2301 = vunpack.c.h.b16 %v83
  %v2302 = vunpack.c.l.b16 %v84
  %v2303 = vunpack.c.h.b16 %v84
  %v2304 = vunpack.c.l.b16 %v85
  %v2305 = vunpack.c.h.b16 %v85
  %v2306 = vunpack.c.l.b16 %v86
  %v2307 = vunpack.c.h.b16 %v86
  %v2308 = vunpack.c.l.b16 %v87
  %v2309 = vunpack.c.h.b16 %v87
  %v2310 = vunpack.c.l.b16 %v88
  %v2311 = vunpack.c.h.b16 %v88
  %v2312 = vunpack.c.l.b16 %v89
  %v2313 = vunpack.c.h.b16 %v89
  %v2314 = vunpack.c.l.b16 %v90
  %v2315 = vunpack.c.h.b16 %v90
  %v2316 = vunpack.c.l.b16 %v91
  %v2317 = vunpack.c.h.b16 %v91
  %v2318 = vunpack.c.l.b16 %v92
  %v2319 = vunpack.c.h.b16 %v92
  %v2320 = vunpack.c.l.b16 %v93
  %v2321 = vunpack.c.h.b16 %v93
  %v2322 = vunpack.c.l.b16 %v94
  %v2323 = vunpack.c.h.b16 %v94
  %v2324 = vunpack.c.l.b16 %v95
  %v2325 = vunpack.c.h.b16 %v95
  %v2326 = vunpack.c.l.b16 %v96
  %v2327 = vunpack.c.h.b16 %v96
  %v2328 = vunpack.c.l.b16 %v97
  %v2329 = vunpack.c.h.b16 %v97
  %v2330 = vunpack.c.l.b16 %v98
  %v2331 = vunpack.c.h.b16 %v98
  %v2332 = vunpack.c.l.b16 %v99
  %v2333 = vunpack.c.h.b16 %v99
  %v2334 = vunpack.c.l.b16 %v100
  %v2335 = vunpack.c.h.b16 %v100
  %v2336 = vunpack.c.l.b16 %v101
  %v2337 = vunpack.c.h.b16 %v101
  %v2338 = vunpack.c.l.b16 %v102
  %v2339 = vunpack.c.h.b16 %v102
  %v2340 = vunpack.c.l.b16 %v103
  %v2341 = vunpack.c.h.b16 %v103
  %v2342 = vunpack.c.l.b16 %v104
  %v2343 = vunpack.c.h.b16 %v104
  %v2344 = vunpack.c.l.b16 %v105
  %v2345 = vunpack.c.h.b16 %v105
  %v2346 = vunpack.c.l.b16 %v106
  %v2347 = vunpack.c.h.b16 %v106
  %v2348 = vunpack.c.l.b16 %v107
  %v2349 = vunpack.c.h.b16 %v107
  %v2350 = vunpack.c.l.b16 %v108
  %v2351 = vunpack.c.h.b16 %v108
  %v2352 = vunpack.c.l.b16 %v109
  %v2353 = vunpack.c.h.b16 %v109
  %v2354 = vunpack.c.l.b16 %v110
  %v2355 = vunpack.c.h.b16 %v110
  %v2356 = vunpack.c.l.b16 %v111
  %v2357 = vunpack.c.h.b16 %v111
  %v2358 = vunpack.c.l.b16 %v112
  %v2359 = vunpack.c.h.b16 %v112
  %v2360 = vunpack.c.l.b16 %v113
  %v2361 = vunpack.c.h.b16 %v113
  %v2362 = vunpack.c.l.b16 %v114
  %v2363 = vunpack.c.h.b16 %v114
  %v2364 = vunpack.c.l.b16 %v115
  %v2365 = vunpack.c.h.b16 %v115
  %v2366 = vunpack.c.l.b16 %v116
  %v2367 = vunpack.c.h.b16 %v116
  %v2368 = vunpack.c.l.b16 %v117
  %v2369 = vunpack.c.h.b16 %v117
  %v2370 = vunpack.c.l.b16 %v118
  %v2371 = vunpack.c.h.b16 %v118
  %v2372 = vunpack.c.l.b16 %v119
  %v2373 = vunpack.c.h.b16 %v119
  %v2374 = vunpack.c.l.b16 %v120
  %v2375 = vunpack.c.h.b16 %v120
  %v2376 = vunpack.c.l.b16 %v121
  %v2377 = vunpack.c.h.b16 %v121
  %v2378 = vunpack.c.l.b16 %v122
  %v2379 = vunpack.c.h.b16 %v122
  %v2380 = vunpack.c.l.b16 %v123
  %v2381 = vunpack.c.h.b16 %v123
  %v2382 = vunpack.c.l.b16 %v124
  %v2383 = vunpack.c.h.b16 %v124
  %v2384 = vunpack.c.l.b16 %v125
  %v2385 = vunpack.c.h.b16 %v125
  %v2386 = vunpack.c.l.b16 %v126
  %v2387 = vunpack.c.h.b16 %v126
  %v2388 = vunpack.c.l.b16 %v127
  %v2389 = vunpack.c.h.b16 %v127
  %v2390 = vunpack.c.l.b16 %v128
  %v2391 = vunpack.c.h.b16 %v128
  %v2392 = vunpack.c.l.b16 %v129
  %v2393 = vunpack.c.h.b16 %v129
  %v2394 = vunpack.c.l.b16 %v130
  %v2395 = vunpack.c.h.b16 %v130
  %v2396 = vunpack.c.l.b16 %v131
  %v2397 = vunpack.c.h.b16 %v131
  %v2398 = vunpack.c.l.b16 %v132
  %v2399 = vunpack.c.h.b16 %v132
  %v2400 = vunpack.c.l.b16 %v133
  %v2401 = vunpack.c.h.b16 %v133
  %v2402 = vunpack.c.l.b16 %v134
  %v2403 = vunpack.c.h.b16 %v134
  %v2404 = vunpack.c.l.b16 %v135
  %v2405 = vunpack.c.h.b16 %v135
  %v2406 = vunpack.c.l.b16 %v136
  %v2407 = vunpack.c.h.b16 %v136
  %v2408 = vunpack.c.l.b16 %v137
  %v2409 = vunpack.c.h.b16 %v137
  %v2410 = vunpack.c.l.b16 %v138
  %v2411 = vunpack.c.h.b16 %v138
  %v2412 = vunpack.c.l.b16 %v139
  %v2413 = vunpack.c.h.b16 %v139
  %v2414 = vunpack.c.l.b16 %v140
  %v2415 = vunpack.c.h.b16 %v140
  %v2416 = vunpack.c.l.b16 %v141
  %v2417 = vunpack.c.h.b16 %v141
  %v2418 = vunpack.c.l.b16 %v142
  %v2419 = vunpack.c.h.b16 %v142
  %v2420 = vunpack.c.l.b16 %v143
  %v2421 = vunpack.c.h.b16 %v143
  %v2422 = vunpack.c.l.b16 %v144
  %v2423 = vunpack.c.h.b16 %v144
  %v2424 = vunpack.c.l.b16 %v145
  %v2425 = vunpack.c.h.b16 %v145
  %v2426 = vunpack.c.l.b16 %v146
  %v2427 = vunpack.c.h.b16 %v146
  %v2428 = vunpack.c.l.b16 %v147
  %v2429 = vunpack.c.h.b16 %v147
  %v2430 = vunpack.c.l.b16 %v148
  %v2431 = vunpack.c.h.b16 %v148
  %v2432 = vunpack.c.l.b16 %v149
  %v2433 = vunpack.c.h.b16 %v149
  %v2434 = vunpack.c.l.b16 %v150
  %v2435 = vunpack.c.h.b16 %v150
  %v2436 = vunpack.c.l.b16 %v151
  %v2437 = vunpack.c.h.b16 %v151
  %v2438 = vunpack.c.l.b16 %v152
  %v2439 = vunpack.c.h.b16 %v152
  %v2440 = vunpack.c.l.b16 %v153
  %v2441 = vunpack.c.h.b16 %v153
  %v2442 = vunpack.c.l.b16 %v154
  %v2443 = vunpack.c.h.b16 %v154
  %v2444 = vunpack.c.l.b16 %v155
  %v2445 = vunpack.c.h.b16 %v155
  %v2446 = vunpack.c.l.b16 %v156
  %v2447 = vunpack.c.h.b16 %v156
  %v2448 = vunpack.c.l.b16 %v157
  %v2449 = vunpack.c.h.b16 %v157
  %v2450 = vunpack.c.l.b16 %v158
  %v2451 = vunpack.c.h.b16 %v158
  %v2452 = vunpack.c.l.b16 %v159
  %v2453 = vunpack.c.h.b16 %v159
  %v2454 = vunpack.c.l.b16 %v160
  %v2455 = vunpack.c.h.b16 %v160
  %v2456 = vunpack.c.l.b16 %v161
  %v2457 = vunpack.c.h.b16 %v161
  %v2458 = vunpack.c.l.b16 %v162
  %v2459 = vunpack.c.h.b16 %v162
  %v2460 = vunpack.c.l.b16 %v163
  %v2461 = vunpack.c.h.b16 %v163
  %v2462 = vunpack.c.l.b16 %v164
  %v2463 = vunpack.c.h.b16 %v164
  %v2464 = vunpack.c.l.b16 %v165
  %v2465 = vunpack.c.h.b16 %v165
  %v2466 = vunpack.c.l.b16 %v166
  %v2467 = vunpack.c.h.b16 %v166
  %v2468 = vunpack.c.l.b16 %v167
  %v2469 = vunpack.c.h.b16 %v167
  %v2470 = vunpack.c.l.b16 %v168
  %v2471 = vunpack.c.h.b16 %v168
  %v2472 = vunpack.c.l.b16 %v169
  %v2473 = vunpack.c.h.b16 %v169
  %v2474 = vunpack.c.l.b16 %v170
  %v2475 = vunpack.c.h.b16 %v170
  %v2476 = vunpack.c.l.b16 %v171
  %v2477 = vunpack.c.h.b16 %v171
  %v2478 = vunpack.c.l.b16 %v172
  %v2479 = vunpack.c.h.b16 %v172
  %v2480 = vunpack.c.l.b16 %v173
  %v2481 = vunpack.c.h.b16 %v173
  %v2482 = vunpack.c.l.b16 %v174
  %v2483 = vunpack.c.h.b16 %v174
  %v2484 = vunpack.c.l.b16 %v175
  %v2485 = vunpack.c.h.b16 %v175
  %v2486 = vunpack.c.l.b16 %v176
  %v2487 = vunpack.c.h.b16 %v176
  %v2488 = vunpack.c.l.b16 %v177
  %v2489 = vunpack.c.h.b16 %v177
  %v2490 = vunpack.c.l.b16 %v178
  %v2491 = vunpack.c.h.b16 %v178
  %v2492 = vunpack.c.l.b16 %v179
  %v2493 = vunpack.c.h.b16 %v179
  %v2494 = vunpack.c.l.b16 %v180
  %v2495 = vunpack.c.h.b16 %v180
  %v2496 = vunpack.c.l.b16 %v181
  %v2497 = vunpack.c.h.b16 %v181
  %v2498 = vunpack.c.l.b16 %v182
  %v2499 = vunpack.c.h.b16 %v182
  %v2500 = vunpack.c.l.b16 %v183
  %v2501 = vunpack.c.h.b16 %v183
  %v2502 = vunpack.c.l.b16 %v184
  %v2503 = vunpack.c.h.b16 %v184
  %v2504 = vunpack.c.l.b16 %v185
  %v2505 = vunpack.c.h.b16 %v185
  %v2506 = vunpack.c.l.b16 %v186
  %v2507 = vunpack.c.h.b16 %v186
  %v2508 = vunpack.c.l.b16 %v187
  %v2509 = vunpack.c.h.b16 %v187
  %v2510 = vunpack.c.l.b16 %v188
  %v2511 = vunpack.c.h.b16 %v188
  %v2512 = vunpack.c.l.b16 %v189
  %v2513 = vunpack.c.h.b16 %v189
  %v2514 = vunpack.c.l.b16 %v190
  %v2515 = vunpack.c.h.b16 %v190
  %v2516 = vunpack.c.l.b16 %v191
  %v2517 = vunpack.c.h.b16 %v191
  %v2518 = vunpack.c.l.b16 %v192
  %v2519 = vunpack.c.h.b16 %v192
  %v2520 = vunpack.c.l.b16 %v193
  %v2521 = vunpack.c.h.b16 %v193
  %v2522 = vunpack.c.l.b16 %v194
  %v2523 = vunpack.c.h.b16 %v194
  %v2524 = vunpack.c.l.b16 %v195
  %v2525 = vunpack.c.h.b16 %v195
  %v2526 = vunpack.c.l.b16 %v196
  %v2527 = vunpack.c.h.b16 %v196
  %v2528 = vunpack.c.l.b16 %v197
  %v2529 = vunpack.c.h.b16 %v197
  %v2530 = vunpack.c.l.b16 %v198
  %v2531 = vunpack.c.h.b16 %v198
  %v2532 = vunpack.c.l.b16 %v199
  %v2533 = vunpack.c.h.b16 %v199
  %v2534 = vunpack.c.l.b16 %v200
  %v2535 = vunpack.c.h.b16 %v200
  %v2536 = vunpack.c.l.b16 %v201
  %v2537 = vunpack.c.h.b16 %v201
  %v2538 = vunpack.c.l.b16 %v202
  %v2539 = vunpack.c.h.b16 %v202
  %v2540 = vunpack.c.l.b16 %v203
  %v2541 = vunpack.c.h.b16 %v203
  %v2542 = vunpack.c.l.b16 %v204
  %v2543 = vunpack.c.h.b16 %v204
  %v2544 = vunpack.c.l.b16 %v205
  %v2545 = vunpack.c.h.b16 %v205
  %v2546 = vunpack.c.l.b16 %v206
  %v2547 = vunpack.c.h.b16 %v206
  %v2548 = vunpack.c.l.b16 %v207
  %v2549 = vunpack.c.h.b16 %v207
  %v2550 = vunpack.c.l.b16 %v208
  %v2551 = vunpack.c.h.b16 %v208
  %v2552 = vunpack.c.l.b16 %v209
  %v2553 = vunpack.c.h.b16 %v209
  %v2554 = vunpack.c.l.b16 %v210
  %v2555 = vunpack.c.h.b16 %v210
  %v2556 = vunpack.c.l.b16 %v211
  %v2557 = vunpack.c.h.b16 %v211
  %v2558 = vunpack.c.l.b16 %v212
  %v2559 = vunpack.c.h.b16 %v212
  %v2560 = vunpack.c.l.b16 %v213
  %v2561 = vunpack.c.h.b16 %v213
  %v2562 = vunpack.c.l.b16 %v214
  %v2563 = vunpack.c.h.b16 %v214
  %v2564 = vunpack.c.l.b16 %v215
  %v2565 = vunpack.c.h.b16 %v215
  %v2566 = vunpack.c.l.b16 %v216
  %v2567 = vunpack.c.h.b16 %v216
  %v2568 = vunpack.c.l.b16 %v217
  %v2569 = vunpack.c.h.b16 %v217
  %v2570 = vunpack.c.l.b16 %v218
  %v2571 = vunpack.c.h.b16 %v218
  %v2572 = vunpack.c.l.b16 %v219
  %v2573 = vunpack.c.h.b16 %v219
  %v2574 = vunpack.c.l.b16 %v220
  %v2575 = vunpack.c.h.b16 %v220
  %v2576 = vunpack.c.l.b16 %v221
  %v2577 = vunpack.c.h.b16 %v221
  %v2578 = vunpack.c.l.b16 %v222
  %v2579 = vunpack.c.h.b16 %v222
  %v2580 = vunpack.c.l.b16 %v223
  %v2581 = vunpack.c.h.b16 %v223
  %v2582 = vunpack.c.l.b16 %v224
  %v2583 = vunpack.c.h.b16 %v224
  %v2584 = vunpack.c.l.b16 %v225
  %v2585 = vunpack.c.h.b16 %v225
  %v2586 = vunpack.c.l.b16 %v226
  %v2587 = vunpack.c.h.b16 %v226
  %v2588 = vunpack.c.l.b16 %v227
  %v2589 = vunpack.c.h.b16 %v227
  %v2590 = vunpack.c.l.b16 %v228
  %v2591 = vunpack.c.h.b16 %v228
  %v2592 = vunpack.c.l.b16 %v229
  %v2593 = vunpack.c.h.b16 %v229
  %v2594 = vunpack.c.l.b16 %v230
  %v2595 = vunpack.c.h.b16 %v230
  %v2596 = vunpack.c.l.b16 %v231
  %v2597 = vunpack.c.h.b16 %v231
  %v2598 = vunpack.c.l.b16 %v232
  %v2599 = vunpack.c.h.b16 %v232
  %v2600 = vunpack.c.l.b16 %v233
  %v2601 = vunpack.c.h.b16 %v233
  %v2602 = vunpack.c.l.b16 %v234
  %v2603 = vunpack.c.h.b16 %v234
  %v2604 = vunpack.c.l.b16 %v235
  %v2605 = vunpack.c.h.b16 %v235
  %v2606 = vunpack.c.l.b16 %v236
  %v2607 = vunpack.c.h.b16 %v236
  %v2608 = vunpack.c.l.b16 %v237
  %v2609 = vunpack.c.h.b16 %v237
  %v2610 = vunpack.c.l.b16 %v238
  %v2611 = vunpack.c.h.b16 %v238
  %v2612 = vunpack.c.l.b16 %v239
  %v2613 = vunpack.c.h.b16 %v239
  %v2614 = vunpack.c.l.b16 %v240
  %v2615 = vunpack.c.h.b16 %v240
  %v2616 = vunpack.c.l.b16 %v241
  %v2617 = vunpack.c.h.b16 %v241
  %v2618 = vunpack.c.l.b16 %v242
  %v2619 = vunpack.c.h.b16 %v242
  %v2620 = vunpack.c.l.b16 %v243
  %v2621 = vunpack.c.h.b16 %v243
  %v2622 = vunpack.c.l.b16 %v244
  %v2623 = vunpack.c.h.b16 %v244
  %v2624 = vunpack.c.l.b16 %v245
  %v2625 = vunpack.c.h.b16 %v245
  %v2626 = vunpack.c.l.b16 %v246
  %v2627 = vunpack.c.h.b16 %v246
  %v2628 = vunpack.c.l.b16 %v247
  %v2629 = vunpack.c.h.b16 %v247
  %v2630 = vunpack.c.l.b16 %v248
  %v2631 = vunpack.c.h.b16 %v248
  %v2632 = vunpack.c.l.b16 %v249
  %v2633 = vunpack.c.h.b16 %v249
  %v2634 = vunpack.c.l.b16 %v250
  %v2635 = vunpack.c.h.b16 %v250
  %v2636 = vunpack.c.l.b16 %v251
  %v2637 = vunpack.c.h.b16 %v251
  %v2638 = vunpack.c.l.b16 %v252
  %v2639 = vunpack.c.h.b16 %v252
  %v2640 = vunpack.c.l.b16 %v253
  %v2641 = vunpack.c.h.b16 %v253
  %v2642 = vunpack.c.l.b16 %v254
  %v2643 = vunpack.c.h.b16 %v254
  %v2644 = vunpack.c.l.b16 %v255
  %v2645 = vunpack.c.h.b16 %v255
  %v2646 = vunpack.c.l.b16 %v256
  %v2647 = vunpack.c.h.b16 %v256
  %v2648 = vunpack.c.l.b16 %v257
  %v2649 = vunpack.c.h.b16 %v257
  %v2650 = vunpack.c.l.b16 %v258
  %v2651 = vunpack.c.h.b16 %v258
  %v2652 = vunpack.c.l.b16 %v259
  %v2653 = vunpack.c.h.b16 %v259
  %v2654 = vunpack.c.l.b16 %v260
  %v2655 = vunpack.c.h.b16 %v260
  %v2656 = vunpack.c.l.b16 %v261
  %v2657 = vunpack.c.h.b16 %v261
  %v2658 = vunpack.c.l.b16 %v262
  %v2659 = vunpack.c.h.b16 %v262
  %v2660 = vunpack.c.l.b16 %v263
  %v2661 = vunpack.c.h.b16 %v263
  %v2662 = vunpack.c.l.b16 %v264
  %v2663 = vunpack.c.h.b16 %v264
  %v2664 = vunpack.c.l.b16 %v265
  %v2665 = vunpack.c.h.b16 %v265
  %v2666 = vunpack.c.l.b16 %v266
  %v2667 = vunpack.c.h.b16 %v266
  %v2668 = vunpack.c.l.b16 %v267
  %v2669 = vunpack.c.h.b16 %v267
  %v2670 = vunpack.c.l.b16 %v268
  %v2671 = vunpack.c.h.b16 %v268
  %v2672 = vunpack.c.l.b16 %v269
  %v2673 = vunpack.c.h.b16 %v269
  %v2674 = vunpack.c.l.b16 %v270
  %v2675 = vunpack.c.h.b16 %v270
  %v2676 = vunpack.c.l.b16 %v271
  %v2677 = vunpack.c.h.b16 %v271
  %v2678 = vunpack.c.l.b16 %v272
  %v2679 = vunpack.c.h.b16 %v272
  %v2680 = vunpack.c.l.b16 %v273
  %v2681 = vunpack.c.h.b16 %v273
  %v2682 = vunpack.c.l.b16 %v274
  %v2683 = vunpack.c.h.b16 %v274
  %v2684 = vunpack.c.l.b16 %v275
  %v2685 = vunpack.c.h.b16 %v275
  %v2686 = vunpack.c.l.b16 %v276
  %v2687 = vunpack.c.h.b16 %v276
  %v2688 = vunpack.c.l.b16 %v277
  %v2689 = vunpack.c.h.b16 %v277
  %v2690 = vunpack.c.l.b16 %v278
  %v2691 = vunpack.c.h.b16 %v278
  %v2692 = vunpack.c.l.b16 %v279
  %v2693 = vunpack.c.h.b16 %v279
  %v2694 = vunpack.c.l.b16 %v280
  %v2695 = vunpack.c.h.b16 %v280
  %v2696 = vunpack.c.l.b16 %v281
  %v2697 = vunpack.c.h.b16 %v281
  %v2698 = vunpack.c.l.b16 %v282
  %v2699 = vunpack.c.h.b16 %v282
  %v2700 = vunpack.c.l.b16 %v283
  %v2701 = vunpack.c.h.b16 %v283
  %v2702 = vunpack.c.l.b16 %v284
  %v2703 = vunpack.c.h.b16 %v284
  %v2704 = vunpack.c.l.b16 %v285
  %v2705 = vunpack.c.h.b16 %v285
  %v2706 = vunpack.c.l.b16 %v286
  %v2707 = vunpack.c.h.b16 %v286
  %v2708 = vunpack.c.l.b16 %v287
  %v2709 = vunpack.c.h.b16 %v287
  %v2710 = vunpack.c.l.b16 %v288
  %v2711 = vunpack.c.h.b16 %v288
  %v2712 = vunpack.c.l.b16 %v289
  %v2713 = vunpack.c.h.b16 %v289
  %v2714 = vunpack.c.l.b16 %v290
  %v2715 = vunpack.c.h.b16 %v290
  %v2716 = vunpack.c.l.b16 %v291
  %v2717 = vunpack.c.h.b16 %v291
  %v2718 = vunpack.c.l.b16 %v292
  %v2719 = vunpack.c.h.b16 %v292
  %v2720 = vunpack.c.l.b16 %v293
  %v2721 = vunpack.c.h.b16 %v293
  %v2722 = vunpack.c.l.b16 %v294
  %v2723 = vunpack.c.h.b16 %v294
  %v2724 = vunpack.c.l.b16 %v295
  %v2725 = vunpack.c.h.b16 %v295
  %v2726 = vunpack.c.l.b16 %v296
  %v2727 = vunpack.c.h.b16 %v296
  %v2728 = vunpack.c.l.b16 %v297
  %v2729 = vunpack.c.h.b16 %v297
  %v2730 = vunpack.c.l.b16 %v298
  %v2731 = vunpack.c.h.b16 %v298
  %v2732 = vunpack.c.l.b16 %v299
  %v2733 = vunpack.c.h.b16 %v299
  %v2734 = vunpack.c.l.b16 %v300
  %v2735 = vunpack.c.h.b16 %v300
  %v2736 = vunpack.c.l.b16 %v301
  %v2737 = vunpack.c.h.b16 %v301
  %v2738 = vunpack.c.l.b16 %v302
  %v2739 = vunpack.c.h.b16 %v302
  %v2740 = vunpack.c.l.b16 %v303
  %v2741 = vunpack.c.h.b16 %v303
  %v2742 = vunpack.c.l.b16 %v304
  %v2743 = vunpack.c.h.b16 %v304
  %v2744 = vunpack.c.l.b16 %v305
  %v2745 = vunpack.c.h.b16 %v305
  %v2746 = vunpack.c.l.b16 %v306
  %v2747 = vunpack.c.h.b16 %v306
  %v2748 = vunpack.c.l.b16 %v307
  %v2749 = vunpack.c.h.b16 %v307
  %v2750 = vunpack.c.l.b16 %v308
  %v2751 = vunpack.c.h.b16 %v308
  %v2752 = vunpack.c.l.b16 %v309
  %v2753 = vunpack.c.h.b16 %v309
  %v2754 = vunpack.c.l.b16 %v310
  %v2755 = vunpack.c.h.b16 %v310
  %v2756 = vunpack.c.l.b16 %v311
  %v2757 = vunpack.c.h.b16 %v311
  %v2758 = vunpack.c.l.b16 %v312
  %v2759 = vunpack.c.h.b16 %v312
  %v2760 = vunpack.c.l.b16 %v313
  %v2761 = vunpack.c.h.b16 %v313
  %v2762 = vunpack.c.l.b16 %v314
  %v2763 = vunpack.c.h.b16 %v314
  %v2764 = vunpack.c.l.b16 %v315
  %v2765 = vunpack.c.h.b16 %v315
  %v2766 = vunpack.c.l.b16 %v316
  %v2767 = vunpack.c.h.b16 %v316
  %v2768 = vunpack.c.l.b16 %v317
  %v2769 = vunpack.c.h.b16 %v317
  %v2770 = vunpack.c.l.b16 %v318
  %v2771 = vunpack.c.h.b16 %v318
  %v2772 = vunpack.c.l.b16 %v319
  %v2773 = vunpack.c.h.b16 %v319
  %v2774 = vunpack.c.l.b16 %v320
  %v2775 = vunpack.c.h.b16 %v320
  %v2776 = vunpack.c.l.b16 %v321
  %v2777 = vunpack.c.h.b16 %v321
  %v2778 = vunpack.c.l.b16 %v322
  %v2779 = vunpack.c.h.b16 %v322
  %v2780 = vunpack.c.l.b16 %v323
  %v2781 = vunpack.c.h.b16 %v323
  %v2782 = vunpack.c.l.b16 %v324
  %v2783 = vunpack.c.h.b16 %v324
  %v2784 = vunpack.c.l.b16 %v325
  %v2785 = vunpack.c.h.b16 %v325
  %v2786 = vunpack.c.l.b16 %v326
  %v2787 = vunpack.c.h.b16 %v326
  %v2788 = vunpack.c.l.b16 %v327
  %v2789 = vunpack.c.h.b16 %v327
  %v2790 = vunpack.c.l.b16 %v328
  %v2791 = vunpack.c.h.b16 %v328
  %v2792 = vunpack.c.l.b16 %v329
  %v2793 = vunpack.c.h.b16 %v329
  %v2794 = vunpack.c.l.b16 %v330
  %v2795 = vunpack.c.h.b16 %v330
  %v2796 = vunpack.c.l.b16 %v331
  %v2797 = vunpack.c.h.b16 %v331
  %v2798 = vunpack.c.l.b16 %v332
  %v2799 = vunpack.c.h.b16 %v332
  %v2800 = vunpack.c.l.b16 %v333
  %v2801 = vunpack.c.h.b16 %v333
  %v2802 = vunpack.c.l.b16 %v334
  %v2803 = vunpack.c.h.b16 %v334
  %v2804 = vunpack.c.l.b16 %v335
  %v2805 = vunpack.c.h.b16 %v335
  %v2806 = vunpack.c.l.b16 %v336
  %v2807 = vunpack.c.h.b16 %v336
  %v2808 = vunpack.c.l.b16 %v337
  %v2809 = vunpack.c.h.b16 %v337
  %v2810 = vunpack.c.l.b16 %v338
  %v2811 = vunpack.c.h.b16 %v338
  %v2812 = vunpack.c.l.b16 %v339
  %v2813 = vunpack.c.h.b16 %v339
  %v2814 = vunpack.c.l.b16 %v340
  %v2815 = vunpack.c.h.b16 %v340
  %v2816 = vunpack.c.l.b16 %v341
  %v2817 = vunpack.c.h.b16 %v341
  %v2818 = vunpack.c.l.b16 %v342
  %v2819 = vunpack.c.h.b16 %v342
  %v2820 = vunpack.c.l.b16 %v343
  %v2821 = vunpack.c.h.b16 %v343
  %v2822 = vunpack.c.l.b16 %v344
  %v2823 = vunpack.c.h.b16 %v344
  %v2824 = vunpack.c.l.b16 %v345
  %v2825 = vunpack.c.h.b16 %v345
  %v2826 = vunpack.c.l.b16 %v346
  %v2827 = vunpack.c.h.b16 %v346
  %v2828 = vunpack.c.l.b16 %v347
  %v2829 = vunpack.c.h.b16 %v347
  %v2830 = vunpack.c.l.b16 %v348
  %v2831 = vunpack.c.h.b16 %v348
  %v2832 = vunpack.c.l.b16 %v349
  %v2833 = vunpack.c.h.b16 %v349
  %v2834 = vunpack.c.l.b16 %v350
  %v2835 = vunpack.c.h.b16 %v350
  %v2836 = vunpack.c.l.b16 %v351
  %v2837 = vunpack.c.h.b16 %v351
  %v2838 = vunpack.c.l.b16 %v352
  %v2839 = vunpack.c.h.b16 %v352
  %v2840 = vunpack.c.l.b16 %v353
  %v2841 = vunpack.c.h.b16 %v353
  %v2842 = vunpack.c.l.b16 %v354
  %v2843 = vunpack.c.h.b16 %v354
  %v2844 = vunpack.c.l.b16 %v355
  %v2845 = vunpack.c.h.b16 %v355
  %v2846 = vunpack.c.l.b16 %v356
  %v2847 = vunpack.c.h.b16 %v356
  %v2848 = vunpack.c.l.b16 %v357
  %v2849 = vunpack.c.h.b16 %v357
  %v2850 = vunpack.c.l.b16 %v358
  %v2851 = vunpack.c.h.b16 %v358
  %v2852 = vunpack.c.l.b16 %v359
  %v2853 = vunpack.c.h.b16 %v359
  %v2854 = vunpack.c.l.b16 %v360
  %v2855 = vunpack.c.h.b16 %v360
  %v2856 = vunpack.c.l.b16 %v361
  %v2857 = vunpack.c.h.b16 %v361
  %v2858 = vunpack.c.l.b16 %v362
  %v2859 = vunpack.c.h.b16 %v362
  %v2860 = vunpack.c.l.b16 %v363
  %v2861 = vunpack.c.h.b16 %v363
  %v2862 = vunpack.c.l.b16 %v364
  %v2863 = vunpack.c.h.b16 %v364
  %v2864 = vunpack.c.l.b16 %v365
  %v2865 = vunpack.c.h.b16 %v365
  %v2866 = vunpack.c.l.b16 %v366
  %v2867 = vunpack.c.h.b16 %v366
  %v2868 = vunpack.c.l.b16 %v367
  %v2869 = vunpack.c.h.b16 %v367
  %v2870 = vunpack.c.l.b16 %v368
  %v2871 = vunpack.c.h.b16 %v368
  %v2872 = vunpack.c.l.b16 %v369
  %v2873 = vunpack.c.h.b16 %v369
  %v2874 = vunpack.c.l.b16 %v370
  %v2875 = vunpack.c.h.b16 %v370
  %v2876 = vunpack.c.l.b16 %v371
  %v2877 = vunpack.c.h.b16 %v371
  %v2878 = vunpack.c.l.b16 %v372
  %v2879 = vunpack.c.h.b16 %v372
  %v2880 = vunpack.c.l.b16 %v373
  %v2881 = vunpack.c.h.b16 %v373
  %v2882 = vunpack.c.l.b16 %v374
  %v2883 = vunpack.c.h.b16 %v374
  %v2884 = vunpack.c.l.b16 %v375
  %v2885 = vunpack.c.h.b16 %v375
  %v2886 = vunpack.c.l.b16 %v376
  %v2887 = vunpack.c.h.b16 %v376
  %v2888 = vunpack.c.l.b16 %v377
  %v2889 = vunpack.c.h.b16 %v377
  %v2890 = vunpack.c.l.b16 %v378
  %v2891 = vunpack.c.h.b16 %v378
  %v2892 = vunpack.c.l.b16 %v379
  %v2893 = vunpack.c.h.b16 %v379
  %v2894 = vunpack.c.l.b16 %v380
  %v2895 = vunpack.c.h.b16 %v380
  %v2896 = vunpack.c.l.b16 %v381
  %v2897 = vunpack.c.h.b16 %v381
  %v2898 = vunpack.c.l.b16 %v382
  %v2899 = vunpack.c.h.b16 %v382
  %v2900 = vunpack.c.l.b16 %v383
  %v2901 = vunpack.c.h.b16 %v383
  %v2902 = vunpack.c.l.b16 %v384
  %v2903 = vunpack.c.h.b16 %v384
  %v2904 = vunpack.c.l.b16 %v385
  %v2905 = vunpack.c.h.b16 %v385
  %v2906 = vunpack.c.l.b16 %v386
  %v2907 = vunpack.c.h.b16 %v386
  %v2908 = vunpack.c.l.b16 %v387
  %v2909 = vunpack.c.h.b16 %v387
  %v2910 = vunpack.c.l.b16 %v388
  %v2911 = vunpack.c.h.b16 %v388
  %v2912 = vunpack.c.l.b16 %v389
  %v2913 = vunpack.c.h.b16 %v389
  %v2914 = vunpack.c.l.b16 %v390
  %v2915 = vunpack.c.h.b16 %v390
  %v2916 = vunpack.c.l.b16 %v391
  %v2917 = vunpack.c.h.b16 %v391
  %v2918 = vunpack.c.l.b16 %v392
  %v2919 = vunpack.c.h.b16 %v392
  %v2920 = vunpack.c.l.b16 %v393
  %v2921 = vunpack.c.h.b16 %v393
  %v2922 = vunpack.c.l.b16 %v394
  %v2923 = vunpack.c.h.b16 %v394
  %v2924 = vunpack.c.l.b16 %v395
  %v2925 = vunpack.c.h.b16 %v395
  %v2926 = vunpack.c.l.b16 %v396
  %v2927 = vunpack.c.h.b16 %v396
  %v2928 = vunpack.c.l.b16 %v397
  %v2929 = vunpack.c.h.b16 %v397
  %v2930 = vunpack.c.l.b16 %v398
  %v2931 = vunpack.c.h.b16 %v398
  %v2932 = vunpack.c.l.b16 %v399
  %v2933 = vunpack.c.h.b16 %v399
  %v2934 = vunpack.c.l.b16 %v400
  %v2935 = vunpack.c.h.b16 %v400
  %v2936 = vunpack.c.l.b16 %v401
  %v2937 = vunpack.c.h.b16 %v401
  %v2938 = vunpack.c.l.b16 %v402
  %v2939 = vunpack.c.h.b16 %v402
  %v2940 = vunpack.c.l.b16 %v403
  %v2941 = vunpack.c.h.b16 %v403
  %v2942 = vunpack.c.l.b16 %v404
  %v2943 = vunpack.c.h.b16 %v404
  %v2944 = vunpack.c.l.b16 %v405
  %v2945 = vunpack.c.h.b16 %v405
  %v2946 = vunpack.c.l.b16 %v406
  %v2947 = vunpack.c.h.b16 %v406
  %v2948 = vunpack.c.l.b16 %v407
  %v2949 = vunpack.c.h.b16 %v407
  %v2950 = vunpack.c.l.b16 %v408
  %v2951 = vunpack.c.h.b16 %v408
  %v2952 = vunpack.c.l.b16 %v409
  %v2953 = vunpack.c.h.b16 %v409
  %v2954 = vunpack.c.l.b16 %v410
  %v2955 = vunpack.c.h.b16 %v410
  %v2956 = vunpack.c.l.b16 %v411
  %v2957 = vunpack.c.h.b16 %v411
  %v2958 = vunpack.c.l.b16 %v412
  %v2959 = vunpack.c.h.b16 %v412
  %v2960 = vunpack.c.l.b16 %v413
  %v2961 = vunpack.c.h.b16 %v413
  %v2962 = vunpack.c.l.b16 %v414
  %v2963 = vunpack.c.h.b16 %v414
  %v2964 = vunpack.c.l.b16 %v415
  %v2965 = vunpack.c.h.b16 %v415
  %v2966 = vunpack.c.l.b16 %v416
  %v2967 = vunpack.c.h.b16 %v416
  %v2968 = vunpack.c.l.b16 %v417
  %v2969 = vunpack.c.h.b16 %v417
  %v2970 = vunpack.c.l.b16 %v418
  %v2971 = vunpack.c.h.b16 %v418
  %v2972 = vunpack.c.l.b16 %v419
  %v2973 = vunpack.c.h.b16 %v419
  %v2974 = vunpack.c.l.b16 %v420
  %v2975 = vunpack.c.h.b16 %v420
  %v2976 = vunpack.c.l.b16 %v421
  %v2977 = vunpack.c.h.b16 %v421
  %v2978 = vunpack.c.l.b16 %v422
  %v2979 = vunpack.c.h.b16 %v422
  %v2980 = vunpack.c.l.b16 %v423
  %v2981 = vunpack.c.h.b16 %v423
  %v2982 = vunpack.c.l.b16 %v424
  %v2983 = vunpack.c.h.b16 %v424
  %v2984 = vunpack.c.l.b16 %v425
  %v2985 = vunpack.c.h.b16 %v425
  %v2986 = vunpack.c.l.b16 %v426
  %v2987 = vunpack.c.h.b16 %v426
  %v2988 = vunpack.c.l.b16 %v427
  %v2989 = vunpack.c.h.b16 %v427
  %v2990 = vunpack.c.l.b16 %v428
  %v2991 = vunpack.c.h.b16 %v428
  %v2992 = vunpack.c.l.b16 %v429
  %v2993 = vunpack.c.h.b16 %v429
  %v2994 = vunpack.c.l.b16 %v430
  %v2995 = vunpack.c.h.b16 %v430
  %v2996 = vunpack.c.l.b16 %v431
  %v2997 = vunpack.c.h.b16 %v431
  %v2998 = vunpack.c.l.b16 %v432
  %v2999 = vunpack.c.h.b16 %v432
  %v3000 = vunpack.c.l.b16 %v433
  %v3001 = vunpack.c.h.b16 %v433
  %v3002 = vunpack.c.l.b16 %v434
  %v3003 = vunpack.c.h.b16 %v434
  %v3004 = vunpack.c.l.b16 %v435
  %v3005 = vunpack.c.h.b16 %v435
  %v3006 = vunpack.c.l.b16 %v436
  %v3007 = vunpack.c.h.b16 %v436
  %v3008 = vunpack.c.l.b16 %v437
  %v3009 = vunpack.c.h.b16 %v437
  %v3010 = vunpack.c.l.b16 %v438
  %v3011 = vunpack.c.h.b16 %v438
  %v3012 = vunpack.c.l.b16 %v439
  %v3013 = vunpack.c.h.b16 %v439
  %v3014 = vunpack.c.l.b16 %v440
  %v3015 = vunpack.c.h.b16 %v440
  %v3016 = vunpack.c.l.b16 %v441
  %v3017 = vunpack.c.h.b16 %v441
  %v3018 = vunpack.c.l.b16 %v442
  %v3019 = vunpack.c.h.b16 %v442
  %v3020 = vunpack.c.l.b16 %v443
  %v3021 = vunpack.c.h.b16 %v443
  %v3022 = vunpack.c.l.b16 %v444
  %v3023 = vunpack.c.h.b16 %v444
  %v3024 = vunpack.c.l.b16 %v445
  %v3025 = vunpack.c.h.b16 %v445
  %v3026 = vunpack.c.l.b16 %v446
  %v3027 = vunpack.c.h.b16 %v446
  %v3028 = vunpack.c.l.b16 %v447
  %v3029 = vunpack.c.h.b16 %v447
  %v3030 = vunpack.c.l.b16 %v448
  %v3031 = vunpack.c.h.b16 %v448
  %v3032 = vunpack.c.l.b16 %v449
  %v3033 = vunpack.c.h.b16 %v449
  %v3034 = vunpack.c.l.b16 %v450
  %v3035 = vunpack.c.h.b16 %v450
  %v3036 = vunpack.c.l.b16 %v451
  %v3037 = vunpack.c.h.b16 %v451
  %v3038 = vunpack.c.l.b16 %v452
  %v3039 = vunpack.c.h.b16 %v452
  %v3040 = vunpack.c.l.b16 %v453
  %v3041 = vunpack.c.h.b16 %v453
  %v3042 = vunpack.c.l.b16 %v454
  %v3043 = vunpack.c.h.b16 %v454
  %v3044 = vunpack.c.l.b16 %v455
  %v3045 = vunpack.c.h.b16 %v455
  %v3046 = vunpack.c.l.b16 %v456
  %v3047 = vunpack.c.h.b16 %v456
  %v3048 = vunpack.c.l.b16 %v457
  %v3049 = vunpack.c.h.b16 %v457
  %v3050 = vunpack.c.l.b16 %v458
  %v3051 = vunpack.c.h.b16 %v458
  %v3052 = vunpack.c.l.b16 %v459
  %v3053 = vunpack.c.h.b16 %v459
  %v3054 = vunpack.c.l.b16 %v460
  %v3055 = vunpack.c.h.b16 %v460
  %v3056 = vunpack.c.l.b16 %v461
  %v3057 = vunpack.c.h.b16 %v461
  %v3058 = vunpack.c.l.b16 %v462
  %v3059 = vunpack.c.h.b16 %v462
  %v3060 = vunpack.c.l.b16 %v463
  %v3061 = vunpack.c.h.b16 %v463
  %v3062 = vunpack.c.l.b16 %v464
  %v3063 = vunpack.c.h.b16 %v464
  %v3064 = vunpack.c.l.b16 %v465
  %v3065 = vunpack.c.h.b16 %v465
  %v3066 = vunpack.c.l.b16 %v466
  %v3067 = vunpack.c.h.b16 %v466
  %v3068 = vunpack.c.l.b16 %v467
  %v3069 = vunpack.c.h.b16 %v467
  %v3070 = vunpack.c.l.b16 %v468
  %v3071 = vunpack.c.h.b16 %v468
  %v3072 = vunpack.c.l.b16 %v469
  %v3073 = vunpack.c.h.b16 %v469
  %v3074 = vunpack.c.l.b16 %v470
  %v3075 = vunpack.c.h.b16 %v470
  %v3076 = vunpack.c.l.b16 %v471
  %v3077 = vunpack.c.h.b16 %v471
  %v3078 = vunpack.c.l.b16 %v472
  %v3079 = vunpack.c.h.b16 %v472
  %v3080 = vunpack.c.l.b16 %v473
  %v3081 = vunpack.c.h.b16 %v473
  %v3082 = vunpack.c.l.b16 %v474
  %v3083 = vunpack.c.h.b16 %v474
  %v3084 = vunpack.c.l.b16 %v475
  %v3085 = vunpack.c.h.b16 %v475
  %v3086 = vunpack.c.l.b16 %v476
  %v3087 = vunpack.c.h.b16 %v476
  %v3088 = vunpack.c.l.b16 %v477
  %v3089 = vunpack.c.h.b16 %v477
  %v3090 = vunpack.c.l.b16 %v478
  %v3091 = vunpack.c.h.b16 %v478
  %v3092 = vunpack.c.l.b16 %v479
  %v3093 = vunpack.c.h.b16 %v479
  %v3094 = vunpack.c.l.b16 %v480
  %v3095 = vunpack.c.h.b16 %v480
  %v3096 = vunpack.c.l.b16 %v481
  %v3097 = vunpack.c.h.b16 %v481
  %v3098 = vunpack.c.l.b16 %v482
  %v3099 = vunpack.c.h.b16 %v482
  %v3100 = vunpack.c.l.b16 %v483
  %v3101 = vunpack.c.h.b16 %v483
  %v3102 = vunpack.c.l.b16 %v484
  %v3103 = vunpack.c.h.b16 %v484
  %v3104 = vunpack.c.l.b16 %v485
  %v3105 = vunpack.c.h.b16 %v485
  %v3106 = vunpack.c.l.b16 %v486
  %v3107 = vunpack.c.h.b16 %v486
  %v3108 = vunpack.c.l.b16 %v487
  %v3109 = vunpack.c.h.b16 %v487
  %v3110 = vunpack.c.l.b16 %v488
  %v3111 = vunpack.c.h.b16 %v488
  %v3112 = vunpack.c.l.b16 %v489
  %v3113 = vunpack.c.h.b16 %v489
  %v3114 = vunpack.c.l.b16 %v490
  %v3115 = vunpack.c.h.b16 %v490
  %v3116 = vunpack.c.l.b16 %v491
  %v3117 = vunpack.c.h.b16 %v491
  %v3118 = vunpack.c.l.b16 %v492
  %v3119 = vunpack.c.h.b16 %v492
  %v3120 = vunpack.c.l.b16 %v493
  %v3121 = vunpack.c.h.b16 %v493
  %v3122 = vunpack.c.l.b16 %v494
  %v3123 = vunpack.c.h.b16 %v494
  %v3124 = vunpack.c.l.b16 %v495
  %v3125 = vunpack.c.h.b16 %v495
  %v3126 = vunpack.c.l.b16 %v496
  %v3127 = vunpack.c.h.b16 %v496
  %v3128 = vunpack.c.l.b16 %v497
  %v3129 = vunpack.c.h.b16 %v497
  %v3130 = vunpack.c.l.b16 %v498
  %v3131 = vunpack.c.h.b16 %v498
  %v3132 = vunpack.c.l.b16 %v499
  %v3133 = vunpack.c.h.b16 %v499
  %v3134 = vunpack.c.l.b16 %v500
  %v3135 = vunpack.c.h.b16 %v500
  %v3136 = vunpack.c.l.b16 %v501
  %v3137 = vunpack.c.h.b16 %v501
  %v3138 = vunpack.c.l.b16 %v502
  %v3139 = vunpack.c.h.b16 %v502
  %v3140 = vunpack.c.l.b16 %v503
  %v3141 = vunpack.c.h.b16 %v503
  %v3142 = vunpack.c.l.b16 %v504
  %v3143 = vunpack.c.h.b16 %v504
  %v3144 = vunpack.c.l.b16 %v505
  %v3145 = vunpack.c.h.b16 %v505
  %v3146 = vunpack.c.l.b16 %v506
  %v3147 = vunpack.c.h.b16 %v506
  %v3148 = vunpack.c.l.b16 %v507
  %v3149 = vunpack.c.h.b16 %v507
  %v3150 = vunpack.c.l.b16 %v508
  %v3151 = vunpack.c.h.b16 %v508
  %v3152 = vunpack.c.l.b16 %v509
  %v3153 = vunpack.c.h.b16 %v509
  %v3154 = vunpack.c.l.b16 %v510
  %v3155 = vunpack.c.h.b16 %v510
  %v3156 = vunpack.c.l.b16 %v511
  %v3157 = vunpack.c.h.b16 %v511
  %v3158 = vunpack.c.l.b16 %v512
  %v3159 = vunpack.c.h.b16 %v512
  %v3160 = vunpack.c.l.b16 %v513
  %v3161 = vunpack.c.h.b16 %v513
  %v3162 = vunpack.c.l.b16 %v514
  %v3163 = vunpack.c.h.b16 %v514
  %v3164 = vunpack.c.l.b16 %v515
  %v3165 = vunpack.c.h.b16 %v515
  %v3166 = vunpack.c.l.b16 %v516
  %v3167 = vunpack.c.h.b16 %v516
  %v3168 = vunpack.c.l.b16 %v517
  %v3169 = vunpack.c.h.b16 %v517
  %v3170 = vunpack.c.l.b16 %v518
  %v3171 = vunpack.c.h.b16 %v518
  %v3172 = vunpack.c.l.b16 %v519
  %v3173 = vunpack.c.h.b16 %v519
  %v3174 = vunpack.c.l.b16 %v520
  %v3175 = vunpack.c.h.b16 %v520
  %v3176 = vunpack.c.l.b16 %v521
  %v3177 = vunpack.c.h.b16 %v521
  %v3178 = vunpack.c.l.b16 %v522
  %v3179 = vunpack.c.h.b16 %v522
  %v3180 = vunpack.c.l.b16 %v523
  %v3181 = vunpack.c.h.b16 %v523
  %v3182 = vunpack.c.l.b16 %v524
  %v3183 = vunpack.c.h.b16 %v524
  %v3184 = vunpack.c.l.b16 %v525
  %v3185 = vunpack.c.h.b16 %v525
  %v3186 = vunpack.c.l.b16 %v526
  %v3187 = vunpack.c.h.b16 %v526
  %v3188 = vunpack.c.l.b16 %v527
  %v3189 = vunpack.c.h.b16 %v527
  %v3190 = vunpack.c.l.b16 %v528
  %v3191 = vunpack.c.h.b16 %v528
  %v3192 = vunpack.c.l.b16 %v529
  %v3193 = vunpack.c.h.b16 %v529
  %v3194 = vunpack.c.l.b16 %v530
  %v3195 = vunpack.c.h.b16 %v530
  %v3196 = vunpack.c.l.b16 %v531
  %v3197 = vunpack.c.h.b16 %v531
  %v3198 = vunpack.c.l.b16 %v532
  %v3199 = vunpack.c.h.b16 %v532
  %v3200 = vunpack.c.l.b16 %v533
  %v3201 = vunpack.c.h.b16 %v533
  %v3202 = vunpack.c.l.b16 %v534
  %v3203 = vunpack.c.h.b16 %v534
  %v3204 = vunpack.c.l.b16 %v535
  %v3205 = vunpack.c.h.b16 %v535
  %v3206 = vunpack.c.l.b16 %v536
  %v3207 = vunpack.c.h.b16 %v536
  %v3208 = vunpack.c.l.b16 %v537
  %v3209 = vunpack.c.h.b16 %v537
  %v3210 = vunpack.c.l.b16 %v538
  %v3211 = vunpack.c.h.b16 %v538
  %v3212 = vunpack.c.l.b16 %v539
  %v3213 = vunpack.c.h.b16 %v539
  %v3214 = vunpack.c.l.b16 %v540
  %v3215 = vunpack.c.h.b16 %v540
  %v3216 = vunpack.c.l.b16 %v541
  %v3217 = vunpack.c.h.b16 %v541
  %v3218 = vunpack.c.l.b16 %v542
  %v3219 = vunpack.c.h.b16 %v542
  %v3220 = vunpack.c.l.b16 %v543
  %v3221 = vunpack.c.h.b16 %v543
  %v3222 = vunpack.c.l.b16 %v544
  %v3223 = vunpack.c.h.b16 %v544
  %v3224 = vunpack.c.l.b16 %v545
  %v3225 = vunpack.c.h.b16 %v545
  %v3226 = vunpack.c.l.b16 %v546
  %v3227 = vunpack.c.h.b16 %v546
  %v3228 = vunpack.c.l.b16 %v547
  %v3229 = vunpack.c.h.b16 %v547
  %v3230 = vunpack.c.l.b16 %v548
  %v3231 = vunpack.c.h.b16 %v548
  %v3232 = vunpack.c.l.b16 %v549
  %v3233 = vunpack.c.h.b16 %v549
  %v3234 = vunpack.c.l.b16 %v550
  %v3235 = vunpack.c.h.b16 %v550
  %v3236 = vunpack.c.l.b16 %v551
  %v3237 = vunpack.c.h.b16 %v551
  %v3238 = vunpack.c.l.b16 %v552
  %v3239 = vunpack.c.h.b16 %v552
  %v3240 = vunpack.c.l.b16 %v553
  %v3241 = vunpack.c.h.b16 %v553
  %v3242 = vunpack.c.l.b16 %v554
  %v3243 = vunpack.c.h.b16 %v554
  %v3244 = vunpack.c.l.b16 %v555
  %v3245 = vunpack.c.h.b16 %v555
  %v3246 = vunpack.c.l.b16 %v556
  %v3247 = vunpack.c.h.b16 %v556
  %v3248 = vunpack.c.l.b16 %v557
  %v3249 = vunpack.c.h.b16 %v557
  %v3250 = vunpack.c.l.b16 %v558
  %v3251 = vunpack.c.h.b16 %v558
  %v3252 = vunpack.c.l.b16 %v559
  %v3253 = vunpack.c.h.b16 %v559
  %v3254 = vunpack.c.l.b16 %v560
  %v3255 = vunpack.c.h.b16 %v560
  %v3256 = vunpack.c.l.b16 %v561
  %v3257 = vunpack.c.h.b16 %v561
  %v3258 = vunpack.c.l.b16 %v562
  %v3259 = vunpack.c.h.b16 %v562
  %v3260 = vunpack.c.l.b16 %v563
  %v3261 = vunpack.c.h.b16 %v563
  %v3262 = vunpack.c.l.b16 %v564
  %v3263 = vunpack.c.h.b16 %v564
  %v3264 = vunpack.c.l.b16 %v565
  %v3265 = vunpack.c.h.b16 %v565
  %v3266 = vunpack.c.l.b16 %v566
  %v3267 = vunpack.c.h.b16 %v566
  %v3268 = vunpack.c.l.b16 %v567
  %v3269 = vunpack.c.h.b16 %v567
  %v3270 = vunpack.c.l.b16 %v568
  %v3271 = vunpack.c.h.b16 %v568
  %v3272 = vunpack.c.l.b16 %v569
  %v3273 = vunpack.c.h.b16 %v569
  %v3274 = vunpack.c.l.b16 %v570
  %v3275 = vunpack.c.h.b16 %v570
  %v3276 = vunpack.c.l.b16 %v571
  %v3277 = vunpack.c.h.b16 %v571
  %v3278 = vunpack.c.l.b16 %v572
  %v3279 = vunpack.c.h.b16 %v572
  %v3280 = vunpack.c.l.b16 %v573
  %v3281 = vunpack.c.h.b16 %v573
  %v3282 = vunpack.c.l.b16 %v574
  %v3283 = vunpack.c.h.b16 %v574
  %v3284 = vunpack.c.l.b16 %v575
  %v3285 = vunpack.c.h.b16 %v575
  %v3286 = vunpack.c.l.b16 %v576
  %v3287 = vunpack.c.h.b16 %v576
  %v3288 = vunpack.c.l.b16 %v577
  %v3289 = vunpack.c.h.b16 %v577
  %v3290 = vunpack.c.l.b16 %v578
  %v3291 = vunpack.c.h.b16 %v578
  %v3292 = vunpack.c.l.b16 %v579
  %v3293 = vunpack.c.h.b16 %v579
  %v3294 = vunpack.c.l.b16 %v580
  %v3295 = vunpack.c.h.b16 %v580
  %v3296 = vunpack.c.l.b16 %v581
  %v3297 = vunpack.c.h.b16 %v581
  %v3298 = vunpack.c.l.b16 %v582
  %v3299 = vunpack.c.h.b16 %v582
  %v3300 = vunpack.c.l.b16 %v583
  %v3301 = vunpack.c.h.b16 %v583
  %v3302 = vunpack.c.l.b16 %v584
  %v3303 = vunpack.c.h.b16 %v584
  %v3304 = vunpack.c.l.b16 %v585
  %v3305 = vunpack.c.h.b16 %v585
  %v3306 = vunpack.c.l.b16 %v586
  %v3307 = vunpack.c.h.b16 %v586
  %v3308 = vunpack.c.l.b16 %v587
  %v3309 = vunpack.c.h.b16 %v587
  %v3310 = vunpack.c.l.b16 %v588
  %v3311 = vunpack.c.h.b16 %v588
  %v3312 = vunpack.c.l.b16 %v589
  %v3313 = vunpack.c.h.b16 %v589
  %v3314 = vunpack.c.l.b16 %v590
  %v3315 = vunpack.c.h.b16 %v590
  %v3316 = vunpack.c.l.b16 %v591
  %v3317 = vunpack.c.h.b16 %v591
  %v3318 = vunpack.c.l.b16 %v592
  %v3319 = vunpack.c.h.b16 %v592
  %v3320 = vunpack.c.l.b16 %v593
  %v3321 = vunpack.c.h.b16 %v593
  %v3322 = vunpack.c.l.b16 %v594
  %v3323 = vunpack.c.h.b16 %v594
  %v3324 = vunpack.c.l.b16 %v595
  %v3325 = vunpack.c.h.b16 %v595
  %v3326 = vunpack.c.l.b16 %v596
  %v3327 = vunpack.c.h.b16 %v596
  %v3328 = vunpack.c.l.b16 %v597
  %v3329 = vunpack.c.h.b16 %v597
  %v3330 = vunpack.c.l.b16 %v598
  %v3331 = vunpack.c.h.b16 %v598
  %v3332 = vunpack.c.l.b16 %v599
  %v3333 = vunpack.c.h.b16 %v599
  %v3334 = vunpack.c.l.b16 %v600
  %v3335 = vunpack.c.h.b16 %v600
  %v3336 = vunpack.c.l.b16 %v601
  %v3337 = vunpack.c.h.b16 %v601
  %v3338 = vunpack.c.l.b16 %v602
  %v3339 = vunpack.c.h.b16 %v602
  %v3340 = vunpack.c.l.b16 %v603
  %v3341 = vunpack.c.h.b16 %v603
  %v3342 = vunpack.c.l.b16 %v604
  %v3343 = vunpack.c.h.b16 %v604
  %v3344 = vunpack.c.l.b16 %v605
  %v3345 = vunpack.c.h.b16 %v605
  %v3346 = vunpack.c.l.b16 %v606
  %v3347 = vunpack.c.h.b16 %v606
  %v3348 = vunpack.c.l.b16 %v607
  %v3349 = vunpack.c.h.b16 %v607
  %v3350 = vunpack.c.l.b16 %v608
  %v3351 = vunpack.c.h.b16 %v608
  %v3352 = vunpack.c.l.b16 %v609
  %v3353 = vunpack.c.h.b16 %v609
  %v3354 = vunpack.c.l.b16 %v610
  %v3355 = vunpack.c.h.b16 %v610
  %v3356 = vunpack.c.l.b16 %v611
  %v3357 = vunpack.c.h.b16 %v611
  %v3358 = vunpack.c.l.b16 %v612
  %v3359 = vunpack.c.h.b16 %v612
  %v3360 = vunpack.c.l.b16 %v613
  %v3361 = vunpack.c.h.b16 %v613
  %v3362 = vunpack.c.l.b16 %v614
  %v3363 = vunpack.c.h.b16 %v614
  %v3364 = vunpack.c.l.b16 %v615
  %v3365 = vunpack.c.h.b16 %v615
  %v3366 = vunpack.c.l.b16 %v616
  %v3367 = vunpack.c.h.b16 %v616
  %v3368 = vunpack.c.l.b16 %v617
  %v3369 = vunpack.c.h.b16 %v617
  %v3370 = vunpack.c.l.b16 %v618
  %v3371 = vunpack.c.h.b16 %v618
  %v3372 = vunpack.c.l.b16 %v619
  %v3373 = vunpack.c.h.b16 %v619
  %v3374 = vunpack.c.l.b16 %v620
  %v3375 = vunpack.c.h.b16 %v620
  %v3376 = vunpack.c.l.b16 %v621
  %v3377 = vunpack.c.h.b16 %v621
  %v3378 = vunpack.c.l.b16 %v622
  %v3379 = vunpack.c.h.b16 %v622
  %v3380 = vunpack.c.l.b16 %v623
  %v3381 = vunpack.c.h.b16 %v623
  %v3382 = vunpack.c.l.b16 %v624
  %v3383 = vunpack.c.h.b16 %v624
  %v3384 = vunpack.c.l.b16 %v625
  %v3385 = vunpack.c.h.b16 %v625
  %v3386 = vunpack.c.l.b16 %v626
  %v3387 = vunpack.c.h.b16 %v626
  %v3388 = vunpack.c.l.b16 %v627
  %v3389 = vunpack.c.h.b16 %v627
  %v3390 = vunpack.c.l.b16 %v628
  %v3391 = vunpack.c.h.b16 %v628
  %v3392 = vunpack.c.l.b16 %v629
  %v3393 = vunpack.c.h.b16 %v629
  %v3394 = vunpack.c.l.b16 %v630
  %v3395 = vunpack.c.h.b16 %v630
  %v3396 = vunpack.c.l.b16 %v631
  %v3397 = vunpack.c.h.b16 %v631
  %v3398 = vunpack.c.l.b16 %v632
  %v3399 = vunpack.c.h.b16 %v632
  %v3400 = vunpack.c.l.b16 %v633
  %v3401 = vunpack.c.h.b16 %v633
  %v3402 = vunpack.c.l.b16 %v634
  %v3403 = vunpack.c.h.b16 %v634
  %v3404 = vunpack.c.l.b16 %v635
  %v3405 = vunpack.c.h.b16 %v635
  %v3406 = vunpack.c.l.b16 %v636
  %v3407 = vunpack.c.h.b16 %v636
  %v3408 = vunpack.c.l.b16 %v637
  %v3409 = vunpack.c.h.b16 %v637
  %v3410 = vunpack.c.l.b16 %v638
  %v3411 = vunpack.c.h.b16 %v638
  %v3412 = vunpack.c.l.b16 %v639
  %v3413 = vunpack.c.h.b16 %v639
  %v3414 = vunpack.c.l.b16 %v640
  %v3415 = vunpack.c.h.b16 %v640
  %v3416 = vunpack.c.l.b16 %v641
  %v3417 = vunpack.c.h.b16 %v641
  %v3418 = vunpack.c.l.b16 %v642
  %v3419 = vunpack.c.h.b16 %v642
  %v3420 = vunpack.c.l.b16 %v643
  %v3421 = vunpack.c.h.b16 %v643
  %v3422 = vunpack.c.l.b16 %v644
  %v3423 = vunpack.c.h.b16 %v644
  %v3424 = vunpack.c.l.b16 %v645
  %v3425 = vunpack.c.h.b16 %v645
  %v3426 = vunpack.c.l.b16 %v646
  %v3427 = vunpack.c.h.b16 %v646
  %v3428 = vunpack.c.l.b16 %v647
  %v3429 = vunpack.c.h.b16 %v647
  %v3430 = vunpack.c.l.b16 %v648
  %v3431 = vunpack.c.h.b16 %v648
  %v3432 = vunpack.c.l.b16 %v649
  %v3433 = vunpack.c.h.b16 %v649
  %v3434 = vunpack.c.l.b16 %v650
  %v3435 = vunpack.c.h.b16 %v650
  %v3436 = vunpack.c.l.b16 %v651
  %v3437 = vunpack.c.h.b16 %v651
  %v3438 = vunpack.c.l.b16 %v652
  %v3439 = vunpack.c.h.b16 %v652
  %v3440 = vunpack.c.l.b16 %v653
  %v3441 = vunpack.c.h.b16 %v653
  %v3442 = vunpack.c.l.b16 %v654
  %v3443 = vunpack.c.h.b16 %v654
  %v3444 = vunpack.c.l.b16 %v655
  %v3445 = vunpack.c.h.b16 %v655
  %v3446 = vunpack.c.l.b16 %v656
  %v3447 = vunpack.c.h.b16 %v656
  %v3448 = vunpack.c.l.b16 %v657
  %v3449 = vunpack.c.h.b16 %v657
  %v3450 = vunpack.c.l.b16 %v658
  %v3451 = vunpack.c.h.b16 %v658
  %v3452 = vunpack.c.l.b16 %v659
  %v3453 = vunpack.c.h.b16 %v659
  %v3454 = vunpack.c.l.b16 %v660
  %v3455 = vunpack.c.h.b16 %v660
  %v3456 = vunpack.c.l.b16 %v661
  %v3457 = vunpack.c.h.b16 %v661
  %v3458 = vunpack.c.l.b16 %v662
  %v3459 = vunpack.c.h.b16 %v662
  %v3460 = vunpack.c.l.b16 %v663
  %v3461 = vunpack.c.h.b16 %v663
  %v3462 = vunpack.c.l.b16 %v664
  %v3463 = vunpack.c.h.b16 %v664
  %v3464 = vunpack.c.l.b16 %v665
  %v3465 = vunpack.c.h.b16 %v665
  %v3466 = vunpack.c.l.b16 %v666
  %v3467 = vunpack.c.h.b16 %v666
  %v3468 = vunpack.c.l.b16 %v667
  %v3469 = vunpack.c.h.b16 %v667
  %v3470 = vunpack.c.l.b16 %v668
  %v3471 = vunpack.c.h.b16 %v668
  %v3472 = vunpack.c.l.b16 %v669
  %v3473 = vunpack.c.h.b16 %v669
  %v3474 = vunpack.c.l.b16 %v670
  %v3475 = vunpack.c.h.b16 %v670
  %v3476 = vunpack.c.l.b16 %v671
  %v3477 = vunpack.c.h.b16 %v671
  %v3478 = vunpack.c.l.b16 %v672
  %v3479 = vunpack.c.h.b16 %v672
  %v3480 = vunpack.c.l.b16 %v673
  %v3481 = vunpack.c.h.b16 %v673
  %v3482 = vunpack.c.l.b16 %v674
  %v3483 = vunpack.c.h.b16 %v674
  %v3484 = vunpack.c.l.b16 %v675
  %v3485 = vunpack.c.h.b16 %v675
  %v3486 = vunpack.c.l.b16 %v676
  %v3487 = vunpack.c.h.b16 %v676
  %v3488 = vunpack.c.l.b16 %v677
  %v3489 = vunpack.c.h.b16 %v677
  %v3490 = vunpack.c.l.b16 %v678
  %v3491 = vunpack.c.h.b16 %v678
  %v3492 = vunpack.c.l.b16 %v679
  %v3493 = vunpack.c.h.b16 %v679
  %v3494 = vunpack.c.l.b16 %v680
  %v3495 = vunpack.c.h.b16 %v680
  %v3496 = vunpack.c.l.b16 %v681
  %v3497 = vunpack.c.h.b16 %v681
  %v3498 = vunpack.c.l.b16 %v682
  %v3499 = vunpack.c.h.b16 %v682
  %v3500 = vunpack.c.l.b16 %v683
  %v3501 = vunpack.c.h.b16 %v683
  %v3502 = vunpack.c.l.b16 %v684
  %v3503 = vunpack.c.h.b16 %v684
  %v3504 = vunpack.c.l.b16 %v685
  %v3505 = vunpack.c.h.b16 %v685
  %v3506 = vunpack.c.l.b16 %v686
  %v3507 = vunpack.c.h.b16 %v686
  %v3508 = vunpack.c.l.b16 %v687
  %v3509 = vunpack.c.h.b16 %v687
  %v3510 = vunpack.c.l.b16 %v688
  %v3511 = vunpack.c.h.b16 %v688
  %v3512 = vunpack.c.l.b16 %v689
  %v3513 = vunpack.c.h.b16 %v689
  %v3514 = vunpack.c.l.b16 %v690
  %v3515 = vunpack.c.h.b16 %v690
  %v3516 = vunpack.c.l.b16 %v691
  %v3517 = vunpack.c.h.b16 %v691
  %v3518 = vunpack.c.l.b16 %v692
  %v3519 = vunpack.c.h.b16 %v692
  %v3520 = vunpack.c.l.b16 %v693
  %v3521 = vunpack.c.h.b16 %v693
  %v3522 = vunpack.c.l.b16 %v694
  %v3523 = vunpack.c.h.b16 %v694
  %v3524 = vunpack.c.l.b16 %v695
  %v3525 = vunpack.c.h.b16 %v695
  %v3526 = vunpack.c.l.b16 %v696
  %v3527 = vunpack.c.h.b16 %v696
  %v3528 = vunpack.c.l.b16 %v697
  %v3529 = vunpack.c.h.b16 %v697
  %v3530 = vunpack.c.l.b16 %v698
  %v3531 = vunpack.c.h.b16 %v698
  %v3532 = vunpack.c.l.b16 %v699
  %v3533 = vunpack.c.h.b16 %v699
  %v3534 = vunpack.c.l.b16 %v700
  %v3535 = vunpack.c.h.b16 %v700
  %v3536 = vunpack.c.l.b16 %v701
  %v3537 = vunpack.c.h.b16 %v701
  %v3538 = vunpack.c.l.b16 %v702
  %v3539 = vunpack.c.h.b16 %v702
  %v3540 = vunpack.c.l.b16 %v703
  %v3541 = vunpack.c.h.b16 %v703
  %v3542 = vunpack.c.l.b16 %v704
  %v3543 = vunpack.c.h.b16 %v704
  %v3544 = vunpack.c.l.b16 %v705
  %v3545 = vunpack.c.h.b16 %v705
  %v3546 = vunpack.c.l.b16 %v706
  %v3547 = vunpack.c.h.b16 %v706
  %v3548 = vunpack.c.l.b16 %v707
  %v3549 = vunpack.c.h.b16 %v707
  %v3550 = vunpack.c.l.b16 %v708
  %v3551 = vunpack.c.h.b16 %v708
  %v3552 = vunpack.c.l.b16 %v709
  %v3553 = vunpack.c.h.b16 %v709
  %v3554 = vunpack.c.l.b16 %v710
  %v3555 = vunpack.c.h.b16 %v710
  %v3556 = vunpack.c.l.b16 %v711
  %v3557 = vunpack.c.h.b16 %v711
  %v3558 = vunpack.c.l.b16 %v712
  %v3559 = vunpack.c.h.b16 %v712
  %v3560 = vunpack.c.l.b16 %v713
  %v3561 = vunpack.c.h.b16 %v713
  %v3562 = vunpack.c.l.b16 %v714
  %v3563 = vunpack.c.h.b16 %v714
  %v3564 = vunpack.c.l.b16 %v715
  %v3565 = vunpack.c.h.b16 %v715
  %v3566 = vunpack.c.l.b16 %v716
  %v3567 = vunpack.c.h.b16 %v716
  %v3568 = vunpack.c.l.b16 %v717
  %v3569 = vunpack.c.h.b16 %v717
  %v3570 = vunpack.c.l.b16 %v718
  %v3571 = vunpack.c.h.b16 %v718
  %v3572 = vunpack.c.l.b16 %v719
  %v3573 = vunpack.c.h.b16 %v719
  %v3574 = vunpack.c.l.b16 %v720
  %v3575 = vunpack.c.h.b16 %v720
  %v3576 = vunpack.c.l.b16 %v721
  %v3577 = vunpack.c.h.b16 %v721
  %v3578 = vunpack.c.l.b16 %v722
  %v3579 = vunpack.c.h.b16 %v722
  %v3580 = vunpack.c.l.b16 %v723
  %v3581 = vunpack.c.h.b16 %v723
  %v3582 = vunpack.c.l.b16 %v724
  %v3583 = vunpack.c.h.b16 %v724
  %v3584 = vunpack.c.l.b16 %v725
  %v3585 = vunpack.c.h.b16 %v725
  %v3586 = vunpack.c.l.b16 %v726
  %v3587 = vunpack.c.h.b16 %v726
  %v3588 = vunpack.c.l.b16 %v727
  %v3589 = vunpack.c.h.b16 %v727
  %v3590 = vunpack.c.l.b16 %v728
  %v3591 = vunpack.c.h.b16 %v728
  %v3592 = vunpack.c.l.b16 %v729
  %v3593 = vunpack.c.h.b16 %v729
  %v3594 = vunpack.c.l.b16 %v730
  %v3595 = vunpack.c.h.b16 %v730
  %v3596 = vunpack.c.l.b16 %v731
  %v3597 = vunpack.c.h.b16 %v731
  %v3598 = vunpack.c.l.b16 %v732
  %v3599 = vunpack.c.h.b16 %v732
  %v3600 = vunpack.c.l.b16 %v733
  %v3601 = vunpack.c.h.b16 %v733
  %v3602 = vunpack.c.l.b16 %v734
  %v3603 = vunpack.c.h.b16 %v734
  %v3604 = vunpack.c.l.b16 %v735
  %v3605 = vunpack.c.h.b16 %v735
  %v3606 = vunpack.c.l.b16 %v736
  %v3607 = vunpack.c.h.b16 %v736
  %v3608 = vunpack.c.l.b16 %v737
  %v3609 = vunpack.c.h.b16 %v737
  %v3610 = vunpack.c.l.b16 %v738
  %v3611 = vunpack.c.h.b16 %v738
  %v3612 = vunpack.c.l.b16 %v739
  %v3613 = vunpack.c.h.b16 %v739
  %v3614 = vunpack.c.l.b16 %v740
  %v3615 = vunpack.c.h.b16 %v740
  %v3616 = vunpack.c.l.b16 %v741
  %v3617 = vunpack.c.h.b16 %v741
  %v3618 = vunpack.c.l.b16 %v742
  %v3619 = vunpack.c.h.b16 %v742
  %v3620 = vunpack.c.l.b16 %v743
  %v3621 = vunpack.c.h.b16 %v743
  %v3622 = vunpack.c.l.b16 %v744
  %v3623 = vunpack.c.h.b16 %v744
  %v3624 = vunpack.c.l.b16 %v745
  %v3625 = vunpack.c.h.b16 %v745
  %v3626 = vunpack.c.l.b16 %v746
  %v3627 = vunpack.c.h.b16 %v746
  %v3628 = vunpack.c.l.b16 %v747
  %v3629 = vunpack.c.h.b16 %v747
  %v3630 = vunpack.c.l.b16 %v748
  %v3631 = vunpack.c.h.b16 %v748
  %v3632 = vunpack.c.l.b16 %v749
  %v3633 = vunpack.c.h.b16 %v749
  %v3634 = vunpack.c.l.b16 %v750
  %v3635 = vunpack.c.h.b16 %v750
  %v3636 = vunpack.c.l.b16 %v751
  %v3637 = vunpack.c.h.b16 %v751
  %v3638 = vunpack.c.l.b16 %v752
  %v3639 = vunpack.c.h.b16 %v752
  %v3640 = vunpack.c.l.b16 %v753
  %v3641 = vunpack.c.h.b16 %v753
  %v3642 = vunpack.c.l.b16 %v754
  %v3643 = vunpack.c.h.b16 %v754
  %v3644 = vunpack.c.l.b16 %v755
  %v3645 = vunpack.c.h.b16 %v755
  %v3646 = vunpack.c.l.b16 %v756
  %v3647 = vunpack.c.h.b16 %v756
  %v3648 = vunpack.c.l.b16 %v757
  %v3649 = vunpack.c.h.b16 %v757
  %v3650 = vunpack.c.l.b16 %v758
  %v3651 = vunpack.c.h.b16 %v758
  %v3652 = vunpack.c.l.b16 %v759
  %v3653 = vunpack.c.h.b16 %v759
  %v3654 = vunpack.c.l.b16 %v760
  %v3655 = vunpack.c.h.b16 %v760
  %v3656 = vunpack.c.l.b16 %v761
  %v3657 = vunpack.c.h.b16 %v761
  %v3658 = vunpack.c.l.b16 %v762
  %v3659 = vunpack.c.h.b16 %v762
  %v3660 = vunpack.c.l.b16 %v763
  %v3661 = vunpack.c.h.b16 %v763
  %v3662 = vunpack.c.l.b16 %v764
  %v3663 = vunpack.c.h.b16 %v764
  %v3664 = vunpack.c.l.b16 %v765
  %v3665 = vunpack.c.h.b16 %v765
  %v3666 = vunpack.c.l.b16 %v766
  %v3667 = vunpack.c.h.b16 %v766
  %v3668 = vunpack.c.l.b16 %v767
  %v3669 = vunpack.c.h.b16 %v767
  %v3670 = vunpack.c.l.b16 %v768
  %v3671 = vunpack.c.h.b16 %v768
  %v3672 = vunpack.c.l.b16 %v769
  %v3673 = vunpack.c.h.b16 %v769
  %v3674 = vunpack.c.l.b16 %v770
  %v3675 = vunpack.c.h.b16 %v770
  %v3676 = vunpack.c.l.b16 %v771
  %v3677 = vunpack.c.h.b16 %v771
  %v3678 = vunpack.c.l.b16 %v772
  %v3679 = vunpack.c.h.b16 %v772
  %v3680 = vunpack.c.l.b16 %v773
  %v3681 = vunpack.c.h.b16 %v773
  %v3682 = vunpack.c.l.b16 %v774
  %v3683 = vunpack.c.h.b16 %v774
  %v3684 = vunpack.c.l.b16 %v775
  %v3685 = vunpack.c.h.b16 %v775
  %v3686 = vunpack.c.l.b16 %v776
  %v3687 = vunpack.c.h.b16 %v776
  %v3688 = vunpack.c.l.b16 %v777
  %v3689 = vunpack.c.h.b16 %v777
  %v3690 = vunpack.c.l.b16 %v778
  %v3691 = vunpack.c.h.b16 %v778
  %v3692 = vunpack.c.l.b16 %v779
  %v3693 = vunpack.c.h.b16 %v779
  %v3694 = vunpack.c.l.b16 %v780
  %v3695 = vunpack.c.h.b16 %v780
  %v3696 = vunpack.c.l.b16 %v781
  %v3697 = vunpack.c.h.b16 %v781
  %v3698 = vunpack.c.l.b16 %v782
  %v3699 = vunpack.c.h.b16 %v782
  %v3700 = vunpack.c.l.b16 %v783
  %v3701 = vunpack.c.h.b16 %v783
  %v3702 = vunpack.c.l.b16 %v784
  %v3703 = vunpack.c.h.b16 %v784
  %v3704 = vunpack.c.l.b16 %v785
  %v3705 = vunpack.c.h.b16 %v785
  %v3706 = vunpack.c.l.b16 %v786
  %v3707 = vunpack.c.h.b16 %v786
  %v3708 = vunpack.c.l.b16 %v787
  %v3709 = vunpack.c.h.b16 %v787
  %v3710 = vunpack.c.l.b16 %v788
  %v3711 = vunpack.c.h.b16 %v788
  %v3712 = vunpack.c.l.b16 %v789
  %v3713 = vunpack.c.h.b16 %v789
  %v3714 = vunpack.c.l.b16 %v790
  %v3715 = vunpack.c.h.b16 %v790
  %v3716 = vunpack.c.l.b16 %v791
  %v3717 = vunpack.c.h.b16 %v791
  %v3718 = vunpack.c.l.b16 %v792
  %v3719 = vunpack.c.h.b16 %v792
  %v3720 = vunpack.c.l.b16 %v793
  %v3721 = vunpack.c.h.b16 %v793
  %v3722 = vunpack.c.l.b16 %v794
  %v3723 = vunpack.c.h.b16 %v794
  %v3724 = vunpack.c.l.b16 %v795
  %v3725 = vunpack.c.h.b16 %v795
  %v3726 = vunpack.c.l.b16 %v796
  %v3727 = vunpack.c.h.b16 %v796
  %v3728 = vunpack.c.l.b16 %v797
  %v3729 = vunpack.c.h.b16 %v797
  %v3730 = vunpack.c.l.b16 %v798
  %v3731 = vunpack.c.h.b16 %v798
  %v3732 = vunpack.c.l.b16 %v799
  %v3733 = vunpack.c.h.b16 %v799
  %v3734 = vunpack.c.l.b16 %v800
  %v3735 = vunpack.c.h.b16 %v800
  %v3736 = vunpack.c.l.b16 %v801
  %v3737 = vunpack.c.h.b16 %v801
  %v3738 = vunpack.c.l.b16 %v802
  %v3739 = vunpack.c.h.b16 %v802
  %v3740 = vunpack.c.l.b16 %v803
  %v3741 = vunpack.c.h.b16 %v803
  %v3742 = vunpack.c.l.b16 %v804
  %v3743 = vunpack.c.h.b16 %v804
  %v3744 = vunpack.c.l.b16 %v805
  %v3745 = vunpack.c.h.b16 %v805
  %v3746 = vunpack.c.l.b16 %v806
  %v3747 = vunpack.c.h.b16 %v806
  %v3748 = vunpack.c.l.b16 %v807
  %v3749 = vunpack.c.h.b16 %v807
  %v3750 = vunpack.c.l.b16 %v808
  %v3751 = vunpack.c.h.b16 %v808
  %v3752 = vunpack.c.l.b16 %v809
  %v3753 = vunpack.c.h.b16 %v809
  %v3754 = vunpack.c.l.b16 %v810
  %v3755 = vunpack.c.h.b16 %v810
  %v3756 = vunpack.c.l.b16 %v811
  %v3757 = vunpack.c.h.b16 %v811
  %v3758 = vunpack.c.l.b16 %v812
  %v3759 = vunpack.c.h.b16 %v812
  %v3760 = vunpack.c.l.b16 %v813
  %v3761 = vunpack.c.h.b16 %v813
  %v3762 = vunpack.c.l.b16 %v814
  %v3763 = vunpack.c.h.b16 %v814
  %v3764 = vunpack.c.l.b16 %v815
  %v3765 = vunpack.c.h.b16 %v815
  %v3766 = vunpack.c.l.b16 %v816
  %v3767 = vunpack.c.h.b16 %v816
  %v3768 = vunpack.c.l.b16 %v817
  %v3769 = vunpack.c.h.b16 %v817
  %v3770 = vunpack.c.l.b16 %v818
  %v3771 = vunpack.c.h.b16 %v818
  %v3772 = vunpack.c.l.b16 %v819
  %v3773 = vunpack.c.h.b16 %v819
  %v3774 = vunpack.c.l.b16 %v820
  %v3775 = vunpack.c.h.b16 %v820
  %v3776 = vunpack.c.l.b16 %v821
  %v3777 = vunpack.c.h.b16 %v821
  %v3778 = vunpack.c.l.b16 %v822
  %v3779 = vunpack.c.h.b16 %v822
  %v3780 = vunpack.c.l.b16 %v823
  %v3781 = vunpack.c.h.b16 %v823
  %v3782 = vunpack.c.l.b16 %v824
  %v3783 = vunpack.c.h.b16 %v824
  %v3784 = vunpack.c.l.b16 %v825
  %v3785 = vunpack.c.h.b16 %v825
  %v3786 = vunpack.c.l.b16 %v826
  %v3787 = vunpack.c.h.b16 %v826
  %v3788 = vunpack.c.l.b16 %v827
  %v3789 = vunpack.c.h.b16 %v827
  %v3790 = vunpack.c.l.b16 %v828
  %v3791 = vunpack.c.h.b16 %v828
  %v3792 = vunpack.c.l.b16 %v829
  %v3793 = vunpack.c.h.b16 %v829
  %v3794 = vunpack.c.l.b16 %v830
  %v3795 = vunpack.c.h.b16 %v830
  %v3796 = vunpack.c.l.b16 %v831
  %v3797 = vunpack.c.h.b16 %v831
  %v3798 = vunpack.c.l.b16 %v832
  %v3799 = vunpack.c.h.b16 %v832
  %v3800 = vunpack.c.l.b16 %v833
  %v3801 = vunpack.c.h.b16 %v833
  %v3802 = vunpack.c.l.b16 %v834
  %v3803 = vunpack.c.h.b16 %v834
  %v3804 = vunpack.c.l.b16 %v835
  %v3805 = vunpack.c.h.b16 %v835
  %v3806 = vunpack.c.l.b16 %v836
  %v3807 = vunpack.c.h.b16 %v836
  %v3808 = vunpack.c.l.b16 %v837
  %v3809 = vunpack.c.h.b16 %v837
  %v3810 = vunpack.c.l.b16 %v838
  %v3811 = vunpack.c.h.b16 %v838
  %v3812 = vunpack.c.l.b16 %v839
  %v3813 = vunpack.c.h.b16 %v839
  %v3814 = vunpack.c.l.b16 %v840
  %v3815 = vunpack.c.h.b16 %v840
  %v3816 = vunpack.c.l.b16 %v841
  %v3817 = vunpack.c.h.b16 %v841
  %v3818 = vunpack.c.l.b16 %v842
  %v3819 = vunpack.c.h.b16 %v842
  %v3820 = vunpack.c.l.b16 %v843
  %v3821 = vunpack.c.h.b16 %v843
  %v3822 = vunpack.c.l.b16 %v844
  %v3823 = vunpack.c.h.b16 %v844
  %v3824 = vunpack.c.l.b16 %v845
  %v3825 = vunpack.c.h.b16 %v845
  %v3826 = vunpack.c.l.b16 %v846
  %v3827 = vunpack.c.h.b16 %v846
  %v3828 = vunpack.c.l.b16 %v847
  %v3829 = vunpack.c.h.b16 %v847
  %v3830 = vunpack.c.l.b16 %v848
  %v3831 = vunpack.c.h.b16 %v848
  %v3832 = vunpack.c.l.b16 %v849
  %v3833 = vunpack.c.h.b16 %v849
  %v3834 = vunpack.c.l.b16 %v850
  %v3835 = vunpack.c.h.b16 %v850
  %v3836 = vunpack.c.l.b16 %v851
  %v3837 = vunpack.c.h.b16 %v851
  %v3838 = vunpack.c.l.b16 %v852
  %v3839 = vunpack.c.h.b16 %v852
  %v3840 = vunpack.c.l.b16 %v853
  %v3841 = vunpack.c.h.b16 %v853
  %v3842 = vunpack.c.l.b16 %v854
  %v3843 = vunpack.c.h.b16 %v854
  %v3844 = vunpack.c.l.b16 %v855
  %v3845 = vunpack.c.h.b16 %v855
  %v3846 = vunpack.c.l.b16 %v856
  %v3847 = vunpack.c.h.b16 %v856
  %v3848 = vunpack.c.l.b16 %v857
  %v3849 = vunpack.c.h.b16 %v857
  %v3850 = vunpack.c.l.b16 %v858
  %v3851 = vunpack.c.h.b16 %v858
  %v3852 = vunpack.c.l.b16 %v859
  %v3853 = vunpack.c.h.b16 %v859
  %v3854 = vunpack.c.l.b16 %v860
  %v3855 = vunpack.c.h.b16 %v860
  %v3856 = vunpack.c.l.b16 %v861
  %v3857 = vunpack.c.h.b16 %v861
  %v3858 = vunpack.c.l.b16 %v862
  %v3859 = vunpack.c.h.b16 %v862
  %v3860 = vunpack.c.l.b16 %v863
  %v3861 = vunpack.c.h.b16 %v863
  %v3862 = vunpack.c.l.b16 %v864
  %v3863 = vunpack.c.h.b16 %v864
  %v3864 = vunpack.c.l.b16 %v865
  %v3865 = vunpack.c.h.b16 %v865
  %v3866 = vunpack.c.l.b16 %v866
  %v3867 = vunpack.c.h.b16 %v866
  %v3868 = vunpack.c.l.b16 %v867
  %v3869 = vunpack.c.h.b16 %v867
  %v3870 = vunpack.c.l.b16 %v868
  %v3871 = vunpack.c.h.b16 %v868
  %v3872 = vunpack.c.l.b16 %v869
  %v3873 = vunpack.c.h.b16 %v869
  %v3874 = vunpack.c.l.b16 %v870
  %v3875 = vunpack.c.h.b16 %v870
  %v3876 = vunpack.c.l.b16 %v871
  %v3877 = vunpack.c.h.b16 %v871
  %v3878 = vunpack.c.l.b16 %v872
  %v3879 = vunpack.c.h.b16 %v872
  %v3880 = vunpack.c.l.b16 %v873
  %v3881 = vunpack.c.h.b16 %v873
  %v3882 = vunpack.c.l.b16 %v874
  %v3883 = vunpack.c.h.b16 %v874
  %v3884 = vunpack.c.l.b16 %v875
  %v3885 = vunpack.c.h.b16 %v875
  %v3886 = vunpack.c.l.b16 %v876
  %v3887 = vunpack.c.h.b16 %v876
  %v3888 = vunpack.c.l.b16 %v877
  %v3889 = vunpack.c.h.b16 %v877
  %v3890 = vunpack.c.l.b16 %v878
  %v3891 = vunpack.c.h.b16 %v878
  %v3892 = vunpack.c.l.b16 %v879
  %v3893 = vunpack.c.h.b16 %v879
  %v3894 = vunpack.c.l.b16 %v880
  %v3895 = vunpack.c.h.b16 %v880
  %v3896 = vunpack.c.l.b16 %v881
  %v3897 = vunpack.c.h.b16 %v881
  %v3898 = vunpack.c.l.b16 %v882
  %v3899 = vunpack.c.h.b16 %v882
  %v3900 = vunpack.c.l.b16 %v883
  %v3901 = vunpack.c.h.b16 %v883
  %v3902 = vunpack.c.l.b16 %v884
  %v3903 = vunpack.c.h.b16 %v884
  %v3904 = vunpack.c.l.b16 %v885
  %v3905 = vunpack.c.h.b16 %v885
  %v3906 = vunpack.c.l.b16 %v886
  %v3907 = vunpack.c.h.b16 %v886
  %v3908 = vunpack.c.l.b16 %v887
  %v3909 = vunpack.c.h.b16 %v887
  %v3910 = vunpack.c.l.b16 %v888
  %v3911 = vunpack.c.h.b16 %v888
  %v3912 = vunpack.c.l.b16 %v889
  %v3913 = vunpack.c.h.b16 %v889
  %v3914 = vunpack.c.l.b16 %v890
  %v3915 = vunpack.c.h.b16 %v890
  %v3916 = vunpack.c.l.b16 %v891
  %v3917 = vunpack.c.h.b16 %v891
  %v3918 = vunpack.c.l.b16 %v892
  %v3919 = vunpack.c.h.b16 %v892
  %v3920 = vunpack.c.l.b16 %v893
  %v3921 = vunpack.c.h.b16 %v893
  %v3922 = vunpack.c.l.b16 %v894
  %v3923 = vunpack.c.h.b16 %v894
  %v3924 = vunpack.c.l.b16 %v895
  %v3925 = vunpack.c.h.b16 %v895
  %v3926 = vunpack.c.l.b16 %v896
  %v3927 = vunpack.c.h.b16 %v896
  %v3928 = vunpack.c.l.b16 %v897
  %v3929 = vunpack.c.h.b16 %v897
  %v3930 = vunpack.c.l.b16 %v898
  %v3931 = vunpack.c.h.b16 %v898
  %v3932 = vunpack.c.l.b16 %v899
  %v3933 = vunpack.c.h.b16 %v899
  %v3934 = vunpack.c.l.b16 %v900
  %v3935 = vunpack.c.h.b16 %v900
  %v3936 = vunpack.c.l.b16 %v901
  %v3937 = vunpack.c.h.b16 %v901
  %v3938 = vunpack.c.l.b16 %v902
  %v3939 = vunpack.c.h.b16 %v902
  %v3940 = vunpack.c.l.b16 %v903
  %v3941 = vunpack.c.h.b16 %v903
  %v3942 = vunpack.c.l.b16 %v904
  %v3943 = vunpack.c.h.b16 %v904
  %v3944 = vunpack.c.l.b16 %v905
  %v3945 = vunpack.c.h.b16 %v905
  %v3946 = vunpack.c.l.b16 %v906
  %v3947 = vunpack.c.h.b16 %v906
  %v3948 = vunpack.c.l.b16 %v907
  %v3949 = vunpack.c.h.b16 %v907
  %v3950 = vunpack.c.l.b16 %v908
  %v3951 = vunpack.c.h.b16 %v908
  %v3952 = vunpack.c.l.b16 %v909
  %v3953 = vunpack.c.h.b16 %v909
  %v3954 = vunpack.c.l.b16 %v910
  %v3955 = vunpack.c.h.b16 %v910
  %v3956 = vunpack.c.l.b16 %v911
  %v3957 = vunpack.c.h.b16 %v911
  %v3958 = vunpack.c.l.b16 %v912
  %v3959 = vunpack.c.h.b16 %v912
  %v3960 = vunpack.c.l.b16 %v913
  %v3961 = vunpack.c.h.b16 %v913
  %v3962 = vunpack.c.l.b16 %v914
  %v3963 = vunpack.c.h.b16 %v914
  %v3964 = vunpack.c.l.b16 %v915
  %v3965 = vunpack.c.h.b16 %v915
  %v3966 = vunpack.c.l.b16 %v916
  %v3967 = vunpack.c.h.b16 %v916
  %v3968 = vunpack.c.l.b16 %v917
  %v3969 = vunpack.c.h.b16 %v917
  %v3970 = vunpack.c.l.b16 %v918
  %v3971 = vunpack.c.h.b16 %v918
  %v3972 = vunpack.c.l.b16 %v919
  %v3973 = vunpack.c.h.b16 %v919
  %v3974 = vunpack.c.l.b16 %v920
  %v3975 = vunpack.c.h.b16 %v920
  %v3976 = vunpack.c.l.b16 %v921
  %v3977 = vunpack.c.h.b16 %v921
  %v3978 = vunpack.c.l.b16 %v922
  %v3979 = vunpack.c.h.b16 %v922
  %v3980 = vunpack.c.l.b16 %v923
  %v3981 = vunpack.c.h.b16 %v923
  %v3982 = vunpack.c.l.b16 %v924
  %v3983 = vunpack.c.h.b16 %v924
  %v3984 = vunpack.c.l.b16 %v925
  %v3985 = vunpack.c.h.b16 %v925
  %v3986 = vunpack.c.l.b16 %v926
  %v3987 = vunpack.c.h.b16 %v926
  %v3988 = vunpack.c.l.b16 %v927
  %v3989 = vunpack.c.h.b16 %v927
  %v3990 = vunpack.c.l.b16 %v928
  %v3991 = vunpack.c.h.b16 %v928
  %v3992 = vunpack.c.l.b16 %v929
  %v3993 = vunpack.c.h.b16 %v929
  %v3994 = vunpack.c.l.b16 %v930
  %v3995 = vunpack.c.h.b16 %v930
  %v3996 = vunpack.c.l.b16 %v931
  %v3997 = vunpack.c.h.b16 %v931
  %v3998 = vunpack.c.l.b16 %v932
  %v3999 = vunpack.c.h.b16 %v932
  %v4000 = vunpack.c.l.b16 %v933
  %v4001 = vunpack.c.h.b16 %v933
  %v4002 = vunpack.c.l.b16 %v934
  %v4003 = vunpack.c.h.b16 %v934
  %v4004 = vunpack.c.l.b16 %v935
  %v4005 = vunpack.c.h.b16 %v935
  %v4006 = vunpack.c.l.b16 %v936
  %v4007 = vunpack.c.h.b16 %v936
  %v4008 = vunpack.c.l.b16 %v937
  %v4009 = vunpack.c.h.b16 %v937
  %v4010 = vunpack.c.l.b16 %v938
  %v4011 = vunpack.c.h.b16 %v938
  %v4012 = vunpack.c.l.b16 %v939
  %v4013 = vunpack.c.h.b16 %v939
  %v4014 = vunpack.c.l.b16 %v940
  %v4015 = vunpack.c.h.b16 %v940
  %v4016 = vunpack.c.l.b16 %v941
  %v4017 = vunpack.c.h.b16 %v941
  %v4018 = vunpack.c.l.b16 %v942
  %v4019 = vunpack.c.h.b16 %v942
  %v4020 = vunpack.c.l.b16 %v943
  %v4021 = vunpack.c.h.b16 %v943
  %v4022 = vunpack.c.l.b16 %v944
  %v4023 = vunpack.c.h.b16 %v944
  %v4024 = vunpack.c.l.b16 %v945
  %v4025 = vunpack.c.h.b16 %v945
  %v4026 = vunpack.c.l.b16 %v946
  %v4027 = vunpack.c.h.b16 %v946
  %v4028 = vunpack.c.l.b16 %v947
  %v4029 = vunpack.c.h.b16 %v947
  %v4030 = vunpack.c.l.b16 %v948
  %v4031 = vunpack.c.h.b16 %v948
  %v4032 = vunpack.c.l.b16 %v949
  %v4033 = vunpack.c.h.b16 %v949
  %v4034 = vunpack.c.l.b16 %v950
  %v4035 = vunpack.c.h.b16 %v950
  %v4036 = vunpack.c.l.b16 %v951
  %v4037 = vunpack.c.h.b16 %v951
  %v4038 = vunpack.c.l.b16 %v952
  %v4039 = vunpack.c.h.b16 %v952
  %v4040 = vunpack.c.l.b16 %v953
  %v4041 = vunpack.c.h.b16 %v953
  %v4042 = vunpack.c.l.b16 %v954
  %v4043 = vunpack.c.h.b16 %v954
  %v4044 = vunpack.c.l.b16 %v955
  %v4045 = vunpack.c.h.b16 %v955
  %v4046 = vunpack.c.l.b16 %v956
  %v4047 = vunpack.c.h.b16 %v956
  %v4048 = vunpack.c.l.b16 %v957
  %v4049 = vunpack.c.h.b16 %v957
  %v4050 = vunpack.c.l.b16 %v958
  %v4051 = vunpack.c.h.b16 %v958
  %v4052 = vunpack.c.l.b16 %v959
  %v4053 = vunpack.c.h.b16 %v959
  %v4054 = vunpack.c.l.b16 %v960
  %v4055 = vunpack.c.h.b16 %v960
  %v4056 = vunpack.c.l.b16 %v961
  %v4057 = vunpack.c.h.b16 %v961
  %v4058 = vunpack.c.l.b16 %v962
  %v4059 = vunpack.c.h.b16 %v962
  %v4060 = vunpack.c.l.b16 %v963
  %v4061 = vunpack.c.h.b16 %v963
  %v4062 = vunpack.c.l.b16 %v964
  %v4063 = vunpack.c.h.b16 %v964
  %v4064 = vunpack.c.l.b16 %v965
  %v4065 = vunpack.c.h.b16 %v965
  %v4066 = vunpack.c.l.b16 %v966
  %v4067 = vunpack.c.h.b16 %v966
  %v4068 = vunpack.c.l.b16 %v967
  %v4069 = vunpack.c.h.b16 %v967
  %v4070 = vunpack.c.l.b16 %v968
  %v4071 = vunpack.c.h.b16 %v968
  %v4072 = vunpack.c.l.b16 %v969
  %v4073 = vunpack.c.h.b16 %v969
  %v4074 = vunpack.c.l.b16 %v970
  %v4075 = vunpack.c.h.b16 %v970
  %v4076 = vunpack.c.l.b16 %v971
  %v4077 = vunpack.c.h.b16 %v971
  %v4078 = vunpack.c.l.b16 %v972
  %v4079 = vunpack.c.h.b16 %v972
  %v4080 = vunpack.c.l.b16 %v973
  %v4081 = vunpack.c.h.b16 %v973
  %v4082 = vunpack.c.l.b16 %v974
  %v4083 = vunpack.c.h.b16 %v974
  %v4084 = vunpack.c.l.b16 %v975
  %v4085 = vunpack.c.h.b16 %v975
  %v4086 = vunpack.c.l.b16 %v976
  %v4087 = vunpack.c.h.b16 %v976
  %v4088 = vunpack.c.l.b16 %v977
  %v4089 = vunpack.c.h.b16 %v977
  %v4090 = vunpack.c.l.b16 %v978
  %v4091 = vunpack.c.h.b16 %v978
  %v4092 = vunpack.c.l.b16 %v979
  %v4093 = vunpack.c.h.b16 %v979
  %v4094 = vunpack.c.l.b16 %v980
  %v4095 = vunpack.c.h.b16 %v980
  %v4096 = vunpack.c.l.b16 %v981
  %v4097 = vunpack.c.h.b16 %v981
  %v4098 = vunpack.c.l.b16 %v982
  %v4099 = vunpack.c.h.b16 %v982
  %v4100 = vunpack.c.l.b16 %v983
  %v4101 = vunpack.c.h.b16 %v983
  %v4102 = vunpack.c.l.b16 %v984
  %v4103 = vunpack.c.h.b16 %v984
  %v4104 = vunpack.c.l.b16 %v985
  %v4105 = vunpack.c.h.b16 %v985
  %v4106 = vunpack.c.l.b16 %v986
  %v4107 = vunpack.c.h.b16 %v986
  %v4108 = vunpack.c.l.b16 %v987
  %v4109 = vunpack.c.h.b16 %v987
  %v4110 = vunpack.c.l.b16 %v988
  %v4111 = vunpack.c.h.b16 %v988
  %v4112 = vunpack.c.l.b16 %v989
  %v4113 = vunpack.c.h.b16 %v989
  %v4114 = vunpack.c.l.b16 %v990
  %v4115 = vunpack.c.h.b16 %v990
  %v4116 = vunpack.c.l.b16 %v991
  %v4117 = vunpack.c.h.b16 %v991
  %v4118 = vunpack.c.l.b16 %v992
  %v4119 = vunpack.c.h.b16 %v992
  %v4120 = vunpack.c.l.b16 %v993
  %v4121 = vunpack.c.h.b16 %v993
  %v4122 = vunpack.c.l.b16 %v994
  %v4123 = vunpack.c.h.b16 %v994
  %v4124 = vunpack.c.l.b16 %v995
  %v4125 = vunpack.c.h.b16 %v995
  %v4126 = vunpack.c.l.b16 %v996
  %v4127 = vunpack.c.h.b16 %v996
  %v4128 = vunpack.c.l.b16 %v997
  %v4129 = vunpack.c.h.b16 %v997
  %v4130 = vunpack.c.l.b16 %v998
  %v4131 = vunpack.c.h.b16 %v998
  %v4132 = vunpack.c.l.b16 %v999
  %v4133 = vunpack.c.h.b16 %v999
  %v4134 = vunpack.c.l.b16 %v1000
  %v4135 = vunpack.c.h.b16 %v1000
  %v4136 = vunpack.c.l.b16 %v1001
  %v4137 = vunpack.c.h.b16 %v1001
  %v4138 = vunpack.c.l.b16 %v1002
  %v4139 = vunpack.c.h.b16 %v1002
  %v4140 = vunpack.c.l.b16 %v1003
  %v4141 = vunpack.c.h.b16 %v1003
  %v4142 = vunpack.c.l.b16 %v1004
  %v4143 = vunpack.c.h.b16 %v1004
  %v4144 = vunpack.c.l.b16 %v1005
  %v4145 = vunpack.c.h.b16 %v1005
  %v4146 = vunpack.c.l.b16 %v1006
  %v4147 = vunpack.c.h.b16 %v1006
  %v4148 = vunpack.c.l.b16 %v1007
  %v4149 = vunpack.c.h.b16 %v1007
  %v4150 = vunpack.c.l.b16 %v1008
  %v4151 = vunpack.c.h.b16 %v1008
  %v4152 = vunpack.c.l.b16 %v1009
  %v4153 = vunpack.c.h.b16 %v1009
  %v4154 = vunpack.c.l.b16 %v1010
  %v4155 = vunpack.c.h.b16 %v1010
  %v4156 = vunpack.c.l.b16 %v1011
  %v4157 = vunpack.c.h.b16 %v1011
  %v4158 = vunpack.c.l.b16 %v1012
  %v4159 = vunpack.c.h.b16 %v1012
  %v4160 = vunpack.c.l.b16 %v1013
  %v4161 = vunpack.c.h.b16 %v1013
  %v4162 = vunpack.c.l.b16 %v1014
  %v4163 = vunpack.c.h.b16 %v1014
  %v4164 = vunpack.c.l.b16 %v1015
  %v4165 = vunpack.c.h.b16 %v1015
  %v4166 = vunpack.c.l.b16 %v1016
  %v4167 = vunpack.c.h.b16 %v1016
  %v4168 = vunpack.c.l.b16 %v1017
  %v4169 = vunpack.c.h.b16 %v1017
  %v4170 = vunpack.c.l.b16 %v1018
  %v4171 = vunpack.c.h.b16 %v1018
  %v4172 = vunpack.c.l.b16 %v1019
  %v4173 = vunpack.c.h.b16 %v1019
  %v4174 = vunpack.c.l.b16 %v1020
  %v4175 = vunpack.c.h.b16 %v1020
  %v4176 = vunpack.c.l.b16 %v1021
  %v4177 = vunpack.c.h.b16 %v1021
  %v4178 = vunpack.c.l.b16 %v1022
  %v4179 = vunpack.c.h.b16 %v1022
  %v4180 = vunpack.c.l.b16 %v1023
  %v4181 = vunpack.c.h.b16 %v1023
  %v4182 = vunpack.c.l.b16 %v1024
  %v4183 = vunpack.c.h.b16 %v1024
  %v4184 = vunpack.c.l.b16 %v1025
  %v4185 = vunpack.c.h.b16 %v1025
  %v4186 = vunpack.c.l.b16 %v1026
  %v4187 = vunpack.c.h.b16 %v1026
  %v4188 = vunpack.c.l.b16 %v1027
  %v4189 = vunpack.c.h.b16 %v1027
  %v4190 = vunpack.c.l.b16 %v1028
  %v4191 = vunpack.c.h.b16 %v1028
  %v4192 = vunpack.c.l.b16 %v1029
  %v4193 = vunpack.c.h.b16 %v1029
  %v4194 = vunpack.c.l.b16 %v1030
  %v4195 = vunpack.c.h.b16 %v1030
  %v4196 = vunpack.c.l.b16 %v1031
  %v4197 = vunpack.c.h.b16 %v1031
  %v4198 = vunpack.c.l.b16 %v1032
  %v4199 = vunpack.c.h.b16 %v1032
  %v4200 = vunpack.c.l.b16 %v1033
  %v4201 = vunpack.c.h.b16 %v1033
  %v4202 = vunpack.c.l.b16 %v1034
  %v4203 = vunpack.c.h.b16 %v1034
  %v4204 = vunpack.c.l.b16 %v1035
  %v4205 = vunpack.c.h.b16 %v1035
  %v4206 = vunpack.c.l.b16 %v1036
  %v4207 = vunpack.c.h.b16 %v1036
  %v4208 = vunpack.c.l.b16 %v1037
  %v4209 = vunpack.c.h.b16 %v1037
  %v4210 = vunpack.c.l.b16 %v1038
  %v4211 = vunpack.c.h.b16 %v1038
  %v4212 = vunpack.c.l.b16 %v1039
  %v4213 = vunpack.c.h.b16 %v1039
  %v4214 = vunpack.c.l.b16 %v1040
  %v4215 = vunpack.c.h.b16 %v1040
  %v4216 = vunpack.c.l.b16 %v1041
  %v4217 = vunpack.c.h.b16 %v1041
  %v4218 = vunpack.c.l.b16 %v1042
  %v4219 = vunpack.c.h.b16 %v1042
  %v4220 = vunpack.c.l.b16 %v1043
  %v4221 = vunpack.c.h.b16 %v1043
  %v4222 = vunpack.c.l.b16 %v1044
  %v4223 = vunpack.c.h.b16 %v1044
  %v4224 = vunpack.c.l.b16 %v1045
  %v4225 = vunpack.c.h.b16 %v1045
  %v4226 = vunpack.c.l.b16 %v1046
  %v4227 = vunpack.c.h.b16 %v1046
  %v4228 = vunpack.c.l.b16 %v1047
  %v4229 = vunpack.c.h.b16 %v1047
  %v4230 = vunpack.c.l.b16 %v1048
  %v4231 = vunpack.c.h.b16 %v1048
  %v4232 = vunpack.c.l.b16 %v1049
  %v4233 = vunpack.c.h.b16 %v1049
  %v4234 = vunpack.c.l.b16 %v1050
  %v4235 = vunpack.c.h.b16 %v1050
  %v4236 = vunpack.c.l.b16 %v1051
  %v4237 = vunpack.c.h.b16 %v1051
  %v4238 = vunpack.c.l.b16 %v1052
  %v4239 = vunpack.c.h.b16 %v1052
  %v4240 = vunpack.c.l.b16 %v1053
  %v4241 = vunpack.c.h.b16 %v1053
  %v4242 = vunpack.c.l.b16 %v1054
  %v4243 = vunpack.c.h.b16 %v1054
  %v4244 = vunpack.c.l.b16 %v1055
  %v4245 = vunpack.c.h.b16 %v1055
  %v4246 = vunpack.c.l.b16 %v1056
  %v4247 = vunpack.c.h.b16 %v1056
  %v4248 = vunpack.c.l.b16 %v1057
  %v4249 = vunpack.c.h.b16 %v1057
  %v4250 = vunpack.c.l.b16 %v1058
  %v4251 = vunpack.c.h.b16 %v1058
  %v4252 = vunpack.c.l.b16 %v1059
  %v4253 = vunpack.c.h.b16 %v1059
  %v4254 = vpack.c.b16 %v2210, %v2206
  %v4255 = vpack.c.b16 %v2211, %v2207
  %v4256 = vpack.c.b16 %v2212, %v2208
  %v4257 = vpack.c.b16 %v2213, %v2209
  %v4258 = vpack.c.b16 %v2218, %v2214
  %v4259 = vpack.c.b16 %v2219, %v2215
  %v4260 = vpack.c.b16 %v2220, %v2216
  %v4261 = vpack.c.b16 %v2221, %v2217
  %v4262 = vpack.c.b16 %v2226, %v2222
  %v4263 = vpack.c.b16 %v2227, %v2223
  %v4264 = vpack.c.b16 %v2228, %v2224
  %v4265 = vpack.c.b16 %v2229, %v2225
  %v4266 = vpack.c.b16 %v2234, %v2230
  %v4267 = vpack.c.b16 %v2235, %v2231
  %v4268 = vpack.c.b16 %v2236, %v2232
  %v4269 = vpack.c.b16 %v2237, %v2233
  %v4270 = vpack.c.b16 %v2242, %v2238
  %v4271 = vpack.c.b16 %v2243, %v2239
  %v4272 = vpack.c.b16 %v2244, %v2240
  %v4273 = vpack.c.b16 %v2245, %v2241
  %v4274 = vpack.c.b16 %v2250, %v2246
  %v4275 = vpack.c.b16 %v2251, %v2247
  %v4276 = vpack.c.b16 %v2252, %v2248
  %v4277 = vpack.c.b16 %v2253, %v2249
  %v4278 = vpack.c.b16 %v2258, %v2254
  %v4279 = vpack.c.b16 %v2259, %v2255
  %v4280 = vpack.c.b16 %v2260, %v2256
  %v4281 = vpack.c.b16 %v2261, %v2257
  %v4282 = vpack.c.b16 %v2266, %v2262
  %v4283 = vpack.c.b16 %v2267, %v2263
  %v4284 = vpack.c.b16 %v2268, %v2264
  %v4285 = vpack.c.b16 %v2269, %v2265
  %v4286 = vpack.c.b16 %v2274, %v2270
  %v4287 = vpack.c.b16 %v2275, %v2271
  %v4288 = vpack.c.b16 %v2276, %v2272
  %v4289 = vpack.c.b16 %v2277, %v2273
  %v4290 = vpack.c.b16 %v2282, %v2278
  %v4291 = vpack.c.b16 %v2283, %v2279
  %v4292 = vpack.c.b16 %v2284, %v2280
  %v4293 = vpack.c.b16 %v2285, %v2281
  %v4294 = vpack.c.b16 %v2290, %v2286
  %v4295 = vpack.c.b16 %v2291, %v2287
  %v4296 = vpack.c.b16 %v2292, %v2288
  %v4297 = vpack.c.b16 %v2293, %v2289
  %v4298 = vpack.c.b16 %v2298, %v2294
  %v4299 = vpack.c.b16 %v2299, %v2295
  %v4300 = vpack.c.b16 %v2300, %v2296
  %v4301 = vpack.c.b16 %v2301, %v2297
  %v4302 = vpack.c.b16 %v2306, %v2302
  %v4303 = vpack.c.b16 %v2307, %v2303
  %v4304 = vpack.c.b16 %v2308, %v2304
  %v4305 = vpack.c.b16 %v2309, %v2305
  %v4306 = vpack.c.b16 %v2314, %v2310
  %v4307 = vpack.c.b16 %v2315, %v2311
  %v4308 = vpack.c.b16 %v2316, %v2312
  %v4309 = vpack.c.b16 %v2317, %v2313
  %v4310 = vpack.c.b16 %v2322, %v2318
  %v4311 = vpack.c.b16 %v2323, %v2319
  %v4312 = vpack.c.b16 %v2324, %v2320
  %v4313 = vpack.c.b16 %v2325, %v2321
  %v4314 = vpack.c.b16 %v2330, %v2326
  %v4315 = vpack.c.b16 %v2331, %v2327
  %v4316 = vpack.c.b16 %v2332, %v2328
  %v4317 = vpack.c.b16 %v2333, %v2329
  %v4318 = vpack.c.b16 %v2338, %v2334
  %v4319 = vpack.c.b16 %v2339, %v2335
  %v4320 = vpack.c.b16 %v2340, %v2336
  %v4321 = vpack.c.b16 %v2341, %v2337
  %v4322 = vpack.c.b16 %v2346, %v2342
  %v4323 = vpack.c.b16 %v2347, %v2343
  %v4324 = vpack.c.b16 %v2348, %v2344
  %v4325 = vpack.c.b16 %v2349, %v2345
  %v4326 = vpack.c.b16 %v2354, %v2350
  %v4327 = vpack.c.b16 %v2355, %v2351
  %v4328 = vpack.c.b16 %v2356, %v2352
  %v4329 = vpack.c.b16 %v2357, %v2353
  %v4330 = vpack.c.b16 %v2362, %v2358
  %v4331 = vpack.c.b16 %v2363, %v2359
  %v4332 = vpack.c.b16 %v2364, %v2360
  %v4333 = vpack.c.b16 %v2365, %v2361
  %v4334 = vpack.c.b16 %v2370, %v2366
  %v4335 = vpack.c.b16 %v2371, %v2367
  %v4336 = vpack.c.b16 %v2372, %v2368
  %v4337 = vpack.c.b16 %v2373, %v2369
  %v4338 = vpack.c.b16 %v2378, %v2374
  %v4339 = vpack.c.b16 %v2379, %v2375
  %v4340 = vpack.c.b16 %v2380, %v2376
  %v4341 = vpack.c.b16 %v2381, %v2377
  %v4342 = vpack.c.b16 %v2386, %v2382
  %v4343 = vpack.c.b16 %v2387, %v2383
  %v4344 = vpack.c.b16 %v2388, %v2384
  %v4345 = vpack.c.b16 %v2389, %v2385
  %v4346 = vpack.c.b16 %v2394, %v2390
  %v4347 = vpack.c.b16 %v2395, %v2391
  %v4348 = vpack.c.b16 %v2396, %v2392
  %v4349 = vpack.c.b16 %v2397, %v2393
  %v4350 = vpack.c.b16 %v2402, %v2398
  %v4351 = vpack.c.b16 %v2403, %v2399
  %v4352 = vpack.c.b16 %v2404, %v2400
  %v4353 = vpack.c.b16 %v2405, %v2401
  %v4354 = vpack.c.b16 %v2410, %v2406
  %v4355 = vpack.c.b16 %v2411, %v2407
  %v4356 = vpack.c.b16 %v2412, %v2408
  %v4357 = vpack.c.b16 %v2413, %v2409
  %v4358 = vpack.c.b16 %v2418, %v2414
  %v4359 = vpack.c.b16 %v2419, %v2415
  %v4360 = vpack.c.b16 %v2420, %v2416
  %v4361 = vpack.c.b16 %v2421, %v2417
  %v4362 = vpack.c.b16 %v2426, %v2422
  %v4363 = vpack.c.b16 %v2427, %v2423
  %v4364 = vpack.c.b16 %v2428, %v2424
  %v4365 = vpack.c.b16 %v2429, %v2425
  %v4366 = vpack.c.b16 %v2434, %v2430
  %v4367 = vpack.c.b16 %v2435, %v2431
  %v4368 = vpack.c.b16 %v2436, %v2432
  %v4369 = vpack.c.b16 %v2437, %v2433
  %v4370 = vpack.c.b16 %v2442, %v2438
  %v4371 = vpack.c.b16 %v2443, %v2439
  %v4372 = vpack.c.b16 %v2444, %v2440
  %v4373 = vpack.c.b16 %v2445, %v2441
  %v4374 = vpack.c.b16 %v2450, %v2446
  %v4375 = vpack.c.b16 %v2451, %v2447
  %v4376 = vpack.c.b16 %v2452, %v2448
  %v4377 = vpack.c.b16 %v2453, %v2449
  %v4378 = vpack.c.b16 %v2458, %v2454
  %v4379 = vpack.c.b16 %v2459, %v2455
  %v4380 = vpack.c.b16 %v2460, %v2456
  %v4381 = vpack.c.b16 %v2461, %v2457
  %v4382 = vpack.c.b16 %v2466, %v2462
  %v4383 = vpack.c.b16 %v2467, %v2463
  %v4384 = vpack.c.b16 %v2468, %v2464
  %v4385 = vpack.c.b16 %v2469, %v2465
  %v4386 = vpack.c.b16 %v2474, %v2470
  %v4387 = vpack.c.b16 %v2475, %v2471
  %v4388 = vpack.c.b16 %v2476, %v2472
  %v4389 = vpack.c.b16 %v2477, %v2473
  %v4390 = vpack.c.b16 %v2482, %v2478
  %v4391 = vpack.c.b16 %v2483, %v2479
  %v4392 = vpack.c.b16 %v2484, %v2480
  %v4393 = vpack.c.b16 %v2485, %v2481
  %v4394 = vpack.c.b16 %v2490, %v2486
  %v4395 = vpack.c.b16 %v2491, %v2487
  %v4396 = vpack.c.b16 %v2492, %v2488
  %v4397 = vpack.c.b16 %v2493, %v2489
  %v4398 = vpack.c.b16 %v2498, %v2494
  %v4399 = vpack.c.b16 %v2499, %v2495
  %v4400 = vpack.c.b16 %v2500, %v2496
  %v4401 = vpack.c.b16 %v2501, %v2497
  %v4402 = vpack.c.b16 %v2506, %v2502
  %v4403 = vpack.c.b16 %v2507, %v2503
  %v4404 = vpack.c.b16 %v2508, %v2504
  %v4405 = vpack.c.b16 %v2509, %v2505
  %v4406 = vpack.c.b16 %v2514, %v2510
  %v4407 = vpack.c.b16 %v2515, %v2511
  %v4408 = vpack.c.b16 %v2516, %v2512
  %v4409 = vpack.c.b16 %v2517, %v2513
  %v4410 = vpack.c.b16 %v2522, %v2518
  %v4411 = vpack.c.b16 %v2523, %v2519
  %v4412 = vpack.c.b16 %v2524, %v2520
  %v4413 = vpack.c.b16 %v2525, %v2521
  %v4414 = vpack.c.b16 %v2530, %v2526
  %v4415 = vpack.c.b16 %v2531, %v2527
  %v4416 = vpack.c.b16 %v2532, %v2528
  %v4417 = vpack.c.b16 %v2533, %v2529
  %v4418 = vpack.c.b16 %v2538, %v2534
  %v4419 = vpack.c.b16 %v2539, %v2535
  %v4420 = vpack.c.b16 %v2540, %v2536
  %v4421 = vpack.c.b16 %v2541, %v2537
  %v4422 = vpack.c.b16 %v2546, %v2542
  %v4423 = vpack.c.b16 %v2547, %v2543
  %v4424 = vpack.c.b16 %v2548, %v2544
  %v4425 = vpack.c.b16 %v2549, %v2545
  %v4426 = vpack.c.b16 %v2554, %v2550
  %v4427 = vpack.c.b16 %v2555, %v2551
  %v4428 = vpack.c.b16 %v2556, %v2552
  %v4429 = vpack.c.b16 %v2557, %v2553
  %v4430 = vpack.c.b16 %v2562, %v2558
  %v4431 = vpack.c.b16 %v2563, %v2559
  %v4432 = vpack.c.b16 %v2564, %v2560
  %v4433 = vpack.c.b16 %v2565, %v2561
  %v4434 = vpack.c.b16 %v2570, %v2566
  %v4435 = vpack.c.b16 %v2571, %v2567
  %v4436 = vpack.c.b16 %v2572, %v2568
  %v4437 = vpack.c.b16 %v2573, %v2569
  %v4438 = vpack.c.b16 %v2578, %v2574
  %v4439 = vpack.c.b16 %v2579, %v2575
  %v4440 = vpack.c.b16 %v2580, %v2576
  %v4441 = vpack.c.b16 %v2581, %v2577
  %v4442 = vpack.c.b16 %v2586, %v2582
  %v4443 = vpack.c.b16 %v2587, %v2583
  %v4444 = vpack.c.b16 %v2588, %v2584
  %v4445 = vpack.c.b16 %v2589, %v2585
  %v4446 = vpack.c.b16 %v2594, %v2590
  %v4447 = vpack.c.b16 %v2595, %v2591
  %v4448 = vpack.c.b16 %v2596, %v2592
  %v4449 = vpack.c.b16 %v2597, %v2593
  %v4450 = vpack.c.b16 %v2602, %v2598
  %v4451 = vpack.c.b16 %v2603, %v2599
  %v4452 = vpack.c.b16 %v2604, %v2600
  %v4453 = vpack.c.b16 %v2605, %v2601
  %v4454 = vpack.c.b16 %v2610, %v2606
  %v4455 = vpack.c.b16 %v2611, %v2607
  %v4456 = vpack.c.b16 %v2612, %v2608
  %v4457 = vpack.c.b16 %v2613, %v2609
  %v4458 = vpack.c.b16 %v2618, %v2614
  %v4459 = vpack.c.b16 %v2619, %v2615
  %v4460 = vpack.c.b16 %v2620, %v2616
  %v4461 = vpack.c.b16 %v2621, %v2617
  %v4462 = vpack.c.b16 %v2626, %v2622
  %v4463 = vpack.c.b16 %v2627, %v2623
  %v4464 = vpack.c.b16 %v2628, %v2624
  %v4465 = vpack.c.b16 %v2629, %v2625
  %v4466 = vpack.c.b16 %v2634, %v2630
  %v4467 = vpack.c.b16 %v2635, %v2631
  %v4468 = vpack.c.b16 %v2636, %v2632
  %v4469 = vpack.c.b16 %v2637, %v2633
  %v4470 = vpack.c.b16 %v2642, %v2638
  %v4471 = vpack.c.b16 %v2643, %v2639
  %v4472 = vpack.c.b16 %v2644, %v2640
  %v4473 = vpack.c.b16 %v2645, %v2641
  %v4474 = vpack.c.b16 %v2650, %v2646
  %v4475 = vpack.c.b16 %v2651, %v2647
  %v4476 = vpack.c.b16 %v2652, %v2648
  %v4477 = vpack.c.b16 %v2653, %v2649
  %v4478 = vpack.c.b16 %v2658, %v2654
  %v4479 = vpack.c.b16 %v2659, %v2655
  %v4480 = vpack.c.b16 %v2660, %v2656
  %v4481 = vpack.c.b16 %v2661, %v2657
  %v4482 = vpack.c.b16 %v2666, %v2662
  %v4483 = vpack.c.b16 %v2667, %v2663
  %v4484 = vpack.c.b16 %v2668, %v2664
  %v4485 = vpack.c.b16 %v2669, %v2665
  %v4486 = vpack.c.b16 %v2674, %v2670
  %v4487 = vpack.c.b16 %v2675, %v2671
  %v4488 = vpack.c.b16 %v2676, %v2672
  %v4489 = vpack.c.b16 %v2677, %v2673
  %v4490 = vpack.c.b16 %v2682, %v2678
  %v4491 = vpack.c.b16 %v2683, %v2679
  %v4492 = vpack.c.b16 %v2684, %v2680
  %v4493 = vpack.c.b16 %v2685, %v2681
  %v4494 = vpack.c.b16 %v2690, %v2686
  %v4495 = vpack.c.b16 %v2691, %v2687
  %v4496 = vpack.c.b16 %v2692, %v2688
  %v4497 = vpack.c.b16 %v2693, %v2689
  %v4498 = vpack.c.b16 %v2698, %v2694
  %v4499 = vpack.c.b16 %v2699, %v2695
  %v4500 = vpack.c.b16 %v2700, %v2696
  %v4501 = vpack.c.b16 %v2701, %v2697
  %v4502 = vpack.c.b16 %v2706, %v2702
  %v4503 = vpack.c.b16 %v2707, %v2703
  %v4504 = vpack.c.b16 %v2708, %v2704
  %v4505 = vpack.c.b16 %v2709, %v2705
  %v4506 = vpack.c.b16 %v2714, %v2710
  %v4507 = vpack.c.b16 %v2715, %v2711
  %v4508 = vpack.c.b16 %v2716, %v2712
  %v4509 = vpack.c.b16 %v2717, %v2713
  %v4510 = vpack.c.b16 %v2722, %v2718
  %v4511 = vpack.c.b16 %v2723, %v2719
  %v4512 = vpack.c.b16 %v2724, %v2720
  %v4513 = vpack.c.b16 %v2725, %v2721
  %v4514 = vpack.c.b16 %v2730, %v2726
  %v4515 = vpack.c.b16 %v2731, %v2727
  %v4516 = vpack.c.b16 %v2732, %v2728
  %v4517 = vpack.c.b16 %v2733, %v2729
  %v4518 = vpack.c.b16 %v2738, %v2734
  %v4519 = vpack.c.b16 %v2739, %v2735
  %v4520 = vpack.c.b16 %v2740, %v2736
  %v4521 = vpack.c.b16 %v2741, %v2737
  %v4522 = vpack.c.b16 %v2746, %v2742
  %v4523 = vpack.c.b16 %v2747, %v2743
  %v4524 = vpack.c.b16 %v2748, %v2744
  %v4525 = vpack.c.b16 %v2749, %v2745
  %v4526 = vpack.c.b16 %v2754, %v2750
  %v4527 = vpack.c.b16 %v2755, %v2751
  %v4528 = vpack.c.b16 %v2756, %v2752
  %v4529 = vpack.c.b16 %v2757, %v2753
  %v4530 = vpack.c.b16 %v2762, %v2758
  %v4531 = vpack.c.b16 %v2763, %v2759
  %v4532 = vpack.c.b16 %v2764, %v2760
  %v4533 = vpack.c.b16 %v2765, %v2761
  %v4534 = vpack.c.b16 %v2770, %v2766
  %v4535 = vpack.c.b16 %v2771, %v2767
  %v4536 = vpack.c.b16 %v2772, %v2768
  %v4537 = vpack.c.b16 %v2773, %v2769
  %v4538 = vpack.c.b16 %v2778, %v2774
  %v4539 = vpack.c.b16 %v2779, %v2775
  %v4540 = vpack.c.b16 %v2780, %v2776
  %v4541 = vpack.c.b16 %v2781, %v2777
  %v4542 = vpack.c.b16 %v2786, %v2782
  %v4543 = vpack.c.b16 %v2787, %v2783
  %v4544 = vpack.c.b16 %v2788, %v2784
  %v4545 = vpack.c.b16 %v2789, %v2785
  %v4546 = vpack.c.b16 %v2794, %v2790
  %v4547 = vpack.c.b16 %v2795, %v2791
  %v4548 = vpack.c.b16 %v2796, %v2792
  %v4549 = vpack.c.b16 %v2797, %v2793
  %v4550 = vpack.c.b16 %v2802, %v2798
  %v4551 = vpack.c.b16 %v2803, %v2799
  %v4552 = vpack.c.b16 %v2804, %v2800
  %v4553 = vpack.c.b16 %v2805, %v2801
  %v4554 = vpack.c.b16 %v2810, %v2806
  %v4555 = vpack.c.b16 %v2811, %v2807
  %v4556 = vpack.c.b16 %v2812, %v2808
  %v4557 = vpack.c.b16 %v2813, %v2809
  %v4558 = vpack.c.b16 %v2818, %v2814
  %v4559 = vpack.c.b16 %v2819, %v2815
  %v4560 = vpack.c.b16 %v2820, %v2816
  %v4561 = vpack.c.b16 %v2821, %v2817
  %v4562 = vpack.c.b16 %v2826, %v2822
  %v4563 = vpack.c.b16 %v2827, %v2823
  %v4564 = vpack.c.b16 %v2828, %v2824
  %v4565 = vpack.c.b16 %v2829, %v2825
  %v4566 = vpack.c.b16 %v2834, %v2830
  %v4567 = vpack.c.b16 %v2835, %v2831
  %v4568 = vpack.c.b16 %v2836, %v2832
  %v4569 = vpack.c.b16 %v2837, %v2833
  %v4570 = vpack.c.b16 %v2842, %v2838
  %v4571 = vpack.c.b16 %v2843, %v2839
  %v4572 = vpack.c.b16 %v2844, %v2840
  %v4573 = vpack.c.b16 %v2845, %v2841
  %v4574 = vpack.c.b16 %v2850, %v2846
  %v4575 = vpack.c.b16 %v2851, %v2847
  %v4576 = vpack.c.b16 %v2852, %v2848
  %v4577 = vpack.c.b16 %v2853, %v2849
  %v4578 = vpack.c.b16 %v2858, %v2854
  %v4579 = vpack.c.b16 %v2859, %v2855
  %v4580 = vpack.c.b16 %v2860, %v2856
  %v4581 = vpack.c.b16 %v2861, %v2857
  %v4582 = vpack.c.b16 %v2866, %v2862
  %v4583 = vpack.c.b16 %v2867, %v2863
  %v4584 = vpack.c.b16 %v2868, %v2864
  %v4585 = vpack.c.b16 %v2869, %v2865
  %v4586 = vpack.c.b16 %v2874, %v2870
  %v4587 = vpack.c.b16 %v2875, %v2871
  %v4588 = vpack.c.b16 %v2876, %v2872
  %v4589 = vpack.c.b16 %v2877, %v2873
  %v4590 = vpack.c.b16 %v2882, %v2878
  %v4591 = vpack.c.b16 %v2883, %v2879
  %v4592 = vpack.c.b16 %v2884, %v2880
  %v4593 = vpack.c.b16 %v2885, %v2881
  %v4594 = vpack.c.b16 %v2890, %v2886
  %v4595 = vpack.c.b16 %v2891, %v2887
  %v4596 = vpack.c.b16 %v2892, %v2888
  %v4597 = vpack.c.b16 %v2893, %v2889
  %v4598 = vpack.c.b16 %v2898, %v2894
  %v4599 = vpack.c.b16 %v2899, %v2895
  %v4600 = vpack.c.b16 %v2900, %v2896
  %v4601 = vpack.c.b16 %v2901, %v2897
  %v4602 = vpack.c.b16 %v2906, %v2902
  %v4603 = vpack.c.b16 %v2907, %v2903
  %v4604 = vpack.c.b16 %v2908, %v2904
  %v4605 = vpack.c.b16 %v2909, %v2905
  %v4606 = vpack.c.b16 %v2914, %v2910
  %v4607 = vpack.c.b16 %v2915, %v2911
  %v4608 = vpack.c.b16 %v2916, %v2912
  %v4609 = vpack.c.b16 %v2917, %v2913
  %v4610 = vpack.c.b16 %v2922, %v2918
  %v4611 = vpack.c.b16 %v2923, %v2919
  %v4612 = vpack.c.b16 %v2924, %v2920
  %v4613 = vpack.c.b16 %v2925, %v2921
  %v4614 = vpack.c.b16 %v2930, %v2926
  %v4615 = vpack.c.b16 %v2931, %v2927
  %v4616 = vpack.c.b16 %v2932, %v2928
  %v4617 = vpack.c.b16 %v2933, %v2929
  %v4618 = vpack.c.b16 %v2938, %v2934
  %v4619 = vpack.c.b16 %v2939, %v2935
  %v4620 = vpack.c.b16 %v2940, %v2936
  %v4621 = vpack.c.b16 %v2941, %v2937
  %v4622 = vpack.c.b16 %v2946, %v2942
  %v4623 = vpack.c.b16 %v2947, %v2943
  %v4624 = vpack.c.b16 %v2948, %v2944
  %v4625 = vpack.c.b16 %v2949, %v2945
  %v4626 = vpack.c.b16 %v2954, %v2950
  %v4627 = vpack.c.b16 %v2955, %v2951
  %v4628 = vpack.c.b16 %v2956, %v2952
  %v4629 = vpack.c.b16 %v2957, %v2953
  %v4630 = vpack.c.b16 %v2962, %v2958
  %v4631 = vpack.c.b16 %v2963, %v2959
  %v4632 = vpack.c.b16 %v2964, %v2960
  %v4633 = vpack.c.b16 %v2965, %v2961
  %v4634 = vpack.c.b16 %v2970, %v2966
  %v4635 = vpack.c.b16 %v2971, %v2967
  %v4636 = vpack.c.b16 %v2972, %v2968
  %v4637 = vpack.c.b16 %v2973, %v2969
  %v4638 = vpack.c.b16 %v2978, %v2974
  %v4639 = vpack.c.b16 %v2979, %v2975
  %v4640 = vpack.c.b16 %v2980, %v2976
  %v4641 = vpack.c.b16 %v2981, %v2977
  %v4642 = vpack.c.b16 %v2986, %v2982
  %v4643 = vpack.c.b16 %v2987, %v2983
  %v4644 = vpack.c.b16 %v2988, %v2984
  %v4645 = vpack.c.b16 %v2989, %v2985
  %v4646 = vpack.c.b16 %v2994, %v2990
  %v4647 = vpack.c.b16 %v2995, %v2991
  %v4648 = vpack.c.b16 %v2996, %v2992
  %v4649 = vpack.c.b16 %v2997, %v2993
  %v4650 = vpack.c.b16 %v3002, %v2998
  %v4651 = vpack.c.b16 %v3003, %v2999
  %v4652 = vpack.c.b16 %v3004, %v3000
  %v4653 = vpack.c.b16 %v3005, %v3001
  %v4654 = vpack.c.b16 %v3010, %v3006
  %v4655 = vpack.c.b16 %v3011, %v3007
  %v4656 = vpack.c.b16 %v3012, %v3008
  %v4657 = vpack.c.b16 %v3013, %v3009
  %v4658 = vpack.c.b16 %v3018, %v3014
  %v4659 = vpack.c.b16 %v3019, %v3015
  %v4660 = vpack.c.b16 %v3020, %v3016
  %v4661 = vpack.c.b16 %v3021, %v3017
  %v4662 = vpack.c.b16 %v3026, %v3022
  %v4663 = vpack.c.b16 %v3027, %v3023
  %v4664 = vpack.c.b16 %v3028, %v3024
  %v4665 = vpack.c.b16 %v3029, %v3025
  %v4666 = vpack.c.b16 %v3034, %v3030
  %v4667 = vpack.c.b16 %v3035, %v3031
  %v4668 = vpack.c.b16 %v3036, %v3032
  %v4669 = vpack.c.b16 %v3037, %v3033
  %v4670 = vpack.c.b16 %v3042, %v3038
  %v4671 = vpack.c.b16 %v3043, %v3039
  %v4672 = vpack.c.b16 %v3044, %v3040
  %v4673 = vpack.c.b16 %v3045, %v3041
  %v4674 = vpack.c.b16 %v3050, %v3046
  %v4675 = vpack.c.b16 %v3051, %v3047
  %v4676 = vpack.c.b16 %v3052, %v3048
  %v4677 = vpack.c.b16 %v3053, %v3049
  %v4678 = vpack.c.b16 %v3058, %v3054
  %v4679 = vpack.c.b16 %v3059, %v3055
  %v4680 = vpack.c.b16 %v3060, %v3056
  %v4681 = vpack.c.b16 %v3061, %v3057
  %v4682 = vpack.c.b16 %v3066, %v3062
  %v4683 = vpack.c.b16 %v3067, %v3063
  %v4684 = vpack.c.b16 %v3068, %v3064
  %v4685 = vpack.c.b16 %v3069, %v3065
  %v4686 = vpack.c.b16 %v3074, %v3070
  %v4687 = vpack.c.b16 %v3075, %v3071
  %v4688 = vpack.c.b16 %v3076, %v3072
  %v4689 = vpack.c.b16 %v3077, %v3073
  %v4690 = vpack.c.b16 %v3082, %v3078
  %v4691 = vpack.c.b16 %v3083, %v3079
  %v4692 = vpack.c.b16 %v3084, %v3080
  %v4693 = vpack.c.b16 %v3085, %v3081
  %v4694 = vpack.c.b16 %v3090, %v3086
  %v4695 = vpack.c.b16 %v3091, %v3087
  %v4696 = vpack.c.b16 %v3092, %v3088
  %v4697 = vpack.c.b16 %v3093, %v3089
  %v4698 = vpack.c.b16 %v3098, %v3094
  %v4699 = vpack.c.b16 %v3099, %v3095
  %v4700 = vpack.c.b16 %v3100, %v3096
  %v4701 = vpack.c.b16 %v3101, %v3097
  %v4702 = vpack.c.b16 %v3106, %v3102
  %v4703 = vpack.c.b16 %v3107, %v3103
  %v4704 = vpack.c.b16 %v3108, %v3104
  %v4705 = vpack.c.b16 %v3109, %v3105
  %v4706 = vpack.c.b16 %v3114, %v3110
  %v4707 = vpack.c.b16 %v3115, %v3111
  %v4708 = vpack.c.b16 %v3116, %v3112
  %v4709 = vpack.c.b16 %v3117, %v3113
  %v4710 = vpack.c.b16 %v3122, %v3118
  %v4711 = vpack.c.b16 %v3123, %v3119
  %v4712 = vpack.c.b16 %v3124, %v3120
  %v4713 = vpack.c.b16 %v3125, %v3121
  %v4714 = vpack.c.b16 %v3130, %v3126
  %v4715 = vpack.c.b16 %v3131, %v3127
  %v4716 = vpack.c.b16 %v3132, %v3128
  %v4717 = vpack.c.b16 %v3133, %v3129
  %v4718 = vpack.c.b16 %v3138, %v3134
  %v4719 = vpack.c.b16 %v3139, %v3135
  %v4720 = vpack.c.b16 %v3140, %v3136
  %v4721 = vpack.c.b16 %v3141, %v3137
  %v4722 = vpack.c.b16 %v3146, %v3142
  %v4723 = vpack.c.b16 %v3147, %v3143
  %v4724 = vpack.c.b16 %v3148, %v3144
  %v4725 = vpack.c.b16 %v3149, %v3145
  %v4726 = vpack.c.b16 %v3154, %v3150
  %v4727 = vpack.c.b16 %v3155, %v3151
  %v4728 = vpack.c.b16 %v3156, %v3152
  %v4729 = vpack.c.b16 %v3157, %v3153
  %v4730 = vpack.c.b16 %v3162, %v3158
  %v4731 = vpack.c.b16 %v3163, %v3159
  %v4732 = vpack.c.b16 %v3164, %v3160
  %v4733 = vpack.c.b16 %v3165, %v3161
  %v4734 = vpack.c.b16 %v3170, %v3166
  %v4735 = vpack.c.b16 %v3171, %v3167
  %v4736 = vpack.c.b16 %v3172, %v3168
  %v4737 = vpack.c.b16 %v3173, %v3169
  %v4738 = vpack.c.b16 %v3178, %v3174
  %v4739 = vpack.c.b16 %v3179, %v3175
  %v4740 = vpack.c.b16 %v3180, %v3176
  %v4741 = vpack.c.b16 %v3181, %v3177
  %v4742 = vpack.c.b16 %v3186, %v3182
  %v4743 = vpack.c.b16 %v3187, %v3183
  %v4744 = vpack.c.b16 %v3188, %v3184
  %v4745 = vpack.c.b16 %v3189, %v3185
  %v4746 = vpack.c.b16 %v3194, %v3190
  %v4747 = vpack.c.b16 %v3195, %v3191
  %v4748 = vpack.c.b16 %v3196, %v3192
  %v4749 = vpack.c.b16 %v3197, %v3193
  %v4750 = vpack.c.b16 %v3202, %v3198
  %v4751 = vpack.c.b16 %v3203, %v3199
  %v4752 = vpack.c.b16 %v3204, %v3200
  %v4753 = vpack.c.b16 %v3205, %v3201
  %v4754 = vpack.c.b16 %v3210, %v3206
  %v4755 = vpack.c.b16 %v3211, %v3207
  %v4756 = vpack.c.b16 %v3212, %v3208
  %v4757 = vpack.c.b16 %v3213, %v3209
  %v4758 = vpack.c.b16 %v3218, %v3214
  %v4759 = vpack.c.b16 %v3219, %v3215
  %v4760 = vpack.c.b16 %v3220, %v3216
  %v4761 = vpack.c.b16 %v3221, %v3217
  %v4762 = vpack.c.b16 %v3226, %v3222
  %v4763 = vpack.c.b16 %v3227, %v3223
  %v4764 = vpack.c.b16 %v3228, %v3224
  %v4765 = vpack.c.b16 %v3229, %v3225
  %v4766 = vpack.c.b16 %v3234, %v3230
  %v4767 = vpack.c.b16 %v3235, %v3231
  %v4768 = vpack.c.b16 %v3236, %v3232
  %v4769 = vpack.c.b16 %v3237, %v3233
  %v4770 = vpack.c.b16 %v3242, %v3238
  %v4771 = vpack.c.b16 %v3243, %v3239
  %v4772 = vpack.c.b16 %v3244, %v3240
  %v4773 = vpack.c.b16 %v3245, %v3241
  %v4774 = vpack.c.b16 %v3250, %v3246
  %v4775 = vpack.c.b16 %v3251, %v3247
  %v4776 = vpack.c.b16 %v3252, %v3248
  %v4777 = vpack.c.b16 %v3253, %v3249
  %v4778 = vpack.c.b16 %v3258, %v3254
  %v4779 = vpack.c.b16 %v3259, %v3255
  %v4780 = vpack.c.b16 %v3260, %v3256
  %v4781 = vpack.c.b16 %v3261, %v3257
  %v4782 = vpack.c.b16 %v3266, %v3262
  %v4783 = vpack.c.b16 %v3267, %v3263
  %v4784 = vpack.c.b16 %v3268, %v3264
  %v4785 = vpack.c.b16 %v3269, %v3265
  %v4786 = vpack.c.b16 %v3274, %v3270
  %v4787 = vpack.c.b16 %v3275, %v3271
  %v4788 = vpack.c.b16 %v3276, %v3272
  %v4789 = vpack.c.b16 %v3277, %v3273
  %v4790 = vpack.c.b16 %v3282, %v3278
  %v4791 = vpack.c.b16 %v3283, %v3279
  %v4792 = vpack.c.b16 %v3284, %v3280
  %v4793 = vpack.c.b16 %v3285, %v3281
  %v4794 = vpack.c.b16 %v3290, %v3286
  %v4795 = vpack.c.b16 %v3291, %v3287
  %v4796 = vpack.c.b16 %v3292, %v3288
  %v4797 = vpack.c.b16 %v3293, %v3289
  %v4798 = vpack.c.b16 %v3298, %v3294
  %v4799 = vpack.c.b16 %v3299, %v3295
  %v4800 = vpack.c.b16 %v3300, %v3296
  %v4801 = vpack.c.b16 %v3301, %v3297
  %v4802 = vpack.c.b16 %v3306, %v3302
  %v4803 = vpack.c.b16 %v3307, %v3303
  %v4804 = vpack.c.b16 %v3308, %v3304
  %v4805 = vpack.c.b16 %v3309, %v3305
  %v4806 = vpack.c.b16 %v3314, %v3310
  %v4807 = vpack.c.b16 %v3315, %v3311
  %v4808 = vpack.c.b16 %v3316, %v3312
  %v4809 = vpack.c.b16 %v3317, %v3313
  %v4810 = vpack.c.b16 %v3322, %v3318
  %v4811 = vpack.c.b16 %v3323, %v3319
  %v4812 = vpack.c.b16 %v3324, %v3320
  %v4813 = vpack.c.b16 %v3325, %v3321
  %v4814 = vpack.c.b16 %v3330, %v3326
  %v4815 = vpack.c.b16 %v3331, %v3327
  %v4816 = vpack.c.b16 %v3332, %v3328
  %v4817 = vpack.c.b16 %v3333, %v3329
  %v4818 = vpack.c.b16 %v3338, %v3334
  %v4819 = vpack.c.b16 %v3339, %v3335
  %v4820 = vpack.c.b16 %v3340, %v3336
  %v4821 = vpack.c.b16 %v3341, %v3337
  %v4822 = vpack.c.b16 %v3346, %v3342
  %v4823 = vpack.c.b16 %v3347, %v3343
  %v4824 = vpack.c.b16 %v3348, %v3344
  %v4825 = vpack.c.b16 %v3349, %v3345
  %v4826 = vpack.c.b16 %v3354, %v3350
  %v4827 = vpack.c.b16 %v3355, %v3351
  %v4828 = vpack.c.b16 %v3356, %v3352
  %v4829 = vpack.c.b16 %v3357, %v3353
  %v4830 = vpack.c.b16 %v3362, %v3358
  %v4831 = vpack.c.b16 %v3363, %v3359
  %v4832 = vpack.c.b16 %v3364, %v3360
  %v4833 = vpack.c.b16 %v3365, %v3361
  %v4834 = vpack.c.b16 %v3370, %v3366
  %v4835 = vpack.c.b16 %v3371, %v3367
  %v4836 = vpack.c.b16 %v3372, %v3368
  %v4837 = vpack.c.b16 %v3373, %v3369
  %v4838 = vpack.c.b16 %v3378, %v3374
  %v4839 = vpack.c.b16 %v3379, %v3375
  %v4840 = vpack.c.b16 %v3380, %v3376
  %v4841 = vpack.c.b16 %v3381, %v3377
  %v4842 = vpack.c.b16 %v3386, %v3382
  %v4843 = vpack.c.b16 %v3387, %v3383
  %v4844 = vpack.c.b16 %v3388, %v3384
  %v4845 = vpack.c.b16 %v3389, %v3385
  %v4846 = vpack.c.b16 %v3394, %v3390
  %v4847 = vpack.c.b16 %v3395, %v3391
  %v4848 = vpack.c.b16 %v3396, %v3392
  %v4849 = vpack.c.b16 %v3397, %v3393
  %v4850 = vpack.c.b16 %v3402, %v3398
  %v4851 = vpack.c.b16 %v3403, %v3399
  %v4852 = vpack.c.b16 %v3404, %v3400
  %v4853 = vpack.c.b16 %v3405, %v3401
  %v4854 = vpack.c.b16 %v3410, %v3406
  %v4855 = vpack.c.b16 %v3411, %v3407
  %v4856 = vpack.c.b16 %v3412, %v3408
  %v4857 = vpack.c.b16 %v3413, %v3409
  %v4858 = vpack.c.b16 %v3418, %v3414
  %v4859 = vpack.c.b16 %v3419, %v3415
  %v4860 = vpack.c.b16 %v3420, %v3416
  %v4861 = vpack.c.b16 %v3421, %v3417
  %v4862 = vpack.c.b16 %v3426, %v3422
  %v4863 = vpack.c.b16 %v3427, %v3423
  %v4864 = vpack.c.b16 %v3428, %v3424
  %v4865 = vpack.c.b16 %v3429, %v3425
  %v4866 = vpack.c.b16 %v3434, %v3430
  %v4867 = vpack.c.b16 %v3435, %v3431
  %v4868 = vpack.c.b16 %v3436, %v3432
  %v4869 = vpack.c.b16 %v3437, %v3433
  %v4870 = vpack.c.b16 %v3442, %v3438
  %v4871 = vpack.c.b16 %v3443, %v3439
  %v4872 = vpack.c.b16 %v3444, %v3440
  %v4873 = vpack.c.b16 %v3445, %v3441
  %v4874 = vpack.c.b16 %v3450, %v3446
  %v4875 = vpack.c.b16 %v3451, %v3447
  %v4876 = vpack.c.b16 %v3452, %v3448
  %v4877 = vpack.c.b16 %v3453, %v3449
  %v4878 = vpack.c.b16 %v3458, %v3454
  %v4879 = vpack.c.b16 %v3459, %v3455
  %v4880 = vpack.c.b16 %v3460, %v3456
  %v4881 = vpack.c.b16 %v3461, %v3457
  %v4882 = vpack.c.b16 %v3466, %v3462
  %v4883 = vpack.c.b16 %v3467, %v3463
  %v4884 = vpack.c.b16 %v3468, %v3464
  %v4885 = vpack.c.b16 %v3469, %v3465
  %v4886 = vpack.c.b16 %v3474, %v3470
  %v4887 = vpack.c.b16 %v3475, %v3471
  %v4888 = vpack.c.b16 %v3476, %v3472
  %v4889 = vpack.c.b16 %v3477, %v3473
  %v4890 = vpack.c.b16 %v3482, %v3478
  %v4891 = vpack.c.b16 %v3483, %v3479
  %v4892 = vpack.c.b16 %v3484, %v3480
  %v4893 = vpack.c.b16 %v3485, %v3481
  %v4894 = vpack.c.b16 %v3490, %v3486
  %v4895 = vpack.c.b16 %v3491, %v3487
  %v4896 = vpack.c.b16 %v3492, %v3488
  %v4897 = vpack.c.b16 %v3493, %v3489
  %v4898 = vpack.c.b16 %v3498, %v3494
  %v4899 = vpack.c.b16 %v3499, %v3495
  %v4900 = vpack.c.b16 %v3500, %v3496
  %v4901 = vpack.c.b16 %v3501, %v3497
  %v4902 = vpack.c.b16 %v3506, %v3502
  %v4903 = vpack.c.b16 %v3507, %v3503
  %v4904 = vpack.c.b16 %v3508, %v3504
  %v4905 = vpack.c.b16 %v3509, %v3505
  %v4906 = vpack.c.b16 %v3514, %v3510
  %v4907 = vpack.c.b16 %v3515, %v3511
  %v4908 = vpack.c.b16 %v3516, %v3512
  %v4909 = vpack.c.b16 %v3517, %v3513
  %v4910 = vpack.c.b16 %v3522, %v3518
  %v4911 = vpack.c.b16 %v3523, %v3519
  %v4912 = vpack.c.b16 %v3524, %v3520
  %v4913 = vpack.c.b16 %v3525, %v3521
  %v4914 = vpack.c.b16 %v3530, %v3526
  %v4915 = vpack.c.b16 %v3531, %v3527
  %v4916 = vpack.c.b16 %v3532, %v3528
  %v4917 = vpack.c.b16 %v3533, %v3529
  %v4918 = vpack.c.b16 %v3538, %v3534
  %v4919 = vpack.c.b16 %v3539, %v3535
  %v4920 = vpack.c.b16 %v3540, %v3536
  %v4921 = vpack.c.b16 %v3541, %v3537
  %v4922 = vpack.c.b16 %v3546, %v3542
  %v4923 = vpack.c.b16 %v3547, %v3543
  %v4924 = vpack.c.b16 %v3548, %v3544
  %v4925 = vpack.c.b16 %v3549, %v3545
  %v4926 = vpack.c.b16 %v3554, %v3550
  %v4927 = vpack.c.b16 %v3555, %v3551
  %v4928 = vpack.c.b16 %v3556, %v3552
  %v4929 = vpack.c.b16 %v3557, %v3553
  %v4930 = vpack.c.b16 %v3562, %v3558
  %v4931 = vpack.c.b16 %v3563, %v3559
  %v4932 = vpack.c.b16 %v3564, %v3560
  %v4933 = vpack.c.b16 %v3565, %v3561
  %v4934 = vpack.c.b16 %v3570, %v3566
  %v4935 = vpack.c.b16 %v3571, %v3567
  %v4936 = vpack.c.b16 %v3572, %v3568
  %v4937 = vpack.c.b16 %v3573, %v3569
  %v4938 = vpack.c.b16 %v3578, %v3574
  %v4939 = vpack.c.b16 %v3579, %v3575
  %v4940 = vpack.c.b16 %v3580, %v3576
  %v4941 = vpack.c.b16 %v3581, %v3577
  %v4942 = vpack.c.b16 %v3586, %v3582
  %v4943 = vpack.c.b16 %v3587, %v3583
  %v4944 = vpack.c.b16 %v3588, %v3584
  %v4945 = vpack.c.b16 %v3589, %v3585
  %v4946 = vpack.c.b16 %v3594, %v3590
  %v4947 = vpack.c.b16 %v3595, %v3591
  %v4948 = vpack.c.b16 %v3596, %v3592
  %v4949 = vpack.c.b16 %v3597, %v3593
  %v4950 = vpack.c.b16 %v3602, %v3598
  %v4951 = vpack.c.b16 %v3603, %v3599
  %v4952 = vpack.c.b16 %v3604, %v3600
  %v4953 = vpack.c.b16 %v3605, %v3601
  %v4954 = vpack.c.b16 %v3610, %v3606
  %v4955 = vpack.c.b16 %v3611, %v3607
  %v4956 = vpack.c.b16 %v3612, %v3608
  %v4957 = vpack.c.b16 %v3613, %v3609
  %v4958 = vpack.c.b16 %v3618, %v3614
  %v4959 = vpack.c.b16 %v3619, %v3615
  %v4960 = vpack.c.b16 %v3620, %v3616
  %v4961 = vpack.c.b16 %v3621, %v3617
  %v4962 = vpack.c.b16 %v3626, %v3622
  %v4963 = vpack.c.b16 %v3627, %v3623
  %v4964 = vpack.c.b16 %v3628, %v3624
  %v4965 = vpack.c.b16 %v3629, %v3625
  %v4966 = vpack.c.b16 %v3634, %v3630
  %v4967 = vpack.c.b16 %v3635, %v3631
  %v4968 = vpack.c.b16 %v3636, %v3632
  %v4969 = vpack.c.b16 %v3637, %v3633
  %v4970 = vpack.c.b16 %v3642, %v3638
  %v4971 = vpack.c.b16 %v3643, %v3639
  %v4972 = vpack.c.b16 %v3644, %v3640
  %v4973 = vpack.c.b16 %v3645, %v3641
  %v4974 = vpack.c.b16 %v3650, %v3646
  %v4975 = vpack.c.b16 %v3651, %v3647
  %v4976 = vpack.c.b16 %v3652, %v3648
  %v4977 = vpack.c.b16 %v3653, %v3649
  %v4978 = vpack.c.b16 %v3658, %v3654
  %v4979 = vpack.c.b16 %v3659, %v3655
  %v4980 = vpack.c.b16 %v3660, %v3656
  %v4981 = vpack.c.b16 %v3661, %v3657
  %v4982 = vpack.c.b16 %v3666, %v3662
  %v4983 = vpack.c.b16 %v3667, %v3663
  %v4984 = vpack.c.b16 %v3668, %v3664
  %v4985 = vpack.c.b16 %v3669, %v3665
  %v4986 = vpack.c.b16 %v3674, %v3670
  %v4987 = vpack.c.b16 %v3675, %v3671
  %v4988 = vpack.c.b16 %v3676, %v3672
  %v4989 = vpack.c.b16 %v3677, %v3673
  %v4990 = vpack.c.b16 %v3682, %v3678
  %v4991 = vpack.c.b16 %v3683, %v3679
  %v4992 = vpack.c.b16 %v3684, %v3680
  %v4993 = vpack.c.b16 %v3685, %v3681
  %v4994 = vpack.c.b16 %v3690, %v3686
  %v4995 = vpack.c.b16 %v3691, %v3687
  %v4996 = vpack.c.b16 %v3692, %v3688
  %v4997 = vpack.c.b16 %v3693, %v3689
  %v4998 = vpack.c.b16 %v3698, %v3694
  %v4999 = vpack.c.b16 %v3699, %v3695
  %v5000 = vpack.c.b16 %v3700, %v3696
  %v5001 = vpack.c.b16 %v3701, %v3697
  %v5002 = vpack.c.b16 %v3706, %v3702
  %v5003 = vpack.c.b16 %v3707, %v3703
  %v5004 = vpack.c.b16 %v3708, %v3704
  %v5005 = vpack.c.b16 %v3709, %v3705
  %v5006 = vpack.c.b16 %v3714, %v3710
  %v5007 = vpack.c.b16 %v3715, %v3711
  %v5008 = vpack.c.b16 %v3716, %v3712
  %v5009 = vpack.c.b16 %v3717, %v3713
  %v5010 = vpack.c.b16 %v3722, %v3718
  %v5011 = vpack.c.b16 %v3723, %v3719
  %v5012 = vpack.c.b16 %v3724, %v3720
  %v5013 = vpack.c.b16 %v3725, %v3721
  %v5014 = vpack.c.b16 %v3730, %v3726
  %v5015 = vpack.c.b16 %v3731, %v3727
  %v5016 = vpack.c.b16 %v3732, %v3728
  %v5017 = vpack.c.b16 %v3733, %v3729
  %v5018 = vpack.c.b16 %v3738, %v3734
  %v5019 = vpack.c.b16 %v3739, %v3735
  %v5020 = vpack.c.b16 %v3740, %v3736
  %v5021 = vpack.c.b16 %v3741, %v3737
  %v5022 = vpack.c.b16 %v3746, %v3742
  %v5023 = vpack.c.b16 %v3747, %v3743
  %v5024 = vpack.c.b16 %v3748, %v3744
  %v5025 = vpack.c.b16 %v3749, %v3745
  %v5026 = vpack.c.b16 %v3754, %v3750
  %v5027 = vpack.c.b16 %v3755, %v3751
  %v5028 = vpack.c.b16 %v3756, %v3752
  %v5029 = vpack.c.b16 %v3757, %v3753
  %v5030 = vpack.c.b16 %v3762, %v3758
  %v5031 = vpack.c.b16 %v3763, %v3759
  %v5032 = vpack.c.b16 %v3764, %v3760
  %v5033 = vpack.c.b16 %v3765, %v3761
  %v5034 = vpack.c.b16 %v3770, %v3766
  %v5035 = vpack.c.b16 %v3771, %v3767
  %v5036 = vpack.c.b16 %v3772, %v3768
  %v5037 = vpack.c.b16 %v3773, %v3769
  %v5038 = vpack.c.b16 %v3778, %v3774
  %v5039 = vpack.c.b16 %v3779, %v3775
  %v5040 = vpack.c.b16 %v3780, %v3776
  %v5041 = vpack.c.b16 %v3781, %v3777
  %v5042 = vpack.c.b16 %v3786, %v3782
  %v5043 = vpack.c.b16 %v3787, %v3783
  %v5044 = vpack.c.b16 %v3788, %v3784
  %v5045 = vpack.c.b16 %v3789, %v3785
  %v5046 = vpack.c.b16 %v3794, %v3790
  %v5047 = vpack.c.b16 %v3795, %v3791
  %v5048 = vpack.c.b16 %v3796, %v3792
  %v5049 = vpack.c.b16 %v3797, %v3793
  %v5050 = vpack.c.b16 %v3802, %v3798
  %v5051 = vpack.c.b16 %v3803, %v3799
  %v5052 = vpack.c.b16 %v3804, %v3800
  %v5053 = vpack.c.b16 %v3805, %v3801
  %v5054 = vpack.c.b16 %v3810, %v3806
  %v5055 = vpack.c.b16 %v3811, %v3807
  %v5056 = vpack.c.b16 %v3812, %v3808
  %v5057 = vpack.c.b16 %v3813, %v3809
  %v5058 = vpack.c.b16 %v3818, %v3814
  %v5059 = vpack.c.b16 %v3819, %v3815
  %v5060 = vpack.c.b16 %v3820, %v3816
  %v5061 = vpack.c.b16 %v3821, %v3817
  %v5062 = vpack.c.b16 %v3826, %v3822
  %v5063 = vpack.c.b16 %v3827, %v3823
  %v5064 = vpack.c.b16 %v3828, %v3824
  %v5065 = vpack.c.b16 %v3829, %v3825
  %v5066 = vpack.c.b16 %v3834, %v3830
  %v5067 = vpack.c.b16 %v3835, %v3831
  %v5068 = vpack.c.b16 %v3836, %v3832
  %v5069 = vpack.c.b16 %v3837, %v3833
  %v5070 = vpack.c.b16 %v3842, %v3838
  %v5071 = vpack.c.b16 %v3843, %v3839
  %v5072 = vpack.c.b16 %v3844, %v3840
  %v5073 = vpack.c.b16 %v3845, %v3841
  %v5074 = vpack.c.b16 %v3850, %v3846
  %v5075 = vpack.c.b16 %v3851, %v3847
  %v5076 = vpack.c.b16 %v3852, %v3848
  %v5077 = vpack.c.b16 %v3853, %v3849
  %v5078 = vpack.c.b16 %v3858, %v3854
  %v5079 = vpack.c.b16 %v3859, %v3855
  %v5080 = vpack.c.b16 %v3860, %v3856
  %v5081 = vpack.c.b16 %v3861, %v3857
  %v5082 = vpack.c.b16 %v3866, %v3862
  %v5083 = vpack.c.b16 %v3867, %v3863
  %v5084 = vpack.c.b16 %v3868, %v3864
  %v5085 = vpack.c.b16 %v3869, %v3865
  %v5086 = vpack.c.b16 %v3874, %v3870
  %v5087 = vpack.c.b16 %v3875, %v3871
  %v5088 = vpack.c.b16 %v3876, %v3872
  %v5089 = vpack.c.b16 %v3877, %v3873
  %v5090 = vpack.c.b16 %v3882, %v3878
  %v5091 = vpack.c.b16 %v3883, %v3879
  %v5092 = vpack.c.b16 %v3884, %v3880
  %v5093 = vpack.c.b16 %v3885, %v3881
  %v5094 = vpack.c.b16 %v3890, %v3886
  %v5095 = vpack.c.b16 %v3891, %v3887
  %v5096 = vpack.c.b16 %v3892, %v3888
  %v5097 = vpack.c.b16 %v3893, %v3889
  %v5098 = vpack.c.b16 %v3898, %v3894
  %v5099 = vpack.c.b16 %v3899, %v3895
  %v5100 = vpack.c.b16 %v3900, %v3896
  %v5101 = vpack.c.b16 %v3901, %v3897
  %v5102 = vpack.c.b16 %v3906, %v3902
  %v5103 = vpack.c.b16 %v3907, %v3903
  %v5104 = vpack.c.b16 %v3908, %v3904
  %v5105 = vpack.c.b16 %v3909, %v3905
  %v5106 = vpack.c.b16 %v3914, %v3910
  %v5107 = vpack.c.b16 %v3915, %v3911
  %v5108 = vpack.c.b16 %v3916, %v3912
  %v5109 = vpack.c.b16 %v3917, %v3913
  %v5110 = vpack.c.b16 %v3922, %v3918
  %v5111 = vpack.c.b16 %v3923, %v3919
  %v5112 = vpack.c.b16 %v3924, %v3920
  %v5113 = vpack.c.b16 %v3925, %v3921
  %v5114 = vpack.c.b16 %v3930, %v3926
  %v5115 = vpack.c.b16 %v3931, %v3927
  %v5116 = vpack.c.b16 %v3932, %v3928
  %v5117 = vpack.c.b16 %v3933, %v3929
  %v5118 = vpack.c.b16 %v3938, %v3934
  %v5119 = vpack.c.b16 %v3939, %v3935
  %v5120 = vpack.c.b16 %v3940, %v3936
  %v5121 = vpack.c.b16 %v3941, %v3937
  %v5122 = vpack.c.b16 %v3946, %v3942
  %v5123 = vpack.c.b16 %v3947, %v3943
  %v5124 = vpack.c.b16 %v3948, %v3944
  %v5125 = vpack.c.b16 %v3949, %v3945
  %v5126 = vpack.c.b16 %v3954, %v3950
  %v5127 = vpack.c.b16 %v3955, %v3951
  %v5128 = vpack.c.b16 %v3956, %v3952
  %v5129 = vpack.c.b16 %v3957, %v3953
  %v5130 = vpack.c.b16 %v3962, %v3958
  %v5131 = vpack.c.b16 %v3963, %v3959
  %v5132 = vpack.c.b16 %v3964, %v3960
  %v5133 = vpack.c.b16 %v3965, %v3961
  %v5134 = vpack.c.b16 %v3970, %v3966
  %v5135 = vpack.c.b16 %v3971, %v3967
  %v5136 = vpack.c.b16 %v3972, %v3968
  %v5137 = vpack.c.b16 %v3973, %v3969
  %v5138 = vpack.c.b16 %v3978, %v3974
  %v5139 = vpack.c.b16 %v3979, %v3975
  %v5140 = vpack.c.b16 %v3980, %v3976
  %v5141 = vpack.c.b16 %v3981, %v3977
  %v5142 = vpack.c.b16 %v3986, %v3982
  %v5143 = vpack.c.b16 %v3987, %v3983
  %v5144 = vpack.c.b16 %v3988, %v3984
  %v5145 = vpack.c.b16 %v3989, %v3985
  %v5146 = vpack.c.b16 %v3994, %v3990
  %v5147 = vpack.c.b16 %v3995, %v3991
  %v5148 = vpack.c.b16 %v3996, %v3992
  %v5149 = vpack.c.b16 %v3997, %v3993
  %v5150 = vpack.c.b16 %v4002, %v3998
  %v5151 = vpack.c.b16 %v4003, %v3999
  %v5152 = vpack.c.b16 %v4004, %v4000
  %v5153 = vpack.c.b16 %v4005, %v4001
  %v5154 = vpack.c.b16 %v4010, %v4006
  %v5155 = vpack.c.b16 %v4011, %v4007
  %v5156 = vpack.c.b16 %v4012, %v4008
  %v5157 = vpack.c.b16 %v4013, %v4009
  %v5158 = vpack.c.b16 %v4018, %v4014
  %v5159 = vpack.c.b16 %v4019, %v4015
  %v5160 = vpack.c.b16 %v4020, %v4016
  %v5161 = vpack.c.b16 %v4021, %v4017
  %v5162 = vpack.c.b16 %v4026, %v4022
  %v5163 = vpack.c.b16 %v4027, %v4023
  %v5164 = vpack.c.b16 %v4028, %v4024
  %v5165 = vpack.c.b16 %v4029, %v4025
  %v5166 = vpack.c.b16 %v4034, %v4030
  %v5167 = vpack.c.b16 %v4035, %v4031
  %v5168 = vpack.c.b16 %v4036, %v4032
  %v5169 = vpack.c.b16 %v4037, %v4033
  %v5170 = vpack.c.b16 %v4042, %v4038
  %v5171 = vpack.c.b16 %v4043, %v4039
  %v5172 = vpack.c.b16 %v4044, %v4040
  %v5173 = vpack.c.b16 %v4045, %v4041
  %v5174 = vpack.c.b16 %v4050, %v4046
  %v5175 = vpack.c.b16 %v4051, %v4047
  %v5176 = vpack.c.b16 %v4052, %v4048
  %v5177 = vpack.c.b16 %v4053, %v4049
  %v5178 = vpack.c.b16 %v4058, %v4054
  %v5179 = vpack.c.b16 %v4059, %v4055
  %v5180 = vpack.c.b16 %v4060, %v4056
  %v5181 = vpack.c.b16 %v4061, %v4057
  %v5182 = vpack.c.b16 %v4066, %v4062
  %v5183 = vpack.c.b16 %v4067, %v4063
  %v5184 = vpack.c.b16 %v4068, %v4064
  %v5185 = vpack.c.b16 %v4069, %v4065
  %v5186 = vpack.c.b16 %v4074, %v4070
  %v5187 = vpack.c.b16 %v4075, %v4071
  %v5188 = vpack.c.b16 %v4076, %v4072
  %v5189 = vpack.c.b16 %v4077, %v4073
  %v5190 = vpack.c.b16 %v4082, %v4078
  %v5191 = vpack.c.b16 %v4083, %v4079
  %v5192 = vpack.c.b16 %v4084, %v4080
  %v5193 = vpack.c.b16 %v4085, %v4081
  %v5194 = vpack.c.b16 %v4090, %v4086
  %v5195 = vpack.c.b16 %v4091, %v4087
  %v5196 = vpack.c.b16 %v4092, %v4088
  %v5197 = vpack.c.b16 %v4093, %v4089
  %v5198 = vpack.c.b16 %v4098, %v4094
  %v5199 = vpack.c.b16 %v4099, %v4095
  %v5200 = vpack.c.b16 %v4100, %v4096
  %v5201 = vpack.c.b16 %v4101, %v4097
  %v5202 = vpack.c.b16 %v4106, %v4102
  %v5203 = vpack.c.b16 %v4107, %v4103
  %v5204 = vpack.c.b16 %v4108, %v4104
  %v5205 = vpack.c.b16 %v4109, %v4105
  %v5206 = vpack.c.b16 %v4114, %v4110
  %v5207 = vpack.c.b16 %v4115, %v4111
  %v5208 = vpack.c.b16 %v4116, %v4112
  %v5209 = vpack.c.b16 %v4117, %v4113
  %v5210 = vpack.c.b16 %v4122, %v4118
  %v5211 = vpack.c.b16 %v4123, %v4119
  %v5212 = vpack.c.b16 %v4124, %v4120
  %v5213 = vpack.c.b16 %v4125, %v4121
  %v5214 = vpack.c.b16 %v4130, %v4126
  %v5215 = vpack.c.b16 %v4131, %v4127
  %v5216 = vpack.c.b16 %v4132, %v4128
  %v5217 = vpack.c.b16 %v4133, %v4129
  %v5218 = vpack.c.b16 %v4138, %v4134
  %v5219 = vpack.c.b16 %v4139, %v4135
  %v5220 = vpack.c.b16 %v4140, %v4136
  %v5221 = vpack.c.b16 %v4141, %v4137
  %v5222 = vpack.c.b16 %v4146, %v4142
  %v5223 = vpack.c.b16 %v4147, %v4143
  %v5224 = vpack.c.b16 %v4148, %v4144
  %v5225 = vpack.c.b16 %v4149, %v4145
  %v5226 = vpack.c.b16 %v4154, %v4150
  %v5227 = vpack.c.b16 %v4155, %v4151
  %v5228 = vpack.c.b16 %v4156, %v4152
  %v5229 = vpack.c.b16 %v4157, %v4153
  %v5230 = vpack.c.b16 %v4162, %v4158
  %v5231 = vpack.c.b16 %v4163, %v4159
  %v5232 = vpack.c.b16 %v4164, %v4160
  %v5233 = vpack.c.b16 %v4165, %v4161
  %v5234 = vpack.c.b16 %v4170, %v4166
  %v5235 = vpack.c.b16 %v4171, %v4167
  %v5236 = vpack.c.b16 %v4172, %v4168
  %v5237 = vpack.c.b16 %v4173, %v4169
  %v5238 = vpack.c.b16 %v4178, %v4174
  %v5239 = vpack.c.b16 %v4179, %v4175
  %v5240 = vpack.c.b16 %v4180, %v4176
  %v5241 = vpack.c.b16 %v4181, %v4177
  %v5242 = vpack.c.b16 %v4186, %v4182
  %v5243 = vpack.c.b16 %v4187, %v4183
  %v5244 = vpack.c.b16 %v4188, %v4184
  %v5245 = vpack.c.b16 %v4189, %v4185
  %v5246 = vpack.c.b16 %v4194, %v4190
  %v5247 = vpack.c.b16 %v4195, %v4191
  %v5248 = vpack.c.b16 %v4196, %v4192
  %v5249 = vpack.c.b16 %v4197, %v4193
  %v5250 = vpack.c.b16 %v4202, %v4198
  %v5251 = vpack.c.b16 %v4203, %v4199
  %v5252 = vpack.c.b16 %v4204, %v4200
  %v5253 = vpack.c.b16 %v4205, %v4201
  %v5254 = vpack.c.b16 %v4210, %v4206
  %v5255 = vpack.c.b16 %v4211, %v4207
  %v5256 = vpack.c.b16 %v4212, %v4208
  %v5257 = vpack.c.b16 %v4213, %v4209
  %v5258 = vpack.c.b16 %v4218, %v4214
  %v5259 = vpack.c.b16 %v4219, %v4215
  %v5260 = vpack.c.b16 %v4220, %v4216
  %v5261 = vpack.c.b16 %v4221, %v4217
  %v5262 = vpack.c.b16 %v4226, %v4222
  %v5263 = vpack.c.b16 %v4227, %v4223
  %v5264 = vpack.c.b16 %v4228, %v4224
  %v5265 = vpack.c.b16 %v4229, %v4225
  %v5266 = vpack.c.b16 %v4234, %v4230
  %v5267 = vpack.c.b16 %v4235, %v4231
  %v5268 = vpack.c.b16 %v4236, %v4232
  %v5269 = vpack.c.b16 %v4237, %v4233
  %v5270 = vpack.c.b16 %v4242, %v4238
  %v5271 = vpack.c.b16 %v4243, %v4239
  %v5272 = vpack.c.b16 %v4244, %v4240
  %v5273 = vpack.c.b16 %v4245, %v4241
  %v5274 = vpack.c.b16 %v4250, %v4246
  %v5275 = vpack.c.b16 %v4251, %v4247
  %v5276 = vpack.c.b16 %v4252, %v4248
  %v5277 = vpack.c.b16 %v4253, %v4249
  %6302 = vmatpush.bf16.msra.mxu0 %v4282
  %6303 = vmatpush.bf16.msra.mxu0 %v4278
  %6304 = vmatpush.bf16.msra.mxu0 %v4274
  %6305 = vmatpush.bf16.msra.mxu0 %v4270
  %6306 = vmatpush.bf16.msra.mxu0 %v4266
  %6307 = vmatpush.bf16.msra.mxu0 %v4262
  %6308 = vmatpush.bf16.msra.mxu0 %v4258
  %6309 = vmatpush.bf16.msra.mxu0 %v4254
  %6310 = vmatmul.bf16.gmra.mxu0 %v1118
  %v6311 = vpop.f32.mrf.mxu0
  %v6312 = vadd.f32 %v1062, %v6311
  %v6313 = vpop.f32.mrf.mxu0
  %6314 = vdwg.mxu0
  %6315 = vmatpush.bf16.msra.mxu0 %v4314
  %6316 = vmatpush.bf16.msra.mxu0 %v4310
  %6317 = vmatpush.bf16.msra.mxu0 %v4306
  %6318 = vmatpush.bf16.msra.mxu0 %v4302
  %6319 = vmatpush.bf16.msra.mxu0 %v4298
  %6320 = vmatpush.bf16.msra.mxu0 %v4294
  %6321 = vmatpush.bf16.msra.mxu0 %v4290
  %6322 = vmatpush.bf16.msra.mxu0 %v4286
  %6323 = vmatmul.bf16.gmra.mxu0 %v1119
  %v6324 = vpop.f32.mrf.mxu0
  %v6325 = vadd.f32 %v6312, %v6324
  %v6326 = vpop.f32.mrf.mxu0
  %6327 = vdwg.mxu0
  %6328 = vmatpush.bf16.msra.mxu0 %v4346
  %6329 = vmatpush.bf16.msra.mxu0 %v4342
  %6330 = vmatpush.bf16.msra.mxu0 %v4338
  %6331 = vmatpush.bf16.msra.mxu0 %v4334
  %6332 = vmatpush.bf16.msra.mxu0 %v4330
  %6333 = vmatpush.bf16.msra.mxu0 %v4326
  %6334 = vmatpush.bf16.msra.mxu0 %v4322
  %6335 = vmatpush.bf16.msra.mxu0 %v4318
  %6336 = vmatmul.bf16.gmra.mxu0 %v1120
  %v6337 = vpop.f32.mrf.mxu0
  %v6338 = vadd.f32 %v6325, %v6337
  %v6339 = vpop.f32.mrf.mxu0
  %6340 = vdwg.mxu0
  %6341 = vmatpush.bf16.msra.mxu0 %v4378
  %6342 = vmatpush.bf16.msra.mxu0 %v4374
  %6343 = vmatpush.bf16.msra.mxu0 %v4370
  %6344 = vmatpush.bf16.msra.mxu0 %v4366
  %6345 = vmatpush.bf16.msra.mxu0 %v4362
  %6346 = vmatpush.bf16.msra.mxu0 %v4358
  %6347 = vmatpush.bf16.msra.mxu0 %v4354
  %6348 = vmatpush.bf16.msra.mxu0 %v4350
  %6349 = vmatmul.bf16.gmra.mxu0 %v1121
  %v6350 = vpop.f32.mrf.mxu0
  %v6351 = vadd.f32 %v6338, %v6350
  %v6352 = vpop.f32.mrf.mxu0
  %6353 = vdwg.mxu0
  %6354 = vmatpush.bf16.msra.mxu0 %v4410
  %6355 = vmatpush.bf16.msra.mxu0 %v4406
  %6356 = vmatpush.bf16.msra.mxu0 %v4402
  %6357 = vmatpush.bf16.msra.mxu0 %v4398
  %6358 = vmatpush.bf16.msra.mxu0 %v4394
  %6359 = vmatpush.bf16.msra.mxu0 %v4390
  %6360 = vmatpush.bf16.msra.mxu0 %v4386
  %6361 = vmatpush.bf16.msra.mxu0 %v4382
  %6362 = vmatmul.bf16.gmra.mxu0 %v1122
  %v6363 = vpop.f32.mrf.mxu0
  %v6364 = vadd.f32 %v6351, %v6363
  %v6365 = vpop.f32.mrf.mxu0
  %6366 = vdwg.mxu0
  %6367 = vmatpush.bf16.msra.mxu0 %v4442
  %6368 = vmatpush.bf16.msra.mxu0 %v4438
  %6369 = vmatpush.bf16.msra.mxu0 %v4434
  %6370 = vmatpush.bf16.msra.mxu0 %v4430
  %6371 = vmatpush.bf16.msra.mxu0 %v4426
  %6372 = vmatpush.bf16.msra.mxu0 %v4422
  %6373 = vmatpush.bf16.msra.mxu0 %v4418
  %6374 = vmatpush.bf16.msra.mxu0 %v4414
  %6375 = vmatmul.bf16.gmra.mxu0 %v1123
  %v6376 = vpop.f32.mrf.mxu0
  %v6377 = vadd.f32 %v6364, %v6376
  %v6378 = vpop.f32.mrf.mxu0
  %6379 = vdwg.mxu0
  %6380 = vmatpush.bf16.msra.mxu0 %v4474
  %6381 = vmatpush.bf16.msra.mxu0 %v4470
  %6382 = vmatpush.bf16.msra.mxu0 %v4466
  %6383 = vmatpush.bf16.msra.mxu0 %v4462
  %6384 = vmatpush.bf16.msra.mxu0 %v4458
  %6385 = vmatpush.bf16.msra.mxu0 %v4454
  %6386 = vmatpush.bf16.msra.mxu0 %v4450
  %6387 = vmatpush.bf16.msra.mxu0 %v4446
  %6388 = vmatmul.bf16.gmra.mxu0 %v1124
  %v6389 = vpop.f32.mrf.mxu0
  %v6390 = vadd.f32 %v6377, %v6389
  %v6391 = vpop.f32.mrf.mxu0
  %6392 = vdwg.mxu0
  %6393 = vmatpush.bf16.msra.mxu0 %v4506
  %6394 = vmatpush.bf16.msra.mxu0 %v4502
  %6395 = vmatpush.bf16.msra.mxu0 %v4498
  %6396 = vmatpush.bf16.msra.mxu0 %v4494
  %6397 = vmatpush.bf16.msra.mxu0 %v4490
  %6398 = vmatpush.bf16.msra.mxu0 %v4486
  %6399 = vmatpush.bf16.msra.mxu0 %v4482
  %6400 = vmatpush.bf16.msra.mxu0 %v4478
  %6401 = vmatmul.bf16.gmra.mxu0 %v1125
  %v6402 = vpop.f32.mrf.mxu0
  %v6403 = vadd.f32 %v6390, %v6402
  %v6404 = vpop.f32.mrf.mxu0
  %6405 = vdwg.mxu0
  %6406 = vmatpush.bf16.msra.mxu0 %v4538
  %6407 = vmatpush.bf16.msra.mxu0 %v4534
  %6408 = vmatpush.bf16.msra.mxu0 %v4530
  %6409 = vmatpush.bf16.msra.mxu0 %v4526
  %6410 = vmatpush.bf16.msra.mxu0 %v4522
  %6411 = vmatpush.bf16.msra.mxu0 %v4518
  %6412 = vmatpush.bf16.msra.mxu0 %v4514
  %6413 = vmatpush.bf16.msra.mxu0 %v4510
  %6414 = vmatmul.bf16.gmra.mxu0 %v1126
  %v6415 = vpop.f32.mrf.mxu0
  %v6416 = vadd.f32 %v6403, %v6415
  %v6417 = vpop.f32.mrf.mxu0
  %6418 = vdwg.mxu0
  %6419 = vmatpush.bf16.msra.mxu0 %v4570
  %6420 = vmatpush.bf16.msra.mxu0 %v4566
  %6421 = vmatpush.bf16.msra.mxu0 %v4562
  %6422 = vmatpush.bf16.msra.mxu0 %v4558
  %6423 = vmatpush.bf16.msra.mxu0 %v4554
  %6424 = vmatpush.bf16.msra.mxu0 %v4550
  %6425 = vmatpush.bf16.msra.mxu0 %v4546
  %6426 = vmatpush.bf16.msra.mxu0 %v4542
  %6427 = vmatmul.bf16.gmra.mxu0 %v1127
  %v6428 = vpop.f32.mrf.mxu0
  %v6429 = vadd.f32 %v6416, %v6428
  %v6430 = vpop.f32.mrf.mxu0
  %6431 = vdwg.mxu0
  %6432 = vmatpush.bf16.msra.mxu0 %v4602
  %6433 = vmatpush.bf16.msra.mxu0 %v4598
  %6434 = vmatpush.bf16.msra.mxu0 %v4594
  %6435 = vmatpush.bf16.msra.mxu0 %v4590
  %6436 = vmatpush.bf16.msra.mxu0 %v4586
  %6437 = vmatpush.bf16.msra.mxu0 %v4582
  %6438 = vmatpush.bf16.msra.mxu0 %v4578
  %6439 = vmatpush.bf16.msra.mxu0 %v4574
  %6440 = vmatmul.bf16.gmra.mxu0 %v1128
  %v6441 = vpop.f32.mrf.mxu0
  %v6442 = vadd.f32 %v6429, %v6441
  %v6443 = vpop.f32.mrf.mxu0
  %6444 = vdwg.mxu0
  %6445 = vmatpush.bf16.msra.mxu0 %v4634
  %6446 = vmatpush.bf16.msra.mxu0 %v4630
  %6447 = vmatpush.bf16.msra.mxu0 %v4626
  %6448 = vmatpush.bf16.msra.mxu0 %v4622
  %6449 = vmatpush.bf16.msra.mxu0 %v4618
  %6450 = vmatpush.bf16.msra.mxu0 %v4614
  %6451 = vmatpush.bf16.msra.mxu0 %v4610
  %6452 = vmatpush.bf16.msra.mxu0 %v4606
  %6453 = vmatmul.bf16.gmra.mxu0 %v1129
  %v6454 = vpop.f32.mrf.mxu0
  %v6455 = vadd.f32 %v6442, %v6454
  %v6456 = vpop.f32.mrf.mxu0
  %6457 = vdwg.mxu0
  %6458 = vmatpush.bf16.msra.mxu0 %v4666
  %6459 = vmatpush.bf16.msra.mxu0 %v4662
  %6460 = vmatpush.bf16.msra.mxu0 %v4658
  %6461 = vmatpush.bf16.msra.mxu0 %v4654
  %6462 = vmatpush.bf16.msra.mxu0 %v4650
  %6463 = vmatpush.bf16.msra.mxu0 %v4646
  %6464 = vmatpush.bf16.msra.mxu0 %v4642
  %6465 = vmatpush.bf16.msra.mxu0 %v4638
  %6466 = vmatmul.bf16.gmra.mxu0 %v1130
  %v6467 = vpop.f32.mrf.mxu0
  %v6468 = vadd.f32 %v6455, %v6467
  %v6469 = vpop.f32.mrf.mxu0
  %6470 = vdwg.mxu0
  %6471 = vmatpush.bf16.msra.mxu0 %v4698
  %6472 = vmatpush.bf16.msra.mxu0 %v4694
  %6473 = vmatpush.bf16.msra.mxu0 %v4690
  %6474 = vmatpush.bf16.msra.mxu0 %v4686
  %6475 = vmatpush.bf16.msra.mxu0 %v4682
  %6476 = vmatpush.bf16.msra.mxu0 %v4678
  %6477 = vmatpush.bf16.msra.mxu0 %v4674
  %6478 = vmatpush.bf16.msra.mxu0 %v4670
  %6479 = vmatmul.bf16.gmra.mxu0 %v1131
  %v6480 = vpop.f32.mrf.mxu0
  %v6481 = vadd.f32 %v6468, %v6480
  %v6482 = vpop.f32.mrf.mxu0
  %6483 = vdwg.mxu0
  %6484 = vmatpush.bf16.msra.mxu0 %v4730
  %6485 = vmatpush.bf16.msra.mxu0 %v4726
  %6486 = vmatpush.bf16.msra.mxu0 %v4722
  %6487 = vmatpush.bf16.msra.mxu0 %v4718
  %6488 = vmatpush.bf16.msra.mxu0 %v4714
  %6489 = vmatpush.bf16.msra.mxu0 %v4710
  %6490 = vmatpush.bf16.msra.mxu0 %v4706
  %6491 = vmatpush.bf16.msra.mxu0 %v4702
  %6492 = vmatmul.bf16.gmra.mxu0 %v1132
  %v6493 = vpop.f32.mrf.mxu0
  %v6494 = vadd.f32 %v6481, %v6493
  %v6495 = vpop.f32.mrf.mxu0
  %6496 = vdwg.mxu0
  %6497 = vmatpush.bf16.msra.mxu0 %v4762
  %6498 = vmatpush.bf16.msra.mxu0 %v4758
  %6499 = vmatpush.bf16.msra.mxu0 %v4754
  %6500 = vmatpush.bf16.msra.mxu0 %v4750
  %6501 = vmatpush.bf16.msra.mxu0 %v4746
  %6502 = vmatpush.bf16.msra.mxu0 %v4742
  %6503 = vmatpush.bf16.msra.mxu0 %v4738
  %6504 = vmatpush.bf16.msra.mxu0 %v4734
  %6505 = vmatmul.bf16.gmra.mxu0 %v1133
  %v6506 = vpop.f32.mrf.mxu0
  %v6507 = vadd.f32 %v6494, %v6506
  %v6508 = vpop.f32.mrf.mxu0
  %6509 = vdwg.mxu0
  %6510 = vmatpush.bf16.msra.mxu0 %v4794
  %6511 = vmatpush.bf16.msra.mxu0 %v4790
  %6512 = vmatpush.bf16.msra.mxu0 %v4786
  %6513 = vmatpush.bf16.msra.mxu0 %v4782
  %6514 = vmatpush.bf16.msra.mxu0 %v4778
  %6515 = vmatpush.bf16.msra.mxu0 %v4774
  %6516 = vmatpush.bf16.msra.mxu0 %v4770
  %6517 = vmatpush.bf16.msra.mxu0 %v4766
  %6518 = vmatmul.bf16.gmra.mxu0 %v1134
  %v6519 = vpop.f32.mrf.mxu0
  %v6520 = vadd.f32 %v6507, %v6519
  %v6521 = vpop.f32.mrf.mxu0
  %6522 = vdwg.mxu0
  %6523 = vmatpush.bf16.msra.mxu0 %v4826
  %6524 = vmatpush.bf16.msra.mxu0 %v4822
  %6525 = vmatpush.bf16.msra.mxu0 %v4818
  %6526 = vmatpush.bf16.msra.mxu0 %v4814
  %6527 = vmatpush.bf16.msra.mxu0 %v4810
  %6528 = vmatpush.bf16.msra.mxu0 %v4806
  %6529 = vmatpush.bf16.msra.mxu0 %v4802
  %6530 = vmatpush.bf16.msra.mxu0 %v4798
  %6531 = vmatmul.bf16.gmra.mxu0 %v1135
  %v6532 = vpop.f32.mrf.mxu0
  %v6533 = vadd.f32 %v6520, %v6532
  %v6534 = vpop.f32.mrf.mxu0
  %6535 = vdwg.mxu0
  %6536 = vmatpush.bf16.msra.mxu0 %v4858
  %6537 = vmatpush.bf16.msra.mxu0 %v4854
  %6538 = vmatpush.bf16.msra.mxu0 %v4850
  %6539 = vmatpush.bf16.msra.mxu0 %v4846
  %6540 = vmatpush.bf16.msra.mxu0 %v4842
  %6541 = vmatpush.bf16.msra.mxu0 %v4838
  %6542 = vmatpush.bf16.msra.mxu0 %v4834
  %6543 = vmatpush.bf16.msra.mxu0 %v4830
  %6544 = vmatmul.bf16.gmra.mxu0 %v1136
  %v6545 = vpop.f32.mrf.mxu0
  %v6546 = vadd.f32 %v6533, %v6545
  %v6547 = vpop.f32.mrf.mxu0
  %6548 = vdwg.mxu0
  %6549 = vmatpush.bf16.msra.mxu0 %v4890
  %6550 = vmatpush.bf16.msra.mxu0 %v4886
  %6551 = vmatpush.bf16.msra.mxu0 %v4882
  %6552 = vmatpush.bf16.msra.mxu0 %v4878
  %6553 = vmatpush.bf16.msra.mxu0 %v4874
  %6554 = vmatpush.bf16.msra.mxu0 %v4870
  %6555 = vmatpush.bf16.msra.mxu0 %v4866
  %6556 = vmatpush.bf16.msra.mxu0 %v4862
  %6557 = vmatmul.bf16.gmra.mxu0 %v1137
  %v6558 = vpop.f32.mrf.mxu0
  %v6559 = vadd.f32 %v6546, %v6558
  %v6560 = vpop.f32.mrf.mxu0
  %6561 = vdwg.mxu0
  %6562 = vmatpush.bf16.msra.mxu0 %v4922
  %6563 = vmatpush.bf16.msra.mxu0 %v4918
  %6564 = vmatpush.bf16.msra.mxu0 %v4914
  %6565 = vmatpush.bf16.msra.mxu0 %v4910
  %6566 = vmatpush.bf16.msra.mxu0 %v4906
  %6567 = vmatpush.bf16.msra.mxu0 %v4902
  %6568 = vmatpush.bf16.msra.mxu0 %v4898
  %6569 = vmatpush.bf16.msra.mxu0 %v4894
  %6570 = vmatmul.bf16.gmra.mxu0 %v1138
  %v6571 = vpop.f32.mrf.mxu0
  %v6572 = vadd.f32 %v6559, %v6571
  %v6573 = vpop.f32.mrf.mxu0
  %6574 = vdwg.mxu0
  %6575 = vmatpush.bf16.msra.mxu0 %v4954
  %6576 = vmatpush.bf16.msra.mxu0 %v4950
  %6577 = vmatpush.bf16.msra.mxu0 %v4946
  %6578 = vmatpush.bf16.msra.mxu0 %v4942
  %6579 = vmatpush.bf16.msra.mxu0 %v4938
  %6580 = vmatpush.bf16.msra.mxu0 %v4934
  %6581 = vmatpush.bf16.msra.mxu0 %v4930
  %6582 = vmatpush.bf16.msra.mxu0 %v4926
  %6583 = vmatmul.bf16.gmra.mxu0 %v1139
  %v6584 = vpop.f32.mrf.mxu0
  %v6585 = vadd.f32 %v6572, %v6584
  %v6586 = vpop.f32.mrf.mxu0
  %6587 = vdwg.mxu0
  %6588 = vmatpush.bf16.msra.mxu0 %v4986
  %6589 = vmatpush.bf16.msra.mxu0 %v4982
  %6590 = vmatpush.bf16.msra.mxu0 %v4978
  %6591 = vmatpush.bf16.msra.mxu0 %v4974
  %6592 = vmatpush.bf16.msra.mxu0 %v4970
  %6593 = vmatpush.bf16.msra.mxu0 %v4966
  %6594 = vmatpush.bf16.msra.mxu0 %v4962
  %6595 = vmatpush.bf16.msra.mxu0 %v4958
  %6596 = vmatmul.bf16.gmra.mxu0 %v1140
  %v6597 = vpop.f32.mrf.mxu0
  %v6598 = vadd.f32 %v6585, %v6597
  %v6599 = vpop.f32.mrf.mxu0
  %6600 = vdwg.mxu0
  %6601 = vmatpush.bf16.msra.mxu0 %v5018
  %6602 = vmatpush.bf16.msra.mxu0 %v5014
  %6603 = vmatpush.bf16.msra.mxu0 %v5010
  %6604 = vmatpush.bf16.msra.mxu0 %v5006
  %6605 = vmatpush.bf16.msra.mxu0 %v5002
  %6606 = vmatpush.bf16.msra.mxu0 %v4998
  %6607 = vmatpush.bf16.msra.mxu0 %v4994
  %6608 = vmatpush.bf16.msra.mxu0 %v4990
  %6609 = vmatmul.bf16.gmra.mxu0 %v1141
  %v6610 = vpop.f32.mrf.mxu0
  %v6611 = vadd.f32 %v6598, %v6610
  %v6612 = vpop.f32.mrf.mxu0
  %6613 = vdwg.mxu0
  %6614 = vmatpush.bf16.msra.mxu0 %v5050
  %6615 = vmatpush.bf16.msra.mxu0 %v5046
  %6616 = vmatpush.bf16.msra.mxu0 %v5042
  %6617 = vmatpush.bf16.msra.mxu0 %v5038
  %6618 = vmatpush.bf16.msra.mxu0 %v5034
  %6619 = vmatpush.bf16.msra.mxu0 %v5030
  %6620 = vmatpush.bf16.msra.mxu0 %v5026
  %6621 = vmatpush.bf16.msra.mxu0 %v5022
  %6622 = vmatmul.bf16.gmra.mxu0 %v1142
  %v6623 = vpop.f32.mrf.mxu0
  %v6624 = vadd.f32 %v6611, %v6623
  %v6625 = vpop.f32.mrf.mxu0
  %6626 = vdwg.mxu0
  %6627 = vmatpush.bf16.msra.mxu0 %v5082
  %6628 = vmatpush.bf16.msra.mxu0 %v5078
  %6629 = vmatpush.bf16.msra.mxu0 %v5074
  %6630 = vmatpush.bf16.msra.mxu0 %v5070
  %6631 = vmatpush.bf16.msra.mxu0 %v5066
  %6632 = vmatpush.bf16.msra.mxu0 %v5062
  %6633 = vmatpush.bf16.msra.mxu0 %v5058
  %6634 = vmatpush.bf16.msra.mxu0 %v5054
  %6635 = vmatmul.bf16.gmra.mxu0 %v1143
  %v6636 = vpop.f32.mrf.mxu0
  %v6637 = vadd.f32 %v6624, %v6636
  %v6638 = vpop.f32.mrf.mxu0
  %6639 = vdwg.mxu0
  %6640 = vmatpush.bf16.msra.mxu0 %v5114
  %6641 = vmatpush.bf16.msra.mxu0 %v5110
  %6642 = vmatpush.bf16.msra.mxu0 %v5106
  %6643 = vmatpush.bf16.msra.mxu0 %v5102
  %6644 = vmatpush.bf16.msra.mxu0 %v5098
  %6645 = vmatpush.bf16.msra.mxu0 %v5094
  %6646 = vmatpush.bf16.msra.mxu0 %v5090
  %6647 = vmatpush.bf16.msra.mxu0 %v5086
  %6648 = vmatmul.bf16.gmra.mxu0 %v1144
  %v6649 = vpop.f32.mrf.mxu0
  %v6650 = vadd.f32 %v6637, %v6649
  %v6651 = vpop.f32.mrf.mxu0
  %6652 = vdwg.mxu0
  %6653 = vmatpush.bf16.msra.mxu0 %v5146
  %6654 = vmatpush.bf16.msra.mxu0 %v5142
  %6655 = vmatpush.bf16.msra.mxu0 %v5138
  %6656 = vmatpush.bf16.msra.mxu0 %v5134
  %6657 = vmatpush.bf16.msra.mxu0 %v5130
  %6658 = vmatpush.bf16.msra.mxu0 %v5126
  %6659 = vmatpush.bf16.msra.mxu0 %v5122
  %6660 = vmatpush.bf16.msra.mxu0 %v5118
  %6661 = vmatmul.bf16.gmra.mxu0 %v1145
  %v6662 = vpop.f32.mrf.mxu0
  %v6663 = vadd.f32 %v6650, %v6662
  %v6664 = vpop.f32.mrf.mxu0
  %6665 = vdwg.mxu0
  %6666 = vmatpush.bf16.msra.mxu0 %v5178
  %6667 = vmatpush.bf16.msra.mxu0 %v5174
  %6668 = vmatpush.bf16.msra.mxu0 %v5170
  %6669 = vmatpush.bf16.msra.mxu0 %v5166
  %6670 = vmatpush.bf16.msra.mxu0 %v5162
  %6671 = vmatpush.bf16.msra.mxu0 %v5158
  %6672 = vmatpush.bf16.msra.mxu0 %v5154
  %6673 = vmatpush.bf16.msra.mxu0 %v5150
  %6674 = vmatmul.bf16.gmra.mxu0 %v1146
  %v6675 = vpop.f32.mrf.mxu0
  %v6676 = vadd.f32 %v6663, %v6675
  %v6677 = vpop.f32.mrf.mxu0
  %6678 = vdwg.mxu0
  %6679 = vmatpush.bf16.msra.mxu0 %v5210
  %6680 = vmatpush.bf16.msra.mxu0 %v5206
  %6681 = vmatpush.bf16.msra.mxu0 %v5202
  %6682 = vmatpush.bf16.msra.mxu0 %v5198
  %6683 = vmatpush.bf16.msra.mxu0 %v5194
  %6684 = vmatpush.bf16.msra.mxu0 %v5190
  %6685 = vmatpush.bf16.msra.mxu0 %v5186
  %6686 = vmatpush.bf16.msra.mxu0 %v5182
  %6687 = vmatmul.bf16.gmra.mxu0 %v1147
  %v6688 = vpop.f32.mrf.mxu0
  %v6689 = vadd.f32 %v6676, %v6688
  %v6690 = vpop.f32.mrf.mxu0
  %6691 = vdwg.mxu0
  %6692 = vmatpush.bf16.msra.mxu0 %v5242
  %6693 = vmatpush.bf16.msra.mxu0 %v5238
  %6694 = vmatpush.bf16.msra.mxu0 %v5234
  %6695 = vmatpush.bf16.msra.mxu0 %v5230
  %6696 = vmatpush.bf16.msra.mxu0 %v5226
  %6697 = vmatpush.bf16.msra.mxu0 %v5222
  %6698 = vmatpush.bf16.msra.mxu0 %v5218
  %6699 = vmatpush.bf16.msra.mxu0 %v5214
  %6700 = vmatmul.bf16.gmra.mxu0 %v1148
  %v6701 = vpop.f32.mrf.mxu0
  %v6702 = vadd.f32 %v6689, %v6701
  %v6703 = vpop.f32.mrf.mxu0
  %6704 = vdwg.mxu0
  %6705 = vmatpush.bf16.msra.mxu0 %v5274
  %6706 = vmatpush.bf16.msra.mxu0 %v5270
  %6707 = vmatpush.bf16.msra.mxu0 %v5266
  %6708 = vmatpush.bf16.msra.mxu0 %v5262
  %6709 = vmatpush.bf16.msra.mxu0 %v5258
  %6710 = vmatpush.bf16.msra.mxu0 %v5254
  %6711 = vmatpush.bf16.msra.mxu0 %v5250
  %6712 = vmatpush.bf16.msra.mxu0 %v5246
  %6713 = vmatmul.bf16.gmra.mxu0 %v1149
  %v6714 = vpop.f32.mrf.mxu0
  %v6715 = vadd.f32 %v6702, %v6714
  %v6716 = vpop.f32.mrf.mxu0
  %6717 = vdwg.mxu0
  %6718 = vmatpush.bf16.msra.mxu0 %v4283
  %6719 = vmatpush.bf16.msra.mxu0 %v4279
  %6720 = vmatpush.bf16.msra.mxu0 %v4275
  %6721 = vmatpush.bf16.msra.mxu0 %v4271
  %6722 = vmatpush.bf16.msra.mxu0 %v4267
  %6723 = vmatpush.bf16.msra.mxu0 %v4263
  %6724 = vmatpush.bf16.msra.mxu0 %v4259
  %6725 = vmatpush.bf16.msra.mxu0 %v4255
  %6726 = vmatmul.bf16.gmra.mxu0 %v1118
  %v6727 = vpop.f32.mrf.mxu0
  %v6728 = vadd.f32 %v1063, %v6727
  %v6729 = vpop.f32.mrf.mxu0
  %6730 = vdwg.mxu0
  %6731 = vmatpush.bf16.msra.mxu0 %v4315
  %6732 = vmatpush.bf16.msra.mxu0 %v4311
  %6733 = vmatpush.bf16.msra.mxu0 %v4307
  %6734 = vmatpush.bf16.msra.mxu0 %v4303
  %6735 = vmatpush.bf16.msra.mxu0 %v4299
  %6736 = vmatpush.bf16.msra.mxu0 %v4295
  %6737 = vmatpush.bf16.msra.mxu0 %v4291
  %6738 = vmatpush.bf16.msra.mxu0 %v4287
  %6739 = vmatmul.bf16.gmra.mxu0 %v1119
  %v6740 = vpop.f32.mrf.mxu0
  %v6741 = vadd.f32 %v6728, %v6740
  %v6742 = vpop.f32.mrf.mxu0
  %6743 = vdwg.mxu0
  %6744 = vmatpush.bf16.msra.mxu0 %v4347
  %6745 = vmatpush.bf16.msra.mxu0 %v4343
  %6746 = vmatpush.bf16.msra.mxu0 %v4339
  %6747 = vmatpush.bf16.msra.mxu0 %v4335
  %6748 = vmatpush.bf16.msra.mxu0 %v4331
  %6749 = vmatpush.bf16.msra.mxu0 %v4327
  %6750 = vmatpush.bf16.msra.mxu0 %v4323
  %6751 = vmatpush.bf16.msra.mxu0 %v4319
  %6752 = vmatmul.bf16.gmra.mxu0 %v1120
  %v6753 = vpop.f32.mrf.mxu0
  %v6754 = vadd.f32 %v6741, %v6753
  %v6755 = vpop.f32.mrf.mxu0
  %6756 = vdwg.mxu0
  %6757 = vmatpush.bf16.msra.mxu0 %v4379
  %6758 = vmatpush.bf16.msra.mxu0 %v4375
  %6759 = vmatpush.bf16.msra.mxu0 %v4371
  %6760 = vmatpush.bf16.msra.mxu0 %v4367
  %6761 = vmatpush.bf16.msra.mxu0 %v4363
  %6762 = vmatpush.bf16.msra.mxu0 %v4359
  %6763 = vmatpush.bf16.msra.mxu0 %v4355
  %6764 = vmatpush.bf16.msra.mxu0 %v4351
  %6765 = vmatmul.bf16.gmra.mxu0 %v1121
  %v6766 = vpop.f32.mrf.mxu0
  %v6767 = vadd.f32 %v6754, %v6766
  %v6768 = vpop.f32.mrf.mxu0
  %6769 = vdwg.mxu0
  %6770 = vmatpush.bf16.msra.mxu0 %v4411
  %6771 = vmatpush.bf16.msra.mxu0 %v4407
  %6772 = vmatpush.bf16.msra.mxu0 %v4403
  %6773 = vmatpush.bf16.msra.mxu0 %v4399
  %6774 = vmatpush.bf16.msra.mxu0 %v4395
  %6775 = vmatpush.bf16.msra.mxu0 %v4391
  %6776 = vmatpush.bf16.msra.mxu0 %v4387
  %6777 = vmatpush.bf16.msra.mxu0 %v4383
  %6778 = vmatmul.bf16.gmra.mxu0 %v1122
  %v6779 = vpop.f32.mrf.mxu0
  %v6780 = vadd.f32 %v6767, %v6779
  %v6781 = vpop.f32.mrf.mxu0
  %6782 = vdwg.mxu0
  %6783 = vmatpush.bf16.msra.mxu0 %v4443
  %6784 = vmatpush.bf16.msra.mxu0 %v4439
  %6785 = vmatpush.bf16.msra.mxu0 %v4435
  %6786 = vmatpush.bf16.msra.mxu0 %v4431
  %6787 = vmatpush.bf16.msra.mxu0 %v4427
  %6788 = vmatpush.bf16.msra.mxu0 %v4423
  %6789 = vmatpush.bf16.msra.mxu0 %v4419
  %6790 = vmatpush.bf16.msra.mxu0 %v4415
  %6791 = vmatmul.bf16.gmra.mxu0 %v1123
  %v6792 = vpop.f32.mrf.mxu0
  %v6793 = vadd.f32 %v6780, %v6792
  %v6794 = vpop.f32.mrf.mxu0
  %6795 = vdwg.mxu0
  %6796 = vmatpush.bf16.msra.mxu0 %v4475
  %6797 = vmatpush.bf16.msra.mxu0 %v4471
  %6798 = vmatpush.bf16.msra.mxu0 %v4467
  %6799 = vmatpush.bf16.msra.mxu0 %v4463
  %6800 = vmatpush.bf16.msra.mxu0 %v4459
  %6801 = vmatpush.bf16.msra.mxu0 %v4455
  %6802 = vmatpush.bf16.msra.mxu0 %v4451
  %6803 = vmatpush.bf16.msra.mxu0 %v4447
  %6804 = vmatmul.bf16.gmra.mxu0 %v1124
  %v6805 = vpop.f32.mrf.mxu0
  %v6806 = vadd.f32 %v6793, %v6805
  %v6807 = vpop.f32.mrf.mxu0
  %6808 = vdwg.mxu0
  %6809 = vmatpush.bf16.msra.mxu0 %v4507
  %6810 = vmatpush.bf16.msra.mxu0 %v4503
  %6811 = vmatpush.bf16.msra.mxu0 %v4499
  %6812 = vmatpush.bf16.msra.mxu0 %v4495
  %6813 = vmatpush.bf16.msra.mxu0 %v4491
  %6814 = vmatpush.bf16.msra.mxu0 %v4487
  %6815 = vmatpush.bf16.msra.mxu0 %v4483
  %6816 = vmatpush.bf16.msra.mxu0 %v4479
  %6817 = vmatmul.bf16.gmra.mxu0 %v1125
  %v6818 = vpop.f32.mrf.mxu0
  %v6819 = vadd.f32 %v6806, %v6818
  %v6820 = vpop.f32.mrf.mxu0
  %6821 = vdwg.mxu0
  %6822 = vmatpush.bf16.msra.mxu0 %v4539
  %6823 = vmatpush.bf16.msra.mxu0 %v4535
  %6824 = vmatpush.bf16.msra.mxu0 %v4531
  %6825 = vmatpush.bf16.msra.mxu0 %v4527
  %6826 = vmatpush.bf16.msra.mxu0 %v4523
  %6827 = vmatpush.bf16.msra.mxu0 %v4519
  %6828 = vmatpush.bf16.msra.mxu0 %v4515
  %6829 = vmatpush.bf16.msra.mxu0 %v4511
  %6830 = vmatmul.bf16.gmra.mxu0 %v1126
  %v6831 = vpop.f32.mrf.mxu0
  %v6832 = vadd.f32 %v6819, %v6831
  %v6833 = vpop.f32.mrf.mxu0
  %6834 = vdwg.mxu0
  %6835 = vmatpush.bf16.msra.mxu0 %v4571
  %6836 = vmatpush.bf16.msra.mxu0 %v4567
  %6837 = vmatpush.bf16.msra.mxu0 %v4563
  %6838 = vmatpush.bf16.msra.mxu0 %v4559
  %6839 = vmatpush.bf16.msra.mxu0 %v4555
  %6840 = vmatpush.bf16.msra.mxu0 %v4551
  %6841 = vmatpush.bf16.msra.mxu0 %v4547
  %6842 = vmatpush.bf16.msra.mxu0 %v4543
  %6843 = vmatmul.bf16.gmra.mxu0 %v1127
  %v6844 = vpop.f32.mrf.mxu0
  %v6845 = vadd.f32 %v6832, %v6844
  %v6846 = vpop.f32.mrf.mxu0
  %6847 = vdwg.mxu0
  %6848 = vmatpush.bf16.msra.mxu0 %v4603
  %6849 = vmatpush.bf16.msra.mxu0 %v4599
  %6850 = vmatpush.bf16.msra.mxu0 %v4595
  %6851 = vmatpush.bf16.msra.mxu0 %v4591
  %6852 = vmatpush.bf16.msra.mxu0 %v4587
  %6853 = vmatpush.bf16.msra.mxu0 %v4583
  %6854 = vmatpush.bf16.msra.mxu0 %v4579
  %6855 = vmatpush.bf16.msra.mxu0 %v4575
  %6856 = vmatmul.bf16.gmra.mxu0 %v1128
  %v6857 = vpop.f32.mrf.mxu0
  %v6858 = vadd.f32 %v6845, %v6857
  %v6859 = vpop.f32.mrf.mxu0
  %6860 = vdwg.mxu0
  %6861 = vmatpush.bf16.msra.mxu0 %v4635
  %6862 = vmatpush.bf16.msra.mxu0 %v4631
  %6863 = vmatpush.bf16.msra.mxu0 %v4627
  %6864 = vmatpush.bf16.msra.mxu0 %v4623
  %6865 = vmatpush.bf16.msra.mxu0 %v4619
  %6866 = vmatpush.bf16.msra.mxu0 %v4615
  %6867 = vmatpush.bf16.msra.mxu0 %v4611
  %6868 = vmatpush.bf16.msra.mxu0 %v4607
  %6869 = vmatmul.bf16.gmra.mxu0 %v1129
  %v6870 = vpop.f32.mrf.mxu0
  %v6871 = vadd.f32 %v6858, %v6870
  %v6872 = vpop.f32.mrf.mxu0
  %6873 = vdwg.mxu0
  %6874 = vmatpush.bf16.msra.mxu0 %v4667
  %6875 = vmatpush.bf16.msra.mxu0 %v4663
  %6876 = vmatpush.bf16.msra.mxu0 %v4659
  %6877 = vmatpush.bf16.msra.mxu0 %v4655
  %6878 = vmatpush.bf16.msra.mxu0 %v4651
  %6879 = vmatpush.bf16.msra.mxu0 %v4647
  %6880 = vmatpush.bf16.msra.mxu0 %v4643
  %6881 = vmatpush.bf16.msra.mxu0 %v4639
  %6882 = vmatmul.bf16.gmra.mxu0 %v1130
  %v6883 = vpop.f32.mrf.mxu0
  %v6884 = vadd.f32 %v6871, %v6883
  %v6885 = vpop.f32.mrf.mxu0
  %6886 = vdwg.mxu0
  %6887 = vmatpush.bf16.msra.mxu0 %v4699
  %6888 = vmatpush.bf16.msra.mxu0 %v4695
  %6889 = vmatpush.bf16.msra.mxu0 %v4691
  %6890 = vmatpush.bf16.msra.mxu0 %v4687
  %6891 = vmatpush.bf16.msra.mxu0 %v4683
  %6892 = vmatpush.bf16.msra.mxu0 %v4679
  %6893 = vmatpush.bf16.msra.mxu0 %v4675
  %6894 = vmatpush.bf16.msra.mxu0 %v4671
  %6895 = vmatmul.bf16.gmra.mxu0 %v1131
  %v6896 = vpop.f32.mrf.mxu0
  %v6897 = vadd.f32 %v6884, %v6896
  %v6898 = vpop.f32.mrf.mxu0
  %6899 = vdwg.mxu0
  %6900 = vmatpush.bf16.msra.mxu0 %v4731
  %6901 = vmatpush.bf16.msra.mxu0 %v4727
  %6902 = vmatpush.bf16.msra.mxu0 %v4723
  %6903 = vmatpush.bf16.msra.mxu0 %v4719
  %6904 = vmatpush.bf16.msra.mxu0 %v4715
  %6905 = vmatpush.bf16.msra.mxu0 %v4711
  %6906 = vmatpush.bf16.msra.mxu0 %v4707
  %6907 = vmatpush.bf16.msra.mxu0 %v4703
  %6908 = vmatmul.bf16.gmra.mxu0 %v1132
  %v6909 = vpop.f32.mrf.mxu0
  %v6910 = vadd.f32 %v6897, %v6909
  %v6911 = vpop.f32.mrf.mxu0
  %6912 = vdwg.mxu0
  %6913 = vmatpush.bf16.msra.mxu0 %v4763
  %6914 = vmatpush.bf16.msra.mxu0 %v4759
  %6915 = vmatpush.bf16.msra.mxu0 %v4755
  %6916 = vmatpush.bf16.msra.mxu0 %v4751
  %6917 = vmatpush.bf16.msra.mxu0 %v4747
  %6918 = vmatpush.bf16.msra.mxu0 %v4743
  %6919 = vmatpush.bf16.msra.mxu0 %v4739
  %6920 = vmatpush.bf16.msra.mxu0 %v4735
  %6921 = vmatmul.bf16.gmra.mxu0 %v1133
  %v6922 = vpop.f32.mrf.mxu0
  %v6923 = vadd.f32 %v6910, %v6922
  %v6924 = vpop.f32.mrf.mxu0
  %6925 = vdwg.mxu0
  %6926 = vmatpush.bf16.msra.mxu0 %v4795
  %6927 = vmatpush.bf16.msra.mxu0 %v4791
  %6928 = vmatpush.bf16.msra.mxu0 %v4787
  %6929 = vmatpush.bf16.msra.mxu0 %v4783
  %6930 = vmatpush.bf16.msra.mxu0 %v4779
  %6931 = vmatpush.bf16.msra.mxu0 %v4775
  %6932 = vmatpush.bf16.msra.mxu0 %v4771
  %6933 = vmatpush.bf16.msra.mxu0 %v4767
  %6934 = vmatmul.bf16.gmra.mxu0 %v1134
  %v6935 = vpop.f32.mrf.mxu0
  %v6936 = vadd.f32 %v6923, %v6935
  %v6937 = vpop.f32.mrf.mxu0
  %6938 = vdwg.mxu0
  %6939 = vmatpush.bf16.msra.mxu0 %v4827
  %6940 = vmatpush.bf16.msra.mxu0 %v4823
  %6941 = vmatpush.bf16.msra.mxu0 %v4819
  %6942 = vmatpush.bf16.msra.mxu0 %v4815
  %6943 = vmatpush.bf16.msra.mxu0 %v4811
  %6944 = vmatpush.bf16.msra.mxu0 %v4807
  %6945 = vmatpush.bf16.msra.mxu0 %v4803
  %6946 = vmatpush.bf16.msra.mxu0 %v4799
  %6947 = vmatmul.bf16.gmra.mxu0 %v1135
  %v6948 = vpop.f32.mrf.mxu0
  %v6949 = vadd.f32 %v6936, %v6948
  %v6950 = vpop.f32.mrf.mxu0
  %6951 = vdwg.mxu0
  %6952 = vmatpush.bf16.msra.mxu0 %v4859
  %6953 = vmatpush.bf16.msra.mxu0 %v4855
  %6954 = vmatpush.bf16.msra.mxu0 %v4851
  %6955 = vmatpush.bf16.msra.mxu0 %v4847
  %6956 = vmatpush.bf16.msra.mxu0 %v4843
  %6957 = vmatpush.bf16.msra.mxu0 %v4839
  %6958 = vmatpush.bf16.msra.mxu0 %v4835
  %6959 = vmatpush.bf16.msra.mxu0 %v4831
  %6960 = vmatmul.bf16.gmra.mxu0 %v1136
  %v6961 = vpop.f32.mrf.mxu0
  %v6962 = vadd.f32 %v6949, %v6961
  %v6963 = vpop.f32.mrf.mxu0
  %6964 = vdwg.mxu0
  %6965 = vmatpush.bf16.msra.mxu0 %v4891
  %6966 = vmatpush.bf16.msra.mxu0 %v4887
  %6967 = vmatpush.bf16.msra.mxu0 %v4883
  %6968 = vmatpush.bf16.msra.mxu0 %v4879
  %6969 = vmatpush.bf16.msra.mxu0 %v4875
  %6970 = vmatpush.bf16.msra.mxu0 %v4871
  %6971 = vmatpush.bf16.msra.mxu0 %v4867
  %6972 = vmatpush.bf16.msra.mxu0 %v4863
  %6973 = vmatmul.bf16.gmra.mxu0 %v1137
  %v6974 = vpop.f32.mrf.mxu0
  %v6975 = vadd.f32 %v6962, %v6974
  %v6976 = vpop.f32.mrf.mxu0
  %6977 = vdwg.mxu0
  %6978 = vmatpush.bf16.msra.mxu0 %v4923
  %6979 = vmatpush.bf16.msra.mxu0 %v4919
  %6980 = vmatpush.bf16.msra.mxu0 %v4915
  %6981 = vmatpush.bf16.msra.mxu0 %v4911
  %6982 = vmatpush.bf16.msra.mxu0 %v4907
  %6983 = vmatpush.bf16.msra.mxu0 %v4903
  %6984 = vmatpush.bf16.msra.mxu0 %v4899
  %6985 = vmatpush.bf16.msra.mxu0 %v4895
  %6986 = vmatmul.bf16.gmra.mxu0 %v1138
  %v6987 = vpop.f32.mrf.mxu0
  %v6988 = vadd.f32 %v6975, %v6987
  %v6989 = vpop.f32.mrf.mxu0
  %6990 = vdwg.mxu0
  %6991 = vmatpush.bf16.msra.mxu0 %v4955
  %6992 = vmatpush.bf16.msra.mxu0 %v4951
  %6993 = vmatpush.bf16.msra.mxu0 %v4947
  %6994 = vmatpush.bf16.msra.mxu0 %v4943
  %6995 = vmatpush.bf16.msra.mxu0 %v4939
  %6996 = vmatpush.bf16.msra.mxu0 %v4935
  %6997 = vmatpush.bf16.msra.mxu0 %v4931
  %6998 = vmatpush.bf16.msra.mxu0 %v4927
  %6999 = vmatmul.bf16.gmra.mxu0 %v1139
  %v7000 = vpop.f32.mrf.mxu0
  %v7001 = vadd.f32 %v6988, %v7000
  %v7002 = vpop.f32.mrf.mxu0
  %7003 = vdwg.mxu0
  %7004 = vmatpush.bf16.msra.mxu0 %v4987
  %7005 = vmatpush.bf16.msra.mxu0 %v4983
  %7006 = vmatpush.bf16.msra.mxu0 %v4979
  %7007 = vmatpush.bf16.msra.mxu0 %v4975
  %7008 = vmatpush.bf16.msra.mxu0 %v4971
  %7009 = vmatpush.bf16.msra.mxu0 %v4967
  %7010 = vmatpush.bf16.msra.mxu0 %v4963
  %7011 = vmatpush.bf16.msra.mxu0 %v4959
  %7012 = vmatmul.bf16.gmra.mxu0 %v1140
  %v7013 = vpop.f32.mrf.mxu0
  %v7014 = vadd.f32 %v7001, %v7013
  %v7015 = vpop.f32.mrf.mxu0
  %7016 = vdwg.mxu0
  %7017 = vmatpush.bf16.msra.mxu0 %v5019
  %7018 = vmatpush.bf16.msra.mxu0 %v5015
  %7019 = vmatpush.bf16.msra.mxu0 %v5011
  %7020 = vmatpush.bf16.msra.mxu0 %v5007
  %7021 = vmatpush.bf16.msra.mxu0 %v5003
  %7022 = vmatpush.bf16.msra.mxu0 %v4999
  %7023 = vmatpush.bf16.msra.mxu0 %v4995
  %7024 = vmatpush.bf16.msra.mxu0 %v4991
  %7025 = vmatmul.bf16.gmra.mxu0 %v1141
  %v7026 = vpop.f32.mrf.mxu0
  %v7027 = vadd.f32 %v7014, %v7026
  %v7028 = vpop.f32.mrf.mxu0
  %7029 = vdwg.mxu0
  %7030 = vmatpush.bf16.msra.mxu0 %v5051
  %7031 = vmatpush.bf16.msra.mxu0 %v5047
  %7032 = vmatpush.bf16.msra.mxu0 %v5043
  %7033 = vmatpush.bf16.msra.mxu0 %v5039
  %7034 = vmatpush.bf16.msra.mxu0 %v5035
  %7035 = vmatpush.bf16.msra.mxu0 %v5031
  %7036 = vmatpush.bf16.msra.mxu0 %v5027
  %7037 = vmatpush.bf16.msra.mxu0 %v5023
  %7038 = vmatmul.bf16.gmra.mxu0 %v1142
  %v7039 = vpop.f32.mrf.mxu0
  %v7040 = vadd.f32 %v7027, %v7039
  %v7041 = vpop.f32.mrf.mxu0
  %7042 = vdwg.mxu0
  %7043 = vmatpush.bf16.msra.mxu0 %v5083
  %7044 = vmatpush.bf16.msra.mxu0 %v5079
  %7045 = vmatpush.bf16.msra.mxu0 %v5075
  %7046 = vmatpush.bf16.msra.mxu0 %v5071
  %7047 = vmatpush.bf16.msra.mxu0 %v5067
  %7048 = vmatpush.bf16.msra.mxu0 %v5063
  %7049 = vmatpush.bf16.msra.mxu0 %v5059
  %7050 = vmatpush.bf16.msra.mxu0 %v5055
  %7051 = vmatmul.bf16.gmra.mxu0 %v1143
  %v7052 = vpop.f32.mrf.mxu0
  %v7053 = vadd.f32 %v7040, %v7052
  %v7054 = vpop.f32.mrf.mxu0
  %7055 = vdwg.mxu0
  %7056 = vmatpush.bf16.msra.mxu0 %v5115
  %7057 = vmatpush.bf16.msra.mxu0 %v5111
  %7058 = vmatpush.bf16.msra.mxu0 %v5107
  %7059 = vmatpush.bf16.msra.mxu0 %v5103
  %7060 = vmatpush.bf16.msra.mxu0 %v5099
  %7061 = vmatpush.bf16.msra.mxu0 %v5095
  %7062 = vmatpush.bf16.msra.mxu0 %v5091
  %7063 = vmatpush.bf16.msra.mxu0 %v5087
  %7064 = vmatmul.bf16.gmra.mxu0 %v1144
  %v7065 = vpop.f32.mrf.mxu0
  %v7066 = vadd.f32 %v7053, %v7065
  %v7067 = vpop.f32.mrf.mxu0
  %7068 = vdwg.mxu0
  %7069 = vmatpush.bf16.msra.mxu0 %v5147
  %7070 = vmatpush.bf16.msra.mxu0 %v5143
  %7071 = vmatpush.bf16.msra.mxu0 %v5139
  %7072 = vmatpush.bf16.msra.mxu0 %v5135
  %7073 = vmatpush.bf16.msra.mxu0 %v5131
  %7074 = vmatpush.bf16.msra.mxu0 %v5127
  %7075 = vmatpush.bf16.msra.mxu0 %v5123
  %7076 = vmatpush.bf16.msra.mxu0 %v5119
  %7077 = vmatmul.bf16.gmra.mxu0 %v1145
  %v7078 = vpop.f32.mrf.mxu0
  %v7079 = vadd.f32 %v7066, %v7078
  %v7080 = vpop.f32.mrf.mxu0
  %7081 = vdwg.mxu0
  %7082 = vmatpush.bf16.msra.mxu0 %v5179
  %7083 = vmatpush.bf16.msra.mxu0 %v5175
  %7084 = vmatpush.bf16.msra.mxu0 %v5171
  %7085 = vmatpush.bf16.msra.mxu0 %v5167
  %7086 = vmatpush.bf16.msra.mxu0 %v5163
  %7087 = vmatpush.bf16.msra.mxu0 %v5159
  %7088 = vmatpush.bf16.msra.mxu0 %v5155
  %7089 = vmatpush.bf16.msra.mxu0 %v5151
  %7090 = vmatmul.bf16.gmra.mxu0 %v1146
  %v7091 = vpop.f32.mrf.mxu0
  %v7092 = vadd.f32 %v7079, %v7091
  %v7093 = vpop.f32.mrf.mxu0
  %7094 = vdwg.mxu0
  %7095 = vmatpush.bf16.msra.mxu0 %v5211
  %7096 = vmatpush.bf16.msra.mxu0 %v5207
  %7097 = vmatpush.bf16.msra.mxu0 %v5203
  %7098 = vmatpush.bf16.msra.mxu0 %v5199
  %7099 = vmatpush.bf16.msra.mxu0 %v5195
  %7100 = vmatpush.bf16.msra.mxu0 %v5191
  %7101 = vmatpush.bf16.msra.mxu0 %v5187
  %7102 = vmatpush.bf16.msra.mxu0 %v5183
  %7103 = vmatmul.bf16.gmra.mxu0 %v1147
  %v7104 = vpop.f32.mrf.mxu0
  %v7105 = vadd.f32 %v7092, %v7104
  %v7106 = vpop.f32.mrf.mxu0
  %7107 = vdwg.mxu0
  %7108 = vmatpush.bf16.msra.mxu0 %v5243
  %7109 = vmatpush.bf16.msra.mxu0 %v5239
  %7110 = vmatpush.bf16.msra.mxu0 %v5235
  %7111 = vmatpush.bf16.msra.mxu0 %v5231
  %7112 = vmatpush.bf16.msra.mxu0 %v5227
  %7113 = vmatpush.bf16.msra.mxu0 %v5223
  %7114 = vmatpush.bf16.msra.mxu0 %v5219
  %7115 = vmatpush.bf16.msra.mxu0 %v5215
  %7116 = vmatmul.bf16.gmra.mxu0 %v1148
  %v7117 = vpop.f32.mrf.mxu0
  %v7118 = vadd.f32 %v7105, %v7117
  %v7119 = vpop.f32.mrf.mxu0
  %7120 = vdwg.mxu0
  %7121 = vmatpush.bf16.msra.mxu0 %v5275
  %7122 = vmatpush.bf16.msra.mxu0 %v5271
  %7123 = vmatpush.bf16.msra.mxu0 %v5267
  %7124 = vmatpush.bf16.msra.mxu0 %v5263
  %7125 = vmatpush.bf16.msra.mxu0 %v5259
  %7126 = vmatpush.bf16.msra.mxu0 %v5255
  %7127 = vmatpush.bf16.msra.mxu0 %v5251
  %7128 = vmatpush.bf16.msra.mxu0 %v5247
  %7129 = vmatmul.bf16.gmra.mxu0 %v1149
  %v7130 = vpop.f32.mrf.mxu0
  %v7131 = vadd.f32 %v7118, %v7130
  %v7132 = vpop.f32.mrf.mxu0
  %7133 = vdwg.mxu0
  %7134 = vmatpush.bf16.msra.mxu0 %v4284
  %7135 = vmatpush.bf16.msra.mxu0 %v4280
  %7136 = vmatpush.bf16.msra.mxu0 %v4276
  %7137 = vmatpush.bf16.msra.mxu0 %v4272
  %7138 = vmatpush.bf16.msra.mxu0 %v4268
  %7139 = vmatpush.bf16.msra.mxu0 %v4264
  %7140 = vmatpush.bf16.msra.mxu0 %v4260
  %7141 = vmatpush.bf16.msra.mxu0 %v4256
  %7142 = vmatmul.bf16.gmra.mxu0 %v1118
  %v7143 = vpop.f32.mrf.mxu0
  %v7144 = vadd.f32 %v1064, %v7143
  %v7145 = vpop.f32.mrf.mxu0
  %7146 = vdwg.mxu0
  %7147 = vmatpush.bf16.msra.mxu0 %v4316
  %7148 = vmatpush.bf16.msra.mxu0 %v4312
  %7149 = vmatpush.bf16.msra.mxu0 %v4308
  %7150 = vmatpush.bf16.msra.mxu0 %v4304
  %7151 = vmatpush.bf16.msra.mxu0 %v4300
  %7152 = vmatpush.bf16.msra.mxu0 %v4296
  %7153 = vmatpush.bf16.msra.mxu0 %v4292
  %7154 = vmatpush.bf16.msra.mxu0 %v4288
  %7155 = vmatmul.bf16.gmra.mxu0 %v1119
  %v7156 = vpop.f32.mrf.mxu0
  %v7157 = vadd.f32 %v7144, %v7156
  %v7158 = vpop.f32.mrf.mxu0
  %7159 = vdwg.mxu0
  %7160 = vmatpush.bf16.msra.mxu0 %v4348
  %7161 = vmatpush.bf16.msra.mxu0 %v4344
  %7162 = vmatpush.bf16.msra.mxu0 %v4340
  %7163 = vmatpush.bf16.msra.mxu0 %v4336
  %7164 = vmatpush.bf16.msra.mxu0 %v4332
  %7165 = vmatpush.bf16.msra.mxu0 %v4328
  %7166 = vmatpush.bf16.msra.mxu0 %v4324
  %7167 = vmatpush.bf16.msra.mxu0 %v4320
  %7168 = vmatmul.bf16.gmra.mxu0 %v1120
  %v7169 = vpop.f32.mrf.mxu0
  %v7170 = vadd.f32 %v7157, %v7169
  %v7171 = vpop.f32.mrf.mxu0
  %7172 = vdwg.mxu0
  %7173 = vmatpush.bf16.msra.mxu0 %v4380
  %7174 = vmatpush.bf16.msra.mxu0 %v4376
  %7175 = vmatpush.bf16.msra.mxu0 %v4372
  %7176 = vmatpush.bf16.msra.mxu0 %v4368
  %7177 = vmatpush.bf16.msra.mxu0 %v4364
  %7178 = vmatpush.bf16.msra.mxu0 %v4360
  %7179 = vmatpush.bf16.msra.mxu0 %v4356
  %7180 = vmatpush.bf16.msra.mxu0 %v4352
  %7181 = vmatmul.bf16.gmra.mxu0 %v1121
  %v7182 = vpop.f32.mrf.mxu0
  %v7183 = vadd.f32 %v7170, %v7182
  %v7184 = vpop.f32.mrf.mxu0
  %7185 = vdwg.mxu0
  %7186 = vmatpush.bf16.msra.mxu0 %v4412
  %7187 = vmatpush.bf16.msra.mxu0 %v4408
  %7188 = vmatpush.bf16.msra.mxu0 %v4404
  %7189 = vmatpush.bf16.msra.mxu0 %v4400
  %7190 = vmatpush.bf16.msra.mxu0 %v4396
  %7191 = vmatpush.bf16.msra.mxu0 %v4392
  %7192 = vmatpush.bf16.msra.mxu0 %v4388
  %7193 = vmatpush.bf16.msra.mxu0 %v4384
  %7194 = vmatmul.bf16.gmra.mxu0 %v1122
  %v7195 = vpop.f32.mrf.mxu0
  %v7196 = vadd.f32 %v7183, %v7195
  %v7197 = vpop.f32.mrf.mxu0
  %7198 = vdwg.mxu0
  %7199 = vmatpush.bf16.msra.mxu0 %v4444
  %7200 = vmatpush.bf16.msra.mxu0 %v4440
  %7201 = vmatpush.bf16.msra.mxu0 %v4436
  %7202 = vmatpush.bf16.msra.mxu0 %v4432
  %7203 = vmatpush.bf16.msra.mxu0 %v4428
  %7204 = vmatpush.bf16.msra.mxu0 %v4424
  %7205 = vmatpush.bf16.msra.mxu0 %v4420
  %7206 = vmatpush.bf16.msra.mxu0 %v4416
  %7207 = vmatmul.bf16.gmra.mxu0 %v1123
  %v7208 = vpop.f32.mrf.mxu0
  %v7209 = vadd.f32 %v7196, %v7208
  %v7210 = vpop.f32.mrf.mxu0
  %7211 = vdwg.mxu0
  %7212 = vmatpush.bf16.msra.mxu0 %v4476
  %7213 = vmatpush.bf16.msra.mxu0 %v4472
  %7214 = vmatpush.bf16.msra.mxu0 %v4468
  %7215 = vmatpush.bf16.msra.mxu0 %v4464
  %7216 = vmatpush.bf16.msra.mxu0 %v4460
  %7217 = vmatpush.bf16.msra.mxu0 %v4456
  %7218 = vmatpush.bf16.msra.mxu0 %v4452
  %7219 = vmatpush.bf16.msra.mxu0 %v4448
  %7220 = vmatmul.bf16.gmra.mxu0 %v1124
  %v7221 = vpop.f32.mrf.mxu0
  %v7222 = vadd.f32 %v7209, %v7221
  %v7223 = vpop.f32.mrf.mxu0
  %7224 = vdwg.mxu0
  %7225 = vmatpush.bf16.msra.mxu0 %v4508
  %7226 = vmatpush.bf16.msra.mxu0 %v4504
  %7227 = vmatpush.bf16.msra.mxu0 %v4500
  %7228 = vmatpush.bf16.msra.mxu0 %v4496
  %7229 = vmatpush.bf16.msra.mxu0 %v4492
  %7230 = vmatpush.bf16.msra.mxu0 %v4488
  %7231 = vmatpush.bf16.msra.mxu0 %v4484
  %7232 = vmatpush.bf16.msra.mxu0 %v4480
  %7233 = vmatmul.bf16.gmra.mxu0 %v1125
  %v7234 = vpop.f32.mrf.mxu0
  %v7235 = vadd.f32 %v7222, %v7234
  %v7236 = vpop.f32.mrf.mxu0
  %7237 = vdwg.mxu0
  %7238 = vmatpush.bf16.msra.mxu0 %v4540
  %7239 = vmatpush.bf16.msra.mxu0 %v4536
  %7240 = vmatpush.bf16.msra.mxu0 %v4532
  %7241 = vmatpush.bf16.msra.mxu0 %v4528
  %7242 = vmatpush.bf16.msra.mxu0 %v4524
  %7243 = vmatpush.bf16.msra.mxu0 %v4520
  %7244 = vmatpush.bf16.msra.mxu0 %v4516
  %7245 = vmatpush.bf16.msra.mxu0 %v4512
  %7246 = vmatmul.bf16.gmra.mxu0 %v1126
  %v7247 = vpop.f32.mrf.mxu0
  %v7248 = vadd.f32 %v7235, %v7247
  %v7249 = vpop.f32.mrf.mxu0
  %7250 = vdwg.mxu0
  %7251 = vmatpush.bf16.msra.mxu0 %v4572
  %7252 = vmatpush.bf16.msra.mxu0 %v4568
  %7253 = vmatpush.bf16.msra.mxu0 %v4564
  %7254 = vmatpush.bf16.msra.mxu0 %v4560
  %7255 = vmatpush.bf16.msra.mxu0 %v4556
  %7256 = vmatpush.bf16.msra.mxu0 %v4552
  %7257 = vmatpush.bf16.msra.mxu0 %v4548
  %7258 = vmatpush.bf16.msra.mxu0 %v4544
  %7259 = vmatmul.bf16.gmra.mxu0 %v1127
  %v7260 = vpop.f32.mrf.mxu0
  %v7261 = vadd.f32 %v7248, %v7260
  %v7262 = vpop.f32.mrf.mxu0
  %7263 = vdwg.mxu0
  %7264 = vmatpush.bf16.msra.mxu0 %v4604
  %7265 = vmatpush.bf16.msra.mxu0 %v4600
  %7266 = vmatpush.bf16.msra.mxu0 %v4596
  %7267 = vmatpush.bf16.msra.mxu0 %v4592
  %7268 = vmatpush.bf16.msra.mxu0 %v4588
  %7269 = vmatpush.bf16.msra.mxu0 %v4584
  %7270 = vmatpush.bf16.msra.mxu0 %v4580
  %7271 = vmatpush.bf16.msra.mxu0 %v4576
  %7272 = vmatmul.bf16.gmra.mxu0 %v1128
  %v7273 = vpop.f32.mrf.mxu0
  %v7274 = vadd.f32 %v7261, %v7273
  %v7275 = vpop.f32.mrf.mxu0
  %7276 = vdwg.mxu0
  %7277 = vmatpush.bf16.msra.mxu0 %v4636
  %7278 = vmatpush.bf16.msra.mxu0 %v4632
  %7279 = vmatpush.bf16.msra.mxu0 %v4628
  %7280 = vmatpush.bf16.msra.mxu0 %v4624
  %7281 = vmatpush.bf16.msra.mxu0 %v4620
  %7282 = vmatpush.bf16.msra.mxu0 %v4616
  %7283 = vmatpush.bf16.msra.mxu0 %v4612
  %7284 = vmatpush.bf16.msra.mxu0 %v4608
  %7285 = vmatmul.bf16.gmra.mxu0 %v1129
  %v7286 = vpop.f32.mrf.mxu0
  %v7287 = vadd.f32 %v7274, %v7286
  %v7288 = vpop.f32.mrf.mxu0
  %7289 = vdwg.mxu0
  %7290 = vmatpush.bf16.msra.mxu0 %v4668
  %7291 = vmatpush.bf16.msra.mxu0 %v4664
  %7292 = vmatpush.bf16.msra.mxu0 %v4660
  %7293 = vmatpush.bf16.msra.mxu0 %v4656
  %7294 = vmatpush.bf16.msra.mxu0 %v4652
  %7295 = vmatpush.bf16.msra.mxu0 %v4648
  %7296 = vmatpush.bf16.msra.mxu0 %v4644
  %7297 = vmatpush.bf16.msra.mxu0 %v4640
  %7298 = vmatmul.bf16.gmra.mxu0 %v1130
  %v7299 = vpop.f32.mrf.mxu0
  %v7300 = vadd.f32 %v7287, %v7299
  %v7301 = vpop.f32.mrf.mxu0
  %7302 = vdwg.mxu0
  %7303 = vmatpush.bf16.msra.mxu0 %v4700
  %7304 = vmatpush.bf16.msra.mxu0 %v4696
  %7305 = vmatpush.bf16.msra.mxu0 %v4692
  %7306 = vmatpush.bf16.msra.mxu0 %v4688
  %7307 = vmatpush.bf16.msra.mxu0 %v4684
  %7308 = vmatpush.bf16.msra.mxu0 %v4680
  %7309 = vmatpush.bf16.msra.mxu0 %v4676
  %7310 = vmatpush.bf16.msra.mxu0 %v4672
  %7311 = vmatmul.bf16.gmra.mxu0 %v1131
  %v7312 = vpop.f32.mrf.mxu0
  %v7313 = vadd.f32 %v7300, %v7312
  %v7314 = vpop.f32.mrf.mxu0
  %7315 = vdwg.mxu0
  %7316 = vmatpush.bf16.msra.mxu0 %v4732
  %7317 = vmatpush.bf16.msra.mxu0 %v4728
  %7318 = vmatpush.bf16.msra.mxu0 %v4724
  %7319 = vmatpush.bf16.msra.mxu0 %v4720
  %7320 = vmatpush.bf16.msra.mxu0 %v4716
  %7321 = vmatpush.bf16.msra.mxu0 %v4712
  %7322 = vmatpush.bf16.msra.mxu0 %v4708
  %7323 = vmatpush.bf16.msra.mxu0 %v4704
  %7324 = vmatmul.bf16.gmra.mxu0 %v1132
  %v7325 = vpop.f32.mrf.mxu0
  %v7326 = vadd.f32 %v7313, %v7325
  %v7327 = vpop.f32.mrf.mxu0
  %7328 = vdwg.mxu0
  %7329 = vmatpush.bf16.msra.mxu0 %v4764
  %7330 = vmatpush.bf16.msra.mxu0 %v4760
  %7331 = vmatpush.bf16.msra.mxu0 %v4756
  %7332 = vmatpush.bf16.msra.mxu0 %v4752
  %7333 = vmatpush.bf16.msra.mxu0 %v4748
  %7334 = vmatpush.bf16.msra.mxu0 %v4744
  %7335 = vmatpush.bf16.msra.mxu0 %v4740
  %7336 = vmatpush.bf16.msra.mxu0 %v4736
  %7337 = vmatmul.bf16.gmra.mxu0 %v1133
  %v7338 = vpop.f32.mrf.mxu0
  %v7339 = vadd.f32 %v7326, %v7338
  %v7340 = vpop.f32.mrf.mxu0
  %7341 = vdwg.mxu0
  %7342 = vmatpush.bf16.msra.mxu0 %v4796
  %7343 = vmatpush.bf16.msra.mxu0 %v4792
  %7344 = vmatpush.bf16.msra.mxu0 %v4788
  %7345 = vmatpush.bf16.msra.mxu0 %v4784
  %7346 = vmatpush.bf16.msra.mxu0 %v4780
  %7347 = vmatpush.bf16.msra.mxu0 %v4776
  %7348 = vmatpush.bf16.msra.mxu0 %v4772
  %7349 = vmatpush.bf16.msra.mxu0 %v4768
  %7350 = vmatmul.bf16.gmra.mxu0 %v1134
  %v7351 = vpop.f32.mrf.mxu0
  %v7352 = vadd.f32 %v7339, %v7351
  %v7353 = vpop.f32.mrf.mxu0
  %7354 = vdwg.mxu0
  %7355 = vmatpush.bf16.msra.mxu0 %v4828
  %7356 = vmatpush.bf16.msra.mxu0 %v4824
  %7357 = vmatpush.bf16.msra.mxu0 %v4820
  %7358 = vmatpush.bf16.msra.mxu0 %v4816
  %7359 = vmatpush.bf16.msra.mxu0 %v4812
  %7360 = vmatpush.bf16.msra.mxu0 %v4808
  %7361 = vmatpush.bf16.msra.mxu0 %v4804
  %7362 = vmatpush.bf16.msra.mxu0 %v4800
  %7363 = vmatmul.bf16.gmra.mxu0 %v1135
  %v7364 = vpop.f32.mrf.mxu0
  %v7365 = vadd.f32 %v7352, %v7364
  %v7366 = vpop.f32.mrf.mxu0
  %7367 = vdwg.mxu0
  %7368 = vmatpush.bf16.msra.mxu0 %v4860
  %7369 = vmatpush.bf16.msra.mxu0 %v4856
  %7370 = vmatpush.bf16.msra.mxu0 %v4852
  %7371 = vmatpush.bf16.msra.mxu0 %v4848
  %7372 = vmatpush.bf16.msra.mxu0 %v4844
  %7373 = vmatpush.bf16.msra.mxu0 %v4840
  %7374 = vmatpush.bf16.msra.mxu0 %v4836
  %7375 = vmatpush.bf16.msra.mxu0 %v4832
  %7376 = vmatmul.bf16.gmra.mxu0 %v1136
  %v7377 = vpop.f32.mrf.mxu0
  %v7378 = vadd.f32 %v7365, %v7377
  %v7379 = vpop.f32.mrf.mxu0
  %7380 = vdwg.mxu0
  %7381 = vmatpush.bf16.msra.mxu0 %v4892
  %7382 = vmatpush.bf16.msra.mxu0 %v4888
  %7383 = vmatpush.bf16.msra.mxu0 %v4884
  %7384 = vmatpush.bf16.msra.mxu0 %v4880
  %7385 = vmatpush.bf16.msra.mxu0 %v4876
  %7386 = vmatpush.bf16.msra.mxu0 %v4872
  %7387 = vmatpush.bf16.msra.mxu0 %v4868
  %7388 = vmatpush.bf16.msra.mxu0 %v4864
  %7389 = vmatmul.bf16.gmra.mxu0 %v1137
  %v7390 = vpop.f32.mrf.mxu0
  %v7391 = vadd.f32 %v7378, %v7390
  %v7392 = vpop.f32.mrf.mxu0
  %7393 = vdwg.mxu0
  %7394 = vmatpush.bf16.msra.mxu0 %v4924
  %7395 = vmatpush.bf16.msra.mxu0 %v4920
  %7396 = vmatpush.bf16.msra.mxu0 %v4916
  %7397 = vmatpush.bf16.msra.mxu0 %v4912
  %7398 = vmatpush.bf16.msra.mxu0 %v4908
  %7399 = vmatpush.bf16.msra.mxu0 %v4904
  %7400 = vmatpush.bf16.msra.mxu0 %v4900
  %7401 = vmatpush.bf16.msra.mxu0 %v4896
  %7402 = vmatmul.bf16.gmra.mxu0 %v1138
  %v7403 = vpop.f32.mrf.mxu0
  %v7404 = vadd.f32 %v7391, %v7403
  %v7405 = vpop.f32.mrf.mxu0
  %7406 = vdwg.mxu0
  %7407 = vmatpush.bf16.msra.mxu0 %v4956
  %7408 = vmatpush.bf16.msra.mxu0 %v4952
  %7409 = vmatpush.bf16.msra.mxu0 %v4948
  %7410 = vmatpush.bf16.msra.mxu0 %v4944
  %7411 = vmatpush.bf16.msra.mxu0 %v4940
  %7412 = vmatpush.bf16.msra.mxu0 %v4936
  %7413 = vmatpush.bf16.msra.mxu0 %v4932
  %7414 = vmatpush.bf16.msra.mxu0 %v4928
  %7415 = vmatmul.bf16.gmra.mxu0 %v1139
  %v7416 = vpop.f32.mrf.mxu0
  %v7417 = vadd.f32 %v7404, %v7416
  %v7418 = vpop.f32.mrf.mxu0
  %7419 = vdwg.mxu0
  %7420 = vmatpush.bf16.msra.mxu0 %v4988
  %7421 = vmatpush.bf16.msra.mxu0 %v4984
  %7422 = vmatpush.bf16.msra.mxu0 %v4980
  %7423 = vmatpush.bf16.msra.mxu0 %v4976
  %7424 = vmatpush.bf16.msra.mxu0 %v4972
  %7425 = vmatpush.bf16.msra.mxu0 %v4968
  %7426 = vmatpush.bf16.msra.mxu0 %v4964
  %7427 = vmatpush.bf16.msra.mxu0 %v4960
  %7428 = vmatmul.bf16.gmra.mxu0 %v1140
  %v7429 = vpop.f32.mrf.mxu0
  %v7430 = vadd.f32 %v7417, %v7429
  %v7431 = vpop.f32.mrf.mxu0
  %7432 = vdwg.mxu0
  %7433 = vmatpush.bf16.msra.mxu0 %v5020
  %7434 = vmatpush.bf16.msra.mxu0 %v5016
  %7435 = vmatpush.bf16.msra.mxu0 %v5012
  %7436 = vmatpush.bf16.msra.mxu0 %v5008
  %7437 = vmatpush.bf16.msra.mxu0 %v5004
  %7438 = vmatpush.bf16.msra.mxu0 %v5000
  %7439 = vmatpush.bf16.msra.mxu0 %v4996
  %7440 = vmatpush.bf16.msra.mxu0 %v4992
  %7441 = vmatmul.bf16.gmra.mxu0 %v1141
  %v7442 = vpop.f32.mrf.mxu0
  %v7443 = vadd.f32 %v7430, %v7442
  %v7444 = vpop.f32.mrf.mxu0
  %7445 = vdwg.mxu0
  %7446 = vmatpush.bf16.msra.mxu0 %v5052
  %7447 = vmatpush.bf16.msra.mxu0 %v5048
  %7448 = vmatpush.bf16.msra.mxu0 %v5044
  %7449 = vmatpush.bf16.msra.mxu0 %v5040
  %7450 = vmatpush.bf16.msra.mxu0 %v5036
  %7451 = vmatpush.bf16.msra.mxu0 %v5032
  %7452 = vmatpush.bf16.msra.mxu0 %v5028
  %7453 = vmatpush.bf16.msra.mxu0 %v5024
  %7454 = vmatmul.bf16.gmra.mxu0 %v1142
  %v7455 = vpop.f32.mrf.mxu0
  %v7456 = vadd.f32 %v7443, %v7455
  %v7457 = vpop.f32.mrf.mxu0
  %7458 = vdwg.mxu0
  %7459 = vmatpush.bf16.msra.mxu0 %v5084
  %7460 = vmatpush.bf16.msra.mxu0 %v5080
  %7461 = vmatpush.bf16.msra.mxu0 %v5076
  %7462 = vmatpush.bf16.msra.mxu0 %v5072
  %7463 = vmatpush.bf16.msra.mxu0 %v5068
  %7464 = vmatpush.bf16.msra.mxu0 %v5064
  %7465 = vmatpush.bf16.msra.mxu0 %v5060
  %7466 = vmatpush.bf16.msra.mxu0 %v5056
  %7467 = vmatmul.bf16.gmra.mxu0 %v1143
  %v7468 = vpop.f32.mrf.mxu0
  %v7469 = vadd.f32 %v7456, %v7468
  %v7470 = vpop.f32.mrf.mxu0
  %7471 = vdwg.mxu0
  %7472 = vmatpush.bf16.msra.mxu0 %v5116
  %7473 = vmatpush.bf16.msra.mxu0 %v5112
  %7474 = vmatpush.bf16.msra.mxu0 %v5108
  %7475 = vmatpush.bf16.msra.mxu0 %v5104
  %7476 = vmatpush.bf16.msra.mxu0 %v5100
  %7477 = vmatpush.bf16.msra.mxu0 %v5096
  %7478 = vmatpush.bf16.msra.mxu0 %v5092
  %7479 = vmatpush.bf16.msra.mxu0 %v5088
  %7480 = vmatmul.bf16.gmra.mxu0 %v1144
  %v7481 = vpop.f32.mrf.mxu0
  %v7482 = vadd.f32 %v7469, %v7481
  %v7483 = vpop.f32.mrf.mxu0
  %7484 = vdwg.mxu0
  %7485 = vmatpush.bf16.msra.mxu0 %v5148
  %7486 = vmatpush.bf16.msra.mxu0 %v5144
  %7487 = vmatpush.bf16.msra.mxu0 %v5140
  %7488 = vmatpush.bf16.msra.mxu0 %v5136
  %7489 = vmatpush.bf16.msra.mxu0 %v5132
  %7490 = vmatpush.bf16.msra.mxu0 %v5128
  %7491 = vmatpush.bf16.msra.mxu0 %v5124
  %7492 = vmatpush.bf16.msra.mxu0 %v5120
  %7493 = vmatmul.bf16.gmra.mxu0 %v1145
  %v7494 = vpop.f32.mrf.mxu0
  %v7495 = vadd.f32 %v7482, %v7494
  %v7496 = vpop.f32.mrf.mxu0
  %7497 = vdwg.mxu0
  %7498 = vmatpush.bf16.msra.mxu0 %v5180
  %7499 = vmatpush.bf16.msra.mxu0 %v5176
  %7500 = vmatpush.bf16.msra.mxu0 %v5172
  %7501 = vmatpush.bf16.msra.mxu0 %v5168
  %7502 = vmatpush.bf16.msra.mxu0 %v5164
  %7503 = vmatpush.bf16.msra.mxu0 %v5160
  %7504 = vmatpush.bf16.msra.mxu0 %v5156
  %7505 = vmatpush.bf16.msra.mxu0 %v5152
  %7506 = vmatmul.bf16.gmra.mxu0 %v1146
  %v7507 = vpop.f32.mrf.mxu0
  %v7508 = vadd.f32 %v7495, %v7507
  %v7509 = vpop.f32.mrf.mxu0
  %7510 = vdwg.mxu0
  %7511 = vmatpush.bf16.msra.mxu0 %v5212
  %7512 = vmatpush.bf16.msra.mxu0 %v5208
  %7513 = vmatpush.bf16.msra.mxu0 %v5204
  %7514 = vmatpush.bf16.msra.mxu0 %v5200
  %7515 = vmatpush.bf16.msra.mxu0 %v5196
  %7516 = vmatpush.bf16.msra.mxu0 %v5192
  %7517 = vmatpush.bf16.msra.mxu0 %v5188
  %7518 = vmatpush.bf16.msra.mxu0 %v5184
  %7519 = vmatmul.bf16.gmra.mxu0 %v1147
  %v7520 = vpop.f32.mrf.mxu0
  %v7521 = vadd.f32 %v7508, %v7520
  %v7522 = vpop.f32.mrf.mxu0
  %7523 = vdwg.mxu0
  %7524 = vmatpush.bf16.msra.mxu0 %v5244
  %7525 = vmatpush.bf16.msra.mxu0 %v5240
  %7526 = vmatpush.bf16.msra.mxu0 %v5236
  %7527 = vmatpush.bf16.msra.mxu0 %v5232
  %7528 = vmatpush.bf16.msra.mxu0 %v5228
  %7529 = vmatpush.bf16.msra.mxu0 %v5224
  %7530 = vmatpush.bf16.msra.mxu0 %v5220
  %7531 = vmatpush.bf16.msra.mxu0 %v5216
  %7532 = vmatmul.bf16.gmra.mxu0 %v1148
  %v7533 = vpop.f32.mrf.mxu0
  %v7534 = vadd.f32 %v7521, %v7533
  %v7535 = vpop.f32.mrf.mxu0
  %7536 = vdwg.mxu0
  %7537 = vmatpush.bf16.msra.mxu0 %v5276
  %7538 = vmatpush.bf16.msra.mxu0 %v5272
  %7539 = vmatpush.bf16.msra.mxu0 %v5268
  %7540 = vmatpush.bf16.msra.mxu0 %v5264
  %7541 = vmatpush.bf16.msra.mxu0 %v5260
  %7542 = vmatpush.bf16.msra.mxu0 %v5256
  %7543 = vmatpush.bf16.msra.mxu0 %v5252
  %7544 = vmatpush.bf16.msra.mxu0 %v5248
  %7545 = vmatmul.bf16.gmra.mxu0 %v1149
  %v7546 = vpop.f32.mrf.mxu0
  %v7547 = vadd.f32 %v7534, %v7546
  %v7548 = vpop.f32.mrf.mxu0
  %7549 = vdwg.mxu0
  %7550 = vmatpush.bf16.msra.mxu0 %v4285
  %7551 = vmatpush.bf16.msra.mxu0 %v4281
  %7552 = vmatpush.bf16.msra.mxu0 %v4277
  %7553 = vmatpush.bf16.msra.mxu0 %v4273
  %7554 = vmatpush.bf16.msra.mxu0 %v4269
  %7555 = vmatpush.bf16.msra.mxu0 %v4265
  %7556 = vmatpush.bf16.msra.mxu0 %v4261
  %7557 = vmatpush.bf16.msra.mxu0 %v4257
  %7558 = vmatmul.bf16.gmra.mxu0 %v1118
  %v7559 = vpop.f32.mrf.mxu0
  %v7560 = vadd.f32 %v1065, %v7559
  %v7561 = vpop.f32.mrf.mxu0
  %7562 = vdwg.mxu0
  %7563 = vmatpush.bf16.msra.mxu0 %v4317
  %7564 = vmatpush.bf16.msra.mxu0 %v4313
  %7565 = vmatpush.bf16.msra.mxu0 %v4309
  %7566 = vmatpush.bf16.msra.mxu0 %v4305
  %7567 = vmatpush.bf16.msra.mxu0 %v4301
  %7568 = vmatpush.bf16.msra.mxu0 %v4297
  %7569 = vmatpush.bf16.msra.mxu0 %v4293
  %7570 = vmatpush.bf16.msra.mxu0 %v4289
  %7571 = vmatmul.bf16.gmra.mxu0 %v1119
  %v7572 = vpop.f32.mrf.mxu0
  %v7573 = vadd.f32 %v7560, %v7572
  %v7574 = vpop.f32.mrf.mxu0
  %7575 = vdwg.mxu0
  %7576 = vmatpush.bf16.msra.mxu0 %v4349
  %7577 = vmatpush.bf16.msra.mxu0 %v4345
  %7578 = vmatpush.bf16.msra.mxu0 %v4341
  %7579 = vmatpush.bf16.msra.mxu0 %v4337
  %7580 = vmatpush.bf16.msra.mxu0 %v4333
  %7581 = vmatpush.bf16.msra.mxu0 %v4329
  %7582 = vmatpush.bf16.msra.mxu0 %v4325
  %7583 = vmatpush.bf16.msra.mxu0 %v4321
  %7584 = vmatmul.bf16.gmra.mxu0 %v1120
  %v7585 = vpop.f32.mrf.mxu0
  %v7586 = vadd.f32 %v7573, %v7585
  %v7587 = vpop.f32.mrf.mxu0
  %7588 = vdwg.mxu0
  %7589 = vmatpush.bf16.msra.mxu0 %v4381
  %7590 = vmatpush.bf16.msra.mxu0 %v4377
  %7591 = vmatpush.bf16.msra.mxu0 %v4373
  %7592 = vmatpush.bf16.msra.mxu0 %v4369
  %7593 = vmatpush.bf16.msra.mxu0 %v4365
  %7594 = vmatpush.bf16.msra.mxu0 %v4361
  %7595 = vmatpush.bf16.msra.mxu0 %v4357
  %7596 = vmatpush.bf16.msra.mxu0 %v4353
  %7597 = vmatmul.bf16.gmra.mxu0 %v1121
  %v7598 = vpop.f32.mrf.mxu0
  %v7599 = vadd.f32 %v7586, %v7598
  %v7600 = vpop.f32.mrf.mxu0
  %7601 = vdwg.mxu0
  %7602 = vmatpush.bf16.msra.mxu0 %v4413
  %7603 = vmatpush.bf16.msra.mxu0 %v4409
  %7604 = vmatpush.bf16.msra.mxu0 %v4405
  %7605 = vmatpush.bf16.msra.mxu0 %v4401
  %7606 = vmatpush.bf16.msra.mxu0 %v4397
  %7607 = vmatpush.bf16.msra.mxu0 %v4393
  %7608 = vmatpush.bf16.msra.mxu0 %v4389
  %7609 = vmatpush.bf16.msra.mxu0 %v4385
  %7610 = vmatmul.bf16.gmra.mxu0 %v1122
  %v7611 = vpop.f32.mrf.mxu0
  %v7612 = vadd.f32 %v7599, %v7611
  %v7613 = vpop.f32.mrf.mxu0
  %7614 = vdwg.mxu0
  %7615 = vmatpush.bf16.msra.mxu0 %v4445
  %7616 = vmatpush.bf16.msra.mxu0 %v4441
  %7617 = vmatpush.bf16.msra.mxu0 %v4437
  %7618 = vmatpush.bf16.msra.mxu0 %v4433
  %7619 = vmatpush.bf16.msra.mxu0 %v4429
  %7620 = vmatpush.bf16.msra.mxu0 %v4425
  %7621 = vmatpush.bf16.msra.mxu0 %v4421
  %7622 = vmatpush.bf16.msra.mxu0 %v4417
  %7623 = vmatmul.bf16.gmra.mxu0 %v1123
  %v7624 = vpop.f32.mrf.mxu0
  %v7625 = vadd.f32 %v7612, %v7624
  %v7626 = vpop.f32.mrf.mxu0
  %7627 = vdwg.mxu0
  %7628 = vmatpush.bf16.msra.mxu0 %v4477
  %7629 = vmatpush.bf16.msra.mxu0 %v4473
  %7630 = vmatpush.bf16.msra.mxu0 %v4469
  %7631 = vmatpush.bf16.msra.mxu0 %v4465
  %7632 = vmatpush.bf16.msra.mxu0 %v4461
  %7633 = vmatpush.bf16.msra.mxu0 %v4457
  %7634 = vmatpush.bf16.msra.mxu0 %v4453
  %7635 = vmatpush.bf16.msra.mxu0 %v4449
  %7636 = vmatmul.bf16.gmra.mxu0 %v1124
  %v7637 = vpop.f32.mrf.mxu0
  %v7638 = vadd.f32 %v7625, %v7637
  %v7639 = vpop.f32.mrf.mxu0
  %7640 = vdwg.mxu0
  %7641 = vmatpush.bf16.msra.mxu0 %v4509
  %7642 = vmatpush.bf16.msra.mxu0 %v4505
  %7643 = vmatpush.bf16.msra.mxu0 %v4501
  %7644 = vmatpush.bf16.msra.mxu0 %v4497
  %7645 = vmatpush.bf16.msra.mxu0 %v4493
  %7646 = vmatpush.bf16.msra.mxu0 %v4489
  %7647 = vmatpush.bf16.msra.mxu0 %v4485
  %7648 = vmatpush.bf16.msra.mxu0 %v4481
  %7649 = vmatmul.bf16.gmra.mxu0 %v1125
  %v7650 = vpop.f32.mrf.mxu0
  %v7651 = vadd.f32 %v7638, %v7650
  %v7652 = vpop.f32.mrf.mxu0
  %7653 = vdwg.mxu0
  %7654 = vmatpush.bf16.msra.mxu0 %v4541
  %7655 = vmatpush.bf16.msra.mxu0 %v4537
  %7656 = vmatpush.bf16.msra.mxu0 %v4533
  %7657 = vmatpush.bf16.msra.mxu0 %v4529
  %7658 = vmatpush.bf16.msra.mxu0 %v4525
  %7659 = vmatpush.bf16.msra.mxu0 %v4521
  %7660 = vmatpush.bf16.msra.mxu0 %v4517
  %7661 = vmatpush.bf16.msra.mxu0 %v4513
  %7662 = vmatmul.bf16.gmra.mxu0 %v1126
  %v7663 = vpop.f32.mrf.mxu0
  %v7664 = vadd.f32 %v7651, %v7663
  %v7665 = vpop.f32.mrf.mxu0
  %7666 = vdwg.mxu0
  %7667 = vmatpush.bf16.msra.mxu0 %v4573
  %7668 = vmatpush.bf16.msra.mxu0 %v4569
  %7669 = vmatpush.bf16.msra.mxu0 %v4565
  %7670 = vmatpush.bf16.msra.mxu0 %v4561
  %7671 = vmatpush.bf16.msra.mxu0 %v4557
  %7672 = vmatpush.bf16.msra.mxu0 %v4553
  %7673 = vmatpush.bf16.msra.mxu0 %v4549
  %7674 = vmatpush.bf16.msra.mxu0 %v4545
  %7675 = vmatmul.bf16.gmra.mxu0 %v1127
  %v7676 = vpop.f32.mrf.mxu0
  %v7677 = vadd.f32 %v7664, %v7676
  %v7678 = vpop.f32.mrf.mxu0
  %7679 = vdwg.mxu0
  %7680 = vmatpush.bf16.msra.mxu0 %v4605
  %7681 = vmatpush.bf16.msra.mxu0 %v4601
  %7682 = vmatpush.bf16.msra.mxu0 %v4597
  %7683 = vmatpush.bf16.msra.mxu0 %v4593
  %7684 = vmatpush.bf16.msra.mxu0 %v4589
  %7685 = vmatpush.bf16.msra.mxu0 %v4585
  %7686 = vmatpush.bf16.msra.mxu0 %v4581
  %7687 = vmatpush.bf16.msra.mxu0 %v4577
  %7688 = vmatmul.bf16.gmra.mxu0 %v1128
  %v7689 = vpop.f32.mrf.mxu0
  %v7690 = vadd.f32 %v7677, %v7689
  %v7691 = vpop.f32.mrf.mxu0
  %7692 = vdwg.mxu0
  %7693 = vmatpush.bf16.msra.mxu0 %v4637
  %7694 = vmatpush.bf16.msra.mxu0 %v4633
  %7695 = vmatpush.bf16.msra.mxu0 %v4629
  %7696 = vmatpush.bf16.msra.mxu0 %v4625
  %7697 = vmatpush.bf16.msra.mxu0 %v4621
  %7698 = vmatpush.bf16.msra.mxu0 %v4617
  %7699 = vmatpush.bf16.msra.mxu0 %v4613
  %7700 = vmatpush.bf16.msra.mxu0 %v4609
  %7701 = vmatmul.bf16.gmra.mxu0 %v1129
  %v7702 = vpop.f32.mrf.mxu0
  %v7703 = vadd.f32 %v7690, %v7702
  %v7704 = vpop.f32.mrf.mxu0
  %7705 = vdwg.mxu0
  %7706 = vmatpush.bf16.msra.mxu0 %v4669
  %7707 = vmatpush.bf16.msra.mxu0 %v4665
  %7708 = vmatpush.bf16.msra.mxu0 %v4661
  %7709 = vmatpush.bf16.msra.mxu0 %v4657
  %7710 = vmatpush.bf16.msra.mxu0 %v4653
  %7711 = vmatpush.bf16.msra.mxu0 %v4649
  %7712 = vmatpush.bf16.msra.mxu0 %v4645
  %7713 = vmatpush.bf16.msra.mxu0 %v4641
  %7714 = vmatmul.bf16.gmra.mxu0 %v1130
  %v7715 = vpop.f32.mrf.mxu0
  %v7716 = vadd.f32 %v7703, %v7715
  %v7717 = vpop.f32.mrf.mxu0
  %7718 = vdwg.mxu0
  %7719 = vmatpush.bf16.msra.mxu0 %v4701
  %7720 = vmatpush.bf16.msra.mxu0 %v4697
  %7721 = vmatpush.bf16.msra.mxu0 %v4693
  %7722 = vmatpush.bf16.msra.mxu0 %v4689
  %7723 = vmatpush.bf16.msra.mxu0 %v4685
  %7724 = vmatpush.bf16.msra.mxu0 %v4681
  %7725 = vmatpush.bf16.msra.mxu0 %v4677
  %7726 = vmatpush.bf16.msra.mxu0 %v4673
  %7727 = vmatmul.bf16.gmra.mxu0 %v1131
  %v7728 = vpop.f32.mrf.mxu0
  %v7729 = vadd.f32 %v7716, %v7728
  %v7730 = vpop.f32.mrf.mxu0
  %7731 = vdwg.mxu0
  %7732 = vmatpush.bf16.msra.mxu0 %v4733
  %7733 = vmatpush.bf16.msra.mxu0 %v4729
  %7734 = vmatpush.bf16.msra.mxu0 %v4725
  %7735 = vmatpush.bf16.msra.mxu0 %v4721
  %7736 = vmatpush.bf16.msra.mxu0 %v4717
  %7737 = vmatpush.bf16.msra.mxu0 %v4713
  %7738 = vmatpush.bf16.msra.mxu0 %v4709
  %7739 = vmatpush.bf16.msra.mxu0 %v4705
  %7740 = vmatmul.bf16.gmra.mxu0 %v1132
  %v7741 = vpop.f32.mrf.mxu0
  %v7742 = vadd.f32 %v7729, %v7741
  %v7743 = vpop.f32.mrf.mxu0
  %7744 = vdwg.mxu0
  %7745 = vmatpush.bf16.msra.mxu0 %v4765
  %7746 = vmatpush.bf16.msra.mxu0 %v4761
  %7747 = vmatpush.bf16.msra.mxu0 %v4757
  %7748 = vmatpush.bf16.msra.mxu0 %v4753
  %7749 = vmatpush.bf16.msra.mxu0 %v4749
  %7750 = vmatpush.bf16.msra.mxu0 %v4745
  %7751 = vmatpush.bf16.msra.mxu0 %v4741
  %7752 = vmatpush.bf16.msra.mxu0 %v4737
  %7753 = vmatmul.bf16.gmra.mxu0 %v1133
  %v7754 = vpop.f32.mrf.mxu0
  %v7755 = vadd.f32 %v7742, %v7754
  %v7756 = vpop.f32.mrf.mxu0
  %7757 = vdwg.mxu0
  %7758 = vmatpush.bf16.msra.mxu0 %v4797
  %7759 = vmatpush.bf16.msra.mxu0 %v4793
  %7760 = vmatpush.bf16.msra.mxu0 %v4789
  %7761 = vmatpush.bf16.msra.mxu0 %v4785
  %7762 = vmatpush.bf16.msra.mxu0 %v4781
  %7763 = vmatpush.bf16.msra.mxu0 %v4777
  %7764 = vmatpush.bf16.msra.mxu0 %v4773
  %7765 = vmatpush.bf16.msra.mxu0 %v4769
  %7766 = vmatmul.bf16.gmra.mxu0 %v1134
  %v7767 = vpop.f32.mrf.mxu0
  %v7768 = vadd.f32 %v7755, %v7767
  %v7769 = vpop.f32.mrf.mxu0
  %7770 = vdwg.mxu0
  %7771 = vmatpush.bf16.msra.mxu0 %v4829
  %7772 = vmatpush.bf16.msra.mxu0 %v4825
  %7773 = vmatpush.bf16.msra.mxu0 %v4821
  %7774 = vmatpush.bf16.msra.mxu0 %v4817
  %7775 = vmatpush.bf16.msra.mxu0 %v4813
  %7776 = vmatpush.bf16.msra.mxu0 %v4809
  %7777 = vmatpush.bf16.msra.mxu0 %v4805
  %7778 = vmatpush.bf16.msra.mxu0 %v4801
  %7779 = vmatmul.bf16.gmra.mxu0 %v1135
  %v7780 = vpop.f32.mrf.mxu0
  %v7781 = vadd.f32 %v7768, %v7780
  %v7782 = vpop.f32.mrf.mxu0
  %7783 = vdwg.mxu0
  %7784 = vmatpush.bf16.msra.mxu0 %v4861
  %7785 = vmatpush.bf16.msra.mxu0 %v4857
  %7786 = vmatpush.bf16.msra.mxu0 %v4853
  %7787 = vmatpush.bf16.msra.mxu0 %v4849
  %7788 = vmatpush.bf16.msra.mxu0 %v4845
  %7789 = vmatpush.bf16.msra.mxu0 %v4841
  %7790 = vmatpush.bf16.msra.mxu0 %v4837
  %7791 = vmatpush.bf16.msra.mxu0 %v4833
  %7792 = vmatmul.bf16.gmra.mxu0 %v1136
  %v7793 = vpop.f32.mrf.mxu0
  %v7794 = vadd.f32 %v7781, %v7793
  %v7795 = vpop.f32.mrf.mxu0
  %7796 = vdwg.mxu0
  %7797 = vmatpush.bf16.msra.mxu0 %v4893
  %7798 = vmatpush.bf16.msra.mxu0 %v4889
  %7799 = vmatpush.bf16.msra.mxu0 %v4885
  %7800 = vmatpush.bf16.msra.mxu0 %v4881
  %7801 = vmatpush.bf16.msra.mxu0 %v4877
  %7802 = vmatpush.bf16.msra.mxu0 %v4873
  %7803 = vmatpush.bf16.msra.mxu0 %v4869
  %7804 = vmatpush.bf16.msra.mxu0 %v4865
  %7805 = vmatmul.bf16.gmra.mxu0 %v1137
  %v7806 = vpop.f32.mrf.mxu0
  %v7807 = vadd.f32 %v7794, %v7806
  %v7808 = vpop.f32.mrf.mxu0
  %7809 = vdwg.mxu0
  %7810 = vmatpush.bf16.msra.mxu0 %v4925
  %7811 = vmatpush.bf16.msra.mxu0 %v4921
  %7812 = vmatpush.bf16.msra.mxu0 %v4917
  %7813 = vmatpush.bf16.msra.mxu0 %v4913
  %7814 = vmatpush.bf16.msra.mxu0 %v4909
  %7815 = vmatpush.bf16.msra.mxu0 %v4905
  %7816 = vmatpush.bf16.msra.mxu0 %v4901
  %7817 = vmatpush.bf16.msra.mxu0 %v4897
  %7818 = vmatmul.bf16.gmra.mxu0 %v1138
  %v7819 = vpop.f32.mrf.mxu0
  %v7820 = vadd.f32 %v7807, %v7819
  %v7821 = vpop.f32.mrf.mxu0
  %7822 = vdwg.mxu0
  %7823 = vmatpush.bf16.msra.mxu0 %v4957
  %7824 = vmatpush.bf16.msra.mxu0 %v4953
  %7825 = vmatpush.bf16.msra.mxu0 %v4949
  %7826 = vmatpush.bf16.msra.mxu0 %v4945
  %7827 = vmatpush.bf16.msra.mxu0 %v4941
  %7828 = vmatpush.bf16.msra.mxu0 %v4937
  %7829 = vmatpush.bf16.msra.mxu0 %v4933
  %7830 = vmatpush.bf16.msra.mxu0 %v4929
  %7831 = vmatmul.bf16.gmra.mxu0 %v1139
  %v7832 = vpop.f32.mrf.mxu0
  %v7833 = vadd.f32 %v7820, %v7832
  %v7834 = vpop.f32.mrf.mxu0
  %7835 = vdwg.mxu0
  %7836 = vmatpush.bf16.msra.mxu0 %v4989
  %7837 = vmatpush.bf16.msra.mxu0 %v4985
  %7838 = vmatpush.bf16.msra.mxu0 %v4981
  %7839 = vmatpush.bf16.msra.mxu0 %v4977
  %7840 = vmatpush.bf16.msra.mxu0 %v4973
  %7841 = vmatpush.bf16.msra.mxu0 %v4969
  %7842 = vmatpush.bf16.msra.mxu0 %v4965
  %7843 = vmatpush.bf16.msra.mxu0 %v4961
  %7844 = vmatmul.bf16.gmra.mxu0 %v1140
  %v7845 = vpop.f32.mrf.mxu0
  %v7846 = vadd.f32 %v7833, %v7845
  %v7847 = vpop.f32.mrf.mxu0
  %7848 = vdwg.mxu0
  %7849 = vmatpush.bf16.msra.mxu0 %v5021
  %7850 = vmatpush.bf16.msra.mxu0 %v5017
  %7851 = vmatpush.bf16.msra.mxu0 %v5013
  %7852 = vmatpush.bf16.msra.mxu0 %v5009
  %7853 = vmatpush.bf16.msra.mxu0 %v5005
  %7854 = vmatpush.bf16.msra.mxu0 %v5001
  %7855 = vmatpush.bf16.msra.mxu0 %v4997
  %7856 = vmatpush.bf16.msra.mxu0 %v4993
  %7857 = vmatmul.bf16.gmra.mxu0 %v1141
  %v7858 = vpop.f32.mrf.mxu0
  %v7859 = vadd.f32 %v7846, %v7858
  %v7860 = vpop.f32.mrf.mxu0
  %7861 = vdwg.mxu0
  %7862 = vmatpush.bf16.msra.mxu0 %v5053
  %7863 = vmatpush.bf16.msra.mxu0 %v5049
  %7864 = vmatpush.bf16.msra.mxu0 %v5045
  %7865 = vmatpush.bf16.msra.mxu0 %v5041
  %7866 = vmatpush.bf16.msra.mxu0 %v5037
  %7867 = vmatpush.bf16.msra.mxu0 %v5033
  %7868 = vmatpush.bf16.msra.mxu0 %v5029
  %7869 = vmatpush.bf16.msra.mxu0 %v5025
  %7870 = vmatmul.bf16.gmra.mxu0 %v1142
  %v7871 = vpop.f32.mrf.mxu0
  %v7872 = vadd.f32 %v7859, %v7871
  %v7873 = vpop.f32.mrf.mxu0
  %7874 = vdwg.mxu0
  %7875 = vmatpush.bf16.msra.mxu0 %v5085
  %7876 = vmatpush.bf16.msra.mxu0 %v5081
  %7877 = vmatpush.bf16.msra.mxu0 %v5077
  %7878 = vmatpush.bf16.msra.mxu0 %v5073
  %7879 = vmatpush.bf16.msra.mxu0 %v5069
  %7880 = vmatpush.bf16.msra.mxu0 %v5065
  %7881 = vmatpush.bf16.msra.mxu0 %v5061
  %7882 = vmatpush.bf16.msra.mxu0 %v5057
  %7883 = vmatmul.bf16.gmra.mxu0 %v1143
  %v7884 = vpop.f32.mrf.mxu0
  %v7885 = vadd.f32 %v7872, %v7884
  %v7886 = vpop.f32.mrf.mxu0
  %7887 = vdwg.mxu0
  %7888 = vmatpush.bf16.msra.mxu0 %v5117
  %7889 = vmatpush.bf16.msra.mxu0 %v5113
  %7890 = vmatpush.bf16.msra.mxu0 %v5109
  %7891 = vmatpush.bf16.msra.mxu0 %v5105
  %7892 = vmatpush.bf16.msra.mxu0 %v5101
  %7893 = vmatpush.bf16.msra.mxu0 %v5097
  %7894 = vmatpush.bf16.msra.mxu0 %v5093
  %7895 = vmatpush.bf16.msra.mxu0 %v5089
  %7896 = vmatmul.bf16.gmra.mxu0 %v1144
  %v7897 = vpop.f32.mrf.mxu0
  %v7898 = vadd.f32 %v7885, %v7897
  %v7899 = vpop.f32.mrf.mxu0
  %7900 = vdwg.mxu0
  %7901 = vmatpush.bf16.msra.mxu0 %v5149
  %7902 = vmatpush.bf16.msra.mxu0 %v5145
  %7903 = vmatpush.bf16.msra.mxu0 %v5141
  %7904 = vmatpush.bf16.msra.mxu0 %v5137
  %7905 = vmatpush.bf16.msra.mxu0 %v5133
  %7906 = vmatpush.bf16.msra.mxu0 %v5129
  %7907 = vmatpush.bf16.msra.mxu0 %v5125
  %7908 = vmatpush.bf16.msra.mxu0 %v5121
  %7909 = vmatmul.bf16.gmra.mxu0 %v1145
  %v7910 = vpop.f32.mrf.mxu0
  %v7911 = vadd.f32 %v7898, %v7910
  %v7912 = vpop.f32.mrf.mxu0
  %7913 = vdwg.mxu0
  %7914 = vmatpush.bf16.msra.mxu0 %v5181
  %7915 = vmatpush.bf16.msra.mxu0 %v5177
  %7916 = vmatpush.bf16.msra.mxu0 %v5173
  %7917 = vmatpush.bf16.msra.mxu0 %v5169
  %7918 = vmatpush.bf16.msra.mxu0 %v5165
  %7919 = vmatpush.bf16.msra.mxu0 %v5161
  %7920 = vmatpush.bf16.msra.mxu0 %v5157
  %7921 = vmatpush.bf16.msra.mxu0 %v5153
  %7922 = vmatmul.bf16.gmra.mxu0 %v1146
  %v7923 = vpop.f32.mrf.mxu0
  %v7924 = vadd.f32 %v7911, %v7923
  %v7925 = vpop.f32.mrf.mxu0
  %7926 = vdwg.mxu0
  %7927 = vmatpush.bf16.msra.mxu0 %v5213
  %7928 = vmatpush.bf16.msra.mxu0 %v5209
  %7929 = vmatpush.bf16.msra.mxu0 %v5205
  %7930 = vmatpush.bf16.msra.mxu0 %v5201
  %7931 = vmatpush.bf16.msra.mxu0 %v5197
  %7932 = vmatpush.bf16.msra.mxu0 %v5193
  %7933 = vmatpush.bf16.msra.mxu0 %v5189
  %7934 = vmatpush.bf16.msra.mxu0 %v5185
  %7935 = vmatmul.bf16.gmra.mxu0 %v1147
  %v7936 = vpop.f32.mrf.mxu0
  %v7937 = vadd.f32 %v7924, %v7936
  %v7938 = vpop.f32.mrf.mxu0
  %7939 = vdwg.mxu0
  %7940 = vmatpush.bf16.msra.mxu0 %v5245
  %7941 = vmatpush.bf16.msra.mxu0 %v5241
  %7942 = vmatpush.bf16.msra.mxu0 %v5237
  %7943 = vmatpush.bf16.msra.mxu0 %v5233
  %7944 = vmatpush.bf16.msra.mxu0 %v5229
  %7945 = vmatpush.bf16.msra.mxu0 %v5225
  %7946 = vmatpush.bf16.msra.mxu0 %v5221
  %7947 = vmatpush.bf16.msra.mxu0 %v5217
  %7948 = vmatmul.bf16.gmra.mxu0 %v1148
  %v7949 = vpop.f32.mrf.mxu0
  %v7950 = vadd.f32 %v7937, %v7949
  %v7951 = vpop.f32.mrf.mxu0
  %7952 = vdwg.mxu0
  %7953 = vmatpush.bf16.msra.mxu0 %v5277
  %7954 = vmatpush.bf16.msra.mxu0 %v5273
  %7955 = vmatpush.bf16.msra.mxu0 %v5269
  %7956 = vmatpush.bf16.msra.mxu0 %v5265
  %7957 = vmatpush.bf16.msra.mxu0 %v5261
  %7958 = vmatpush.bf16.msra.mxu0 %v5257
  %7959 = vmatpush.bf16.msra.mxu0 %v5253
  %7960 = vmatpush.bf16.msra.mxu0 %v5249
  %7961 = vmatmul.bf16.gmra.mxu0 %v1149
  %v7962 = vpop.f32.mrf.mxu0
  %v7963 = vadd.f32 %v7950, %v7962
  %v7964 = vpop.f32.mrf.mxu0
  %7965 = vdwg.mxu0
  %v7966 = vmax.f32 %v6715, 0.0
  %v7967 = vmax.f32 %v7131, 0.0
  %v7968 = vmax.f32 %v7547, 0.0
  %v7969 = vmax.f32 %v7963, 0.0
  %v7970 = vld [vmem:[%s3] sm:$0xff]
  %v7971 = vld [vmem:[%s3 + $0x8] sm:$0xff]
  %v7972 = vld [vmem:[%s3 + $0x10] sm:$0xff]
  %v7973 = vld [vmem:[%s3 + $0x18] sm:$0xff]
  %v7974 = vld [vmem:[%s3 + $0x20] sm:$0xff]
  %v7975 = vld [vmem:[%s3 + $0x28] sm:$0xff]
  %v7976 = vld [vmem:[%s3 + $0x30] sm:$0xff]
  %v7977 = vld [vmem:[%s3 + $0x38] sm:$0xff]
  %v7978 = vld [vmem:[%s3 + $0x40] sm:$0xff]
  %v7979 = vld [vmem:[%s3 + $0x48] sm:$0xff]
  %v7980 = vld [vmem:[%s3 + $0x50] sm:$0xff]
  %v7981 = vld [vmem:[%s3 + $0x58] sm:$0xff]
  %v7982 = vld [vmem:[%s3 + $0x60] sm:$0xff]
  %v7983 = vld [vmem:[%s3 + $0x68] sm:$0xff]
  %v7984 = vld [vmem:[%s3 + $0x70] sm:$0xff]
  %v7985 = vld [vmem:[%s3 + $0x78] sm:$0xff]
  %v7986 = vld [vmem:[%s3 + $0x80] sm:$0xff]
  %v7987 = vld [vmem:[%s3 + $0x88] sm:$0xff]
  %v7988 = vld [vmem:[%s3 + $0x90] sm:$0xff]
  %v7989 = vld [vmem:[%s3 + $0x98] sm:$0xff]
  %v7990 = vld [vmem:[%s3 + $0xa0] sm:$0xff]
  %v7991 = vld [vmem:[%s3 + $0xa8] sm:$0xff]
  %v7992 = vld [vmem:[%s3 + $0xb0] sm:$0xff]
  %v7993 = vld [vmem:[%s3 + $0xb8] sm:$0xff]
  %v7994 = vld [vmem:[%s3 + $0xc0] sm:$0xff]
  %v7995 = vld [vmem:[%s3 + $0xc8] sm:$0xff]
  %v7996 = vld [vmem:[%s3 + $0xd0] sm:$0xff]
  %v7997 = vld [vmem:[%s3 + $0xd8] sm:$0xff]
  %v7998 = vld [vmem:[%s3 + $0xe0] sm:$0xff]
  %v7999 = vld [vmem:[%s3 + $0xe8] sm:$0xff]
  %v8000 = vld [vmem:[%s3 + $0xf0] sm:$0xff]
  %v8001 = vld [vmem:[%s3 + $0xf8] sm:$0xff]
  %v8002 = vld [vmem:[%s3 + $0x100] sm:$0xff]
  %v8003 = vld [vmem:[%s3 + $0x108] sm:$0xff]
  %v8004 = vld [vmem:[%s3 + $0x110] sm:$0xff]
  %v8005 = vld [vmem:[%s3 + $0x118] sm:$0xff]
  %v8006 = vld [vmem:[%s3 + $0x120] sm:$0xff]
  %v8007 = vld [vmem:[%s3 + $0x128] sm:$0xff]
  %v8008 = vld [vmem:[%s3 + $0x130] sm:$0xff]
  %v8009 = vld [vmem:[%s3 + $0x138] sm:$0xff]
  %v8010 = vld [vmem:[%s3 + $0x140] sm:$0xff]
  %v8011 = vld [vmem:[%s3 + $0x148] sm:$0xff]
  %v8012 = vld [vmem:[%s3 + $0x150] sm:$0xff]
  %v8013 = vld [vmem:[%s3 + $0x158] sm:$0xff]
  %v8014 = vld [vmem:[%s3 + $0x160] sm:$0xff]
  %v8015 = vld [vmem:[%s3 + $0x168] sm:$0xff]
  %v8016 = vld [vmem:[%s3 + $0x170] sm:$0xff]
  %v8017 = vld [vmem:[%s3 + $0x178] sm:$0xff]
  %v8018 = vld [vmem:[%s3 + $0x180] sm:$0xff]
  %v8019 = vld [vmem:[%s3 + $0x188] sm:$0xff]
  %v8020 = vld [vmem:[%s3 + $0x190] sm:$0xff]
  %v8021 = vld [vmem:[%s3 + $0x198] sm:$0xff]
  %v8022 = vld [vmem:[%s3 + $0x1a0] sm:$0xff]
  %v8023 = vld [vmem:[%s3 + $0x1a8] sm:$0xff]
  %v8024 = vld [vmem:[%s3 + $0x1b0] sm:$0xff]
  %v8025 = vld [vmem:[%s3 + $0x1b8] sm:$0xff]
  %v8026 = vld [vmem:[%s3 + $0x1c0] sm:$0xff]
  %v8027 = vld [vmem:[%s3 + $0x1c8] sm:$0xff]
  %v8028 = vld [vmem:[%s3 + $0x1d0] sm:$0xff]
  %v8029 = vld [vmem:[%s3 + $0x1d8] sm:$0xff]
  %v8030 = vld [vmem:[%s3 + $0x1e0] sm:$0xff]
  %v8031 = vld [vmem:[%s3 + $0x1e8] sm:$0xff]
  %v8032 = vld [vmem:[%s3 + $0x1f0] sm:$0xff]
  %v8033 = vld [vmem:[%s3 + $0x1f8] sm:$0xff]
  %v8034 = vld [vmem:[%s4] sm:$0x1]
  %v8036 = vperm.slane %v8034, 0
  %8038 = vmatpush.msra.mxu0 %v7985
  %8039 = vmatpush.msra.mxu0 %v7984
  %8040 = vmatpush.msra.mxu0 %v7983
  %8041 = vmatpush.msra.mxu0 %v7982
  %8042 = vmatpush.msra.mxu0 %v7981
  %8043 = vmatpush.msra.mxu0 %v7980
  %8044 = vmatpush.msra.mxu0 %v7979
  %8045 = vmatpush.msra.mxu0 %v7978
  %8046 = vmatpush.msra.mxu0 %v7977
  %8047 = vmatpush.msra.mxu0 %v7976
  %8048 = vmatpush.msra.mxu0 %v7975
  %8049 = vmatpush.msra.mxu0 %v7974
  %8050 = vmatpush.msra.mxu0 %v7973
  %8051 = vmatpush.msra.mxu0 %v7972
  %8052 = vmatpush.msra.mxu0 %v7971
  %8053 = vmatpush.msra.mxu0 %v7970
  %8054 = vmatmul.f32.gmra.mxu0 %v7966
  %v8055 = vpop.f32.mrf.mxu0
  %v8056 = vadd.f32 %v8036, %v8055
  %8057 = vdwg.mxu0
  %8058 = vmatpush.msra.mxu0 %v8001
  %8059 = vmatpush.msra.mxu0 %v8000
  %8060 = vmatpush.msra.mxu0 %v7999
  %8061 = vmatpush.msra.mxu0 %v7998
  %8062 = vmatpush.msra.mxu0 %v7997
  %8063 = vmatpush.msra.mxu0 %v7996
  %8064 = vmatpush.msra.mxu0 %v7995
  %8065 = vmatpush.msra.mxu0 %v7994
  %8066 = vmatpush.msra.mxu0 %v7993
  %8067 = vmatpush.msra.mxu0 %v7992
  %8068 = vmatpush.msra.mxu0 %v7991
  %8069 = vmatpush.msra.mxu0 %v7990
  %8070 = vmatpush.msra.mxu0 %v7989
  %8071 = vmatpush.msra.mxu0 %v7988
  %8072 = vmatpush.msra.mxu0 %v7987
  %8073 = vmatpush.msra.mxu0 %v7986
  %8074 = vmatmul.f32.gmra.mxu0 %v7967
  %v8075 = vpop.f32.mrf.mxu0
  %v8076 = vadd.f32 %v8056, %v8075
  %8077 = vdwg.mxu0
  %8078 = vmatpush.msra.mxu0 %v8017
  %8079 = vmatpush.msra.mxu0 %v8016
  %8080 = vmatpush.msra.mxu0 %v8015
  %8081 = vmatpush.msra.mxu0 %v8014
  %8082 = vmatpush.msra.mxu0 %v8013
  %8083 = vmatpush.msra.mxu0 %v8012
  %8084 = vmatpush.msra.mxu0 %v8011
  %8085 = vmatpush.msra.mxu0 %v8010
  %8086 = vmatpush.msra.mxu0 %v8009
  %8087 = vmatpush.msra.mxu0 %v8008
  %8088 = vmatpush.msra.mxu0 %v8007
  %8089 = vmatpush.msra.mxu0 %v8006
  %8090 = vmatpush.msra.mxu0 %v8005
  %8091 = vmatpush.msra.mxu0 %v8004
  %8092 = vmatpush.msra.mxu0 %v8003
  %8093 = vmatpush.msra.mxu0 %v8002
  %8094 = vmatmul.f32.gmra.mxu0 %v7968
  %v8095 = vpop.f32.mrf.mxu0
  %v8096 = vadd.f32 %v8076, %v8095
  %8097 = vdwg.mxu0
  %8098 = vmatpush.msra.mxu0 %v8033
  %8099 = vmatpush.msra.mxu0 %v8032
  %8100 = vmatpush.msra.mxu0 %v8031
  %8101 = vmatpush.msra.mxu0 %v8030
  %8102 = vmatpush.msra.mxu0 %v8029
  %8103 = vmatpush.msra.mxu0 %v8028
  %8104 = vmatpush.msra.mxu0 %v8027
  %8105 = vmatpush.msra.mxu0 %v8026
  %8106 = vmatpush.msra.mxu0 %v8025
  %8107 = vmatpush.msra.mxu0 %v8024
  %8108 = vmatpush.msra.mxu0 %v8023
  %8109 = vmatpush.msra.mxu0 %v8022
  %8110 = vmatpush.msra.mxu0 %v8021
  %8111 = vmatpush.msra.mxu0 %v8020
  %8112 = vmatpush.msra.mxu0 %v8019
  %8113 = vmatpush.msra.mxu0 %v8018
  %8114 = vmatmul.f32.gmra.mxu0 %v7969
  %v8115 = vpop.f32.mrf.mxu0
  %v8116 = vadd.f32 %v8096, %v8115
  %8117 = vdwg.mxu0
  %8118 = vst [vmem:[%s5] sm:$0xff] %v8116
  // Predicated region
  $region22: #{net_forward.5} parent=0 // pred_check
    _
  $region23: #{net_forward.5} parent=0 // pred_check_branch
    %8120 = sbr.rel (0) target = $region25
  $region24: #{net_forward.5} parent=0 // pred_region
    _
  $region25: #{net_forward.5} parent=0 // pred_fallthru
    _
  // Predicated region
  $region26: #{net_forward.5} parent=0 // pred_check
    _
  $region27: #{net_forward.5} parent=0 // pred_check_branch
    %8122 = sbr.rel (0) target = $region29
  $region28: #{net_forward.5} parent=0 // pred_region
    _
  $region29: #{net_forward.5} parent=0 // pred_fallthru
    _

</llo_original>
